<compile_context>
chip_gen: v7x
topology: tpu7x:2x2x1
jax: 0.10.0
libtpu: 0.0.40
codegen_flags: <defaults>
</compile_context>

<pallas_src>
import functools

import jax
import jax.numpy as jnp
import numpy as np
from jax.experimental import pallas as pl
from jax.experimental.pallas import tpu as pltpu

EPS = 1e-5  # nn.InstanceNorm2d default (affine=False, biased variance)


def _residual_block_kernel(x_ref, w1_ref, w2_ref, out_ref,
                           pad_ref, patch_ref, *, n_tile, H, W, C):
    """Fused ReflPad+Conv3x3+IN+ReLU+ReflPad+Conv3x3+IN + residual for one
    group of `n_tile` batch elements.

    x_ref    : (n_tile, H, W, C)      f32   input block (also the residual)
    w*_ref   : (9*C, C)               bf16  conv weights, rows ordered (kh,kw,ci)
    out_ref  : (n_tile, H, W, C)      f32
    pad_ref  : (n_tile, H+2, W+2, C)  bf16  VMEM scratch (reflect-padded acts)
    patch_ref: (n_tile*H*W, 9*C)      bf16  VMEM scratch (im2col patches)
    """
    M = n_tile * H * W
    inv_hw = 1.0 / float(H * W)

    def reflect_pad(src_f32):
        # Single f32 -> bf16 cast per element while writing the padded copy.
        src = src_f32.astype(jnp.bfloat16)
        # interior
        pad_ref[:, 1:H + 1, 1:W + 1, :] = src
        # top/bottom rows (reflection excludes the edge, like ReflectionPad2d)
        pad_ref[:, 0:1, 1:W + 1, :] = src[:, 1:2, :, :]
        pad_ref[:, H + 1:H + 2, 1:W + 1, :] = src[:, H - 2:H - 1, :, :]
        # left/right columns (done after rows -> corners come out right)
        pad_ref[:, :, 0:1, :] = pad_ref[:, :, 2:3, :]
        pad_ref[:, :, W + 1:W + 2, :] = pad_ref[:, :, W - 1:W, :]

    def build_patches():
        # im2col: column block (kh*3+kw) holds pad[:, kh:kh+H, kw:kw+W, :]
        for kh in range(3):
            for kw in range(3):
                j = (kh * 3 + kw) * C
                tap = pad_ref[:, kh:kh + H, kw:kw + W, :]
                patch_ref[:, j:j + C] = tap.reshape(M, C)

    def conv_instance_norm(w_ref):
        # (M, 9C) x (9C, C) -> (M, C); bf16 operands, f32 accumulation.
        # Conv bias omitted: exactly cancelled by the mean subtraction below.
        acc = jnp.dot(patch_ref[...], w_ref[...],
                      preferred_element_type=jnp.float32)
        acc = acc.reshape(n_tile, H * W, C)
        # single-pass per-(sample, channel) statistics over H*W
        s = jnp.sum(acc, axis=1, keepdims=True)
        ss = jnp.sum(acc * acc, axis=1, keepdims=True)
        mean = s * inv_hw
        var = ss * inv_hw - mean * mean
        return (acc - mean) * jax.lax.rsqrt(var + EPS)

    x = x_ref[...].astype(jnp.float32)          # residual, stays in VMEM

    # stage 1: ReflPad -> Conv1 -> InstanceNorm -> ReLU
    reflect_pad(x)
    build_patches()
    y = jnp.maximum(conv_instance_norm(w1_ref), 0.0)

    # stage 2: ReflPad -> Conv2 -> InstanceNorm   (scratch buffers reused)
    reflect_pad(y.reshape(n_tile, H, W, C))
    build_patches()
    z = conv_instance_norm(w2_ref)

    out_ref[...] = (x + z.reshape(n_tile, H, W, C)).astype(out_ref.dtype)


def _pick_n_tile(N, H, W, target_m=256):
    """Largest divisor of N such that n*H*W <= max(target_m, H*W)."""
    hw = H * W
    best = 1
    for n in range(1, N + 1):
        if N % n == 0 and n * hw <= max(target_m, hw):
            best = n
    return best


def residual_block(x_nchw, w1_oihw, b1, w2_oihw, b2, *, n_tile=None):
    """Forward pass of the PyTorch ResidualBlock. Input/output are NCHW f32.

    b1/b2 are accepted for interface parity with nn.Conv2d but are not used:
    InstanceNorm2d(affine=False) cancels a per-channel constant bias exactly.
    """
    del b1, b2
    N, C, H, W = x_nchw.shape
    if n_tile is None:
        n_tile = _pick_n_tile(N, H, W)
    assert N % n_tile == 0 and H >= 2 and W >= 2

    x = jnp.transpose(x_nchw, (0, 2, 3, 1))  # NCHW -> NHWC (C on lanes)
    # OIHW -> HWIO -> (9C, C); rows ordered (kh, kw, ci) to match im2col.
    # bf16 weights: MXU-native; f32 accumulation happens in-kernel.
    w1 = jnp.transpose(w1_oihw, (2, 3, 1, 0)).reshape(9 * C, C).astype(jnp.bfloat16)
    w2 = jnp.transpose(w2_oihw, (2, 3, 1, 0)).reshape(9 * C, C).astype(jnp.bfloat16)

    kernel = functools.partial(_residual_block_kernel,
                               n_tile=n_tile, H=H, W=W, C=C)

    flops = 2 * 2 * N * H * W * 9 * C * C                    # two 3x3 convs
    bytes_accessed = (2 * N * H * W * C * 4                  # x in + out
                      + 2 * 9 * C * C * 2)                   # bf16 weights

    # TODO(synk): for real CycleGAN sizes (H=W>=64, C=512) add row-strip
    # spatial tiling with a 1-row halo (manual DMA from memory_space=pl.ANY)
    # so the im2col scratch stays under the 64 MiB v7x VMEM budget.
    out = pl.pallas_call(
        kernel,
        out_shape=jax.ShapeDtypeStruct((N, H, W, C), x.dtype),
        grid=(N // n_tile,),
        in_specs=[
            pl.BlockSpec((n_tile, H, W, C), lambda n: (n, 0, 0, 0)),  # x
            pl.BlockSpec((9 * C, C), lambda n: (0, 0)),               # w1
            pl.BlockSpec((9 * C, C), lambda n: (0, 0)),               # w2
        ],
        out_specs=pl.BlockSpec((n_tile, H, W, C), lambda n: (n, 0, 0, 0)),
        scratch_shapes=[
            pltpu.VMEM((n_tile, H + 2, W + 2, C), jnp.bfloat16),  # padded acts
            pltpu.VMEM((n_tile * H * W, 9 * C), jnp.bfloat16),    # im2col
        ],
        compiler_params=pltpu.CompilerParams(
            dimension_semantics=("parallel",)),
        cost_estimate=pl.CostEstimate(flops=flops, transcendentals=0,
                                      bytes_accessed=bytes_accessed),
    )(x, w1, w2)
    return jnp.transpose(out, (0, 3, 1, 2))  # NHWC -> NCHW


def _reference(x_nchw, w1_oihw, b1, w2_oihw, b2):
    """Pure-JAX reference mirroring the PyTorch module (bias included).  Conv
    operands are cast to bf16 (f32 accumulation) to match the kernel's MXU
    compute dtype."""
    def conv(h, w, b):
        hp = jnp.pad(h, ((0, 0), (0, 0), (1, 1), (1, 1)), mode="reflect")
        y = jax.lax.conv_general_dilated(
            hp.astype(jnp.bfloat16), w.astype(jnp.bfloat16), (1, 1), "VALID",
            dimension_numbers=("NCHW", "OIHW", "NCHW"),
            preferred_element_type=jnp.float32)
        return y + b[None, :, None, None]

    def inorm(y):
        m = y.mean(axis=(2, 3), keepdims=True)
        v = ((y - m) ** 2).mean(axis=(2, 3), keepdims=True)
        return (y - m) / jnp.sqrt(v + EPS)

    h = jax.nn.relu(inorm(conv(x_nchw, w1_oihw, b1)))
    h = inorm(conv(h, w2_oihw, b2))
    return x_nchw + h


if __name__ == "__main__":
    # Small shapes consistent with the module's forward (cellSize scaled down).
    N, C, H, W = 2, 128, 16, 16

    key = jax.random.PRNGKey(0)
    kx, kw1, kb1, kw2, kb2 = jax.random.split(key, 5)

    x = jax.random.normal(kx, (N, C, H, W), jnp.float32)
    # Deterministic synthetic parameters (shapes from nn.Conv2d(C, C, 3)).
    scale = 1.0 / np.sqrt(C * 3 * 3)
    w1 = jax.random.uniform(kw1, (C, C, 3, 3), jnp.float32, -scale, scale)
    b1 = jax.random.uniform(kb1, (C,), jnp.float32, -scale, scale)
    w2 = jax.random.uniform(kw2, (C, C, 3, 3), jnp.float32, -scale, scale)
    b2 = jax.random.uniform(kb2, (C,), jnp.float32, -scale, scale)

    out = jax.block_until_ready(residual_block(x, w1, b1, w2, b2))

    ref = jax.block_until_ready(_reference(x, w1, b1, w2, b2))
    np.testing.assert_allclose(np.asarray(out), np.asarray(ref),
                               rtol=1e-2, atol=1e-2)

    print("KERNEL_OK")
</pallas_src>

<mosaic_0001>
module attributes {stable_mosaic.version = 11 : i64} {
  func.func @_residual_block_kernel(%arg0: i32, %arg1: memref<1x16x16x128xf32, #tpu.memory_space<vmem>>, %arg2: memref<1152x128xbf16, #tpu.memory_space<vmem>>, %arg3: memref<1152x128xbf16, #tpu.memory_space<vmem>>, %arg4: memref<1x16x16x128xf32, #tpu.memory_space<vmem>>, %arg5: memref<1x18x18x128xbf16, #tpu.memory_space<vmem>>, %arg6: memref<256x1152xbf16, #tpu.memory_space<vmem>>) attributes {dimension_semantics = [#tpu.dimension_semantics<parallel>], iteration_bounds = array<i64: 2>, scalar_prefetch = 0 : i64, scratch_operands = 2 : i64, tpu.core_type = #tpu.core_type<tc>, window_params = [{transform_indices = @transform_0, window_bounds = array<i64: 1, 16, 16, 128>}, {pipeline_mode = #tpu.pipeline_mode<synchronous>, transform_indices = @transform_1, window_bounds = array<i64: 1152, 128>}, {pipeline_mode = #tpu.pipeline_mode<synchronous>, transform_indices = @transform_2, window_bounds = array<i64: 1152, 128>}, {transform_indices = @transform_3, window_bounds = array<i64: 1, 16, 16, 128>}]} {
    %c0 = arith.constant 0 : index
    %c0_0 = arith.constant 0 : index
    %c0_1 = arith.constant 0 : index
    %c0_2 = arith.constant 0 : index
    %0 = vector.load %arg1[%c0, %c0_0, %c0_1, %c0_2] : memref<1x16x16x128xf32, #tpu.memory_space<vmem>>, vector<1x16x16x128xf32>
    %1 = arith.truncf %0 : vector<1x16x16x128xf32> to vector<1x16x16x128xbf16>
    %c0_3 = arith.constant 0 : index
    %c1 = arith.constant 1 : index
    %c1_4 = arith.constant 1 : index
    %c0_5 = arith.constant 0 : index
    %2 = vector.load %arg5[%c0_3, %c1, %c1_4, %c0_5] : memref<1x18x18x128xbf16, #tpu.memory_space<vmem>>, vector<1x16x16x128xbf16>
    tpu.vector_store %arg5[%c0_3, %c1, %c1_4, %c0_5], %1 {strides = array<i32>} : memref<1x18x18x128xbf16, #tpu.memory_space<vmem>>, vector<1x16x16x128xbf16>,
    %3 = vector.extract_strided_slice %1 {offsets = [0, 1, 0, 0], sizes = [1, 1, 16, 128], strides = [1, 1, 1, 1]} : vector<1x16x16x128xbf16> to vector<1x1x16x128xbf16>
    %c0_6 = arith.constant 0 : index
    %c0_7 = arith.constant 0 : index
    %c1_8 = arith.constant 1 : index
    %c0_9 = arith.constant 0 : index
    %4 = vector.load %arg5[%c0_6, %c0_7, %c1_8, %c0_9] : memref<1x18x18x128xbf16, #tpu.memory_space<vmem>>, vector<1x1x16x128xbf16>
    tpu.vector_store %arg5[%c0_6, %c0_7, %c1_8, %c0_9], %3 {strides = array<i32>} : memref<1x18x18x128xbf16, #tpu.memory_space<vmem>>, vector<1x1x16x128xbf16>,
    %5 = vector.extract_strided_slice %1 {offsets = [0, 14, 0, 0], sizes = [1, 1, 16, 128], strides = [1, 1, 1, 1]} : vector<1x16x16x128xbf16> to vector<1x1x16x128xbf16>
    %c0_10 = arith.constant 0 : index
    %c17 = arith.constant 17 : index
    %c1_11 = arith.constant 1 : index
    %c0_12 = arith.constant 0 : index
    %6 = vector.load %arg5[%c0_10, %c17, %c1_11, %c0_12] : memref<1x18x18x128xbf16, #tpu.memory_space<vmem>>, vector<1x1x16x128xbf16>
    tpu.vector_store %arg5[%c0_10, %c17, %c1_11, %c0_12], %5 {strides = array<i32>} : memref<1x18x18x128xbf16, #tpu.memory_space<vmem>>, vector<1x1x16x128xbf16>,
    %c0_13 = arith.constant 0 : index
    %c0_14 = arith.constant 0 : index
    %c2 = arith.constant 2 : index
    %c0_15 = arith.constant 0 : index
    %7 = vector.load %arg5[%c0_13, %c0_14, %c2, %c0_15] : memref<1x18x18x128xbf16, #tpu.memory_space<vmem>>, vector<1x18x1x128xbf16>
    %c0_16 = arith.constant 0 : index
    %c0_17 = arith.constant 0 : index
    %c0_18 = arith.constant 0 : index
    %c0_19 = arith.constant 0 : index
    %8 = vector.load %arg5[%c0_16, %c0_17, %c0_18, %c0_19] : memref<1x18x18x128xbf16, #tpu.memory_space<vmem>>, vector<1x18x1x128xbf16>
    tpu.vector_store %arg5[%c0_16, %c0_17, %c0_18, %c0_19], %7 {strides = array<i32>} : memref<1x18x18x128xbf16, #tpu.memory_space<vmem>>, vector<1x18x1x128xbf16>,
    %c0_20 = arith.constant 0 : index
    %c0_21 = arith.constant 0 : index
    %c15 = arith.constant 15 : index
    %c0_22 = arith.constant 0 : index
    %9 = vector.load %arg5[%c0_20, %c0_21, %c15, %c0_22] : memref<1x18x18x128xbf16, #tpu.memory_space<vmem>>, vector<1x18x1x128xbf16>
    %c0_23 = arith.constant 0 : index
    %c0_24 = arith.constant 0 : index
    %c17_25 = arith.constant 17 : index
    %c0_26 = arith.constant 0 : index
    %10 = vector.load %arg5[%c0_23, %c0_24, %c17_25, %c0_26] : memref<1x18x18x128xbf16, #tpu.memory_space<vmem>>, vector<1x18x1x128xbf16>
    tpu.vector_store %arg5[%c0_23, %c0_24, %c17_25, %c0_26], %9 {strides = array<i32>} : memref<1x18x18x128xbf16, #tpu.memory_space<vmem>>, vector<1x18x1x128xbf16>,
    %c0_27 = arith.constant 0 : index
    %c0_28 = arith.constant 0 : index
    %c0_29 = arith.constant 0 : index
    %c0_30 = arith.constant 0 : index
    %11 = vector.load %arg5[%c0_27, %c0_28, %c0_29, %c0_30] : memref<1x18x18x128xbf16, #tpu.memory_space<vmem>>, vector<1x16x16x128xbf16>
    %12 = vector.shape_cast %11 : vector<1x16x16x128xbf16> to vector<256x128xbf16>
    %c0_31 = arith.constant 0 : index
    %c0_32 = arith.constant 0 : index
    %13 = vector.load %arg6[%c0_31, %c0_32] : memref<256x1152xbf16, #tpu.memory_space<vmem>>, vector<256x128xbf16>
    tpu.vector_store %arg6[%c0_31, %c0_32], %12 {strides = array<i32>} : memref<256x1152xbf16, #tpu.memory_space<vmem>>, vector<256x128xbf16>,
    %c0_33 = arith.constant 0 : index
    %c0_34 = arith.constant 0 : index
    %c1_35 = arith.constant 1 : index
    %c0_36 = arith.constant 0 : index
    %14 = vector.load %arg5[%c0_33, %c0_34, %c1_35, %c0_36] : memref<1x18x18x128xbf16, #tpu.memory_space<vmem>>, vector<1x16x16x128xbf16>
    %15 = vector.shape_cast %14 : vector<1x16x16x128xbf16> to vector<256x128xbf16>
    %c0_37 = arith.constant 0 : index
    %c128 = arith.constant 128 : index
    %16 = vector.load %arg6[%c0_37, %c128] : memref<256x1152xbf16, #tpu.memory_space<vmem>>, vector<256x128xbf16>
    tpu.vector_store %arg6[%c0_37, %c128], %15 {strides = array<i32>} : memref<256x1152xbf16, #tpu.memory_space<vmem>>, vector<256x128xbf16>,
    %c0_38 = arith.constant 0 : index
    %c0_39 = arith.constant 0 : index
    %c2_40 = arith.constant 2 : index
    %c0_41 = arith.constant 0 : index
    %17 = vector.load %arg5[%c0_38, %c0_39, %c2_40, %c0_41] : memref<1x18x18x128xbf16, #tpu.memory_space<vmem>>, vector<1x16x16x128xbf16>
    %18 = vector.shape_cast %17 : vector<1x16x16x128xbf16> to vector<256x128xbf16>
    %c0_42 = arith.constant 0 : index
    %c256 = arith.constant 256 : index
    %19 = vector.load %arg6[%c0_42, %c256] : memref<256x1152xbf16, #tpu.memory_space<vmem>>, vector<256x128xbf16>
    tpu.vector_store %arg6[%c0_42, %c256], %18 {strides = array<i32>} : memref<256x1152xbf16, #tpu.memory_space<vmem>>, vector<256x128xbf16>,
    %c0_43 = arith.constant 0 : index
    %c1_44 = arith.constant 1 : index
    %c0_45 = arith.constant 0 : index
    %c0_46 = arith.constant 0 : index
    %20 = vector.load %arg5[%c0_43, %c1_44, %c0_45, %c0_46] : memref<1x18x18x128xbf16, #tpu.memory_space<vmem>>, vector<1x16x16x128xbf16>
    %21 = vector.shape_cast %20 : vector<1x16x16x128xbf16> to vector<256x128xbf16>
    %c0_47 = arith.constant 0 : index
    %c384 = arith.constant 384 : index
    %22 = vector.load %arg6[%c0_47, %c384] : memref<256x1152xbf16, #tpu.memory_space<vmem>>, vector<256x128xbf16>
    tpu.vector_store %arg6[%c0_47, %c384], %21 {strides = array<i32>} : memref<256x1152xbf16, #tpu.memory_space<vmem>>, vector<256x128xbf16>,
    %c0_48 = arith.constant 0 : index
    %c1_49 = arith.constant 1 : index
    %c1_50 = arith.constant 1 : index
    %c0_51 = arith.constant 0 : index
    %23 = vector.load %arg5[%c0_48, %c1_49, %c1_50, %c0_51] : memref<1x18x18x128xbf16, #tpu.memory_space<vmem>>, vector<1x16x16x128xbf16>
    %24 = vector.shape_cast %23 : vector<1x16x16x128xbf16> to vector<256x128xbf16>
    %c0_52 = arith.constant 0 : index
    %c512 = arith.constant 512 : index
    %25 = vector.load %arg6[%c0_52, %c512] : memref<256x1152xbf16, #tpu.memory_space<vmem>>, vector<256x128xbf16>
    tpu.vector_store %arg6[%c0_52, %c512], %24 {strides = array<i32>} : memref<256x1152xbf16, #tpu.memory_space<vmem>>, vector<256x128xbf16>,
    %c0_53 = arith.constant 0 : index
    %c1_54 = arith.constant 1 : index
    %c2_55 = arith.constant 2 : index
    %c0_56 = arith.constant 0 : index
    %26 = vector.load %arg5[%c0_53, %c1_54, %c2_55, %c0_56] : memref<1x18x18x128xbf16, #tpu.memory_space<vmem>>, vector<1x16x16x128xbf16>
    %27 = vector.shape_cast %26 : vector<1x16x16x128xbf16> to vector<256x128xbf16>
    %c0_57 = arith.constant 0 : index
    %c640 = arith.constant 640 : index
    %28 = vector.load %arg6[%c0_57, %c640] : memref<256x1152xbf16, #tpu.memory_space<vmem>>, vector<256x128xbf16>
    tpu.vector_store %arg6[%c0_57, %c640], %27 {strides = array<i32>} : memref<256x1152xbf16, #tpu.memory_space<vmem>>, vector<256x128xbf16>,
    %c0_58 = arith.constant 0 : index
    %c2_59 = arith.constant 2 : index
    %c0_60 = arith.constant 0 : index
    %c0_61 = arith.constant 0 : index
    %29 = vector.load %arg5[%c0_58, %c2_59, %c0_60, %c0_61] : memref<1x18x18x128xbf16, #tpu.memory_space<vmem>>, vector<1x16x16x128xbf16>
    %30 = vector.shape_cast %29 : vector<1x16x16x128xbf16> to vector<256x128xbf16>
    %c0_62 = arith.constant 0 : index
    %c768 = arith.constant 768 : index
    %31 = vector.load %arg6[%c0_62, %c768] : memref<256x1152xbf16, #tpu.memory_space<vmem>>, vector<256x128xbf16>
    tpu.vector_store %arg6[%c0_62, %c768], %30 {strides = array<i32>} : memref<256x1152xbf16, #tpu.memory_space<vmem>>, vector<256x128xbf16>,
    %c0_63 = arith.constant 0 : index
    %c2_64 = arith.constant 2 : index
    %c1_65 = arith.constant 1 : index
    %c0_66 = arith.constant 0 : index
    %32 = vector.load %arg5[%c0_63, %c2_64, %c1_65, %c0_66] : memref<1x18x18x128xbf16, #tpu.memory_space<vmem>>, vector<1x16x16x128xbf16>
    %33 = vector.shape_cast %32 : vector<1x16x16x128xbf16> to vector<256x128xbf16>
    %c0_67 = arith.constant 0 : index
    %c896 = arith.constant 896 : index
    %34 = vector.load %arg6[%c0_67, %c896] : memref<256x1152xbf16, #tpu.memory_space<vmem>>, vector<256x128xbf16>
    tpu.vector_store %arg6[%c0_67, %c896], %33 {strides = array<i32>} : memref<256x1152xbf16, #tpu.memory_space<vmem>>, vector<256x128xbf16>,
    %c0_68 = arith.constant 0 : index
    %c2_69 = arith.constant 2 : index
    %c2_70 = arith.constant 2 : index
    %c0_71 = arith.constant 0 : index
    %35 = vector.load %arg5[%c0_68, %c2_69, %c2_70, %c0_71] : memref<1x18x18x128xbf16, #tpu.memory_space<vmem>>, vector<1x16x16x128xbf16>
    %36 = vector.shape_cast %35 : vector<1x16x16x128xbf16> to vector<256x128xbf16>
    %c0_72 = arith.constant 0 : index
    %c1024 = arith.constant 1024 : index
    %37 = vector.load %arg6[%c0_72, %c1024] : memref<256x1152xbf16, #tpu.memory_space<vmem>>, vector<256x128xbf16>
    tpu.vector_store %arg6[%c0_72, %c1024], %36 {strides = array<i32>} : memref<256x1152xbf16, #tpu.memory_space<vmem>>, vector<256x128xbf16>,
    %c0_73 = arith.constant 0 : index
    %c0_74 = arith.constant 0 : index
    %38 = vector.load %arg6[%c0_73, %c0_74] : memref<256x1152xbf16, #tpu.memory_space<vmem>>, vector<256x1152xbf16>
    %c0_75 = arith.constant 0 : index
    %c0_76 = arith.constant 0 : index
    %39 = vector.load %arg2[%c0_75, %c0_76] : memref<1152x128xbf16, #tpu.memory_space<vmem>>, vector<1152x128xbf16>
    %cst = arith.constant dense<0.000000e+00> : vector<256x128xf32>
    %40 = tpu.matmul %38, %39, %cst {dimension_numbers = #tpu.dot_dimension_numbers<[1], [0], [0], [1], [0, 0, 1, 1], [], []>} : vector<256x1152xbf16>, vector<1152x128xbf16>, vector<256x128xf32> -> vector<256x128xf32>
    %41 = vector.shape_cast %40 : vector<256x128xf32> to vector<1x256x128xf32>
    %cst_77 = arith.constant dense<0.000000e+00> : vector<1x128xf32>
    %42 = vector.multi_reduction <add>, %41, %cst_77 [1] : vector<1x256x128xf32> to vector<1x128xf32>
    %43 = vector.shape_cast %42 : vector<1x128xf32> to vector<1x1x128xf32>
    %44 = arith.mulf %41, %41 : vector<1x256x128xf32>
    %cst_78 = arith.constant dense<0.000000e+00> : vector<1x128xf32>
    %45 = vector.multi_reduction <add>, %44, %cst_78 [1] : vector<1x256x128xf32> to vector<1x128xf32>
    %46 = vector.shape_cast %45 : vector<1x128xf32> to vector<1x1x128xf32>
    %cst_79 = arith.constant 3.906250e-03 : f32
    %47 = vector.broadcast %cst_79 : f32 to vector<1x1x128xf32>
    %48 = arith.mulf %43, %47 : vector<1x1x128xf32>
    %cst_80 = arith.constant 3.906250e-03 : f32
    %49 = vector.broadcast %cst_80 : f32 to vector<1x1x128xf32>
    %50 = arith.mulf %46, %49 : vector<1x1x128xf32>
    %51 = arith.mulf %48, %48 : vector<1x1x128xf32>
    %52 = arith.subf %50, %51 : vector<1x1x128xf32>
    %53 = vector.broadcast %48 : vector<1x1x128xf32> to vector<1x256x128xf32>
    %54 = arith.subf %41, %53 : vector<1x256x128xf32>
    %cst_81 = arith.constant 9.99999974E-6 : f32
    %55 = vector.broadcast %cst_81 : f32 to vector<1x1x128xf32>
    %56 = arith.addf %52, %55 : vector<1x1x128xf32>
    %57 = math.rsqrt %56 : vector<1x1x128xf32>
    %58 = vector.broadcast %57 : vector<1x1x128xf32> to vector<1x256x128xf32>
    %59 = arith.mulf %54, %58 : vector<1x256x128xf32>
    %cst_82 = arith.constant 0.000000e+00 : f32
    %60 = vector.broadcast %cst_82 : f32 to vector<1x256x128xf32>
    %61 = arith.maximumf %59, %60 : vector<1x256x128xf32>
    %62 = vector.shape_cast %61 : vector<1x256x128xf32> to vector<1x16x16x128xf32>
    %63 = arith.truncf %62 : vector<1x16x16x128xf32> to vector<1x16x16x128xbf16>
    %c0_83 = arith.constant 0 : index
    %c1_84 = arith.constant 1 : index
    %c1_85 = arith.constant 1 : index
    %c0_86 = arith.constant 0 : index
    %64 = vector.load %arg5[%c0_83, %c1_84, %c1_85, %c0_86] : memref<1x18x18x128xbf16, #tpu.memory_space<vmem>>, vector<1x16x16x128xbf16>
    tpu.vector_store %arg5[%c0_83, %c1_84, %c1_85, %c0_86], %63 {strides = array<i32>} : memref<1x18x18x128xbf16, #tpu.memory_space<vmem>>, vector<1x16x16x128xbf16>,
    %65 = vector.extract_strided_slice %63 {offsets = [0, 1, 0, 0], sizes = [1, 1, 16, 128], strides = [1, 1, 1, 1]} : vector<1x16x16x128xbf16> to vector<1x1x16x128xbf16>
    %c0_87 = arith.constant 0 : index
    %c0_88 = arith.constant 0 : index
    %c1_89 = arith.constant 1 : index
    %c0_90 = arith.constant 0 : index
    %66 = vector.load %arg5[%c0_87, %c0_88, %c1_89, %c0_90] : memref<1x18x18x128xbf16, #tpu.memory_space<vmem>>, vector<1x1x16x128xbf16>
    tpu.vector_store %arg5[%c0_87, %c0_88, %c1_89, %c0_90], %65 {strides = array<i32>} : memref<1x18x18x128xbf16, #tpu.memory_space<vmem>>, vector<1x1x16x128xbf16>,
    %67 = vector.extract_strided_slice %63 {offsets = [0, 14, 0, 0], sizes = [1, 1, 16, 128], strides = [1, 1, 1, 1]} : vector<1x16x16x128xbf16> to vector<1x1x16x128xbf16>
    %c0_91 = arith.constant 0 : index
    %c17_92 = arith.constant 17 : index
    %c1_93 = arith.constant 1 : index
    %c0_94 = arith.constant 0 : index
    %68 = vector.load %arg5[%c0_91, %c17_92, %c1_93, %c0_94] : memref<1x18x18x128xbf16, #tpu.memory_space<vmem>>, vector<1x1x16x128xbf16>
    tpu.vector_store %arg5[%c0_91, %c17_92, %c1_93, %c0_94], %67 {strides = array<i32>} : memref<1x18x18x128xbf16, #tpu.memory_space<vmem>>, vector<1x1x16x128xbf16>,
    %c0_95 = arith.constant 0 : index
    %c0_96 = arith.constant 0 : index
    %c2_97 = arith.constant 2 : index
    %c0_98 = arith.constant 0 : index
    %69 = vector.load %arg5[%c0_95, %c0_96, %c2_97, %c0_98] : memref<1x18x18x128xbf16, #tpu.memory_space<vmem>>, vector<1x18x1x128xbf16>
    %c0_99 = arith.constant 0 : index
    %c0_100 = arith.constant 0 : index
    %c0_101 = arith.constant 0 : index
    %c0_102 = arith.constant 0 : index
    %70 = vector.load %arg5[%c0_99, %c0_100, %c0_101, %c0_102] : memref<1x18x18x128xbf16, #tpu.memory_space<vmem>>, vector<1x18x1x128xbf16>
    tpu.vector_store %arg5[%c0_99, %c0_100, %c0_101, %c0_102], %69 {strides = array<i32>} : memref<1x18x18x128xbf16, #tpu.memory_space<vmem>>, vector<1x18x1x128xbf16>,
    %c0_103 = arith.constant 0 : index
    %c0_104 = arith.constant 0 : index
    %c15_105 = arith.constant 15 : index
    %c0_106 = arith.constant 0 : index
    %71 = vector.load %arg5[%c0_103, %c0_104, %c15_105, %c0_106] : memref<1x18x18x128xbf16, #tpu.memory_space<vmem>>, vector<1x18x1x128xbf16>
    %c0_107 = arith.constant 0 : index
    %c0_108 = arith.constant 0 : index
    %c17_109 = arith.constant 17 : index
    %c0_110 = arith.constant 0 : index
    %72 = vector.load %arg5[%c0_107, %c0_108, %c17_109, %c0_110] : memref<1x18x18x128xbf16, #tpu.memory_space<vmem>>, vector<1x18x1x128xbf16>
    tpu.vector_store %arg5[%c0_107, %c0_108, %c17_109, %c0_110], %71 {strides = array<i32>} : memref<1x18x18x128xbf16, #tpu.memory_space<vmem>>, vector<1x18x1x128xbf16>,
    %c0_111 = arith.constant 0 : index
    %c0_112 = arith.constant 0 : index
    %c0_113 = arith.constant 0 : index
    %c0_114 = arith.constant 0 : index
    %73 = vector.load %arg5[%c0_111, %c0_112, %c0_113, %c0_114] : memref<1x18x18x128xbf16, #tpu.memory_space<vmem>>, vector<1x16x16x128xbf16>
    %74 = vector.shape_cast %73 : vector<1x16x16x128xbf16> to vector<256x128xbf16>
    %c0_115 = arith.constant 0 : index
    %c0_116 = arith.constant 0 : index
    %75 = vector.load %arg6[%c0_115, %c0_116] : memref<256x1152xbf16, #tpu.memory_space<vmem>>, vector<256x128xbf16>
    tpu.vector_store %arg6[%c0_115, %c0_116], %74 {strides = array<i32>} : memref<256x1152xbf16, #tpu.memory_space<vmem>>, vector<256x128xbf16>,
    %c0_117 = arith.constant 0 : index
    %c0_118 = arith.constant 0 : index
    %c1_119 = arith.constant 1 : index
    %c0_120 = arith.constant 0 : index
    %76 = vector.load %arg5[%c0_117, %c0_118, %c1_119, %c0_120] : memref<1x18x18x128xbf16, #tpu.memory_space<vmem>>, vector<1x16x16x128xbf16>
    %77 = vector.shape_cast %76 : vector<1x16x16x128xbf16> to vector<256x128xbf16>
    %c0_121 = arith.constant 0 : index
    %c128_122 = arith.constant 128 : index
    %78 = vector.load %arg6[%c0_121, %c128_122] : memref<256x1152xbf16, #tpu.memory_space<vmem>>, vector<256x128xbf16>
    tpu.vector_store %arg6[%c0_121, %c128_122], %77 {strides = array<i32>} : memref<256x1152xbf16, #tpu.memory_space<vmem>>, vector<256x128xbf16>,
    %c0_123 = arith.constant 0 : index
    %c0_124 = arith.constant 0 : index
    %c2_125 = arith.constant 2 : index
    %c0_126 = arith.constant 0 : index
    %79 = vector.load %arg5[%c0_123, %c0_124, %c2_125, %c0_126] : memref<1x18x18x128xbf16, #tpu.memory_space<vmem>>, vector<1x16x16x128xbf16>
    %80 = vector.shape_cast %79 : vector<1x16x16x128xbf16> to vector<256x128xbf16>
    %c0_127 = arith.constant 0 : index
    %c256_128 = arith.constant 256 : index
    %81 = vector.load %arg6[%c0_127, %c256_128] : memref<256x1152xbf16, #tpu.memory_space<vmem>>, vector<256x128xbf16>
    tpu.vector_store %arg6[%c0_127, %c256_128], %80 {strides = array<i32>} : memref<256x1152xbf16, #tpu.memory_space<vmem>>, vector<256x128xbf16>,
    %c0_129 = arith.constant 0 : index
    %c1_130 = arith.constant 1 : index
    %c0_131 = arith.constant 0 : index
    %c0_132 = arith.constant 0 : index
    %82 = vector.load %arg5[%c0_129, %c1_130, %c0_131, %c0_132] : memref<1x18x18x128xbf16, #tpu.memory_space<vmem>>, vector<1x16x16x128xbf16>
    %83 = vector.shape_cast %82 : vector<1x16x16x128xbf16> to vector<256x128xbf16>
    %c0_133 = arith.constant 0 : index
    %c384_134 = arith.constant 384 : index
    %84 = vector.load %arg6[%c0_133, %c384_134] : memref<256x1152xbf16, #tpu.memory_space<vmem>>, vector<256x128xbf16>
    tpu.vector_store %arg6[%c0_133, %c384_134], %83 {strides = array<i32>} : memref<256x1152xbf16, #tpu.memory_space<vmem>>, vector<256x128xbf16>,
    %c0_135 = arith.constant 0 : index
    %c1_136 = arith.constant 1 : index
    %c1_137 = arith.constant 1 : index
    %c0_138 = arith.constant 0 : index
    %85 = vector.load %arg5[%c0_135, %c1_136, %c1_137, %c0_138] : memref<1x18x18x128xbf16, #tpu.memory_space<vmem>>, vector<1x16x16x128xbf16>
    %86 = vector.shape_cast %85 : vector<1x16x16x128xbf16> to vector<256x128xbf16>
    %c0_139 = arith.constant 0 : index
    %c512_140 = arith.constant 512 : index
    %87 = vector.load %arg6[%c0_139, %c512_140] : memref<256x1152xbf16, #tpu.memory_space<vmem>>, vector<256x128xbf16>
    tpu.vector_store %arg6[%c0_139, %c512_140], %86 {strides = array<i32>} : memref<256x1152xbf16, #tpu.memory_space<vmem>>, vector<256x128xbf16>,
    %c0_141 = arith.constant 0 : index
    %c1_142 = arith.constant 1 : index
    %c2_143 = arith.constant 2 : index
    %c0_144 = arith.constant 0 : index
    %88 = vector.load %arg5[%c0_141, %c1_142, %c2_143, %c0_144] : memref<1x18x18x128xbf16, #tpu.memory_space<vmem>>, vector<1x16x16x128xbf16>
    %89 = vector.shape_cast %88 : vector<1x16x16x128xbf16> to vector<256x128xbf16>
    %c0_145 = arith.constant 0 : index
    %c640_146 = arith.constant 640 : index
    %90 = vector.load %arg6[%c0_145, %c640_146] : memref<256x1152xbf16, #tpu.memory_space<vmem>>, vector<256x128xbf16>
    tpu.vector_store %arg6[%c0_145, %c640_146], %89 {strides = array<i32>} : memref<256x1152xbf16, #tpu.memory_space<vmem>>, vector<256x128xbf16>,
    %c0_147 = arith.constant 0 : index
    %c2_148 = arith.constant 2 : index
    %c0_149 = arith.constant 0 : index
    %c0_150 = arith.constant 0 : index
    %91 = vector.load %arg5[%c0_147, %c2_148, %c0_149, %c0_150] : memref<1x18x18x128xbf16, #tpu.memory_space<vmem>>, vector<1x16x16x128xbf16>
    %92 = vector.shape_cast %91 : vector<1x16x16x128xbf16> to vector<256x128xbf16>
    %c0_151 = arith.constant 0 : index
    %c768_152 = arith.constant 768 : index
    %93 = vector.load %arg6[%c0_151, %c768_152] : memref<256x1152xbf16, #tpu.memory_space<vmem>>, vector<256x128xbf16>
    tpu.vector_store %arg6[%c0_151, %c768_152], %92 {strides = array<i32>} : memref<256x1152xbf16, #tpu.memory_space<vmem>>, vector<256x128xbf16>,
    %c0_153 = arith.constant 0 : index
    %c2_154 = arith.constant 2 : index
    %c1_155 = arith.constant 1 : index
    %c0_156 = arith.constant 0 : index
    %94 = vector.load %arg5[%c0_153, %c2_154, %c1_155, %c0_156] : memref<1x18x18x128xbf16, #tpu.memory_space<vmem>>, vector<1x16x16x128xbf16>
    %95 = vector.shape_cast %94 : vector<1x16x16x128xbf16> to vector<256x128xbf16>
    %c0_157 = arith.constant 0 : index
    %c896_158 = arith.constant 896 : index
    %96 = vector.load %arg6[%c0_157, %c896_158] : memref<256x1152xbf16, #tpu.memory_space<vmem>>, vector<256x128xbf16>
    tpu.vector_store %arg6[%c0_157, %c896_158], %95 {strides = array<i32>} : memref<256x1152xbf16, #tpu.memory_space<vmem>>, vector<256x128xbf16>,
    %c0_159 = arith.constant 0 : index
    %c2_160 = arith.constant 2 : index
    %c2_161 = arith.constant 2 : index
    %c0_162 = arith.constant 0 : index
    %97 = vector.load %arg5[%c0_159, %c2_160, %c2_161, %c0_162] : memref<1x18x18x128xbf16, #tpu.memory_space<vmem>>, vector<1x16x16x128xbf16>
    %98 = vector.shape_cast %97 : vector<1x16x16x128xbf16> to vector<256x128xbf16>
    %c0_163 = arith.constant 0 : index
    %c1024_164 = arith.constant 1024 : index
    %99 = vector.load %arg6[%c0_163, %c1024_164] : memref<256x1152xbf16, #tpu.memory_space<vmem>>, vector<256x128xbf16>
    tpu.vector_store %arg6[%c0_163, %c1024_164], %98 {strides = array<i32>} : memref<256x1152xbf16, #tpu.memory_space<vmem>>, vector<256x128xbf16>,
    %c0_165 = arith.constant 0 : index
    %c0_166 = arith.constant 0 : index
    %100 = vector.load %arg6[%c0_165, %c0_166] : memref<256x1152xbf16, #tpu.memory_space<vmem>>, vector<256x1152xbf16>
    %c0_167 = arith.constant 0 : index
    %c0_168 = arith.constant 0 : index
    %101 = vector.load %arg3[%c0_167, %c0_168] : memref<1152x128xbf16, #tpu.memory_space<vmem>>, vector<1152x128xbf16>
    %cst_169 = arith.constant dense<0.000000e+00> : vector<256x128xf32>
    %102 = tpu.matmul %100, %101, %cst_169 {dimension_numbers = #tpu.dot_dimension_numbers<[1], [0], [0], [1], [0, 0, 1, 1], [], []>} : vector<256x1152xbf16>, vector<1152x128xbf16>, vector<256x128xf32> -> vector<256x128xf32>
    %103 = vector.shape_cast %102 : vector<256x128xf32> to vector<1x256x128xf32>
    %cst_170 = arith.constant dense<0.000000e+00> : vector<1x128xf32>
    %104 = vector.multi_reduction <add>, %103, %cst_170 [1] : vector<1x256x128xf32> to vector<1x128xf32>
    %105 = vector.shape_cast %104 : vector<1x128xf32> to vector<1x1x128xf32>
    %106 = arith.mulf %103, %103 : vector<1x256x128xf32>
    %cst_171 = arith.constant dense<0.000000e+00> : vector<1x128xf32>
    %107 = vector.multi_reduction <add>, %106, %cst_171 [1] : vector<1x256x128xf32> to vector<1x128xf32>
    %108 = vector.shape_cast %107 : vector<1x128xf32> to vector<1x1x128xf32>
    %cst_172 = arith.constant 3.906250e-03 : f32
    %109 = vector.broadcast %cst_172 : f32 to vector<1x1x128xf32>
    %110 = arith.mulf %105, %109 : vector<1x1x128xf32>
    %cst_173 = arith.constant 3.906250e-03 : f32
    %111 = vector.broadcast %cst_173 : f32 to vector<1x1x128xf32>
    %112 = arith.mulf %108, %111 : vector<1x1x128xf32>
    %113 = arith.mulf %110, %110 : vector<1x1x128xf32>
    %114 = arith.subf %112, %113 : vector<1x1x128xf32>
    %115 = vector.broadcast %110 : vector<1x1x128xf32> to vector<1x256x128xf32>
    %116 = arith.subf %103, %115 : vector<1x256x128xf32>
    %cst_174 = arith.constant 9.99999974E-6 : f32
    %117 = vector.broadcast %cst_174 : f32 to vector<1x1x128xf32>
    %118 = arith.addf %114, %117 : vector<1x1x128xf32>
    %119 = math.rsqrt %118 : vector<1x1x128xf32>
    %120 = vector.broadcast %119 : vector<1x1x128xf32> to vector<1x256x128xf32>
    %121 = arith.mulf %116, %120 : vector<1x256x128xf32>
    %122 = vector.shape_cast %121 : vector<1x256x128xf32> to vector<1x16x16x128xf32>
    %123 = arith.addf %0, %122 : vector<1x16x16x128xf32>
    %c0_175 = arith.constant 0 : index
    %c0_176 = arith.constant 0 : index
    %c0_177 = arith.constant 0 : index
    %c0_178 = arith.constant 0 : index
    %124 = vector.load %arg4[%c0_175, %c0_176, %c0_177, %c0_178] : memref<1x16x16x128xf32, #tpu.memory_space<vmem>>, vector<1x16x16x128xf32>
    tpu.vector_store %arg4[%c0_175, %c0_176, %c0_177, %c0_178], %123 {strides = array<i32>} : memref<1x16x16x128xf32, #tpu.memory_space<vmem>>, vector<1x16x16x128xf32>,
    return
  }
  func.func @transform_0(%arg0: i32) -> (i32, i32, i32, i32) {
    %c0_i32 = arith.constant 0 : i32
    %c0_i32_0 = arith.constant 0 : i32
    %c0_i32_1 = arith.constant 0 : i32
    %c0_i32_2 = arith.constant 0 : i32
    return %arg0, %c0_i32, %c0_i32_0, %c0_i32_1 : i32, i32, i32, i32
  }
  func.func @transform_1(%arg0: i32) -> (i32, i32) {
    %c0_i32 = arith.constant 0 : i32
    %c0_i32_0 = arith.constant 0 : i32
    %c0_i32_1 = arith.constant 0 : i32
    return %c0_i32, %c0_i32_0 : i32, i32
  }
  func.func @transform_2(%arg0: i32) -> (i32, i32) {
    %c0_i32 = arith.constant 0 : i32
    %c0_i32_0 = arith.constant 0 : i32
    %c0_i32_1 = arith.constant 0 : i32
    return %c0_i32, %c0_i32_0 : i32, i32
  }
  func.func @transform_3(%arg0: i32) -> (i32, i32, i32, i32) {
    %c0_i32 = arith.constant 0 : i32
    %c0_i32_0 = arith.constant 0 : i32
    %c0_i32_1 = arith.constant 0 : i32
    %c0_i32_2 = arith.constant 0 : i32
    return %arg0, %c0_i32, %c0_i32_0, %c0_i32_1 : i32, i32, i32, i32
  }
}

</mosaic_0001>

<llo_original>
// kernel: tpu_custom_call.1
$region0: #{tpu_custom_call.1}
  #allocation0 [shape = 'u32[]', space=smem, size = 0x4, offset = 0x4, fixed_abs, tag = 'smem constant byte address 0x4 - core index']
  #allocation1 [shape = 'u32[144,128]{1,0:T(1,128)}', space=vmem, size = 0x12000, scoped, tag = 'internal scratch']
  #allocation2 [shape = 'bf16[1,18,18,128]{3,2,1,0:T(8,128)(2,1)}', space=vmem, size = 0x1b000, scoped, tag = 'scratch operand']
  #allocation3 [shape = 'bf16[256,1152]{1,0:T(16,128)(2,1)}', space=vmem, size = 0x90000, scoped, tag = 'scratch operand']
  %s0 = inlined_call_operand.hbm [shape: f32[2,16,16,128], index: 0, kind: input, shape index: {}]
  %s1 = inlined_call_operand.hbm [shape: bf16[1152,128], index: 1, kind: input, shape index: {}]
  %s2 = inlined_call_operand.hbm [shape: bf16[1152,128], index: 2, kind: input, shape index: {}]
  %s3 = inlined_call_operand.hbm [shape: f32[2,16,16,128], index: 3, kind: output, shape index: {}]
  %s4 = sld [smem:[#allocation0]]
  $region57: #{tpu_custom_call.1} parent=0
    _
  %s6 = ssub.s32 1, %s4
  %s7 = scalar_select 0, %s6, %s4
  $region1: #{tpu_custom_call.1} parent=0
    #allocation4 [shape = 'u8[262144]{0}', space=vmem, size = 0x40000, scoped, tag = 'input window, operand 0']
    #allocation5 [shape = 's32[2]{0}', space=sflag, size = 0x8, scoped, tag = 'scoped memory for tpu_custom_call.1']
    #allocation6 [shape = 's32[2]{0}', space=sflag, size = 0x8, scoped, tag = 'scoped memory for tpu_custom_call.1']
    #allocation7 [shape = 'u8[294912]{0}', space=vmem, size = 0x48000, scoped, tag = 'input window, operand 1, single buffered']
    #allocation8 [shape = 's32[1]{0}', space=sflag, size = 0x4, scoped, tag = 'scoped memory for tpu_custom_call.1']
    #allocation9 [shape = 'u8[294912]{0}', space=vmem, size = 0x48000, scoped, tag = 'input window, operand 2, single buffered']
    #allocation10 [shape = 'u8[262144]{0}', space=vmem, size = 0x40000, scoped, tag = 'output window, operand 0']
    %8 = vsyncpa [#allocation5], 0
    %s9 = scalar_lea.sflag [#allocation5], 1
    %10 = vsyncpa %s9, 0
    %11 = vsyncpa [#allocation8], 0
    %12 = vsyncpa [#allocation6], 0
    %s13 = scalar_lea.sflag [#allocation6], 1
    %14 = vsyncpa %s13, 0
    loop: start=0, step=1, limit=4
    $region2: #{tpu_custom_call.1} parent=1 // loop_pre_header
      _
    $region3: #{tpu_custom_call.1} parent=1 // loop_header
      %s16 = sphi 0, %s20
      %p17 = scmp.ge.s32.totalorder %s16, 4
      %s26 = sphi 0, %s28
      %s29 = sphi 0, %s26
      %s30 = sphi 0, %s29
      %s46 = sphi 0, %s30
      %s50 = sphi 0, %s50
      %s52 = sphi 0, %s50
      %s53 = sphi 0, %s52
      %s67 = sphi 0, %s53
      %s71 = sphi 0, %s71
      %s73 = sphi 0, %s71
      %s74 = sphi 0, %s73
      %s88 = sphi 0, %s74
      %s94 = sphi 0, %s96
      %s97 = sphi 0, %s94
      %s98 = sphi 0, %s97
      %s114 = sphi 0, %s98
    $region4: #{tpu_custom_call.1} parent=1 // loop_header_branch
      %19 = sbr.rel (%p17) target = $region8
    $region5: #{tpu_custom_call.1} parent=1 // loop_body
      %s21 = ssub.s32 %s16, 1
      %s22 = ssub.s32 %s16, 2
      %s23 = sadd.s32 %s16, 1
      %s24 = ssub.s32 %s16, %s23
      %p25 = scmp.eq.s32.totalorder %s24, 0
      %s27 = sadd.s32 %s26, 1
      %s28 = scalar_select %p25, %s26, %s27
      %p31 = pneg %p25
      %p32 = scmp.eq.s32.totalorder %s16, 1
      %p33 = por %p31, %p32
      %p34 = scmp.ne.s32.totalorder %s26, %s29
      %p35 = scmp.eq.s32.totalorder %s16, 0
      %p36 = por %p34, %p35
      %p37 = scmp.ne.s32.totalorder %s26, %s29
      %p38 = scmp.eq.s32.totalorder %s21, 1
      %p39 = por %p37, %p38
      %p40 = scmp.ne.s32.totalorder %s29, %s30
      %p41 = scmp.eq.s32.totalorder %s21, 0
      %p42 = por %p40, %p41
      %p43 = scmp.ne.s32.totalorder %s29, %s30
      %p44 = scmp.eq.s32.totalorder %s22, 1
      %p45 = por %p43, %p44
      %p47 = scmp.ne.s32.totalorder %s30, %s46
      %p48 = scmp.eq.s32.totalorder %s22, 0
      %p49 = por %p47, %p48
      %s51 = sadd.s32 %s50, 1
      %p54 = scmp.eq.s32.totalorder %s16, 1
      %p55 = scmp.ne.s32.totalorder %s50, %s52
      %p56 = scmp.eq.s32.totalorder %s16, 0
      %p57 = por %p55, %p56
      %p58 = scmp.ne.s32.totalorder %s50, %s52
      %p59 = scmp.eq.s32.totalorder %s21, 1
      %p60 = por %p58, %p59
      %p61 = scmp.ne.s32.totalorder %s52, %s53
      %p62 = scmp.eq.s32.totalorder %s21, 0
      %p63 = por %p61, %p62
      %p64 = scmp.ne.s32.totalorder %s52, %s53
      %p65 = scmp.eq.s32.totalorder %s22, 1
      %p66 = por %p64, %p65
      %p68 = scmp.ne.s32.totalorder %s53, %s67
      %p69 = scmp.eq.s32.totalorder %s22, 0
      %p70 = por %p68, %p69
      %s72 = sadd.s32 %s71, 1
      %p75 = scmp.eq.s32.totalorder %s16, 1
      %p76 = scmp.ne.s32.totalorder %s71, %s73
      %p77 = scmp.eq.s32.totalorder %s16, 0
      %p78 = por %p76, %p77
      %p79 = scmp.ne.s32.totalorder %s71, %s73
      %p80 = scmp.eq.s32.totalorder %s21, 1
      %p81 = por %p79, %p80
      %p82 = scmp.ne.s32.totalorder %s73, %s74
      %p83 = scmp.eq.s32.totalorder %s21, 0
      %p84 = por %p82, %p83
      %p85 = scmp.ne.s32.totalorder %s73, %s74
      %p86 = scmp.eq.s32.totalorder %s22, 1
      %p87 = por %p85, %p86
      %p89 = scmp.ne.s32.totalorder %s74, %s88
      %p90 = scmp.eq.s32.totalorder %s22, 0
      %p91 = por %p89, %p90
      %s92 = ssub.s32 %s16, %s23
      %p93 = scmp.eq.s32.totalorder %s92, 0
      %s95 = sadd.s32 %s94, 1
      %s96 = scalar_select %p93, %s94, %s95
      %p99 = pneg %p93
      %p100 = scmp.eq.s32.totalorder %s16, 1
      %p101 = por %p99, %p100
      %p102 = scmp.ne.s32.totalorder %s94, %s97
      %p103 = scmp.eq.s32.totalorder %s16, 0
      %p104 = por %p102, %p103
      %p105 = scmp.ne.s32.totalorder %s94, %s97
      %p106 = scmp.eq.s32.totalorder %s21, 1
      %p107 = por %p105, %p106
      %p108 = scmp.ne.s32.totalorder %s97, %s98
      %p109 = scmp.eq.s32.totalorder %s21, 0
      %p110 = por %p108, %p109
      %p111 = scmp.ne.s32.totalorder %s97, %s98
      %p112 = scmp.eq.s32.totalorder %s22, 1
      %p113 = por %p111, %p112
      %p115 = scmp.ne.s32.totalorder %s98, %s114
      %p116 = scmp.eq.s32.totalorder %s22, 0
      %p117 = por %p115, %p116
      %p118 = scmp.le.s32.totalorder 1, %s16
      %p119 = scmp.lt.s32.totalorder %s16, 3
      %p120 = pnand %p118, %p119
      %p121 = pneg %p120
      // Predicated region
      $region9: #{tpu_custom_call.1} parent=5 // pred_check
        _
      $region10: #{tpu_custom_call.1} parent=5 // pred_check_branch
        %123 = sbr.rel (%p120) target = $region12
      $region11: #{tpu_custom_call.1} parent=5 // pred_region
        %s124 = ssub.s32 %s16, 1
        // Predicated region
        $region13: #{tpu_custom_call.1} parent=11 // pred_check
          %p125 = pneg %p63
        $region14: #{tpu_custom_call.1} parent=11 // pred_check_branch
          %127 = sbr.rel (%p125) target = $region16
        $region15: #{tpu_custom_call.1} parent=11 // pred_region
          %s129 = ssub.s32 9216, 9216
          %130 = vsyncadd [#allocation8], %s129
          %s131 = sshll.u32 [#allocation7], 4
          %s132 = int_to_ptr.vmem [resolvable:$true] %s131
          %137 = dma.hbm_to_vmem [thread:$0]  %s1, 9216, %s132, [#allocation8], 64, 64, 4
        $region16: #{tpu_custom_call.1} parent=11 // pred_fallthru
          _
        // Predicated region
        $region17: #{tpu_custom_call.1} parent=11 // pred_check
          %p138 = pneg %p84
        $region18: #{tpu_custom_call.1} parent=11 // pred_check_branch
          %140 = sbr.rel (%p138) target = $region20
        $region19: #{tpu_custom_call.1} parent=11 // pred_region
          %s142 = ssub.s32 9216, 9216
          %143 = vsyncadd [#allocation8], %s142
          %s144 = sshll.u32 [#allocation9], 4
          %s145 = int_to_ptr.vmem [resolvable:$true] %s144
          %150 = dma.hbm_to_vmem [thread:$0]  %s2, 9216, %s145, [#allocation8], 64, 64, 4
        $region20: #{tpu_custom_call.1} parent=11 // pred_fallthru
          _
      $region12: #{tpu_custom_call.1} parent=5 // pred_fallthru
        _
      %p151 = scmp.lt.s32.totalorder %s16, 2
      // Predicated region
      $region21: #{tpu_custom_call.1} parent=5 // pred_check
        %p152 = pneg %p151
      $region22: #{tpu_custom_call.1} parent=5 // pred_check_branch
        %154 = sbr.rel (%p152) target = $region24
      $region23: #{tpu_custom_call.1} parent=5 // pred_region
        // Predicated region
        $region25: #{tpu_custom_call.1} parent=23 // pred_check
          %p155 = pneg %p36
        $region26: #{tpu_custom_call.1} parent=23 // pred_check_branch
          %157 = sbr.rel (%p155) target = $region28
        $region27: #{tpu_custom_call.1} parent=23 // pred_region
          %s158 = sand.u32 %s26, 1
          %s159 = scalar_lea.sflag [#allocation5], %s158
          %s160 = sand.u32 %s26, 1
          %s161 = smul.addr %s160, 256
          %s162 = scalar_lea.vmem [#allocation4], %s161
          %s164 = ssub.s32 4096, 4096
          %165 = vsyncadd %s159, %s164
          %s166 = smul.addr %s16, 32
          %s167 = smul.addr %s166, 128
          %s168 = scalar_lea.hbm %s0, %s167
          %s169 = sshll.u32 %s162, 4
          %s170 = int_to_ptr.vmem [resolvable:$true] %s169
          %175 = dma.hbm_to_vmem [thread:$0]  %s168, 4096, %s170, %s159, 128, 128, 8
        $region28: #{tpu_custom_call.1} parent=23 // pred_fallthru
          _
      $region24: #{tpu_custom_call.1} parent=5 // pred_fallthru
        _
      %p176 = scmp.le.s32.totalorder 1, %s16
      %p177 = scmp.lt.s32.totalorder %s16, 3
      %p178 = pnand %p176, %p177
      %p179 = pneg %p178
      // Predicated region
      $region29: #{tpu_custom_call.1} parent=5 // pred_check
        _
      $region30: #{tpu_custom_call.1} parent=5 // pred_check_branch
        %181 = sbr.rel (%p178) target = $region32
      $region31: #{tpu_custom_call.1} parent=5 // pred_region
        %s182 = ssub.s32 %s16, 1
        %s183 = sand.u32 %s29, 1
        %s184 = scalar_lea.sflag [#allocation5], %s183
        %s185 = sand.u32 %s29, 1
        %s186 = smul.addr %s185, 256
        %s187 = scalar_lea.vmem [#allocation4], %s186
        // Predicated region
        $region33: #{tpu_custom_call.1} parent=31 // pred_check
          %p188 = pneg %p42
        $region34: #{tpu_custom_call.1} parent=31 // pred_check_branch
          %190 = sbr.rel (%p188) target = $region36
        $region35: #{tpu_custom_call.1} parent=31 // pred_region
          %191 = dma.done %s184, 4096
        $region36: #{tpu_custom_call.1} parent=31 // pred_fallthru
          _
        // Predicated region
        $region37: #{tpu_custom_call.1} parent=31 // pred_check
          %p192 = pneg %p63
        $region38: #{tpu_custom_call.1} parent=31 // pred_check_branch
          %194 = sbr.rel (%p192) target = $region40
        $region39: #{tpu_custom_call.1} parent=31 // pred_region
          %195 = dma.done [#allocation8], 9216
        $region40: #{tpu_custom_call.1} parent=31 // pred_fallthru
          _
        // Predicated region
        $region41: #{tpu_custom_call.1} parent=31 // pred_check
          %p196 = pneg %p84
        $region42: #{tpu_custom_call.1} parent=31 // pred_check_branch
          %198 = sbr.rel (%p196) target = $region44
        $region43: #{tpu_custom_call.1} parent=31 // pred_region
          %199 = dma.done [#allocation8], 9216
        $region44: #{tpu_custom_call.1} parent=31 // pred_fallthru
          _
        %s200 = sand.u32 %s29, 1
        %s201 = scalar_lea.sflag [#allocation5], %s200
        %s202 = sand.u32 %s29, 1
        %s203 = smul.addr %s202, 256
        %s204 = scalar_lea.vmem [#allocation4], %s203
        %p205 = pneg %p42
        %p206 = pneg %p39
        %p207 = pneg %p63
        %p208 = pneg %p60
        %p209 = pneg %p84
        %p210 = pneg %p81
        %p211 = pneg %p110
        %p212 = pneg %p107
        %s213 = sand.u32 %s97, 1
        %s214 = scalar_lea.sflag [#allocation6], %s213
        %s215 = sand.u32 %s97, 1
        %s216 = smul.addr %s215, 256
        %s217 = scalar_lea.vmem [#allocation10], %s216
        %v219 = vld [vmem:[%s187] sm:$0xff]
        %v220 = vld [vmem:[%s187 + $0x8] sm:$0xff]
        %v221 = vld [vmem:[%s187 + $0x10] sm:$0xff]
        %v222 = vld [vmem:[%s187 + $0x18] sm:$0xff]
        %v223 = vld [vmem:[%s187 + $0x20] sm:$0xff]
        %v224 = vld [vmem:[%s187 + $0x28] sm:$0xff]
        %v225 = vld [vmem:[%s187 + $0x30] sm:$0xff]
        %v226 = vld [vmem:[%s187 + $0x38] sm:$0xff]
        %v227 = vld [vmem:[%s187 + $0x40] sm:$0xff]
        %v228 = vld [vmem:[%s187 + $0x48] sm:$0xff]
        %v229 = vld [vmem:[%s187 + $0x50] sm:$0xff]
        %v230 = vld [vmem:[%s187 + $0x58] sm:$0xff]
        %v231 = vld [vmem:[%s187 + $0x60] sm:$0xff]
        %v232 = vld [vmem:[%s187 + $0x68] sm:$0xff]
        %v233 = vld [vmem:[%s187 + $0x70] sm:$0xff]
        %v234 = vld [vmem:[%s187 + $0x78] sm:$0xff]
        %v235 = vld [vmem:[%s187 + $0x80] sm:$0xff]
        %v236 = vld [vmem:[%s187 + $0x88] sm:$0xff]
        %v237 = vld [vmem:[%s187 + $0x90] sm:$0xff]
        %v238 = vld [vmem:[%s187 + $0x98] sm:$0xff]
        %v239 = vld [vmem:[%s187 + $0xa0] sm:$0xff]
        %v240 = vld [vmem:[%s187 + $0xa8] sm:$0xff]
        %v241 = vld [vmem:[%s187 + $0xb0] sm:$0xff]
        %v242 = vld [vmem:[%s187 + $0xb8] sm:$0xff]
        %v243 = vld [vmem:[%s187 + $0xc0] sm:$0xff]
        %v244 = vld [vmem:[%s187 + $0xc8] sm:$0xff]
        %v245 = vld [vmem:[%s187 + $0xd0] sm:$0xff]
        %v246 = vld [vmem:[%s187 + $0xd8] sm:$0xff]
        %v247 = vld [vmem:[%s187 + $0xe0] sm:$0xff]
        %v248 = vld [vmem:[%s187 + $0xe8] sm:$0xff]
        %v249 = vld [vmem:[%s187 + $0xf0] sm:$0xff]
        %v250 = vld [vmem:[%s187 + $0xf8] sm:$0xff]
        %v251 = vpack.c.bf16 %v220, %v219
        %v252 = vpack.c.bf16 %v222, %v221
        %v253 = vpack.c.bf16 %v224, %v223
        %v254 = vpack.c.bf16 %v226, %v225
        %v255 = vpack.c.bf16 %v228, %v227
        %v256 = vpack.c.bf16 %v230, %v229
        %v257 = vpack.c.bf16 %v232, %v231
        %v258 = vpack.c.bf16 %v234, %v233
        %v259 = vpack.c.bf16 %v236, %v235
        %v260 = vpack.c.bf16 %v238, %v237
        %v261 = vpack.c.bf16 %v240, %v239
        %v262 = vpack.c.bf16 %v242, %v241
        %v263 = vpack.c.bf16 %v244, %v243
        %v264 = vpack.c.bf16 %v246, %v245
        %v265 = vpack.c.bf16 %v248, %v247
        %v266 = vpack.c.bf16 %v250, %v249
        %v283 = vunpack.c.l.b16 %v251
        %v284 = vunpack.c.h.b16 %v251
        %v285 = vunpack.c.l.b16 %v252
        %v286 = vunpack.c.h.b16 %v252
        %v287 = vunpack.c.l.b16 %v253
        %v288 = vunpack.c.h.b16 %v253
        %v289 = vunpack.c.l.b16 %v254
        %v290 = vunpack.c.h.b16 %v254
        %v291 = vunpack.c.l.b16 %v255
        %v292 = vunpack.c.h.b16 %v255
        %v293 = vunpack.c.l.b16 %v256
        %v294 = vunpack.c.h.b16 %v256
        %v295 = vunpack.c.l.b16 %v257
        %v296 = vunpack.c.h.b16 %v257
        %v297 = vunpack.c.l.b16 %v258
        %v298 = vunpack.c.h.b16 %v258
        %v299 = vunpack.c.l.b16 %v259
        %v300 = vunpack.c.h.b16 %v259
        %v301 = vunpack.c.l.b16 %v260
        %v302 = vunpack.c.h.b16 %v260
        %v303 = vunpack.c.l.b16 %v261
        %v304 = vunpack.c.h.b16 %v261
        %v305 = vunpack.c.l.b16 %v262
        %v306 = vunpack.c.h.b16 %v262
        %v307 = vunpack.c.l.b16 %v263
        %v308 = vunpack.c.h.b16 %v263
        %v309 = vunpack.c.l.b16 %v264
        %v310 = vunpack.c.h.b16 %v264
        %v311 = vunpack.c.l.b16 %v265
        %v312 = vunpack.c.h.b16 %v265
        %v313 = vunpack.c.l.b16 %v266
        %v314 = vunpack.c.h.b16 %v266
        %v315 = vpack.c.b16 %v283, %v283
        %v316 = vpack.c.b16 %v284, %v284
        %v317 = vpack.c.b16 %v285, %v285
        %v318 = vpack.c.b16 %v286, %v286
        %v319 = vpack.c.b16 %v287, %v287
        %v320 = vpack.c.b16 %v288, %v288
        %v321 = vpack.c.b16 %v289, %v289
        %v322 = vpack.c.b16 %v290, %v290
        %v323 = vpack.c.b16 %v291, %v291
        %v324 = vpack.c.b16 %v292, %v292
        %v325 = vpack.c.b16 %v293, %v293
        %v326 = vpack.c.b16 %v294, %v294
        %v327 = vpack.c.b16 %v295, %v295
        %v328 = vpack.c.b16 %v296, %v296
        %v329 = vpack.c.b16 %v297, %v297
        %v330 = vpack.c.b16 %v298, %v298
        %v331 = vpack.c.b16 %v299, %v299
        %v332 = vpack.c.b16 %v300, %v300
        %v333 = vpack.c.b16 %v301, %v301
        %v334 = vpack.c.b16 %v302, %v302
        %v335 = vpack.c.b16 %v303, %v303
        %v336 = vpack.c.b16 %v304, %v304
        %v337 = vpack.c.b16 %v305, %v305
        %v338 = vpack.c.b16 %v306, %v306
        %v339 = vpack.c.b16 %v307, %v307
        %v340 = vpack.c.b16 %v308, %v308
        %v341 = vpack.c.b16 %v309, %v309
        %v342 = vpack.c.b16 %v310, %v310
        %v343 = vpack.c.b16 %v311, %v311
        %v344 = vpack.c.b16 %v312, %v312
        %v345 = vpack.c.b16 %v313, %v313
        %v346 = vpack.c.b16 %v314, %v314
        %vm347 = vsmask.f32 256
        %vm348 = vsmask.f32 4368
        %vm349 = vmor %vm347, %vm348
        %v351 = vshrl.u32 %v315, 16
        %v353 = vrot.slane %v351, 7
        %v354 = vshll.u32 %v315, 16
        %v356 = vor.u32 %v353, %v354
        %v357 = vrot.slane %v353, 4
        %v359 = vshrl.u32 %v316, 16
        %v361 = vrot.slane %v359, 7
        %v362 = vshll.u32 %v316, 16
        %v364 = vor.u32 %v361, %v362
        %v365 = vsel %vm349, %v357, %v364
        %v366 = vrot.slane %v361, 4
        %v368 = vshrl.u32 %v317, 16
        %v370 = vrot.slane %v368, 7
        %v371 = vshll.u32 %v317, 16
        %v373 = vor.u32 %v370, %v371
        %v374 = vrot.slane %v370, 4
        %v376 = vshrl.u32 %v318, 16
        %v378 = vrot.slane %v376, 7
        %v379 = vshll.u32 %v318, 16
        %v381 = vor.u32 %v378, %v379
        %v382 = vsel %vm349, %v374, %v381
        %v383 = vrot.slane %v378, 4
        %v385 = vshrl.u32 %v319, 16
        %v387 = vrot.slane %v385, 7
        %v388 = vshll.u32 %v319, 16
        %v390 = vor.u32 %v387, %v388
        %v391 = vrot.slane %v387, 4
        %v393 = vshrl.u32 %v320, 16
        %v395 = vrot.slane %v393, 7
        %v396 = vshll.u32 %v320, 16
        %v398 = vor.u32 %v395, %v396
        %v399 = vsel %vm349, %v391, %v398
        %v400 = vrot.slane %v395, 4
        %v402 = vshrl.u32 %v321, 16
        %v404 = vrot.slane %v402, 7
        %v405 = vshll.u32 %v321, 16
        %v407 = vor.u32 %v404, %v405
        %v408 = vrot.slane %v404, 4
        %v410 = vshrl.u32 %v322, 16
        %v412 = vrot.slane %v410, 7
        %v413 = vshll.u32 %v322, 16
        %v415 = vor.u32 %v412, %v413
        %v416 = vsel %vm349, %v408, %v415
        %v417 = vrot.slane %v412, 4
        %v419 = vshrl.u32 %v323, 16
        %v421 = vrot.slane %v419, 7
        %v422 = vshll.u32 %v323, 16
        %v424 = vor.u32 %v421, %v422
        %v425 = vrot.slane %v421, 4
        %v427 = vshrl.u32 %v324, 16
        %v429 = vrot.slane %v427, 7
        %v430 = vshll.u32 %v324, 16
        %v432 = vor.u32 %v429, %v430
        %v433 = vsel %vm349, %v425, %v432
        %v434 = vrot.slane %v429, 4
        %v436 = vshrl.u32 %v325, 16
        %v438 = vrot.slane %v436, 7
        %v439 = vshll.u32 %v325, 16
        %v441 = vor.u32 %v438, %v439
        %v442 = vrot.slane %v438, 4
        %v444 = vshrl.u32 %v326, 16
        %v446 = vrot.slane %v444, 7
        %v447 = vshll.u32 %v326, 16
        %v449 = vor.u32 %v446, %v447
        %v450 = vsel %vm349, %v442, %v449
        %v451 = vrot.slane %v446, 4
        %v453 = vshrl.u32 %v327, 16
        %v455 = vrot.slane %v453, 7
        %v456 = vshll.u32 %v327, 16
        %v458 = vor.u32 %v455, %v456
        %v459 = vrot.slane %v455, 4
        %v461 = vshrl.u32 %v328, 16
        %v463 = vrot.slane %v461, 7
        %v464 = vshll.u32 %v328, 16
        %v466 = vor.u32 %v463, %v464
        %v467 = vsel %vm349, %v459, %v466
        %v468 = vrot.slane %v463, 4
        %v470 = vshrl.u32 %v329, 16
        %v472 = vrot.slane %v470, 7
        %v473 = vshll.u32 %v329, 16
        %v475 = vor.u32 %v472, %v473
        %v476 = vrot.slane %v472, 4
        %v478 = vshrl.u32 %v330, 16
        %v480 = vrot.slane %v478, 7
        %v481 = vshll.u32 %v330, 16
        %v483 = vor.u32 %v480, %v481
        %v484 = vsel %vm349, %v476, %v483
        %v485 = vrot.slane %v480, 4
        %v487 = vshrl.u32 %v331, 16
        %v489 = vrot.slane %v487, 7
        %v490 = vshll.u32 %v331, 16
        %v492 = vor.u32 %v489, %v490
        %v493 = vrot.slane %v489, 4
        %v495 = vshrl.u32 %v332, 16
        %v497 = vrot.slane %v495, 7
        %v498 = vshll.u32 %v332, 16
        %v500 = vor.u32 %v497, %v498
        %v501 = vsel %vm349, %v493, %v500
        %v502 = vrot.slane %v497, 4
        %v504 = vshrl.u32 %v333, 16
        %v506 = vrot.slane %v504, 7
        %v507 = vshll.u32 %v333, 16
        %v509 = vor.u32 %v506, %v507
        %v510 = vrot.slane %v506, 4
        %v512 = vshrl.u32 %v334, 16
        %v514 = vrot.slane %v512, 7
        %v515 = vshll.u32 %v334, 16
        %v517 = vor.u32 %v514, %v515
        %v518 = vsel %vm349, %v510, %v517
        %v519 = vrot.slane %v514, 4
        %v521 = vshrl.u32 %v335, 16
        %v523 = vrot.slane %v521, 7
        %v524 = vshll.u32 %v335, 16
        %v526 = vor.u32 %v523, %v524
        %v527 = vrot.slane %v523, 4
        %v529 = vshrl.u32 %v336, 16
        %v531 = vrot.slane %v529, 7
        %v532 = vshll.u32 %v336, 16
        %v534 = vor.u32 %v531, %v532
        %v535 = vsel %vm349, %v527, %v534
        %v536 = vrot.slane %v531, 4
        %v538 = vshrl.u32 %v337, 16
        %v540 = vrot.slane %v538, 7
        %v541 = vshll.u32 %v337, 16
        %v543 = vor.u32 %v540, %v541
        %v544 = vrot.slane %v540, 4
        %v546 = vshrl.u32 %v338, 16
        %v548 = vrot.slane %v546, 7
        %v549 = vshll.u32 %v338, 16
        %v551 = vor.u32 %v548, %v549
        %v552 = vsel %vm349, %v544, %v551
        %v553 = vrot.slane %v548, 4
        %v555 = vshrl.u32 %v339, 16
        %v557 = vrot.slane %v555, 7
        %v558 = vshll.u32 %v339, 16
        %v560 = vor.u32 %v557, %v558
        %v561 = vrot.slane %v557, 4
        %v563 = vshrl.u32 %v340, 16
        %v565 = vrot.slane %v563, 7
        %v566 = vshll.u32 %v340, 16
        %v568 = vor.u32 %v565, %v566
        %v569 = vsel %vm349, %v561, %v568
        %v570 = vrot.slane %v565, 4
        %v572 = vshrl.u32 %v341, 16
        %v574 = vrot.slane %v572, 7
        %v575 = vshll.u32 %v341, 16
        %v577 = vor.u32 %v574, %v575
        %v578 = vrot.slane %v574, 4
        %v580 = vshrl.u32 %v342, 16
        %v582 = vrot.slane %v580, 7
        %v583 = vshll.u32 %v342, 16
        %v585 = vor.u32 %v582, %v583
        %v586 = vsel %vm349, %v578, %v585
        %v587 = vrot.slane %v582, 4
        %v589 = vshrl.u32 %v343, 16
        %v591 = vrot.slane %v589, 7
        %v592 = vshll.u32 %v343, 16
        %v594 = vor.u32 %v591, %v592
        %v595 = vrot.slane %v591, 4
        %v597 = vshrl.u32 %v344, 16
        %v599 = vrot.slane %v597, 7
        %v600 = vshll.u32 %v344, 16
        %v602 = vor.u32 %v599, %v600
        %v603 = vsel %vm349, %v595, %v602
        %v604 = vrot.slane %v599, 4
        %v606 = vshrl.u32 %v345, 16
        %v608 = vrot.slane %v606, 7
        %v609 = vshll.u32 %v345, 16
        %v611 = vor.u32 %v608, %v609
        %v612 = vrot.slane %v608, 4
        %v614 = vshrl.u32 %v346, 16
        %v616 = vrot.slane %v614, 7
        %v617 = vshll.u32 %v346, 16
        %v619 = vor.u32 %v616, %v617
        %v620 = vsel %vm349, %v612, %v619
        %v621 = vrot.slane %v616, 4
        %s670 = scalar_lea.vmem [#allocation2], 12
        %vm671 = vcmask 1043456
        %vm672 = vsmask.f32 7938
        %vm673 = vmand %vm671, %vm672
        %v674 = vld [vmem:[%s670] sm:$0xf]
        %v675 = vsel %vm673, %v356, %v674
        %676 = vst [vmem:[%s670] sm:$0xf] %v675
        %677 = vst [vmem:[%s670 + $0x4] sm:$0xf] %v365
        %vm678 = vcmask 1040384
        %vm679 = vmand %vm678, %vm347
        %v680 = vld [vmem:[%s670 + $0x8] sm:$0x1]
        %v681 = vsel %vm679, %v366, %v680
        %682 = vst [vmem:[%s670 + $0x8] sm:$0x1] %v681
        %v683 = vld [vmem:[%s670 + $0xc] sm:$0xf]
        %v684 = vsel %vm673, %v373, %v683
        %685 = vst [vmem:[%s670 + $0xc] sm:$0xf] %v684
        %686 = vst [vmem:[%s670 + $0x10] sm:$0xf] %v382
        %v687 = vld [vmem:[%s670 + $0x14] sm:$0x1]
        %v688 = vsel %vm679, %v383, %v687
        %689 = vst [vmem:[%s670 + $0x14] sm:$0x1] %v688
        %v690 = vld [vmem:[%s670 + $0x18] sm:$0xf]
        %v691 = vsel %vm673, %v390, %v690
        %692 = vst [vmem:[%s670 + $0x18] sm:$0xf] %v691
        %693 = vst [vmem:[%s670 + $0x1c] sm:$0xf] %v399
        %v694 = vld [vmem:[%s670 + $0x20] sm:$0x1]
        %v695 = vsel %vm679, %v400, %v694
        %696 = vst [vmem:[%s670 + $0x20] sm:$0x1] %v695
        %v697 = vld [vmem:[%s670 + $0x24] sm:$0xf]
        %v698 = vsel %vm673, %v407, %v697
        %699 = vst [vmem:[%s670 + $0x24] sm:$0xf] %v698
        %700 = vst [vmem:[%s670 + $0x28] sm:$0xf] %v416
        %v701 = vld [vmem:[%s670 + $0x2c] sm:$0x1]
        %v702 = vsel %vm679, %v417, %v701
        %703 = vst [vmem:[%s670 + $0x2c] sm:$0x1] %v702
        %v704 = vld [vmem:[%s670 + $0x30] sm:$0xf]
        %v705 = vsel %vm673, %v424, %v704
        %706 = vst [vmem:[%s670 + $0x30] sm:$0xf] %v705
        %707 = vst [vmem:[%s670 + $0x34] sm:$0xf] %v433
        %v708 = vld [vmem:[%s670 + $0x38] sm:$0x1]
        %v709 = vsel %vm679, %v434, %v708
        %710 = vst [vmem:[%s670 + $0x38] sm:$0x1] %v709
        %v711 = vld [vmem:[%s670 + $0x3c] sm:$0xf]
        %v712 = vsel %vm673, %v441, %v711
        %713 = vst [vmem:[%s670 + $0x3c] sm:$0xf] %v712
        %714 = vst [vmem:[%s670 + $0x40] sm:$0xf] %v450
        %v715 = vld [vmem:[%s670 + $0x44] sm:$0x1]
        %v716 = vsel %vm679, %v451, %v715
        %717 = vst [vmem:[%s670 + $0x44] sm:$0x1] %v716
        %v718 = vld [vmem:[%s670 + $0x48] sm:$0xf]
        %v719 = vsel %vm673, %v458, %v718
        %720 = vst [vmem:[%s670 + $0x48] sm:$0xf] %v719
        %721 = vst [vmem:[%s670 + $0x4c] sm:$0xf] %v467
        %v722 = vld [vmem:[%s670 + $0x50] sm:$0x1]
        %v723 = vsel %vm679, %v468, %v722
        %724 = vst [vmem:[%s670 + $0x50] sm:$0x1] %v723
        %v725 = vld [vmem:[%s670 + $0x54] sm:$0xf]
        %v726 = vsel %vm673, %v475, %v725
        %727 = vst [vmem:[%s670 + $0x54] sm:$0xf] %v726
        %728 = vst [vmem:[%s670 + $0x58] sm:$0xf] %v484
        %v729 = vld [vmem:[%s670 + $0x5c] sm:$0x1]
        %v730 = vsel %vm679, %v485, %v729
        %731 = vst [vmem:[%s670 + $0x5c] sm:$0x1] %v730
        %v732 = vld [vmem:[%s670 + $0x60] sm:$0xf]
        %v733 = vsel %vm673, %v492, %v732
        %734 = vst [vmem:[%s670 + $0x60] sm:$0xf] %v733
        %735 = vst [vmem:[%s670 + $0x64] sm:$0xf] %v501
        %v736 = vld [vmem:[%s670 + $0x68] sm:$0x1]
        %v737 = vsel %vm679, %v502, %v736
        %738 = vst [vmem:[%s670 + $0x68] sm:$0x1] %v737
        %v739 = vld [vmem:[%s670 + $0x6c] sm:$0xf]
        %v740 = vsel %vm673, %v509, %v739
        %741 = vst [vmem:[%s670 + $0x6c] sm:$0xf] %v740
        %742 = vst [vmem:[%s670 + $0x70] sm:$0xf] %v518
        %v743 = vld [vmem:[%s670 + $0x74] sm:$0x1]
        %v744 = vsel %vm679, %v519, %v743
        %745 = vst [vmem:[%s670 + $0x74] sm:$0x1] %v744
        %v746 = vld [vmem:[%s670 + $0x78] sm:$0xf]
        %v747 = vsel %vm673, %v526, %v746
        %748 = vst [vmem:[%s670 + $0x78] sm:$0xf] %v747
        %749 = vst [vmem:[%s670 + $0x7c] sm:$0xf] %v535
        %v750 = vld [vmem:[%s670 + $0x80] sm:$0x1]
        %v751 = vsel %vm679, %v536, %v750
        %752 = vst [vmem:[%s670 + $0x80] sm:$0x1] %v751
        %v753 = vld [vmem:[%s670 + $0x84] sm:$0xf]
        %v754 = vsel %vm673, %v543, %v753
        %755 = vst [vmem:[%s670 + $0x84] sm:$0xf] %v754
        %756 = vst [vmem:[%s670 + $0x88] sm:$0xf] %v552
        %v757 = vld [vmem:[%s670 + $0x8c] sm:$0x1]
        %v758 = vsel %vm679, %v553, %v757
        %759 = vst [vmem:[%s670 + $0x8c] sm:$0x1] %v758
        %v760 = vld [vmem:[%s670 + $0x90] sm:$0xf]
        %v761 = vsel %vm673, %v560, %v760
        %762 = vst [vmem:[%s670 + $0x90] sm:$0xf] %v761
        %763 = vst [vmem:[%s670 + $0x94] sm:$0xf] %v569
        %v764 = vld [vmem:[%s670 + $0x98] sm:$0x1]
        %v765 = vsel %vm679, %v570, %v764
        %766 = vst [vmem:[%s670 + $0x98] sm:$0x1] %v765
        %v767 = vld [vmem:[%s670 + $0x9c] sm:$0xf]
        %v768 = vsel %vm673, %v577, %v767
        %769 = vst [vmem:[%s670 + $0x9c] sm:$0xf] %v768
        %770 = vst [vmem:[%s670 + $0xa0] sm:$0xf] %v586
        %v771 = vld [vmem:[%s670 + $0xa4] sm:$0x1]
        %v772 = vsel %vm679, %v587, %v771
        %773 = vst [vmem:[%s670 + $0xa4] sm:$0x1] %v772
        %v774 = vld [vmem:[%s670 + $0xa8] sm:$0xf]
        %v775 = vsel %vm673, %v594, %v774
        %776 = vst [vmem:[%s670 + $0xa8] sm:$0xf] %v775
        %777 = vst [vmem:[%s670 + $0xac] sm:$0xf] %v603
        %v778 = vld [vmem:[%s670 + $0xb0] sm:$0x1]
        %v779 = vsel %vm679, %v604, %v778
        %780 = vst [vmem:[%s670 + $0xb0] sm:$0x1] %v779
        %v781 = vld [vmem:[%s670 + $0xb4] sm:$0xf]
        %v782 = vsel %vm673, %v611, %v781
        %783 = vst [vmem:[%s670 + $0xb4] sm:$0xf] %v782
        %784 = vst [vmem:[%s670 + $0xb8] sm:$0xf] %v620
        %v785 = vld [vmem:[%s670 + $0xbc] sm:$0x1]
        %v786 = vsel %vm679, %v621, %v785
        %787 = vst [vmem:[%s670 + $0xbc] sm:$0x1] %v786
        %v788 = vld [vmem:[#allocation2] sm:$0xf]
        %v789 = vsel %vm673, %v373, %v788
        %790 = vst [vmem:[#allocation2] sm:$0xf] %v789
        %791 = vst [vmem:[#allocation2 + $0x4] sm:$0xf] %v382
        %v792 = vld [vmem:[#allocation2 + $0x8] sm:$0x1]
        %v793 = vsel %vm679, %v383, %v792
        %794 = vst [vmem:[#allocation2 + $0x8] sm:$0x1] %v793
        %s795 = scalar_lea.vmem [#allocation2], 204
        %v796 = vld [vmem:[%s795] sm:$0xf]
        %v797 = vsel %vm673, %v594, %v796
        %798 = vst [vmem:[%s795] sm:$0xf] %v797
        %799 = vst [vmem:[%s795 + $0x4] sm:$0xf] %v603
        %v800 = vld [vmem:[%s795 + $0x8] sm:$0x1]
        %v801 = vsel %vm679, %v604, %v800
        %802 = vst [vmem:[%s795 + $0x8] sm:$0x1] %v801
        %v803 = vld [vmem:[#allocation2] sm:$0x2]
        %v804 = vld [vmem:[#allocation2 + $0xc] sm:$0x2]
        %v805 = vld [vmem:[#allocation2 + $0x18] sm:$0x2]
        %v806 = vld [vmem:[#allocation2 + $0x24] sm:$0x2]
        %v807 = vld [vmem:[#allocation2 + $0x30] sm:$0x2]
        %v808 = vld [vmem:[#allocation2 + $0x3c] sm:$0x2]
        %v809 = vld [vmem:[#allocation2 + $0x48] sm:$0x2]
        %v810 = vld [vmem:[#allocation2 + $0x54] sm:$0x2]
        %v811 = vld [vmem:[#allocation2 + $0x60] sm:$0x2]
        %v812 = vld [vmem:[#allocation2 + $0x6c] sm:$0x2]
        %v813 = vld [vmem:[#allocation2 + $0x78] sm:$0x2]
        %v814 = vld [vmem:[#allocation2 + $0x84] sm:$0x2]
        %v815 = vld [vmem:[#allocation2 + $0x90] sm:$0x2]
        %v816 = vld [vmem:[#allocation2 + $0x9c] sm:$0x2]
        %v817 = vld [vmem:[#allocation2 + $0xa8] sm:$0x2]
        %v818 = vld [vmem:[#allocation2 + $0xb4] sm:$0x2]
        %v819 = vld [vmem:[#allocation2 + $0xc0] sm:$0x2]
        %v820 = vld [vmem:[#allocation2 + $0xcc] sm:$0x2]
        %v839 = vrot.slane %v803, 5
        %v840 = vrot.slane %v839, 4
        %v841 = vrot.slane %v804, 5
        %v842 = vrot.slane %v841, 4
        %v843 = vrot.slane %v805, 5
        %v844 = vrot.slane %v843, 4
        %v845 = vrot.slane %v806, 5
        %v846 = vrot.slane %v845, 4
        %v847 = vrot.slane %v807, 5
        %v848 = vrot.slane %v847, 4
        %v849 = vrot.slane %v808, 5
        %v850 = vrot.slane %v849, 4
        %v851 = vrot.slane %v809, 5
        %v852 = vrot.slane %v851, 4
        %v853 = vrot.slane %v810, 5
        %v854 = vrot.slane %v853, 4
        %v855 = vrot.slane %v811, 5
        %v856 = vrot.slane %v855, 4
        %v857 = vrot.slane %v812, 5
        %v858 = vrot.slane %v857, 4
        %v859 = vrot.slane %v813, 5
        %v860 = vrot.slane %v859, 4
        %v861 = vrot.slane %v814, 5
        %v862 = vrot.slane %v861, 4
        %v863 = vrot.slane %v815, 5
        %v864 = vrot.slane %v863, 4
        %v865 = vrot.slane %v816, 5
        %v866 = vrot.slane %v865, 4
        %v867 = vrot.slane %v817, 5
        %v868 = vrot.slane %v867, 4
        %v869 = vrot.slane %v818, 5
        %v870 = vrot.slane %v869, 4
        %v871 = vrot.slane %v819, 5
        %v872 = vrot.slane %v871, 4
        %v873 = vrot.slane %v820, 5
        %v874 = vrot.slane %v873, 4
        %v893 = vld [vmem:[#allocation2] sm:$0x1]
        %v894 = vsel %vm679, %v840, %v893
        %895 = vst [vmem:[#allocation2] sm:$0x1] %v894
        %v896 = vld [vmem:[#allocation2 + $0xc] sm:$0x1]
        %v897 = vsel %vm679, %v842, %v896
        %898 = vst [vmem:[#allocation2 + $0xc] sm:$0x1] %v897
        %v899 = vld [vmem:[#allocation2 + $0x18] sm:$0x1]
        %v900 = vsel %vm679, %v844, %v899
        %901 = vst [vmem:[#allocation2 + $0x18] sm:$0x1] %v900
        %v902 = vld [vmem:[#allocation2 + $0x24] sm:$0x1]
        %v903 = vsel %vm679, %v846, %v902
        %904 = vst [vmem:[#allocation2 + $0x24] sm:$0x1] %v903
        %v905 = vld [vmem:[#allocation2 + $0x30] sm:$0x1]
        %v906 = vsel %vm679, %v848, %v905
        %907 = vst [vmem:[#allocation2 + $0x30] sm:$0x1] %v906
        %v908 = vld [vmem:[#allocation2 + $0x3c] sm:$0x1]
        %v909 = vsel %vm679, %v850, %v908
        %910 = vst [vmem:[#allocation2 + $0x3c] sm:$0x1] %v909
        %v911 = vld [vmem:[#allocation2 + $0x48] sm:$0x1]
        %v912 = vsel %vm679, %v852, %v911
        %913 = vst [vmem:[#allocation2 + $0x48] sm:$0x1] %v912
        %v914 = vld [vmem:[#allocation2 + $0x54] sm:$0x1]
        %v915 = vsel %vm679, %v854, %v914
        %916 = vst [vmem:[#allocation2 + $0x54] sm:$0x1] %v915
        %v917 = vld [vmem:[#allocation2 + $0x60] sm:$0x1]
        %v918 = vsel %vm679, %v856, %v917
        %919 = vst [vmem:[#allocation2 + $0x60] sm:$0x1] %v918
        %v920 = vld [vmem:[#allocation2 + $0x6c] sm:$0x1]
        %v921 = vsel %vm679, %v858, %v920
        %922 = vst [vmem:[#allocation2 + $0x6c] sm:$0x1] %v921
        %v923 = vld [vmem:[#allocation2 + $0x78] sm:$0x1]
        %v924 = vsel %vm679, %v860, %v923
        %925 = vst [vmem:[#allocation2 + $0x78] sm:$0x1] %v924
        %v926 = vld [vmem:[#allocation2 + $0x84] sm:$0x1]
        %v927 = vsel %vm679, %v862, %v926
        %928 = vst [vmem:[#allocation2 + $0x84] sm:$0x1] %v927
        %v929 = vld [vmem:[#allocation2 + $0x90] sm:$0x1]
        %v930 = vsel %vm679, %v864, %v929
        %931 = vst [vmem:[#allocation2 + $0x90] sm:$0x1] %v930
        %v932 = vld [vmem:[#allocation2 + $0x9c] sm:$0x1]
        %v933 = vsel %vm679, %v866, %v932
        %934 = vst [vmem:[#allocation2 + $0x9c] sm:$0x1] %v933
        %v935 = vld [vmem:[#allocation2 + $0xa8] sm:$0x1]
        %v936 = vsel %vm679, %v868, %v935
        %937 = vst [vmem:[#allocation2 + $0xa8] sm:$0x1] %v936
        %v938 = vld [vmem:[#allocation2 + $0xb4] sm:$0x1]
        %v939 = vsel %vm679, %v870, %v938
        %940 = vst [vmem:[#allocation2 + $0xb4] sm:$0x1] %v939
        %v941 = vld [vmem:[#allocation2 + $0xc0] sm:$0x1]
        %v942 = vsel %vm679, %v872, %v941
        %943 = vst [vmem:[#allocation2 + $0xc0] sm:$0x1] %v942
        %v944 = vld [vmem:[#allocation2 + $0xcc] sm:$0x1]
        %v945 = vsel %vm679, %v874, %v944
        %946 = vst [vmem:[#allocation2 + $0xcc] sm:$0x1] %v945
        %v947 = vld [vmem:[#allocation2 + $0x4] sm:$0x8]
        %v948 = vld [vmem:[#allocation2 + $0x10] sm:$0x8]
        %v949 = vld [vmem:[#allocation2 + $0x1c] sm:$0x8]
        %v950 = vld [vmem:[#allocation2 + $0x28] sm:$0x8]
        %v951 = vld [vmem:[#allocation2 + $0x34] sm:$0x8]
        %v952 = vld [vmem:[#allocation2 + $0x40] sm:$0x8]
        %v953 = vld [vmem:[#allocation2 + $0x4c] sm:$0x8]
        %v954 = vld [vmem:[#allocation2 + $0x58] sm:$0x8]
        %v955 = vld [vmem:[#allocation2 + $0x64] sm:$0x8]
        %v956 = vld [vmem:[#allocation2 + $0x70] sm:$0x8]
        %v957 = vld [vmem:[#allocation2 + $0x7c] sm:$0x8]
        %v958 = vld [vmem:[#allocation2 + $0x88] sm:$0x8]
        %v959 = vld [vmem:[#allocation2 + $0x94] sm:$0x8]
        %v960 = vld [vmem:[#allocation2 + $0xa0] sm:$0x8]
        %v961 = vld [vmem:[#allocation2 + $0xac] sm:$0x8]
        %v962 = vld [vmem:[#allocation2 + $0xb8] sm:$0x8]
        %v963 = vld [vmem:[#allocation2 + $0xc4] sm:$0x8]
        %v964 = vld [vmem:[#allocation2 + $0xd0] sm:$0x8]
        %v983 = vrot.slane %v947, 7
        %v984 = vrot.slane %v983, 4
        %v985 = vrot.slane %v948, 7
        %v986 = vrot.slane %v985, 4
        %v987 = vrot.slane %v949, 7
        %v988 = vrot.slane %v987, 4
        %v989 = vrot.slane %v950, 7
        %v990 = vrot.slane %v989, 4
        %v991 = vrot.slane %v951, 7
        %v992 = vrot.slane %v991, 4
        %v993 = vrot.slane %v952, 7
        %v994 = vrot.slane %v993, 4
        %v995 = vrot.slane %v953, 7
        %v996 = vrot.slane %v995, 4
        %v997 = vrot.slane %v954, 7
        %v998 = vrot.slane %v997, 4
        %v999 = vrot.slane %v955, 7
        %v1000 = vrot.slane %v999, 4
        %v1001 = vrot.slane %v956, 7
        %v1002 = vrot.slane %v1001, 4
        %v1003 = vrot.slane %v957, 7
        %v1004 = vrot.slane %v1003, 4
        %v1005 = vrot.slane %v958, 7
        %v1006 = vrot.slane %v1005, 4
        %v1007 = vrot.slane %v959, 7
        %v1008 = vrot.slane %v1007, 4
        %v1009 = vrot.slane %v960, 7
        %v1010 = vrot.slane %v1009, 4
        %v1011 = vrot.slane %v961, 7
        %v1012 = vrot.slane %v1011, 4
        %v1013 = vrot.slane %v962, 7
        %v1014 = vrot.slane %v1013, 4
        %v1015 = vrot.slane %v963, 7
        %v1016 = vrot.slane %v1015, 4
        %v1017 = vrot.slane %v964, 7
        %v1018 = vrot.slane %v1017, 4
        %vm1037 = vmand %vm678, %vm672
        %v1038 = vld [vmem:[#allocation2 + $0x8] sm:$0x1]
        %v1039 = vsel %vm1037, %v984, %v1038
        %1040 = vst [vmem:[#allocation2 + $0x8] sm:$0x1] %v1039
        %v1041 = vld [vmem:[#allocation2 + $0x14] sm:$0x1]
        %v1042 = vsel %vm1037, %v986, %v1041
        %1043 = vst [vmem:[#allocation2 + $0x14] sm:$0x1] %v1042
        %v1044 = vld [vmem:[#allocation2 + $0x20] sm:$0x1]
        %v1045 = vsel %vm1037, %v988, %v1044
        %1046 = vst [vmem:[#allocation2 + $0x20] sm:$0x1] %v1045
        %v1047 = vld [vmem:[#allocation2 + $0x2c] sm:$0x1]
        %v1048 = vsel %vm1037, %v990, %v1047
        %1049 = vst [vmem:[#allocation2 + $0x2c] sm:$0x1] %v1048
        %v1050 = vld [vmem:[#allocation2 + $0x38] sm:$0x1]
        %v1051 = vsel %vm1037, %v992, %v1050
        %1052 = vst [vmem:[#allocation2 + $0x38] sm:$0x1] %v1051
        %v1053 = vld [vmem:[#allocation2 + $0x44] sm:$0x1]
        %v1054 = vsel %vm1037, %v994, %v1053
        %1055 = vst [vmem:[#allocation2 + $0x44] sm:$0x1] %v1054
        %v1056 = vld [vmem:[#allocation2 + $0x50] sm:$0x1]
        %v1057 = vsel %vm1037, %v996, %v1056
        %1058 = vst [vmem:[#allocation2 + $0x50] sm:$0x1] %v1057
        %v1059 = vld [vmem:[#allocation2 + $0x5c] sm:$0x1]
        %v1060 = vsel %vm1037, %v998, %v1059
        %1061 = vst [vmem:[#allocation2 + $0x5c] sm:$0x1] %v1060
        %v1062 = vld [vmem:[#allocation2 + $0x68] sm:$0x1]
        %v1063 = vsel %vm1037, %v1000, %v1062
        %1064 = vst [vmem:[#allocation2 + $0x68] sm:$0x1] %v1063
        %v1065 = vld [vmem:[#allocation2 + $0x74] sm:$0x1]
        %v1066 = vsel %vm1037, %v1002, %v1065
        %1067 = vst [vmem:[#allocation2 + $0x74] sm:$0x1] %v1066
        %v1068 = vld [vmem:[#allocation2 + $0x80] sm:$0x1]
        %v1069 = vsel %vm1037, %v1004, %v1068
        %1070 = vst [vmem:[#allocation2 + $0x80] sm:$0x1] %v1069
        %v1071 = vld [vmem:[#allocation2 + $0x8c] sm:$0x1]
        %v1072 = vsel %vm1037, %v1006, %v1071
        %1073 = vst [vmem:[#allocation2 + $0x8c] sm:$0x1] %v1072
        %v1074 = vld [vmem:[#allocation2 + $0x98] sm:$0x1]
        %v1075 = vsel %vm1037, %v1008, %v1074
        %1076 = vst [vmem:[#allocation2 + $0x98] sm:$0x1] %v1075
        %v1077 = vld [vmem:[#allocation2 + $0xa4] sm:$0x1]
        %v1078 = vsel %vm1037, %v1010, %v1077
        %1079 = vst [vmem:[#allocation2 + $0xa4] sm:$0x1] %v1078
        %v1080 = vld [vmem:[#allocation2 + $0xb0] sm:$0x1]
        %v1081 = vsel %vm1037, %v1012, %v1080
        %1082 = vst [vmem:[#allocation2 + $0xb0] sm:$0x1] %v1081
        %v1083 = vld [vmem:[#allocation2 + $0xbc] sm:$0x1]
        %v1084 = vsel %vm1037, %v1014, %v1083
        %1085 = vst [vmem:[#allocation2 + $0xbc] sm:$0x1] %v1084
        %v1086 = vld [vmem:[#allocation2 + $0xc8] sm:$0x1]
        %v1087 = vsel %vm1037, %v1016, %v1086
        %1088 = vst [vmem:[#allocation2 + $0xc8] sm:$0x1] %v1087
        %v1089 = vld [vmem:[#allocation2 + $0xd4] sm:$0x1]
        %v1090 = vsel %vm1037, %v1018, %v1089
        %1091 = vst [vmem:[#allocation2 + $0xd4] sm:$0x1] %v1090
        %v1092 = vld [vmem:[#allocation2] sm:$0xf]
        %v1093 = vld [vmem:[#allocation2 + $0x4] sm:$0xf]
        %v1094 = vld [vmem:[#allocation2 + $0xc] sm:$0xf]
        %v1095 = vld [vmem:[#allocation2 + $0x10] sm:$0xf]
        %v1096 = vld [vmem:[#allocation2 + $0x18] sm:$0xf]
        %v1097 = vld [vmem:[#allocation2 + $0x1c] sm:$0xf]
        %v1098 = vld [vmem:[#allocation2 + $0x24] sm:$0xf]
        %v1099 = vld [vmem:[#allocation2 + $0x28] sm:$0xf]
        %v1100 = vld [vmem:[#allocation2 + $0x30] sm:$0xf]
        %v1101 = vld [vmem:[#allocation2 + $0x34] sm:$0xf]
        %v1102 = vld [vmem:[#allocation2 + $0x3c] sm:$0xf]
        %v1103 = vld [vmem:[#allocation2 + $0x40] sm:$0xf]
        %v1104 = vld [vmem:[#allocation2 + $0x48] sm:$0xf]
        %v1105 = vld [vmem:[#allocation2 + $0x4c] sm:$0xf]
        %v1106 = vld [vmem:[#allocation2 + $0x54] sm:$0xf]
        %v1107 = vld [vmem:[#allocation2 + $0x58] sm:$0xf]
        %v1108 = vld [vmem:[#allocation2 + $0x60] sm:$0xf]
        %v1109 = vld [vmem:[#allocation2 + $0x64] sm:$0xf]
        %v1110 = vld [vmem:[#allocation2 + $0x6c] sm:$0xf]
        %v1111 = vld [vmem:[#allocation2 + $0x70] sm:$0xf]
        %v1112 = vld [vmem:[#allocation2 + $0x78] sm:$0xf]
        %v1113 = vld [vmem:[#allocation2 + $0x7c] sm:$0xf]
        %v1114 = vld [vmem:[#allocation2 + $0x84] sm:$0xf]
        %v1115 = vld [vmem:[#allocation2 + $0x88] sm:$0xf]
        %v1116 = vld [vmem:[#allocation2 + $0x90] sm:$0xf]
        %v1117 = vld [vmem:[#allocation2 + $0x94] sm:$0xf]
        %v1118 = vld [vmem:[#allocation2 + $0x9c] sm:$0xf]
        %v1119 = vld [vmem:[#allocation2 + $0xa0] sm:$0xf]
        %v1120 = vld [vmem:[#allocation2 + $0xa8] sm:$0xf]
        %v1121 = vld [vmem:[#allocation2 + $0xac] sm:$0xf]
        %v1122 = vld [vmem:[#allocation2 + $0xb4] sm:$0xf]
        %v1123 = vld [vmem:[#allocation2 + $0xb8] sm:$0xf]
        %v1156 = vunpack.c.l.b16 %v1092
        %v1157 = vunpack.c.l.b16 %v1093
        %v1158 = vunpack.c.l.b16 %v1094
        %v1159 = vunpack.c.l.b16 %v1095
        %v1160 = vunpack.c.l.b16 %v1096
        %v1161 = vunpack.c.l.b16 %v1097
        %v1162 = vunpack.c.l.b16 %v1098
        %v1163 = vunpack.c.l.b16 %v1099
        %v1164 = vunpack.c.l.b16 %v1100
        %v1165 = vunpack.c.l.b16 %v1101
        %v1166 = vunpack.c.l.b16 %v1102
        %v1167 = vunpack.c.l.b16 %v1103
        %v1168 = vunpack.c.l.b16 %v1104
        %v1169 = vunpack.c.l.b16 %v1105
        %v1170 = vunpack.c.l.b16 %v1106
        %v1171 = vunpack.c.l.b16 %v1107
        %v1172 = vunpack.c.l.b16 %v1108
        %v1173 = vunpack.c.l.b16 %v1109
        %v1174 = vunpack.c.l.b16 %v1110
        %v1175 = vunpack.c.l.b16 %v1111
        %v1176 = vunpack.c.l.b16 %v1112
        %v1177 = vunpack.c.l.b16 %v1113
        %v1178 = vunpack.c.l.b16 %v1114
        %v1179 = vunpack.c.l.b16 %v1115
        %v1180 = vunpack.c.l.b16 %v1116
        %v1181 = vunpack.c.l.b16 %v1117
        %v1182 = vunpack.c.l.b16 %v1118
        %v1183 = vunpack.c.l.b16 %v1119
        %v1184 = vunpack.c.l.b16 %v1120
        %v1185 = vunpack.c.l.b16 %v1121
        %v1186 = vunpack.c.l.b16 %v1122
        %v1187 = vunpack.c.l.b16 %v1123
        %v1188 = vpack.c.b16 %v1157, %v1156
        %v1189 = vpack.c.b16 %v1159, %v1158
        %v1190 = vpack.c.b16 %v1161, %v1160
        %v1191 = vpack.c.b16 %v1163, %v1162
        %v1192 = vpack.c.b16 %v1165, %v1164
        %v1193 = vpack.c.b16 %v1167, %v1166
        %v1194 = vpack.c.b16 %v1169, %v1168
        %v1195 = vpack.c.b16 %v1171, %v1170
        %v1196 = vpack.c.b16 %v1173, %v1172
        %v1197 = vpack.c.b16 %v1175, %v1174
        %v1198 = vpack.c.b16 %v1177, %v1176
        %v1199 = vpack.c.b16 %v1179, %v1178
        %v1200 = vpack.c.b16 %v1181, %v1180
        %v1201 = vpack.c.b16 %v1183, %v1182
        %v1202 = vpack.c.b16 %v1185, %v1184
        %v1203 = vpack.c.b16 %v1187, %v1186
        %1220 = vst [vmem:[#allocation3] sm:$0xff] %v1188
        %1221 = vst [vmem:[#allocation3 + $0x48] sm:$0xff] %v1189
        %1222 = vst [vmem:[#allocation3 + $0x90] sm:$0xff] %v1190
        %1223 = vst [vmem:[#allocation3 + $0xd8] sm:$0xff] %v1191
        %1224 = vst [vmem:[#allocation3 + $0x120] sm:$0xff] %v1192
        %1225 = vst [vmem:[#allocation3 + $0x168] sm:$0xff] %v1193
        %1226 = vst [vmem:[#allocation3 + $0x1b0] sm:$0xff] %v1194
        %1227 = vst [vmem:[#allocation3 + $0x1f8] sm:$0xff] %v1195
        %1228 = vst [vmem:[#allocation3 + $0x240] sm:$0xff] %v1196
        %1229 = vst [vmem:[#allocation3 + $0x288] sm:$0xff] %v1197
        %1230 = vst [vmem:[#allocation3 + $0x2d0] sm:$0xff] %v1198
        %1231 = vst [vmem:[#allocation3 + $0x318] sm:$0xff] %v1199
        %1232 = vst [vmem:[#allocation3 + $0x360] sm:$0xff] %v1200
        %1233 = vst [vmem:[#allocation3 + $0x3a8] sm:$0xff] %v1201
        %1234 = vst [vmem:[#allocation3 + $0x3f0] sm:$0xff] %v1202
        %1235 = vst [vmem:[#allocation3 + $0x438] sm:$0xff] %v1203
        %v1236 = vld [vmem:[#allocation2] sm:$0xf]
        %v1237 = vld [vmem:[#allocation2 + $0x4] sm:$0xf]
        %v1238 = vld [vmem:[#allocation2 + $0x8] sm:$0x1]
        %v1239 = vld [vmem:[#allocation2 + $0xc] sm:$0xf]
        %v1240 = vld [vmem:[#allocation2 + $0x10] sm:$0xf]
        %v1241 = vld [vmem:[#allocation2 + $0x14] sm:$0x1]
        %v1242 = vld [vmem:[#allocation2 + $0x18] sm:$0xf]
        %v1243 = vld [vmem:[#allocation2 + $0x1c] sm:$0xf]
        %v1244 = vld [vmem:[#allocation2 + $0x20] sm:$0x1]
        %v1245 = vld [vmem:[#allocation2 + $0x24] sm:$0xf]
        %v1246 = vld [vmem:[#allocation2 + $0x28] sm:$0xf]
        %v1247 = vld [vmem:[#allocation2 + $0x2c] sm:$0x1]
        %v1248 = vld [vmem:[#allocation2 + $0x30] sm:$0xf]
        %v1249 = vld [vmem:[#allocation2 + $0x34] sm:$0xf]
        %v1250 = vld [vmem:[#allocation2 + $0x38] sm:$0x1]
        %v1251 = vld [vmem:[#allocation2 + $0x3c] sm:$0xf]
        %v1252 = vld [vmem:[#allocation2 + $0x40] sm:$0xf]
        %v1253 = vld [vmem:[#allocation2 + $0x44] sm:$0x1]
        %v1254 = vld [vmem:[#allocation2 + $0x48] sm:$0xf]
        %v1255 = vld [vmem:[#allocation2 + $0x4c] sm:$0xf]
        %v1256 = vld [vmem:[#allocation2 + $0x50] sm:$0x1]
        %v1257 = vld [vmem:[#allocation2 + $0x54] sm:$0xf]
        %v1258 = vld [vmem:[#allocation2 + $0x58] sm:$0xf]
        %v1259 = vld [vmem:[#allocation2 + $0x5c] sm:$0x1]
        %v1260 = vld [vmem:[#allocation2 + $0x60] sm:$0xf]
        %v1261 = vld [vmem:[#allocation2 + $0x64] sm:$0xf]
        %v1262 = vld [vmem:[#allocation2 + $0x68] sm:$0x1]
        %v1263 = vld [vmem:[#allocation2 + $0x6c] sm:$0xf]
        %v1264 = vld [vmem:[#allocation2 + $0x70] sm:$0xf]
        %v1265 = vld [vmem:[#allocation2 + $0x74] sm:$0x1]
        %v1266 = vld [vmem:[#allocation2 + $0x78] sm:$0xf]
        %v1267 = vld [vmem:[#allocation2 + $0x7c] sm:$0xf]
        %v1268 = vld [vmem:[#allocation2 + $0x80] sm:$0x1]
        %v1269 = vld [vmem:[#allocation2 + $0x84] sm:$0xf]
        %v1270 = vld [vmem:[#allocation2 + $0x88] sm:$0xf]
        %v1271 = vld [vmem:[#allocation2 + $0x8c] sm:$0x1]
        %v1272 = vld [vmem:[#allocation2 + $0x90] sm:$0xf]
        %v1273 = vld [vmem:[#allocation2 + $0x94] sm:$0xf]
        %v1274 = vld [vmem:[#allocation2 + $0x98] sm:$0x1]
        %v1275 = vld [vmem:[#allocation2 + $0x9c] sm:$0xf]
        %v1276 = vld [vmem:[#allocation2 + $0xa0] sm:$0xf]
        %v1277 = vld [vmem:[#allocation2 + $0xa4] sm:$0x1]
        %v1278 = vld [vmem:[#allocation2 + $0xa8] sm:$0xf]
        %v1279 = vld [vmem:[#allocation2 + $0xac] sm:$0xf]
        %v1280 = vld [vmem:[#allocation2 + $0xb0] sm:$0x1]
        %v1281 = vld [vmem:[#allocation2 + $0xb4] sm:$0xf]
        %v1282 = vld [vmem:[#allocation2 + $0xb8] sm:$0xf]
        %v1283 = vld [vmem:[#allocation2 + $0xbc] sm:$0x1]
        %vm1284 = vsmask.f32 3328
        %vm1285 = vsmask.f32 7440
        %vm1286 = vmor %vm1284, %vm1285
        %v1288 = vshrl.u32 %v1236, 16
        %v1290 = vrot.slane %v1288, 4
        %v1291 = vshll.u32 %v1236, 16
        %v1293 = vrot.slane %v1291, 5
        %v1294 = vor.u32 %v1290, %v1293
        %v1295 = vrot.slane %v1294, 4
        %v1297 = vshll.u32 %v1237, 16
        %v1299 = vrot.slane %v1297, 5
        %v1300 = vsel %vm1286, %v1295, %v1299
        %v1301 = vshrl.u32 %v1237, 16
        %v1303 = vrot.slane %v1301, 4
        %v1304 = vor.u32 %v1303, %v1299
        %v1305 = vrot.slane %v1304, 4
        %v1307 = vshll.u32 %v1238, 16
        %v1309 = vrot.slane %v1307, 5
        %v1310 = vsel %vm1286, %v1305, %v1309
        %v1312 = vshrl.u32 %v1239, 16
        %v1314 = vrot.slane %v1312, 4
        %v1315 = vshll.u32 %v1239, 16
        %v1317 = vrot.slane %v1315, 5
        %v1318 = vor.u32 %v1314, %v1317
        %v1319 = vrot.slane %v1318, 4
        %v1321 = vshll.u32 %v1240, 16
        %v1323 = vrot.slane %v1321, 5
        %v1324 = vsel %vm1286, %v1319, %v1323
        %v1325 = vshrl.u32 %v1240, 16
        %v1327 = vrot.slane %v1325, 4
        %v1328 = vor.u32 %v1327, %v1323
        %v1329 = vrot.slane %v1328, 4
        %v1331 = vshll.u32 %v1241, 16
        %v1333 = vrot.slane %v1331, 5
        %v1334 = vsel %vm1286, %v1329, %v1333
        %v1336 = vshrl.u32 %v1242, 16
        %v1338 = vrot.slane %v1336, 4
        %v1339 = vshll.u32 %v1242, 16
        %v1341 = vrot.slane %v1339, 5
        %v1342 = vor.u32 %v1338, %v1341
        %v1343 = vrot.slane %v1342, 4
        %v1345 = vshll.u32 %v1243, 16
        %v1347 = vrot.slane %v1345, 5
        %v1348 = vsel %vm1286, %v1343, %v1347
        %v1349 = vshrl.u32 %v1243, 16
        %v1351 = vrot.slane %v1349, 4
        %v1352 = vor.u32 %v1351, %v1347
        %v1353 = vrot.slane %v1352, 4
        %v1355 = vshll.u32 %v1244, 16
        %v1357 = vrot.slane %v1355, 5
        %v1358 = vsel %vm1286, %v1353, %v1357
        %v1360 = vshrl.u32 %v1245, 16
        %v1362 = vrot.slane %v1360, 4
        %v1363 = vshll.u32 %v1245, 16
        %v1365 = vrot.slane %v1363, 5
        %v1366 = vor.u32 %v1362, %v1365
        %v1367 = vrot.slane %v1366, 4
        %v1369 = vshll.u32 %v1246, 16
        %v1371 = vrot.slane %v1369, 5
        %v1372 = vsel %vm1286, %v1367, %v1371
        %v1373 = vshrl.u32 %v1246, 16
        %v1375 = vrot.slane %v1373, 4
        %v1376 = vor.u32 %v1375, %v1371
        %v1377 = vrot.slane %v1376, 4
        %v1379 = vshll.u32 %v1247, 16
        %v1381 = vrot.slane %v1379, 5
        %v1382 = vsel %vm1286, %v1377, %v1381
        %v1384 = vshrl.u32 %v1248, 16
        %v1386 = vrot.slane %v1384, 4
        %v1387 = vshll.u32 %v1248, 16
        %v1389 = vrot.slane %v1387, 5
        %v1390 = vor.u32 %v1386, %v1389
        %v1391 = vrot.slane %v1390, 4
        %v1393 = vshll.u32 %v1249, 16
        %v1395 = vrot.slane %v1393, 5
        %v1396 = vsel %vm1286, %v1391, %v1395
        %v1397 = vshrl.u32 %v1249, 16
        %v1399 = vrot.slane %v1397, 4
        %v1400 = vor.u32 %v1399, %v1395
        %v1401 = vrot.slane %v1400, 4
        %v1403 = vshll.u32 %v1250, 16
        %v1405 = vrot.slane %v1403, 5
        %v1406 = vsel %vm1286, %v1401, %v1405
        %v1408 = vshrl.u32 %v1251, 16
        %v1410 = vrot.slane %v1408, 4
        %v1411 = vshll.u32 %v1251, 16
        %v1413 = vrot.slane %v1411, 5
        %v1414 = vor.u32 %v1410, %v1413
        %v1415 = vrot.slane %v1414, 4
        %v1417 = vshll.u32 %v1252, 16
        %v1419 = vrot.slane %v1417, 5
        %v1420 = vsel %vm1286, %v1415, %v1419
        %v1421 = vshrl.u32 %v1252, 16
        %v1423 = vrot.slane %v1421, 4
        %v1424 = vor.u32 %v1423, %v1419
        %v1425 = vrot.slane %v1424, 4
        %v1427 = vshll.u32 %v1253, 16
        %v1429 = vrot.slane %v1427, 5
        %v1430 = vsel %vm1286, %v1425, %v1429
        %v1432 = vshrl.u32 %v1254, 16
        %v1434 = vrot.slane %v1432, 4
        %v1435 = vshll.u32 %v1254, 16
        %v1437 = vrot.slane %v1435, 5
        %v1438 = vor.u32 %v1434, %v1437
        %v1439 = vrot.slane %v1438, 4
        %v1441 = vshll.u32 %v1255, 16
        %v1443 = vrot.slane %v1441, 5
        %v1444 = vsel %vm1286, %v1439, %v1443
        %v1445 = vshrl.u32 %v1255, 16
        %v1447 = vrot.slane %v1445, 4
        %v1448 = vor.u32 %v1447, %v1443
        %v1449 = vrot.slane %v1448, 4
        %v1451 = vshll.u32 %v1256, 16
        %v1453 = vrot.slane %v1451, 5
        %v1454 = vsel %vm1286, %v1449, %v1453
        %v1456 = vshrl.u32 %v1257, 16
        %v1458 = vrot.slane %v1456, 4
        %v1459 = vshll.u32 %v1257, 16
        %v1461 = vrot.slane %v1459, 5
        %v1462 = vor.u32 %v1458, %v1461
        %v1463 = vrot.slane %v1462, 4
        %v1465 = vshll.u32 %v1258, 16
        %v1467 = vrot.slane %v1465, 5
        %v1468 = vsel %vm1286, %v1463, %v1467
        %v1469 = vshrl.u32 %v1258, 16
        %v1471 = vrot.slane %v1469, 4
        %v1472 = vor.u32 %v1471, %v1467
        %v1473 = vrot.slane %v1472, 4
        %v1475 = vshll.u32 %v1259, 16
        %v1477 = vrot.slane %v1475, 5
        %v1478 = vsel %vm1286, %v1473, %v1477
        %v1480 = vshrl.u32 %v1260, 16
        %v1482 = vrot.slane %v1480, 4
        %v1483 = vshll.u32 %v1260, 16
        %v1485 = vrot.slane %v1483, 5
        %v1486 = vor.u32 %v1482, %v1485
        %v1487 = vrot.slane %v1486, 4
        %v1489 = vshll.u32 %v1261, 16
        %v1491 = vrot.slane %v1489, 5
        %v1492 = vsel %vm1286, %v1487, %v1491
        %v1493 = vshrl.u32 %v1261, 16
        %v1495 = vrot.slane %v1493, 4
        %v1496 = vor.u32 %v1495, %v1491
        %v1497 = vrot.slane %v1496, 4
        %v1499 = vshll.u32 %v1262, 16
        %v1501 = vrot.slane %v1499, 5
        %v1502 = vsel %vm1286, %v1497, %v1501
        %v1504 = vshrl.u32 %v1263, 16
        %v1506 = vrot.slane %v1504, 4
        %v1507 = vshll.u32 %v1263, 16
        %v1509 = vrot.slane %v1507, 5
        %v1510 = vor.u32 %v1506, %v1509
        %v1511 = vrot.slane %v1510, 4
        %v1513 = vshll.u32 %v1264, 16
        %v1515 = vrot.slane %v1513, 5
        %v1516 = vsel %vm1286, %v1511, %v1515
        %v1517 = vshrl.u32 %v1264, 16
        %v1519 = vrot.slane %v1517, 4
        %v1520 = vor.u32 %v1519, %v1515
        %v1521 = vrot.slane %v1520, 4
        %v1523 = vshll.u32 %v1265, 16
        %v1525 = vrot.slane %v1523, 5
        %v1526 = vsel %vm1286, %v1521, %v1525
        %v1528 = vshrl.u32 %v1266, 16
        %v1530 = vrot.slane %v1528, 4
        %v1531 = vshll.u32 %v1266, 16
        %v1533 = vrot.slane %v1531, 5
        %v1534 = vor.u32 %v1530, %v1533
        %v1535 = vrot.slane %v1534, 4
        %v1537 = vshll.u32 %v1267, 16
        %v1539 = vrot.slane %v1537, 5
        %v1540 = vsel %vm1286, %v1535, %v1539
        %v1541 = vshrl.u32 %v1267, 16
        %v1543 = vrot.slane %v1541, 4
        %v1544 = vor.u32 %v1543, %v1539
        %v1545 = vrot.slane %v1544, 4
        %v1547 = vshll.u32 %v1268, 16
        %v1549 = vrot.slane %v1547, 5
        %v1550 = vsel %vm1286, %v1545, %v1549
        %v1552 = vshrl.u32 %v1269, 16
        %v1554 = vrot.slane %v1552, 4
        %v1555 = vshll.u32 %v1269, 16
        %v1557 = vrot.slane %v1555, 5
        %v1558 = vor.u32 %v1554, %v1557
        %v1559 = vrot.slane %v1558, 4
        %v1561 = vshll.u32 %v1270, 16
        %v1563 = vrot.slane %v1561, 5
        %v1564 = vsel %vm1286, %v1559, %v1563
        %v1565 = vshrl.u32 %v1270, 16
        %v1567 = vrot.slane %v1565, 4
        %v1568 = vor.u32 %v1567, %v1563
        %v1569 = vrot.slane %v1568, 4
        %v1571 = vshll.u32 %v1271, 16
        %v1573 = vrot.slane %v1571, 5
        %v1574 = vsel %vm1286, %v1569, %v1573
        %v1576 = vshrl.u32 %v1272, 16
        %v1578 = vrot.slane %v1576, 4
        %v1579 = vshll.u32 %v1272, 16
        %v1581 = vrot.slane %v1579, 5
        %v1582 = vor.u32 %v1578, %v1581
        %v1583 = vrot.slane %v1582, 4
        %v1585 = vshll.u32 %v1273, 16
        %v1587 = vrot.slane %v1585, 5
        %v1588 = vsel %vm1286, %v1583, %v1587
        %v1589 = vshrl.u32 %v1273, 16
        %v1591 = vrot.slane %v1589, 4
        %v1592 = vor.u32 %v1591, %v1587
        %v1593 = vrot.slane %v1592, 4
        %v1595 = vshll.u32 %v1274, 16
        %v1597 = vrot.slane %v1595, 5
        %v1598 = vsel %vm1286, %v1593, %v1597
        %v1600 = vshrl.u32 %v1275, 16
        %v1602 = vrot.slane %v1600, 4
        %v1603 = vshll.u32 %v1275, 16
        %v1605 = vrot.slane %v1603, 5
        %v1606 = vor.u32 %v1602, %v1605
        %v1607 = vrot.slane %v1606, 4
        %v1609 = vshll.u32 %v1276, 16
        %v1611 = vrot.slane %v1609, 5
        %v1612 = vsel %vm1286, %v1607, %v1611
        %v1613 = vshrl.u32 %v1276, 16
        %v1615 = vrot.slane %v1613, 4
        %v1616 = vor.u32 %v1615, %v1611
        %v1617 = vrot.slane %v1616, 4
        %v1619 = vshll.u32 %v1277, 16
        %v1621 = vrot.slane %v1619, 5
        %v1622 = vsel %vm1286, %v1617, %v1621
        %v1624 = vshrl.u32 %v1278, 16
        %v1626 = vrot.slane %v1624, 4
        %v1627 = vshll.u32 %v1278, 16
        %v1629 = vrot.slane %v1627, 5
        %v1630 = vor.u32 %v1626, %v1629
        %v1631 = vrot.slane %v1630, 4
        %v1633 = vshll.u32 %v1279, 16
        %v1635 = vrot.slane %v1633, 5
        %v1636 = vsel %vm1286, %v1631, %v1635
        %v1637 = vshrl.u32 %v1279, 16
        %v1639 = vrot.slane %v1637, 4
        %v1640 = vor.u32 %v1639, %v1635
        %v1641 = vrot.slane %v1640, 4
        %v1643 = vshll.u32 %v1280, 16
        %v1645 = vrot.slane %v1643, 5
        %v1646 = vsel %vm1286, %v1641, %v1645
        %v1648 = vshrl.u32 %v1281, 16
        %v1650 = vrot.slane %v1648, 4
        %v1651 = vshll.u32 %v1281, 16
        %v1653 = vrot.slane %v1651, 5
        %v1654 = vor.u32 %v1650, %v1653
        %v1655 = vrot.slane %v1654, 4
        %v1657 = vshll.u32 %v1282, 16
        %v1659 = vrot.slane %v1657, 5
        %v1660 = vsel %vm1286, %v1655, %v1659
        %v1661 = vshrl.u32 %v1282, 16
        %v1663 = vrot.slane %v1661, 4
        %v1664 = vor.u32 %v1663, %v1659
        %v1665 = vrot.slane %v1664, 4
        %v1667 = vshll.u32 %v1283, 16
        %v1669 = vrot.slane %v1667, 5
        %v1670 = vsel %vm1286, %v1665, %v1669
        %v1671 = vunpack.c.l.b16 %v1300
        %v1672 = vunpack.c.l.b16 %v1310
        %v1673 = vunpack.c.l.b16 %v1324
        %v1674 = vunpack.c.l.b16 %v1334
        %v1675 = vunpack.c.l.b16 %v1348
        %v1676 = vunpack.c.l.b16 %v1358
        %v1677 = vunpack.c.l.b16 %v1372
        %v1678 = vunpack.c.l.b16 %v1382
        %v1679 = vunpack.c.l.b16 %v1396
        %v1680 = vunpack.c.l.b16 %v1406
        %v1681 = vunpack.c.l.b16 %v1420
        %v1682 = vunpack.c.l.b16 %v1430
        %v1683 = vunpack.c.l.b16 %v1444
        %v1684 = vunpack.c.l.b16 %v1454
        %v1685 = vunpack.c.l.b16 %v1468
        %v1686 = vunpack.c.l.b16 %v1478
        %v1687 = vunpack.c.l.b16 %v1492
        %v1688 = vunpack.c.l.b16 %v1502
        %v1689 = vunpack.c.l.b16 %v1516
        %v1690 = vunpack.c.l.b16 %v1526
        %v1691 = vunpack.c.l.b16 %v1540
        %v1692 = vunpack.c.l.b16 %v1550
        %v1693 = vunpack.c.l.b16 %v1564
        %v1694 = vunpack.c.l.b16 %v1574
        %v1695 = vunpack.c.l.b16 %v1588
        %v1696 = vunpack.c.l.b16 %v1598
        %v1697 = vunpack.c.l.b16 %v1612
        %v1698 = vunpack.c.l.b16 %v1622
        %v1699 = vunpack.c.l.b16 %v1636
        %v1700 = vunpack.c.l.b16 %v1646
        %v1701 = vunpack.c.l.b16 %v1660
        %v1702 = vunpack.c.l.b16 %v1670
        %v1703 = vpack.c.b16 %v1672, %v1671
        %v1704 = vpack.c.b16 %v1674, %v1673
        %v1705 = vpack.c.b16 %v1676, %v1675
        %v1706 = vpack.c.b16 %v1678, %v1677
        %v1707 = vpack.c.b16 %v1680, %v1679
        %v1708 = vpack.c.b16 %v1682, %v1681
        %v1709 = vpack.c.b16 %v1684, %v1683
        %v1710 = vpack.c.b16 %v1686, %v1685
        %v1711 = vpack.c.b16 %v1688, %v1687
        %v1712 = vpack.c.b16 %v1690, %v1689
        %v1713 = vpack.c.b16 %v1692, %v1691
        %v1714 = vpack.c.b16 %v1694, %v1693
        %v1715 = vpack.c.b16 %v1696, %v1695
        %v1716 = vpack.c.b16 %v1698, %v1697
        %v1717 = vpack.c.b16 %v1700, %v1699
        %v1718 = vpack.c.b16 %v1702, %v1701
        %1735 = vst [vmem:[#allocation3 + $0x8] sm:$0xff] %v1703
        %1736 = vst [vmem:[#allocation3 + $0x50] sm:$0xff] %v1704
        %1737 = vst [vmem:[#allocation3 + $0x98] sm:$0xff] %v1705
        %1738 = vst [vmem:[#allocation3 + $0xe0] sm:$0xff] %v1706
        %1739 = vst [vmem:[#allocation3 + $0x128] sm:$0xff] %v1707
        %1740 = vst [vmem:[#allocation3 + $0x170] sm:$0xff] %v1708
        %1741 = vst [vmem:[#allocation3 + $0x1b8] sm:$0xff] %v1709
        %1742 = vst [vmem:[#allocation3 + $0x200] sm:$0xff] %v1710
        %1743 = vst [vmem:[#allocation3 + $0x248] sm:$0xff] %v1711
        %1744 = vst [vmem:[#allocation3 + $0x290] sm:$0xff] %v1712
        %1745 = vst [vmem:[#allocation3 + $0x2d8] sm:$0xff] %v1713
        %1746 = vst [vmem:[#allocation3 + $0x320] sm:$0xff] %v1714
        %1747 = vst [vmem:[#allocation3 + $0x368] sm:$0xff] %v1715
        %1748 = vst [vmem:[#allocation3 + $0x3b0] sm:$0xff] %v1716
        %1749 = vst [vmem:[#allocation3 + $0x3f8] sm:$0xff] %v1717
        %1750 = vst [vmem:[#allocation3 + $0x440] sm:$0xff] %v1718
        %v1751 = vld [vmem:[#allocation2] sm:$0xe]
        %v1752 = vld [vmem:[#allocation2 + $0x4] sm:$0xf]
        %v1753 = vld [vmem:[#allocation2 + $0x8] sm:$0x1]
        %v1754 = vld [vmem:[#allocation2 + $0xc] sm:$0xe]
        %v1755 = vld [vmem:[#allocation2 + $0x10] sm:$0xf]
        %v1756 = vld [vmem:[#allocation2 + $0x14] sm:$0x1]
        %v1757 = vld [vmem:[#allocation2 + $0x18] sm:$0xe]
        %v1758 = vld [vmem:[#allocation2 + $0x1c] sm:$0xf]
        %v1759 = vld [vmem:[#allocation2 + $0x20] sm:$0x1]
        %v1760 = vld [vmem:[#allocation2 + $0x24] sm:$0xe]
        %v1761 = vld [vmem:[#allocation2 + $0x28] sm:$0xf]
        %v1762 = vld [vmem:[#allocation2 + $0x2c] sm:$0x1]
        %v1763 = vld [vmem:[#allocation2 + $0x30] sm:$0xe]
        %v1764 = vld [vmem:[#allocation2 + $0x34] sm:$0xf]
        %v1765 = vld [vmem:[#allocation2 + $0x38] sm:$0x1]
        %v1766 = vld [vmem:[#allocation2 + $0x3c] sm:$0xe]
        %v1767 = vld [vmem:[#allocation2 + $0x40] sm:$0xf]
        %v1768 = vld [vmem:[#allocation2 + $0x44] sm:$0x1]
        %v1769 = vld [vmem:[#allocation2 + $0x48] sm:$0xe]
        %v1770 = vld [vmem:[#allocation2 + $0x4c] sm:$0xf]
        %v1771 = vld [vmem:[#allocation2 + $0x50] sm:$0x1]
        %v1772 = vld [vmem:[#allocation2 + $0x54] sm:$0xe]
        %v1773 = vld [vmem:[#allocation2 + $0x58] sm:$0xf]
        %v1774 = vld [vmem:[#allocation2 + $0x5c] sm:$0x1]
        %v1775 = vld [vmem:[#allocation2 + $0x60] sm:$0xe]
        %v1776 = vld [vmem:[#allocation2 + $0x64] sm:$0xf]
        %v1777 = vld [vmem:[#allocation2 + $0x68] sm:$0x1]
        %v1778 = vld [vmem:[#allocation2 + $0x6c] sm:$0xe]
        %v1779 = vld [vmem:[#allocation2 + $0x70] sm:$0xf]
        %v1780 = vld [vmem:[#allocation2 + $0x74] sm:$0x1]
        %v1781 = vld [vmem:[#allocation2 + $0x78] sm:$0xe]
        %v1782 = vld [vmem:[#allocation2 + $0x7c] sm:$0xf]
        %v1783 = vld [vmem:[#allocation2 + $0x80] sm:$0x1]
        %v1784 = vld [vmem:[#allocation2 + $0x84] sm:$0xe]
        %v1785 = vld [vmem:[#allocation2 + $0x88] sm:$0xf]
        %v1786 = vld [vmem:[#allocation2 + $0x8c] sm:$0x1]
        %v1787 = vld [vmem:[#allocation2 + $0x90] sm:$0xe]
        %v1788 = vld [vmem:[#allocation2 + $0x94] sm:$0xf]
        %v1789 = vld [vmem:[#allocation2 + $0x98] sm:$0x1]
        %v1790 = vld [vmem:[#allocation2 + $0x9c] sm:$0xe]
        %v1791 = vld [vmem:[#allocation2 + $0xa0] sm:$0xf]
        %v1792 = vld [vmem:[#allocation2 + $0xa4] sm:$0x1]
        %v1793 = vld [vmem:[#allocation2 + $0xa8] sm:$0xe]
        %v1794 = vld [vmem:[#allocation2 + $0xac] sm:$0xf]
        %v1795 = vld [vmem:[#allocation2 + $0xb0] sm:$0x1]
        %v1796 = vld [vmem:[#allocation2 + $0xb4] sm:$0xe]
        %v1797 = vld [vmem:[#allocation2 + $0xb8] sm:$0xf]
        %v1798 = vld [vmem:[#allocation2 + $0xbc] sm:$0x1]
        %vm1847 = vcmask 1042432
        %vm1848 = vcmask 1046532
        %vm1849 = vmor %vm1847, %vm1848
        %v1850 = vrot.slane %v1751, 5
        %v1851 = vrot.slane %v1850, 4
        %v1852 = vrot.slane %v1752, 5
        %v1853 = vsel %vm1849, %v1851, %v1852
        %v1854 = vrot.slane %v1852, 4
        %v1855 = vrot.slane %v1753, 5
        %v1856 = vsel %vm1849, %v1854, %v1855
        %v1857 = vrot.slane %v1754, 5
        %v1858 = vrot.slane %v1857, 4
        %v1859 = vrot.slane %v1755, 5
        %v1860 = vsel %vm1849, %v1858, %v1859
        %v1861 = vrot.slane %v1859, 4
        %v1862 = vrot.slane %v1756, 5
        %v1863 = vsel %vm1849, %v1861, %v1862
        %v1864 = vrot.slane %v1757, 5
        %v1865 = vrot.slane %v1864, 4
        %v1866 = vrot.slane %v1758, 5
        %v1867 = vsel %vm1849, %v1865, %v1866
        %v1868 = vrot.slane %v1866, 4
        %v1869 = vrot.slane %v1759, 5
        %v1870 = vsel %vm1849, %v1868, %v1869
        %v1871 = vrot.slane %v1760, 5
        %v1872 = vrot.slane %v1871, 4
        %v1873 = vrot.slane %v1761, 5
        %v1874 = vsel %vm1849, %v1872, %v1873
        %v1875 = vrot.slane %v1873, 4
        %v1876 = vrot.slane %v1762, 5
        %v1877 = vsel %vm1849, %v1875, %v1876
        %v1878 = vrot.slane %v1763, 5
        %v1879 = vrot.slane %v1878, 4
        %v1880 = vrot.slane %v1764, 5
        %v1881 = vsel %vm1849, %v1879, %v1880
        %v1882 = vrot.slane %v1880, 4
        %v1883 = vrot.slane %v1765, 5
        %v1884 = vsel %vm1849, %v1882, %v1883
        %v1885 = vrot.slane %v1766, 5
        %v1886 = vrot.slane %v1885, 4
        %v1887 = vrot.slane %v1767, 5
        %v1888 = vsel %vm1849, %v1886, %v1887
        %v1889 = vrot.slane %v1887, 4
        %v1890 = vrot.slane %v1768, 5
        %v1891 = vsel %vm1849, %v1889, %v1890
        %v1892 = vrot.slane %v1769, 5
        %v1893 = vrot.slane %v1892, 4
        %v1894 = vrot.slane %v1770, 5
        %v1895 = vsel %vm1849, %v1893, %v1894
        %v1896 = vrot.slane %v1894, 4
        %v1897 = vrot.slane %v1771, 5
        %v1898 = vsel %vm1849, %v1896, %v1897
        %v1899 = vrot.slane %v1772, 5
        %v1900 = vrot.slane %v1899, 4
        %v1901 = vrot.slane %v1773, 5
        %v1902 = vsel %vm1849, %v1900, %v1901
        %v1903 = vrot.slane %v1901, 4
        %v1904 = vrot.slane %v1774, 5
        %v1905 = vsel %vm1849, %v1903, %v1904
        %v1906 = vrot.slane %v1775, 5
        %v1907 = vrot.slane %v1906, 4
        %v1908 = vrot.slane %v1776, 5
        %v1909 = vsel %vm1849, %v1907, %v1908
        %v1910 = vrot.slane %v1908, 4
        %v1911 = vrot.slane %v1777, 5
        %v1912 = vsel %vm1849, %v1910, %v1911
        %v1913 = vrot.slane %v1778, 5
        %v1914 = vrot.slane %v1913, 4
        %v1915 = vrot.slane %v1779, 5
        %v1916 = vsel %vm1849, %v1914, %v1915
        %v1917 = vrot.slane %v1915, 4
        %v1918 = vrot.slane %v1780, 5
        %v1919 = vsel %vm1849, %v1917, %v1918
        %v1920 = vrot.slane %v1781, 5
        %v1921 = vrot.slane %v1920, 4
        %v1922 = vrot.slane %v1782, 5
        %v1923 = vsel %vm1849, %v1921, %v1922
        %v1924 = vrot.slane %v1922, 4
        %v1925 = vrot.slane %v1783, 5
        %v1926 = vsel %vm1849, %v1924, %v1925
        %v1927 = vrot.slane %v1784, 5
        %v1928 = vrot.slane %v1927, 4
        %v1929 = vrot.slane %v1785, 5
        %v1930 = vsel %vm1849, %v1928, %v1929
        %v1931 = vrot.slane %v1929, 4
        %v1932 = vrot.slane %v1786, 5
        %v1933 = vsel %vm1849, %v1931, %v1932
        %v1934 = vrot.slane %v1787, 5
        %v1935 = vrot.slane %v1934, 4
        %v1936 = vrot.slane %v1788, 5
        %v1937 = vsel %vm1849, %v1935, %v1936
        %v1938 = vrot.slane %v1936, 4
        %v1939 = vrot.slane %v1789, 5
        %v1940 = vsel %vm1849, %v1938, %v1939
        %v1941 = vrot.slane %v1790, 5
        %v1942 = vrot.slane %v1941, 4
        %v1943 = vrot.slane %v1791, 5
        %v1944 = vsel %vm1849, %v1942, %v1943
        %v1945 = vrot.slane %v1943, 4
        %v1946 = vrot.slane %v1792, 5
        %v1947 = vsel %vm1849, %v1945, %v1946
        %v1948 = vrot.slane %v1793, 5
        %v1949 = vrot.slane %v1948, 4
        %v1950 = vrot.slane %v1794, 5
        %v1951 = vsel %vm1849, %v1949, %v1950
        %v1952 = vrot.slane %v1950, 4
        %v1953 = vrot.slane %v1795, 5
        %v1954 = vsel %vm1849, %v1952, %v1953
        %v1955 = vrot.slane %v1796, 5
        %v1956 = vrot.slane %v1955, 4
        %v1957 = vrot.slane %v1797, 5
        %v1958 = vsel %vm1849, %v1956, %v1957
        %v1959 = vrot.slane %v1957, 4
        %v1960 = vrot.slane %v1798, 5
        %v1961 = vsel %vm1849, %v1959, %v1960
        %v1962 = vunpack.c.l.b16 %v1853
        %v1963 = vunpack.c.l.b16 %v1856
        %v1964 = vunpack.c.l.b16 %v1860
        %v1965 = vunpack.c.l.b16 %v1863
        %v1966 = vunpack.c.l.b16 %v1867
        %v1967 = vunpack.c.l.b16 %v1870
        %v1968 = vunpack.c.l.b16 %v1874
        %v1969 = vunpack.c.l.b16 %v1877
        %v1970 = vunpack.c.l.b16 %v1881
        %v1971 = vunpack.c.l.b16 %v1884
        %v1972 = vunpack.c.l.b16 %v1888
        %v1973 = vunpack.c.l.b16 %v1891
        %v1974 = vunpack.c.l.b16 %v1895
        %v1975 = vunpack.c.l.b16 %v1898
        %v1976 = vunpack.c.l.b16 %v1902
        %v1977 = vunpack.c.l.b16 %v1905
        %v1978 = vunpack.c.l.b16 %v1909
        %v1979 = vunpack.c.l.b16 %v1912
        %v1980 = vunpack.c.l.b16 %v1916
        %v1981 = vunpack.c.l.b16 %v1919
        %v1982 = vunpack.c.l.b16 %v1923
        %v1983 = vunpack.c.l.b16 %v1926
        %v1984 = vunpack.c.l.b16 %v1930
        %v1985 = vunpack.c.l.b16 %v1933
        %v1986 = vunpack.c.l.b16 %v1937
        %v1987 = vunpack.c.l.b16 %v1940
        %v1988 = vunpack.c.l.b16 %v1944
        %v1989 = vunpack.c.l.b16 %v1947
        %v1990 = vunpack.c.l.b16 %v1951
        %v1991 = vunpack.c.l.b16 %v1954
        %v1992 = vunpack.c.l.b16 %v1958
        %v1993 = vunpack.c.l.b16 %v1961
        %v1994 = vpack.c.b16 %v1963, %v1962
        %v1995 = vpack.c.b16 %v1965, %v1964
        %v1996 = vpack.c.b16 %v1967, %v1966
        %v1997 = vpack.c.b16 %v1969, %v1968
        %v1998 = vpack.c.b16 %v1971, %v1970
        %v1999 = vpack.c.b16 %v1973, %v1972
        %v2000 = vpack.c.b16 %v1975, %v1974
        %v2001 = vpack.c.b16 %v1977, %v1976
        %v2002 = vpack.c.b16 %v1979, %v1978
        %v2003 = vpack.c.b16 %v1981, %v1980
        %v2004 = vpack.c.b16 %v1983, %v1982
        %v2005 = vpack.c.b16 %v1985, %v1984
        %v2006 = vpack.c.b16 %v1987, %v1986
        %v2007 = vpack.c.b16 %v1989, %v1988
        %v2008 = vpack.c.b16 %v1991, %v1990
        %v2009 = vpack.c.b16 %v1993, %v1992
        %2026 = vst [vmem:[#allocation3 + $0x10] sm:$0xff] %v1994
        %2027 = vst [vmem:[#allocation3 + $0x58] sm:$0xff] %v1995
        %2028 = vst [vmem:[#allocation3 + $0xa0] sm:$0xff] %v1996
        %2029 = vst [vmem:[#allocation3 + $0xe8] sm:$0xff] %v1997
        %2030 = vst [vmem:[#allocation3 + $0x130] sm:$0xff] %v1998
        %2031 = vst [vmem:[#allocation3 + $0x178] sm:$0xff] %v1999
        %2032 = vst [vmem:[#allocation3 + $0x1c0] sm:$0xff] %v2000
        %2033 = vst [vmem:[#allocation3 + $0x208] sm:$0xff] %v2001
        %2034 = vst [vmem:[#allocation3 + $0x250] sm:$0xff] %v2002
        %2035 = vst [vmem:[#allocation3 + $0x298] sm:$0xff] %v2003
        %2036 = vst [vmem:[#allocation3 + $0x2e0] sm:$0xff] %v2004
        %2037 = vst [vmem:[#allocation3 + $0x328] sm:$0xff] %v2005
        %2038 = vst [vmem:[#allocation3 + $0x370] sm:$0xff] %v2006
        %2039 = vst [vmem:[#allocation3 + $0x3b8] sm:$0xff] %v2007
        %2040 = vst [vmem:[#allocation3 + $0x400] sm:$0xff] %v2008
        %2041 = vst [vmem:[#allocation3 + $0x448] sm:$0xff] %v2009
        %v2042 = vld [vmem:[%s670] sm:$0xf]
        %v2043 = vld [vmem:[%s670 + $0x4] sm:$0xf]
        %v2044 = vld [vmem:[%s670 + $0xc] sm:$0xf]
        %v2045 = vld [vmem:[%s670 + $0x10] sm:$0xf]
        %v2046 = vld [vmem:[%s670 + $0x18] sm:$0xf]
        %v2047 = vld [vmem:[%s670 + $0x1c] sm:$0xf]
        %v2048 = vld [vmem:[%s670 + $0x24] sm:$0xf]
        %v2049 = vld [vmem:[%s670 + $0x28] sm:$0xf]
        %v2050 = vld [vmem:[%s670 + $0x30] sm:$0xf]
        %v2051 = vld [vmem:[%s670 + $0x34] sm:$0xf]
        %v2052 = vld [vmem:[%s670 + $0x3c] sm:$0xf]
        %v2053 = vld [vmem:[%s670 + $0x40] sm:$0xf]
        %v2054 = vld [vmem:[%s670 + $0x48] sm:$0xf]
        %v2055 = vld [vmem:[%s670 + $0x4c] sm:$0xf]
        %v2056 = vld [vmem:[%s670 + $0x54] sm:$0xf]
        %v2057 = vld [vmem:[%s670 + $0x58] sm:$0xf]
        %v2058 = vld [vmem:[%s670 + $0x60] sm:$0xf]
        %v2059 = vld [vmem:[%s670 + $0x64] sm:$0xf]
        %v2060 = vld [vmem:[%s670 + $0x6c] sm:$0xf]
        %v2061 = vld [vmem:[%s670 + $0x70] sm:$0xf]
        %v2062 = vld [vmem:[%s670 + $0x78] sm:$0xf]
        %v2063 = vld [vmem:[%s670 + $0x7c] sm:$0xf]
        %v2064 = vld [vmem:[%s670 + $0x84] sm:$0xf]
        %v2065 = vld [vmem:[%s670 + $0x88] sm:$0xf]
        %v2066 = vld [vmem:[%s670 + $0x90] sm:$0xf]
        %v2067 = vld [vmem:[%s670 + $0x94] sm:$0xf]
        %v2068 = vld [vmem:[%s670 + $0x9c] sm:$0xf]
        %v2069 = vld [vmem:[%s670 + $0xa0] sm:$0xf]
        %v2070 = vld [vmem:[%s670 + $0xa8] sm:$0xf]
        %v2071 = vld [vmem:[%s670 + $0xac] sm:$0xf]
        %v2072 = vld [vmem:[%s670 + $0xb4] sm:$0xf]
        %v2073 = vld [vmem:[%s670 + $0xb8] sm:$0xf]
        %v2106 = vunpack.c.l.b16 %v2042
        %v2107 = vunpack.c.l.b16 %v2043
        %v2108 = vunpack.c.l.b16 %v2044
        %v2109 = vunpack.c.l.b16 %v2045
        %v2110 = vunpack.c.l.b16 %v2046
        %v2111 = vunpack.c.l.b16 %v2047
        %v2112 = vunpack.c.l.b16 %v2048
        %v2113 = vunpack.c.l.b16 %v2049
        %v2114 = vunpack.c.l.b16 %v2050
        %v2115 = vunpack.c.l.b16 %v2051
        %v2116 = vunpack.c.l.b16 %v2052
        %v2117 = vunpack.c.l.b16 %v2053
        %v2118 = vunpack.c.l.b16 %v2054
        %v2119 = vunpack.c.l.b16 %v2055
        %v2120 = vunpack.c.l.b16 %v2056
        %v2121 = vunpack.c.l.b16 %v2057
        %v2122 = vunpack.c.l.b16 %v2058
        %v2123 = vunpack.c.l.b16 %v2059
        %v2124 = vunpack.c.l.b16 %v2060
        %v2125 = vunpack.c.l.b16 %v2061
        %v2126 = vunpack.c.l.b16 %v2062
        %v2127 = vunpack.c.l.b16 %v2063
        %v2128 = vunpack.c.l.b16 %v2064
        %v2129 = vunpack.c.l.b16 %v2065
        %v2130 = vunpack.c.l.b16 %v2066
        %v2131 = vunpack.c.l.b16 %v2067
        %v2132 = vunpack.c.l.b16 %v2068
        %v2133 = vunpack.c.l.b16 %v2069
        %v2134 = vunpack.c.l.b16 %v2070
        %v2135 = vunpack.c.l.b16 %v2071
        %v2136 = vunpack.c.l.b16 %v2072
        %v2137 = vunpack.c.l.b16 %v2073
        %v2138 = vpack.c.b16 %v2107, %v2106
        %v2139 = vpack.c.b16 %v2109, %v2108
        %v2140 = vpack.c.b16 %v2111, %v2110
        %v2141 = vpack.c.b16 %v2113, %v2112
        %v2142 = vpack.c.b16 %v2115, %v2114
        %v2143 = vpack.c.b16 %v2117, %v2116
        %v2144 = vpack.c.b16 %v2119, %v2118
        %v2145 = vpack.c.b16 %v2121, %v2120
        %v2146 = vpack.c.b16 %v2123, %v2122
        %v2147 = vpack.c.b16 %v2125, %v2124
        %v2148 = vpack.c.b16 %v2127, %v2126
        %v2149 = vpack.c.b16 %v2129, %v2128
        %v2150 = vpack.c.b16 %v2131, %v2130
        %v2151 = vpack.c.b16 %v2133, %v2132
        %v2152 = vpack.c.b16 %v2135, %v2134
        %v2153 = vpack.c.b16 %v2137, %v2136
        %2170 = vst [vmem:[#allocation3 + $0x18] sm:$0xff] %v2138
        %2171 = vst [vmem:[#allocation3 + $0x60] sm:$0xff] %v2139
        %2172 = vst [vmem:[#allocation3 + $0xa8] sm:$0xff] %v2140
        %2173 = vst [vmem:[#allocation3 + $0xf0] sm:$0xff] %v2141
        %2174 = vst [vmem:[#allocation3 + $0x138] sm:$0xff] %v2142
        %2175 = vst [vmem:[#allocation3 + $0x180] sm:$0xff] %v2143
        %2176 = vst [vmem:[#allocation3 + $0x1c8] sm:$0xff] %v2144
        %2177 = vst [vmem:[#allocation3 + $0x210] sm:$0xff] %v2145
        %2178 = vst [vmem:[#allocation3 + $0x258] sm:$0xff] %v2146
        %2179 = vst [vmem:[#allocation3 + $0x2a0] sm:$0xff] %v2147
        %2180 = vst [vmem:[#allocation3 + $0x2e8] sm:$0xff] %v2148
        %2181 = vst [vmem:[#allocation3 + $0x330] sm:$0xff] %v2149
        %2182 = vst [vmem:[#allocation3 + $0x378] sm:$0xff] %v2150
        %2183 = vst [vmem:[#allocation3 + $0x3c0] sm:$0xff] %v2151
        %2184 = vst [vmem:[#allocation3 + $0x408] sm:$0xff] %v2152
        %2185 = vst [vmem:[#allocation3 + $0x450] sm:$0xff] %v2153
        %v2186 = vld [vmem:[%s670] sm:$0xf]
        %v2187 = vld [vmem:[%s670 + $0x4] sm:$0xf]
        %v2188 = vld [vmem:[%s670 + $0x8] sm:$0x1]
        %v2189 = vld [vmem:[%s670 + $0xc] sm:$0xf]
        %v2190 = vld [vmem:[%s670 + $0x10] sm:$0xf]
        %v2191 = vld [vmem:[%s670 + $0x14] sm:$0x1]
        %v2192 = vld [vmem:[%s670 + $0x18] sm:$0xf]
        %v2193 = vld [vmem:[%s670 + $0x1c] sm:$0xf]
        %v2194 = vld [vmem:[%s670 + $0x20] sm:$0x1]
        %v2195 = vld [vmem:[%s670 + $0x24] sm:$0xf]
        %v2196 = vld [vmem:[%s670 + $0x28] sm:$0xf]
        %v2197 = vld [vmem:[%s670 + $0x2c] sm:$0x1]
        %v2198 = vld [vmem:[%s670 + $0x30] sm:$0xf]
        %v2199 = vld [vmem:[%s670 + $0x34] sm:$0xf]
        %v2200 = vld [vmem:[%s670 + $0x38] sm:$0x1]
        %v2201 = vld [vmem:[%s670 + $0x3c] sm:$0xf]
        %v2202 = vld [vmem:[%s670 + $0x40] sm:$0xf]
        %v2203 = vld [vmem:[%s670 + $0x44] sm:$0x1]
        %v2204 = vld [vmem:[%s670 + $0x48] sm:$0xf]
        %v2205 = vld [vmem:[%s670 + $0x4c] sm:$0xf]
        %v2206 = vld [vmem:[%s670 + $0x50] sm:$0x1]
        %v2207 = vld [vmem:[%s670 + $0x54] sm:$0xf]
        %v2208 = vld [vmem:[%s670 + $0x58] sm:$0xf]
        %v2209 = vld [vmem:[%s670 + $0x5c] sm:$0x1]
        %v2210 = vld [vmem:[%s670 + $0x60] sm:$0xf]
        %v2211 = vld [vmem:[%s670 + $0x64] sm:$0xf]
        %v2212 = vld [vmem:[%s670 + $0x68] sm:$0x1]
        %v2213 = vld [vmem:[%s670 + $0x6c] sm:$0xf]
        %v2214 = vld [vmem:[%s670 + $0x70] sm:$0xf]
        %v2215 = vld [vmem:[%s670 + $0x74] sm:$0x1]
        %v2216 = vld [vmem:[%s670 + $0x78] sm:$0xf]
        %v2217 = vld [vmem:[%s670 + $0x7c] sm:$0xf]
        %v2218 = vld [vmem:[%s670 + $0x80] sm:$0x1]
        %v2219 = vld [vmem:[%s670 + $0x84] sm:$0xf]
        %v2220 = vld [vmem:[%s670 + $0x88] sm:$0xf]
        %v2221 = vld [vmem:[%s670 + $0x8c] sm:$0x1]
        %v2222 = vld [vmem:[%s670 + $0x90] sm:$0xf]
        %v2223 = vld [vmem:[%s670 + $0x94] sm:$0xf]
        %v2224 = vld [vmem:[%s670 + $0x98] sm:$0x1]
        %v2225 = vld [vmem:[%s670 + $0x9c] sm:$0xf]
        %v2226 = vld [vmem:[%s670 + $0xa0] sm:$0xf]
        %v2227 = vld [vmem:[%s670 + $0xa4] sm:$0x1]
        %v2228 = vld [vmem:[%s670 + $0xa8] sm:$0xf]
        %v2229 = vld [vmem:[%s670 + $0xac] sm:$0xf]
        %v2230 = vld [vmem:[%s670 + $0xb0] sm:$0x1]
        %v2231 = vld [vmem:[%s670 + $0xb4] sm:$0xf]
        %v2232 = vld [vmem:[%s670 + $0xb8] sm:$0xf]
        %v2233 = vld [vmem:[%s670 + $0xbc] sm:$0x1]
        %v2235 = vshrl.u32 %v2186, 16
        %v2237 = vrot.slane %v2235, 4
        %v2238 = vshll.u32 %v2186, 16
        %v2240 = vrot.slane %v2238, 5
        %v2241 = vor.u32 %v2237, %v2240
        %v2242 = vrot.slane %v2241, 4
        %v2244 = vshll.u32 %v2187, 16
        %v2246 = vrot.slane %v2244, 5
        %v2247 = vsel %vm1286, %v2242, %v2246
        %v2248 = vshrl.u32 %v2187, 16
        %v2250 = vrot.slane %v2248, 4
        %v2251 = vor.u32 %v2250, %v2246
        %v2252 = vrot.slane %v2251, 4
        %v2254 = vshll.u32 %v2188, 16
        %v2256 = vrot.slane %v2254, 5
        %v2257 = vsel %vm1286, %v2252, %v2256
        %v2259 = vshrl.u32 %v2189, 16
        %v2261 = vrot.slane %v2259, 4
        %v2262 = vshll.u32 %v2189, 16
        %v2264 = vrot.slane %v2262, 5
        %v2265 = vor.u32 %v2261, %v2264
        %v2266 = vrot.slane %v2265, 4
        %v2268 = vshll.u32 %v2190, 16
        %v2270 = vrot.slane %v2268, 5
        %v2271 = vsel %vm1286, %v2266, %v2270
        %v2272 = vshrl.u32 %v2190, 16
        %v2274 = vrot.slane %v2272, 4
        %v2275 = vor.u32 %v2274, %v2270
        %v2276 = vrot.slane %v2275, 4
        %v2278 = vshll.u32 %v2191, 16
        %v2280 = vrot.slane %v2278, 5
        %v2281 = vsel %vm1286, %v2276, %v2280
        %v2283 = vshrl.u32 %v2192, 16
        %v2285 = vrot.slane %v2283, 4
        %v2286 = vshll.u32 %v2192, 16
        %v2288 = vrot.slane %v2286, 5
        %v2289 = vor.u32 %v2285, %v2288
        %v2290 = vrot.slane %v2289, 4
        %v2292 = vshll.u32 %v2193, 16
        %v2294 = vrot.slane %v2292, 5
        %v2295 = vsel %vm1286, %v2290, %v2294
        %v2296 = vshrl.u32 %v2193, 16
        %v2298 = vrot.slane %v2296, 4
        %v2299 = vor.u32 %v2298, %v2294
        %v2300 = vrot.slane %v2299, 4
        %v2302 = vshll.u32 %v2194, 16
        %v2304 = vrot.slane %v2302, 5
        %v2305 = vsel %vm1286, %v2300, %v2304
        %v2307 = vshrl.u32 %v2195, 16
        %v2309 = vrot.slane %v2307, 4
        %v2310 = vshll.u32 %v2195, 16
        %v2312 = vrot.slane %v2310, 5
        %v2313 = vor.u32 %v2309, %v2312
        %v2314 = vrot.slane %v2313, 4
        %v2316 = vshll.u32 %v2196, 16
        %v2318 = vrot.slane %v2316, 5
        %v2319 = vsel %vm1286, %v2314, %v2318
        %v2320 = vshrl.u32 %v2196, 16
        %v2322 = vrot.slane %v2320, 4
        %v2323 = vor.u32 %v2322, %v2318
        %v2324 = vrot.slane %v2323, 4
        %v2326 = vshll.u32 %v2197, 16
        %v2328 = vrot.slane %v2326, 5
        %v2329 = vsel %vm1286, %v2324, %v2328
        %v2331 = vshrl.u32 %v2198, 16
        %v2333 = vrot.slane %v2331, 4
        %v2334 = vshll.u32 %v2198, 16
        %v2336 = vrot.slane %v2334, 5
        %v2337 = vor.u32 %v2333, %v2336
        %v2338 = vrot.slane %v2337, 4
        %v2340 = vshll.u32 %v2199, 16
        %v2342 = vrot.slane %v2340, 5
        %v2343 = vsel %vm1286, %v2338, %v2342
        %v2344 = vshrl.u32 %v2199, 16
        %v2346 = vrot.slane %v2344, 4
        %v2347 = vor.u32 %v2346, %v2342
        %v2348 = vrot.slane %v2347, 4
        %v2350 = vshll.u32 %v2200, 16
        %v2352 = vrot.slane %v2350, 5
        %v2353 = vsel %vm1286, %v2348, %v2352
        %v2355 = vshrl.u32 %v2201, 16
        %v2357 = vrot.slane %v2355, 4
        %v2358 = vshll.u32 %v2201, 16
        %v2360 = vrot.slane %v2358, 5
        %v2361 = vor.u32 %v2357, %v2360
        %v2362 = vrot.slane %v2361, 4
        %v2364 = vshll.u32 %v2202, 16
        %v2366 = vrot.slane %v2364, 5
        %v2367 = vsel %vm1286, %v2362, %v2366
        %v2368 = vshrl.u32 %v2202, 16
        %v2370 = vrot.slane %v2368, 4
        %v2371 = vor.u32 %v2370, %v2366
        %v2372 = vrot.slane %v2371, 4
        %v2374 = vshll.u32 %v2203, 16
        %v2376 = vrot.slane %v2374, 5
        %v2377 = vsel %vm1286, %v2372, %v2376
        %v2379 = vshrl.u32 %v2204, 16
        %v2381 = vrot.slane %v2379, 4
        %v2382 = vshll.u32 %v2204, 16
        %v2384 = vrot.slane %v2382, 5
        %v2385 = vor.u32 %v2381, %v2384
        %v2386 = vrot.slane %v2385, 4
        %v2388 = vshll.u32 %v2205, 16
        %v2390 = vrot.slane %v2388, 5
        %v2391 = vsel %vm1286, %v2386, %v2390
        %v2392 = vshrl.u32 %v2205, 16
        %v2394 = vrot.slane %v2392, 4
        %v2395 = vor.u32 %v2394, %v2390
        %v2396 = vrot.slane %v2395, 4
        %v2398 = vshll.u32 %v2206, 16
        %v2400 = vrot.slane %v2398, 5
        %v2401 = vsel %vm1286, %v2396, %v2400
        %v2403 = vshrl.u32 %v2207, 16
        %v2405 = vrot.slane %v2403, 4
        %v2406 = vshll.u32 %v2207, 16
        %v2408 = vrot.slane %v2406, 5
        %v2409 = vor.u32 %v2405, %v2408
        %v2410 = vrot.slane %v2409, 4
        %v2412 = vshll.u32 %v2208, 16
        %v2414 = vrot.slane %v2412, 5
        %v2415 = vsel %vm1286, %v2410, %v2414
        %v2416 = vshrl.u32 %v2208, 16
        %v2418 = vrot.slane %v2416, 4
        %v2419 = vor.u32 %v2418, %v2414
        %v2420 = vrot.slane %v2419, 4
        %v2422 = vshll.u32 %v2209, 16
        %v2424 = vrot.slane %v2422, 5
        %v2425 = vsel %vm1286, %v2420, %v2424
        %v2427 = vshrl.u32 %v2210, 16
        %v2429 = vrot.slane %v2427, 4
        %v2430 = vshll.u32 %v2210, 16
        %v2432 = vrot.slane %v2430, 5
        %v2433 = vor.u32 %v2429, %v2432
        %v2434 = vrot.slane %v2433, 4
        %v2436 = vshll.u32 %v2211, 16
        %v2438 = vrot.slane %v2436, 5
        %v2439 = vsel %vm1286, %v2434, %v2438
        %v2440 = vshrl.u32 %v2211, 16
        %v2442 = vrot.slane %v2440, 4
        %v2443 = vor.u32 %v2442, %v2438
        %v2444 = vrot.slane %v2443, 4
        %v2446 = vshll.u32 %v2212, 16
        %v2448 = vrot.slane %v2446, 5
        %v2449 = vsel %vm1286, %v2444, %v2448
        %v2451 = vshrl.u32 %v2213, 16
        %v2453 = vrot.slane %v2451, 4
        %v2454 = vshll.u32 %v2213, 16
        %v2456 = vrot.slane %v2454, 5
        %v2457 = vor.u32 %v2453, %v2456
        %v2458 = vrot.slane %v2457, 4
        %v2460 = vshll.u32 %v2214, 16
        %v2462 = vrot.slane %v2460, 5
        %v2463 = vsel %vm1286, %v2458, %v2462
        %v2464 = vshrl.u32 %v2214, 16
        %v2466 = vrot.slane %v2464, 4
        %v2467 = vor.u32 %v2466, %v2462
        %v2468 = vrot.slane %v2467, 4
        %v2470 = vshll.u32 %v2215, 16
        %v2472 = vrot.slane %v2470, 5
        %v2473 = vsel %vm1286, %v2468, %v2472
        %v2475 = vshrl.u32 %v2216, 16
        %v2477 = vrot.slane %v2475, 4
        %v2478 = vshll.u32 %v2216, 16
        %v2480 = vrot.slane %v2478, 5
        %v2481 = vor.u32 %v2477, %v2480
        %v2482 = vrot.slane %v2481, 4
        %v2484 = vshll.u32 %v2217, 16
        %v2486 = vrot.slane %v2484, 5
        %v2487 = vsel %vm1286, %v2482, %v2486
        %v2488 = vshrl.u32 %v2217, 16
        %v2490 = vrot.slane %v2488, 4
        %v2491 = vor.u32 %v2490, %v2486
        %v2492 = vrot.slane %v2491, 4
        %v2494 = vshll.u32 %v2218, 16
        %v2496 = vrot.slane %v2494, 5
        %v2497 = vsel %vm1286, %v2492, %v2496
        %v2499 = vshrl.u32 %v2219, 16
        %v2501 = vrot.slane %v2499, 4
        %v2502 = vshll.u32 %v2219, 16
        %v2504 = vrot.slane %v2502, 5
        %v2505 = vor.u32 %v2501, %v2504
        %v2506 = vrot.slane %v2505, 4
        %v2508 = vshll.u32 %v2220, 16
        %v2510 = vrot.slane %v2508, 5
        %v2511 = vsel %vm1286, %v2506, %v2510
        %v2512 = vshrl.u32 %v2220, 16
        %v2514 = vrot.slane %v2512, 4
        %v2515 = vor.u32 %v2514, %v2510
        %v2516 = vrot.slane %v2515, 4
        %v2518 = vshll.u32 %v2221, 16
        %v2520 = vrot.slane %v2518, 5
        %v2521 = vsel %vm1286, %v2516, %v2520
        %v2523 = vshrl.u32 %v2222, 16
        %v2525 = vrot.slane %v2523, 4
        %v2526 = vshll.u32 %v2222, 16
        %v2528 = vrot.slane %v2526, 5
        %v2529 = vor.u32 %v2525, %v2528
        %v2530 = vrot.slane %v2529, 4
        %v2532 = vshll.u32 %v2223, 16
        %v2534 = vrot.slane %v2532, 5
        %v2535 = vsel %vm1286, %v2530, %v2534
        %v2536 = vshrl.u32 %v2223, 16
        %v2538 = vrot.slane %v2536, 4
        %v2539 = vor.u32 %v2538, %v2534
        %v2540 = vrot.slane %v2539, 4
        %v2542 = vshll.u32 %v2224, 16
        %v2544 = vrot.slane %v2542, 5
        %v2545 = vsel %vm1286, %v2540, %v2544
        %v2547 = vshrl.u32 %v2225, 16
        %v2549 = vrot.slane %v2547, 4
        %v2550 = vshll.u32 %v2225, 16
        %v2552 = vrot.slane %v2550, 5
        %v2553 = vor.u32 %v2549, %v2552
        %v2554 = vrot.slane %v2553, 4
        %v2556 = vshll.u32 %v2226, 16
        %v2558 = vrot.slane %v2556, 5
        %v2559 = vsel %vm1286, %v2554, %v2558
        %v2560 = vshrl.u32 %v2226, 16
        %v2562 = vrot.slane %v2560, 4
        %v2563 = vor.u32 %v2562, %v2558
        %v2564 = vrot.slane %v2563, 4
        %v2566 = vshll.u32 %v2227, 16
        %v2568 = vrot.slane %v2566, 5
        %v2569 = vsel %vm1286, %v2564, %v2568
        %v2571 = vshrl.u32 %v2228, 16
        %v2573 = vrot.slane %v2571, 4
        %v2574 = vshll.u32 %v2228, 16
        %v2576 = vrot.slane %v2574, 5
        %v2577 = vor.u32 %v2573, %v2576
        %v2578 = vrot.slane %v2577, 4
        %v2580 = vshll.u32 %v2229, 16
        %v2582 = vrot.slane %v2580, 5
        %v2583 = vsel %vm1286, %v2578, %v2582
        %v2584 = vshrl.u32 %v2229, 16
        %v2586 = vrot.slane %v2584, 4
        %v2587 = vor.u32 %v2586, %v2582
        %v2588 = vrot.slane %v2587, 4
        %v2590 = vshll.u32 %v2230, 16
        %v2592 = vrot.slane %v2590, 5
        %v2593 = vsel %vm1286, %v2588, %v2592
        %v2595 = vshrl.u32 %v2231, 16
        %v2597 = vrot.slane %v2595, 4
        %v2598 = vshll.u32 %v2231, 16
        %v2600 = vrot.slane %v2598, 5
        %v2601 = vor.u32 %v2597, %v2600
        %v2602 = vrot.slane %v2601, 4
        %v2604 = vshll.u32 %v2232, 16
        %v2606 = vrot.slane %v2604, 5
        %v2607 = vsel %vm1286, %v2602, %v2606
        %v2608 = vshrl.u32 %v2232, 16
        %v2610 = vrot.slane %v2608, 4
        %v2611 = vor.u32 %v2610, %v2606
        %v2612 = vrot.slane %v2611, 4
        %v2614 = vshll.u32 %v2233, 16
        %v2616 = vrot.slane %v2614, 5
        %v2617 = vsel %vm1286, %v2612, %v2616
        %v2618 = vunpack.c.l.b16 %v2247
        %v2619 = vunpack.c.l.b16 %v2257
        %v2620 = vunpack.c.l.b16 %v2271
        %v2621 = vunpack.c.l.b16 %v2281
        %v2622 = vunpack.c.l.b16 %v2295
        %v2623 = vunpack.c.l.b16 %v2305
        %v2624 = vunpack.c.l.b16 %v2319
        %v2625 = vunpack.c.l.b16 %v2329
        %v2626 = vunpack.c.l.b16 %v2343
        %v2627 = vunpack.c.l.b16 %v2353
        %v2628 = vunpack.c.l.b16 %v2367
        %v2629 = vunpack.c.l.b16 %v2377
        %v2630 = vunpack.c.l.b16 %v2391
        %v2631 = vunpack.c.l.b16 %v2401
        %v2632 = vunpack.c.l.b16 %v2415
        %v2633 = vunpack.c.l.b16 %v2425
        %v2634 = vunpack.c.l.b16 %v2439
        %v2635 = vunpack.c.l.b16 %v2449
        %v2636 = vunpack.c.l.b16 %v2463
        %v2637 = vunpack.c.l.b16 %v2473
        %v2638 = vunpack.c.l.b16 %v2487
        %v2639 = vunpack.c.l.b16 %v2497
        %v2640 = vunpack.c.l.b16 %v2511
        %v2641 = vunpack.c.l.b16 %v2521
        %v2642 = vunpack.c.l.b16 %v2535
        %v2643 = vunpack.c.l.b16 %v2545
        %v2644 = vunpack.c.l.b16 %v2559
        %v2645 = vunpack.c.l.b16 %v2569
        %v2646 = vunpack.c.l.b16 %v2583
        %v2647 = vunpack.c.l.b16 %v2593
        %v2648 = vunpack.c.l.b16 %v2607
        %v2649 = vunpack.c.l.b16 %v2617
        %v2650 = vpack.c.b16 %v2619, %v2618
        %v2651 = vpack.c.b16 %v2621, %v2620
        %v2652 = vpack.c.b16 %v2623, %v2622
        %v2653 = vpack.c.b16 %v2625, %v2624
        %v2654 = vpack.c.b16 %v2627, %v2626
        %v2655 = vpack.c.b16 %v2629, %v2628
        %v2656 = vpack.c.b16 %v2631, %v2630
        %v2657 = vpack.c.b16 %v2633, %v2632
        %v2658 = vpack.c.b16 %v2635, %v2634
        %v2659 = vpack.c.b16 %v2637, %v2636
        %v2660 = vpack.c.b16 %v2639, %v2638
        %v2661 = vpack.c.b16 %v2641, %v2640
        %v2662 = vpack.c.b16 %v2643, %v2642
        %v2663 = vpack.c.b16 %v2645, %v2644
        %v2664 = vpack.c.b16 %v2647, %v2646
        %v2665 = vpack.c.b16 %v2649, %v2648
        %2682 = vst [vmem:[#allocation3 + $0x20] sm:$0xff] %v2650
        %2683 = vst [vmem:[#allocation3 + $0x68] sm:$0xff] %v2651
        %2684 = vst [vmem:[#allocation3 + $0xb0] sm:$0xff] %v2652
        %2685 = vst [vmem:[#allocation3 + $0xf8] sm:$0xff] %v2653
        %2686 = vst [vmem:[#allocation3 + $0x140] sm:$0xff] %v2654
        %2687 = vst [vmem:[#allocation3 + $0x188] sm:$0xff] %v2655
        %2688 = vst [vmem:[#allocation3 + $0x1d0] sm:$0xff] %v2656
        %2689 = vst [vmem:[#allocation3 + $0x218] sm:$0xff] %v2657
        %2690 = vst [vmem:[#allocation3 + $0x260] sm:$0xff] %v2658
        %2691 = vst [vmem:[#allocation3 + $0x2a8] sm:$0xff] %v2659
        %2692 = vst [vmem:[#allocation3 + $0x2f0] sm:$0xff] %v2660
        %2693 = vst [vmem:[#allocation3 + $0x338] sm:$0xff] %v2661
        %2694 = vst [vmem:[#allocation3 + $0x380] sm:$0xff] %v2662
        %2695 = vst [vmem:[#allocation3 + $0x3c8] sm:$0xff] %v2663
        %2696 = vst [vmem:[#allocation3 + $0x410] sm:$0xff] %v2664
        %2697 = vst [vmem:[#allocation3 + $0x458] sm:$0xff] %v2665
        %v2698 = vld [vmem:[%s670] sm:$0xe]
        %v2699 = vld [vmem:[%s670 + $0x4] sm:$0xf]
        %v2700 = vld [vmem:[%s670 + $0x8] sm:$0x1]
        %v2701 = vld [vmem:[%s670 + $0xc] sm:$0xe]
        %v2702 = vld [vmem:[%s670 + $0x10] sm:$0xf]
        %v2703 = vld [vmem:[%s670 + $0x14] sm:$0x1]
        %v2704 = vld [vmem:[%s670 + $0x18] sm:$0xe]
        %v2705 = vld [vmem:[%s670 + $0x1c] sm:$0xf]
        %v2706 = vld [vmem:[%s670 + $0x20] sm:$0x1]
        %v2707 = vld [vmem:[%s670 + $0x24] sm:$0xe]
        %v2708 = vld [vmem:[%s670 + $0x28] sm:$0xf]
        %v2709 = vld [vmem:[%s670 + $0x2c] sm:$0x1]
        %v2710 = vld [vmem:[%s670 + $0x30] sm:$0xe]
        %v2711 = vld [vmem:[%s670 + $0x34] sm:$0xf]
        %v2712 = vld [vmem:[%s670 + $0x38] sm:$0x1]
        %v2713 = vld [vmem:[%s670 + $0x3c] sm:$0xe]
        %v2714 = vld [vmem:[%s670 + $0x40] sm:$0xf]
        %v2715 = vld [vmem:[%s670 + $0x44] sm:$0x1]
        %v2716 = vld [vmem:[%s670 + $0x48] sm:$0xe]
        %v2717 = vld [vmem:[%s670 + $0x4c] sm:$0xf]
        %v2718 = vld [vmem:[%s670 + $0x50] sm:$0x1]
        %v2719 = vld [vmem:[%s670 + $0x54] sm:$0xe]
        %v2720 = vld [vmem:[%s670 + $0x58] sm:$0xf]
        %v2721 = vld [vmem:[%s670 + $0x5c] sm:$0x1]
        %v2722 = vld [vmem:[%s670 + $0x60] sm:$0xe]
        %v2723 = vld [vmem:[%s670 + $0x64] sm:$0xf]
        %v2724 = vld [vmem:[%s670 + $0x68] sm:$0x1]
        %v2725 = vld [vmem:[%s670 + $0x6c] sm:$0xe]
        %v2726 = vld [vmem:[%s670 + $0x70] sm:$0xf]
        %v2727 = vld [vmem:[%s670 + $0x74] sm:$0x1]
        %v2728 = vld [vmem:[%s670 + $0x78] sm:$0xe]
        %v2729 = vld [vmem:[%s670 + $0x7c] sm:$0xf]
        %v2730 = vld [vmem:[%s670 + $0x80] sm:$0x1]
        %v2731 = vld [vmem:[%s670 + $0x84] sm:$0xe]
        %v2732 = vld [vmem:[%s670 + $0x88] sm:$0xf]
        %v2733 = vld [vmem:[%s670 + $0x8c] sm:$0x1]
        %v2734 = vld [vmem:[%s670 + $0x90] sm:$0xe]
        %v2735 = vld [vmem:[%s670 + $0x94] sm:$0xf]
        %v2736 = vld [vmem:[%s670 + $0x98] sm:$0x1]
        %v2737 = vld [vmem:[%s670 + $0x9c] sm:$0xe]
        %v2738 = vld [vmem:[%s670 + $0xa0] sm:$0xf]
        %v2739 = vld [vmem:[%s670 + $0xa4] sm:$0x1]
        %v2740 = vld [vmem:[%s670 + $0xa8] sm:$0xe]
        %v2741 = vld [vmem:[%s670 + $0xac] sm:$0xf]
        %v2742 = vld [vmem:[%s670 + $0xb0] sm:$0x1]
        %v2743 = vld [vmem:[%s670 + $0xb4] sm:$0xe]
        %v2744 = vld [vmem:[%s670 + $0xb8] sm:$0xf]
        %v2745 = vld [vmem:[%s670 + $0xbc] sm:$0x1]
        %v2794 = vrot.slane %v2698, 5
        %v2795 = vrot.slane %v2794, 4
        %v2796 = vrot.slane %v2699, 5
        %v2797 = vsel %vm1849, %v2795, %v2796
        %v2798 = vrot.slane %v2796, 4
        %v2799 = vrot.slane %v2700, 5
        %v2800 = vsel %vm1849, %v2798, %v2799
        %v2801 = vrot.slane %v2701, 5
        %v2802 = vrot.slane %v2801, 4
        %v2803 = vrot.slane %v2702, 5
        %v2804 = vsel %vm1849, %v2802, %v2803
        %v2805 = vrot.slane %v2803, 4
        %v2806 = vrot.slane %v2703, 5
        %v2807 = vsel %vm1849, %v2805, %v2806
        %v2808 = vrot.slane %v2704, 5
        %v2809 = vrot.slane %v2808, 4
        %v2810 = vrot.slane %v2705, 5
        %v2811 = vsel %vm1849, %v2809, %v2810
        %v2812 = vrot.slane %v2810, 4
        %v2813 = vrot.slane %v2706, 5
        %v2814 = vsel %vm1849, %v2812, %v2813
        %v2815 = vrot.slane %v2707, 5
        %v2816 = vrot.slane %v2815, 4
        %v2817 = vrot.slane %v2708, 5
        %v2818 = vsel %vm1849, %v2816, %v2817
        %v2819 = vrot.slane %v2817, 4
        %v2820 = vrot.slane %v2709, 5
        %v2821 = vsel %vm1849, %v2819, %v2820
        %v2822 = vrot.slane %v2710, 5
        %v2823 = vrot.slane %v2822, 4
        %v2824 = vrot.slane %v2711, 5
        %v2825 = vsel %vm1849, %v2823, %v2824
        %v2826 = vrot.slane %v2824, 4
        %v2827 = vrot.slane %v2712, 5
        %v2828 = vsel %vm1849, %v2826, %v2827
        %v2829 = vrot.slane %v2713, 5
        %v2830 = vrot.slane %v2829, 4
        %v2831 = vrot.slane %v2714, 5
        %v2832 = vsel %vm1849, %v2830, %v2831
        %v2833 = vrot.slane %v2831, 4
        %v2834 = vrot.slane %v2715, 5
        %v2835 = vsel %vm1849, %v2833, %v2834
        %v2836 = vrot.slane %v2716, 5
        %v2837 = vrot.slane %v2836, 4
        %v2838 = vrot.slane %v2717, 5
        %v2839 = vsel %vm1849, %v2837, %v2838
        %v2840 = vrot.slane %v2838, 4
        %v2841 = vrot.slane %v2718, 5
        %v2842 = vsel %vm1849, %v2840, %v2841
        %v2843 = vrot.slane %v2719, 5
        %v2844 = vrot.slane %v2843, 4
        %v2845 = vrot.slane %v2720, 5
        %v2846 = vsel %vm1849, %v2844, %v2845
        %v2847 = vrot.slane %v2845, 4
        %v2848 = vrot.slane %v2721, 5
        %v2849 = vsel %vm1849, %v2847, %v2848
        %v2850 = vrot.slane %v2722, 5
        %v2851 = vrot.slane %v2850, 4
        %v2852 = vrot.slane %v2723, 5
        %v2853 = vsel %vm1849, %v2851, %v2852
        %v2854 = vrot.slane %v2852, 4
        %v2855 = vrot.slane %v2724, 5
        %v2856 = vsel %vm1849, %v2854, %v2855
        %v2857 = vrot.slane %v2725, 5
        %v2858 = vrot.slane %v2857, 4
        %v2859 = vrot.slane %v2726, 5
        %v2860 = vsel %vm1849, %v2858, %v2859
        %v2861 = vrot.slane %v2859, 4
        %v2862 = vrot.slane %v2727, 5
        %v2863 = vsel %vm1849, %v2861, %v2862
        %v2864 = vrot.slane %v2728, 5
        %v2865 = vrot.slane %v2864, 4
        %v2866 = vrot.slane %v2729, 5
        %v2867 = vsel %vm1849, %v2865, %v2866
        %v2868 = vrot.slane %v2866, 4
        %v2869 = vrot.slane %v2730, 5
        %v2870 = vsel %vm1849, %v2868, %v2869
        %v2871 = vrot.slane %v2731, 5
        %v2872 = vrot.slane %v2871, 4
        %v2873 = vrot.slane %v2732, 5
        %v2874 = vsel %vm1849, %v2872, %v2873
        %v2875 = vrot.slane %v2873, 4
        %v2876 = vrot.slane %v2733, 5
        %v2877 = vsel %vm1849, %v2875, %v2876
        %v2878 = vrot.slane %v2734, 5
        %v2879 = vrot.slane %v2878, 4
        %v2880 = vrot.slane %v2735, 5
        %v2881 = vsel %vm1849, %v2879, %v2880
        %v2882 = vrot.slane %v2880, 4
        %v2883 = vrot.slane %v2736, 5
        %v2884 = vsel %vm1849, %v2882, %v2883
        %v2885 = vrot.slane %v2737, 5
        %v2886 = vrot.slane %v2885, 4
        %v2887 = vrot.slane %v2738, 5
        %v2888 = vsel %vm1849, %v2886, %v2887
        %v2889 = vrot.slane %v2887, 4
        %v2890 = vrot.slane %v2739, 5
        %v2891 = vsel %vm1849, %v2889, %v2890
        %v2892 = vrot.slane %v2740, 5
        %v2893 = vrot.slane %v2892, 4
        %v2894 = vrot.slane %v2741, 5
        %v2895 = vsel %vm1849, %v2893, %v2894
        %v2896 = vrot.slane %v2894, 4
        %v2897 = vrot.slane %v2742, 5
        %v2898 = vsel %vm1849, %v2896, %v2897
        %v2899 = vrot.slane %v2743, 5
        %v2900 = vrot.slane %v2899, 4
        %v2901 = vrot.slane %v2744, 5
        %v2902 = vsel %vm1849, %v2900, %v2901
        %v2903 = vrot.slane %v2901, 4
        %v2904 = vrot.slane %v2745, 5
        %v2905 = vsel %vm1849, %v2903, %v2904
        %v2906 = vunpack.c.l.b16 %v2797
        %v2907 = vunpack.c.l.b16 %v2800
        %v2908 = vunpack.c.l.b16 %v2804
        %v2909 = vunpack.c.l.b16 %v2807
        %v2910 = vunpack.c.l.b16 %v2811
        %v2911 = vunpack.c.l.b16 %v2814
        %v2912 = vunpack.c.l.b16 %v2818
        %v2913 = vunpack.c.l.b16 %v2821
        %v2914 = vunpack.c.l.b16 %v2825
        %v2915 = vunpack.c.l.b16 %v2828
        %v2916 = vunpack.c.l.b16 %v2832
        %v2917 = vunpack.c.l.b16 %v2835
        %v2918 = vunpack.c.l.b16 %v2839
        %v2919 = vunpack.c.l.b16 %v2842
        %v2920 = vunpack.c.l.b16 %v2846
        %v2921 = vunpack.c.l.b16 %v2849
        %v2922 = vunpack.c.l.b16 %v2853
        %v2923 = vunpack.c.l.b16 %v2856
        %v2924 = vunpack.c.l.b16 %v2860
        %v2925 = vunpack.c.l.b16 %v2863
        %v2926 = vunpack.c.l.b16 %v2867
        %v2927 = vunpack.c.l.b16 %v2870
        %v2928 = vunpack.c.l.b16 %v2874
        %v2929 = vunpack.c.l.b16 %v2877
        %v2930 = vunpack.c.l.b16 %v2881
        %v2931 = vunpack.c.l.b16 %v2884
        %v2932 = vunpack.c.l.b16 %v2888
        %v2933 = vunpack.c.l.b16 %v2891
        %v2934 = vunpack.c.l.b16 %v2895
        %v2935 = vunpack.c.l.b16 %v2898
        %v2936 = vunpack.c.l.b16 %v2902
        %v2937 = vunpack.c.l.b16 %v2905
        %v2938 = vpack.c.b16 %v2907, %v2906
        %v2939 = vpack.c.b16 %v2909, %v2908
        %v2940 = vpack.c.b16 %v2911, %v2910
        %v2941 = vpack.c.b16 %v2913, %v2912
        %v2942 = vpack.c.b16 %v2915, %v2914
        %v2943 = vpack.c.b16 %v2917, %v2916
        %v2944 = vpack.c.b16 %v2919, %v2918
        %v2945 = vpack.c.b16 %v2921, %v2920
        %v2946 = vpack.c.b16 %v2923, %v2922
        %v2947 = vpack.c.b16 %v2925, %v2924
        %v2948 = vpack.c.b16 %v2927, %v2926
        %v2949 = vpack.c.b16 %v2929, %v2928
        %v2950 = vpack.c.b16 %v2931, %v2930
        %v2951 = vpack.c.b16 %v2933, %v2932
        %v2952 = vpack.c.b16 %v2935, %v2934
        %v2953 = vpack.c.b16 %v2937, %v2936
        %2970 = vst [vmem:[#allocation3 + $0x28] sm:$0xff] %v2938
        %2971 = vst [vmem:[#allocation3 + $0x70] sm:$0xff] %v2939
        %2972 = vst [vmem:[#allocation3 + $0xb8] sm:$0xff] %v2940
        %2973 = vst [vmem:[#allocation3 + $0x100] sm:$0xff] %v2941
        %2974 = vst [vmem:[#allocation3 + $0x148] sm:$0xff] %v2942
        %2975 = vst [vmem:[#allocation3 + $0x190] sm:$0xff] %v2943
        %2976 = vst [vmem:[#allocation3 + $0x1d8] sm:$0xff] %v2944
        %2977 = vst [vmem:[#allocation3 + $0x220] sm:$0xff] %v2945
        %2978 = vst [vmem:[#allocation3 + $0x268] sm:$0xff] %v2946
        %2979 = vst [vmem:[#allocation3 + $0x2b0] sm:$0xff] %v2947
        %2980 = vst [vmem:[#allocation3 + $0x2f8] sm:$0xff] %v2948
        %2981 = vst [vmem:[#allocation3 + $0x340] sm:$0xff] %v2949
        %2982 = vst [vmem:[#allocation3 + $0x388] sm:$0xff] %v2950
        %2983 = vst [vmem:[#allocation3 + $0x3d0] sm:$0xff] %v2951
        %2984 = vst [vmem:[#allocation3 + $0x418] sm:$0xff] %v2952
        %2985 = vst [vmem:[#allocation3 + $0x460] sm:$0xff] %v2953
        %s2986 = scalar_lea.vmem [#allocation2], 24
        %v2987 = vld [vmem:[%s2986] sm:$0xf]
        %v2988 = vld [vmem:[%s2986 + $0x4] sm:$0xf]
        %v2989 = vld [vmem:[%s2986 + $0xc] sm:$0xf]
        %v2990 = vld [vmem:[%s2986 + $0x10] sm:$0xf]
        %v2991 = vld [vmem:[%s2986 + $0x18] sm:$0xf]
        %v2992 = vld [vmem:[%s2986 + $0x1c] sm:$0xf]
        %v2993 = vld [vmem:[%s2986 + $0x24] sm:$0xf]
        %v2994 = vld [vmem:[%s2986 + $0x28] sm:$0xf]
        %v2995 = vld [vmem:[%s2986 + $0x30] sm:$0xf]
        %v2996 = vld [vmem:[%s2986 + $0x34] sm:$0xf]
        %v2997 = vld [vmem:[%s2986 + $0x3c] sm:$0xf]
        %v2998 = vld [vmem:[%s2986 + $0x40] sm:$0xf]
        %v2999 = vld [vmem:[%s2986 + $0x48] sm:$0xf]
        %v3000 = vld [vmem:[%s2986 + $0x4c] sm:$0xf]
        %v3001 = vld [vmem:[%s2986 + $0x54] sm:$0xf]
        %v3002 = vld [vmem:[%s2986 + $0x58] sm:$0xf]
        %v3003 = vld [vmem:[%s2986 + $0x60] sm:$0xf]
        %v3004 = vld [vmem:[%s2986 + $0x64] sm:$0xf]
        %v3005 = vld [vmem:[%s2986 + $0x6c] sm:$0xf]
        %v3006 = vld [vmem:[%s2986 + $0x70] sm:$0xf]
        %v3007 = vld [vmem:[%s2986 + $0x78] sm:$0xf]
        %v3008 = vld [vmem:[%s2986 + $0x7c] sm:$0xf]
        %v3009 = vld [vmem:[%s2986 + $0x84] sm:$0xf]
        %v3010 = vld [vmem:[%s2986 + $0x88] sm:$0xf]
        %v3011 = vld [vmem:[%s2986 + $0x90] sm:$0xf]
        %v3012 = vld [vmem:[%s2986 + $0x94] sm:$0xf]
        %v3013 = vld [vmem:[%s2986 + $0x9c] sm:$0xf]
        %v3014 = vld [vmem:[%s2986 + $0xa0] sm:$0xf]
        %v3015 = vld [vmem:[%s2986 + $0xa8] sm:$0xf]
        %v3016 = vld [vmem:[%s2986 + $0xac] sm:$0xf]
        %v3017 = vld [vmem:[%s2986 + $0xb4] sm:$0xf]
        %v3018 = vld [vmem:[%s2986 + $0xb8] sm:$0xf]
        %v3051 = vunpack.c.l.b16 %v2987
        %v3052 = vunpack.c.l.b16 %v2988
        %v3053 = vunpack.c.l.b16 %v2989
        %v3054 = vunpack.c.l.b16 %v2990
        %v3055 = vunpack.c.l.b16 %v2991
        %v3056 = vunpack.c.l.b16 %v2992
        %v3057 = vunpack.c.l.b16 %v2993
        %v3058 = vunpack.c.l.b16 %v2994
        %v3059 = vunpack.c.l.b16 %v2995
        %v3060 = vunpack.c.l.b16 %v2996
        %v3061 = vunpack.c.l.b16 %v2997
        %v3062 = vunpack.c.l.b16 %v2998
        %v3063 = vunpack.c.l.b16 %v2999
        %v3064 = vunpack.c.l.b16 %v3000
        %v3065 = vunpack.c.l.b16 %v3001
        %v3066 = vunpack.c.l.b16 %v3002
        %v3067 = vunpack.c.l.b16 %v3003
        %v3068 = vunpack.c.l.b16 %v3004
        %v3069 = vunpack.c.l.b16 %v3005
        %v3070 = vunpack.c.l.b16 %v3006
        %v3071 = vunpack.c.l.b16 %v3007
        %v3072 = vunpack.c.l.b16 %v3008
        %v3073 = vunpack.c.l.b16 %v3009
        %v3074 = vunpack.c.l.b16 %v3010
        %v3075 = vunpack.c.l.b16 %v3011
        %v3076 = vunpack.c.l.b16 %v3012
        %v3077 = vunpack.c.l.b16 %v3013
        %v3078 = vunpack.c.l.b16 %v3014
        %v3079 = vunpack.c.l.b16 %v3015
        %v3080 = vunpack.c.l.b16 %v3016
        %v3081 = vunpack.c.l.b16 %v3017
        %v3082 = vunpack.c.l.b16 %v3018
        %v3083 = vpack.c.b16 %v3052, %v3051
        %v3084 = vpack.c.b16 %v3054, %v3053
        %v3085 = vpack.c.b16 %v3056, %v3055
        %v3086 = vpack.c.b16 %v3058, %v3057
        %v3087 = vpack.c.b16 %v3060, %v3059
        %v3088 = vpack.c.b16 %v3062, %v3061
        %v3089 = vpack.c.b16 %v3064, %v3063
        %v3090 = vpack.c.b16 %v3066, %v3065
        %v3091 = vpack.c.b16 %v3068, %v3067
        %v3092 = vpack.c.b16 %v3070, %v3069
        %v3093 = vpack.c.b16 %v3072, %v3071
        %v3094 = vpack.c.b16 %v3074, %v3073
        %v3095 = vpack.c.b16 %v3076, %v3075
        %v3096 = vpack.c.b16 %v3078, %v3077
        %v3097 = vpack.c.b16 %v3080, %v3079
        %v3098 = vpack.c.b16 %v3082, %v3081
        %3115 = vst [vmem:[#allocation3 + $0x30] sm:$0xff] %v3083
        %3116 = vst [vmem:[#allocation3 + $0x78] sm:$0xff] %v3084
        %3117 = vst [vmem:[#allocation3 + $0xc0] sm:$0xff] %v3085
        %3118 = vst [vmem:[#allocation3 + $0x108] sm:$0xff] %v3086
        %3119 = vst [vmem:[#allocation3 + $0x150] sm:$0xff] %v3087
        %3120 = vst [vmem:[#allocation3 + $0x198] sm:$0xff] %v3088
        %3121 = vst [vmem:[#allocation3 + $0x1e0] sm:$0xff] %v3089
        %3122 = vst [vmem:[#allocation3 + $0x228] sm:$0xff] %v3090
        %3123 = vst [vmem:[#allocation3 + $0x270] sm:$0xff] %v3091
        %3124 = vst [vmem:[#allocation3 + $0x2b8] sm:$0xff] %v3092
        %3125 = vst [vmem:[#allocation3 + $0x300] sm:$0xff] %v3093
        %3126 = vst [vmem:[#allocation3 + $0x348] sm:$0xff] %v3094
        %3127 = vst [vmem:[#allocation3 + $0x390] sm:$0xff] %v3095
        %3128 = vst [vmem:[#allocation3 + $0x3d8] sm:$0xff] %v3096
        %3129 = vst [vmem:[#allocation3 + $0x420] sm:$0xff] %v3097
        %3130 = vst [vmem:[#allocation3 + $0x468] sm:$0xff] %v3098
        %v3131 = vld [vmem:[%s2986] sm:$0xf]
        %v3132 = vld [vmem:[%s2986 + $0x4] sm:$0xf]
        %v3133 = vld [vmem:[%s2986 + $0x8] sm:$0x1]
        %v3134 = vld [vmem:[%s2986 + $0xc] sm:$0xf]
        %v3135 = vld [vmem:[%s2986 + $0x10] sm:$0xf]
        %v3136 = vld [vmem:[%s2986 + $0x14] sm:$0x1]
        %v3137 = vld [vmem:[%s2986 + $0x18] sm:$0xf]
        %v3138 = vld [vmem:[%s2986 + $0x1c] sm:$0xf]
        %v3139 = vld [vmem:[%s2986 + $0x20] sm:$0x1]
        %v3140 = vld [vmem:[%s2986 + $0x24] sm:$0xf]
        %v3141 = vld [vmem:[%s2986 + $0x28] sm:$0xf]
        %v3142 = vld [vmem:[%s2986 + $0x2c] sm:$0x1]
        %v3143 = vld [vmem:[%s2986 + $0x30] sm:$0xf]
        %v3144 = vld [vmem:[%s2986 + $0x34] sm:$0xf]
        %v3145 = vld [vmem:[%s2986 + $0x38] sm:$0x1]
        %v3146 = vld [vmem:[%s2986 + $0x3c] sm:$0xf]
        %v3147 = vld [vmem:[%s2986 + $0x40] sm:$0xf]
        %v3148 = vld [vmem:[%s2986 + $0x44] sm:$0x1]
        %v3149 = vld [vmem:[%s2986 + $0x48] sm:$0xf]
        %v3150 = vld [vmem:[%s2986 + $0x4c] sm:$0xf]
        %v3151 = vld [vmem:[%s2986 + $0x50] sm:$0x1]
        %v3152 = vld [vmem:[%s2986 + $0x54] sm:$0xf]
        %v3153 = vld [vmem:[%s2986 + $0x58] sm:$0xf]
        %v3154 = vld [vmem:[%s2986 + $0x5c] sm:$0x1]
        %v3155 = vld [vmem:[%s2986 + $0x60] sm:$0xf]
        %v3156 = vld [vmem:[%s2986 + $0x64] sm:$0xf]
        %v3157 = vld [vmem:[%s2986 + $0x68] sm:$0x1]
        %v3158 = vld [vmem:[%s2986 + $0x6c] sm:$0xf]
        %v3159 = vld [vmem:[%s2986 + $0x70] sm:$0xf]
        %v3160 = vld [vmem:[%s2986 + $0x74] sm:$0x1]
        %v3161 = vld [vmem:[%s2986 + $0x78] sm:$0xf]
        %v3162 = vld [vmem:[%s2986 + $0x7c] sm:$0xf]
        %v3163 = vld [vmem:[%s2986 + $0x80] sm:$0x1]
        %v3164 = vld [vmem:[%s2986 + $0x84] sm:$0xf]
        %v3165 = vld [vmem:[%s2986 + $0x88] sm:$0xf]
        %v3166 = vld [vmem:[%s2986 + $0x8c] sm:$0x1]
        %v3167 = vld [vmem:[%s2986 + $0x90] sm:$0xf]
        %v3168 = vld [vmem:[%s2986 + $0x94] sm:$0xf]
        %v3169 = vld [vmem:[%s2986 + $0x98] sm:$0x1]
        %v3170 = vld [vmem:[%s2986 + $0x9c] sm:$0xf]
        %v3171 = vld [vmem:[%s2986 + $0xa0] sm:$0xf]
        %v3172 = vld [vmem:[%s2986 + $0xa4] sm:$0x1]
        %v3173 = vld [vmem:[%s2986 + $0xa8] sm:$0xf]
        %v3174 = vld [vmem:[%s2986 + $0xac] sm:$0xf]
        %v3175 = vld [vmem:[%s2986 + $0xb0] sm:$0x1]
        %v3176 = vld [vmem:[%s2986 + $0xb4] sm:$0xf]
        %v3177 = vld [vmem:[%s2986 + $0xb8] sm:$0xf]
        %v3178 = vld [vmem:[%s2986 + $0xbc] sm:$0x1]
        %v3180 = vshrl.u32 %v3131, 16
        %v3182 = vrot.slane %v3180, 4
        %v3183 = vshll.u32 %v3131, 16
        %v3185 = vrot.slane %v3183, 5
        %v3186 = vor.u32 %v3182, %v3185
        %v3187 = vrot.slane %v3186, 4
        %v3189 = vshll.u32 %v3132, 16
        %v3191 = vrot.slane %v3189, 5
        %v3192 = vsel %vm1286, %v3187, %v3191
        %v3193 = vshrl.u32 %v3132, 16
        %v3195 = vrot.slane %v3193, 4
        %v3196 = vor.u32 %v3195, %v3191
        %v3197 = vrot.slane %v3196, 4
        %v3199 = vshll.u32 %v3133, 16
        %v3201 = vrot.slane %v3199, 5
        %v3202 = vsel %vm1286, %v3197, %v3201
        %v3204 = vshrl.u32 %v3134, 16
        %v3206 = vrot.slane %v3204, 4
        %v3207 = vshll.u32 %v3134, 16
        %v3209 = vrot.slane %v3207, 5
        %v3210 = vor.u32 %v3206, %v3209
        %v3211 = vrot.slane %v3210, 4
        %v3213 = vshll.u32 %v3135, 16
        %v3215 = vrot.slane %v3213, 5
        %v3216 = vsel %vm1286, %v3211, %v3215
        %v3217 = vshrl.u32 %v3135, 16
        %v3219 = vrot.slane %v3217, 4
        %v3220 = vor.u32 %v3219, %v3215
        %v3221 = vrot.slane %v3220, 4
        %v3223 = vshll.u32 %v3136, 16
        %v3225 = vrot.slane %v3223, 5
        %v3226 = vsel %vm1286, %v3221, %v3225
        %v3228 = vshrl.u32 %v3137, 16
        %v3230 = vrot.slane %v3228, 4
        %v3231 = vshll.u32 %v3137, 16
        %v3233 = vrot.slane %v3231, 5
        %v3234 = vor.u32 %v3230, %v3233
        %v3235 = vrot.slane %v3234, 4
        %v3237 = vshll.u32 %v3138, 16
        %v3239 = vrot.slane %v3237, 5
        %v3240 = vsel %vm1286, %v3235, %v3239
        %v3241 = vshrl.u32 %v3138, 16
        %v3243 = vrot.slane %v3241, 4
        %v3244 = vor.u32 %v3243, %v3239
        %v3245 = vrot.slane %v3244, 4
        %v3247 = vshll.u32 %v3139, 16
        %v3249 = vrot.slane %v3247, 5
        %v3250 = vsel %vm1286, %v3245, %v3249
        %v3252 = vshrl.u32 %v3140, 16
        %v3254 = vrot.slane %v3252, 4
        %v3255 = vshll.u32 %v3140, 16
        %v3257 = vrot.slane %v3255, 5
        %v3258 = vor.u32 %v3254, %v3257
        %v3259 = vrot.slane %v3258, 4
        %v3261 = vshll.u32 %v3141, 16
        %v3263 = vrot.slane %v3261, 5
        %v3264 = vsel %vm1286, %v3259, %v3263
        %v3265 = vshrl.u32 %v3141, 16
        %v3267 = vrot.slane %v3265, 4
        %v3268 = vor.u32 %v3267, %v3263
        %v3269 = vrot.slane %v3268, 4
        %v3271 = vshll.u32 %v3142, 16
        %v3273 = vrot.slane %v3271, 5
        %v3274 = vsel %vm1286, %v3269, %v3273
        %v3276 = vshrl.u32 %v3143, 16
        %v3278 = vrot.slane %v3276, 4
        %v3279 = vshll.u32 %v3143, 16
        %v3281 = vrot.slane %v3279, 5
        %v3282 = vor.u32 %v3278, %v3281
        %v3283 = vrot.slane %v3282, 4
        %v3285 = vshll.u32 %v3144, 16
        %v3287 = vrot.slane %v3285, 5
        %v3288 = vsel %vm1286, %v3283, %v3287
        %v3289 = vshrl.u32 %v3144, 16
        %v3291 = vrot.slane %v3289, 4
        %v3292 = vor.u32 %v3291, %v3287
        %v3293 = vrot.slane %v3292, 4
        %v3295 = vshll.u32 %v3145, 16
        %v3297 = vrot.slane %v3295, 5
        %v3298 = vsel %vm1286, %v3293, %v3297
        %v3300 = vshrl.u32 %v3146, 16
        %v3302 = vrot.slane %v3300, 4
        %v3303 = vshll.u32 %v3146, 16
        %v3305 = vrot.slane %v3303, 5
        %v3306 = vor.u32 %v3302, %v3305
        %v3307 = vrot.slane %v3306, 4
        %v3309 = vshll.u32 %v3147, 16
        %v3311 = vrot.slane %v3309, 5
        %v3312 = vsel %vm1286, %v3307, %v3311
        %v3313 = vshrl.u32 %v3147, 16
        %v3315 = vrot.slane %v3313, 4
        %v3316 = vor.u32 %v3315, %v3311
        %v3317 = vrot.slane %v3316, 4
        %v3319 = vshll.u32 %v3148, 16
        %v3321 = vrot.slane %v3319, 5
        %v3322 = vsel %vm1286, %v3317, %v3321
        %v3324 = vshrl.u32 %v3149, 16
        %v3326 = vrot.slane %v3324, 4
        %v3327 = vshll.u32 %v3149, 16
        %v3329 = vrot.slane %v3327, 5
        %v3330 = vor.u32 %v3326, %v3329
        %v3331 = vrot.slane %v3330, 4
        %v3333 = vshll.u32 %v3150, 16
        %v3335 = vrot.slane %v3333, 5
        %v3336 = vsel %vm1286, %v3331, %v3335
        %v3337 = vshrl.u32 %v3150, 16
        %v3339 = vrot.slane %v3337, 4
        %v3340 = vor.u32 %v3339, %v3335
        %v3341 = vrot.slane %v3340, 4
        %v3343 = vshll.u32 %v3151, 16
        %v3345 = vrot.slane %v3343, 5
        %v3346 = vsel %vm1286, %v3341, %v3345
        %v3348 = vshrl.u32 %v3152, 16
        %v3350 = vrot.slane %v3348, 4
        %v3351 = vshll.u32 %v3152, 16
        %v3353 = vrot.slane %v3351, 5
        %v3354 = vor.u32 %v3350, %v3353
        %v3355 = vrot.slane %v3354, 4
        %v3357 = vshll.u32 %v3153, 16
        %v3359 = vrot.slane %v3357, 5
        %v3360 = vsel %vm1286, %v3355, %v3359
        %v3361 = vshrl.u32 %v3153, 16
        %v3363 = vrot.slane %v3361, 4
        %v3364 = vor.u32 %v3363, %v3359
        %v3365 = vrot.slane %v3364, 4
        %v3367 = vshll.u32 %v3154, 16
        %v3369 = vrot.slane %v3367, 5
        %v3370 = vsel %vm1286, %v3365, %v3369
        %v3372 = vshrl.u32 %v3155, 16
        %v3374 = vrot.slane %v3372, 4
        %v3375 = vshll.u32 %v3155, 16
        %v3377 = vrot.slane %v3375, 5
        %v3378 = vor.u32 %v3374, %v3377
        %v3379 = vrot.slane %v3378, 4
        %v3381 = vshll.u32 %v3156, 16
        %v3383 = vrot.slane %v3381, 5
        %v3384 = vsel %vm1286, %v3379, %v3383
        %v3385 = vshrl.u32 %v3156, 16
        %v3387 = vrot.slane %v3385, 4
        %v3388 = vor.u32 %v3387, %v3383
        %v3389 = vrot.slane %v3388, 4
        %v3391 = vshll.u32 %v3157, 16
        %v3393 = vrot.slane %v3391, 5
        %v3394 = vsel %vm1286, %v3389, %v3393
        %v3396 = vshrl.u32 %v3158, 16
        %v3398 = vrot.slane %v3396, 4
        %v3399 = vshll.u32 %v3158, 16
        %v3401 = vrot.slane %v3399, 5
        %v3402 = vor.u32 %v3398, %v3401
        %v3403 = vrot.slane %v3402, 4
        %v3405 = vshll.u32 %v3159, 16
        %v3407 = vrot.slane %v3405, 5
        %v3408 = vsel %vm1286, %v3403, %v3407
        %v3409 = vshrl.u32 %v3159, 16
        %v3411 = vrot.slane %v3409, 4
        %v3412 = vor.u32 %v3411, %v3407
        %v3413 = vrot.slane %v3412, 4
        %v3415 = vshll.u32 %v3160, 16
        %v3417 = vrot.slane %v3415, 5
        %v3418 = vsel %vm1286, %v3413, %v3417
        %v3420 = vshrl.u32 %v3161, 16
        %v3422 = vrot.slane %v3420, 4
        %v3423 = vshll.u32 %v3161, 16
        %v3425 = vrot.slane %v3423, 5
        %v3426 = vor.u32 %v3422, %v3425
        %v3427 = vrot.slane %v3426, 4
        %v3429 = vshll.u32 %v3162, 16
        %v3431 = vrot.slane %v3429, 5
        %v3432 = vsel %vm1286, %v3427, %v3431
        %v3433 = vshrl.u32 %v3162, 16
        %v3435 = vrot.slane %v3433, 4
        %v3436 = vor.u32 %v3435, %v3431
        %v3437 = vrot.slane %v3436, 4
        %v3439 = vshll.u32 %v3163, 16
        %v3441 = vrot.slane %v3439, 5
        %v3442 = vsel %vm1286, %v3437, %v3441
        %v3444 = vshrl.u32 %v3164, 16
        %v3446 = vrot.slane %v3444, 4
        %v3447 = vshll.u32 %v3164, 16
        %v3449 = vrot.slane %v3447, 5
        %v3450 = vor.u32 %v3446, %v3449
        %v3451 = vrot.slane %v3450, 4
        %v3453 = vshll.u32 %v3165, 16
        %v3455 = vrot.slane %v3453, 5
        %v3456 = vsel %vm1286, %v3451, %v3455
        %v3457 = vshrl.u32 %v3165, 16
        %v3459 = vrot.slane %v3457, 4
        %v3460 = vor.u32 %v3459, %v3455
        %v3461 = vrot.slane %v3460, 4
        %v3463 = vshll.u32 %v3166, 16
        %v3465 = vrot.slane %v3463, 5
        %v3466 = vsel %vm1286, %v3461, %v3465
        %v3468 = vshrl.u32 %v3167, 16
        %v3470 = vrot.slane %v3468, 4
        %v3471 = vshll.u32 %v3167, 16
        %v3473 = vrot.slane %v3471, 5
        %v3474 = vor.u32 %v3470, %v3473
        %v3475 = vrot.slane %v3474, 4
        %v3477 = vshll.u32 %v3168, 16
        %v3479 = vrot.slane %v3477, 5
        %v3480 = vsel %vm1286, %v3475, %v3479
        %v3481 = vshrl.u32 %v3168, 16
        %v3483 = vrot.slane %v3481, 4
        %v3484 = vor.u32 %v3483, %v3479
        %v3485 = vrot.slane %v3484, 4
        %v3487 = vshll.u32 %v3169, 16
        %v3489 = vrot.slane %v3487, 5
        %v3490 = vsel %vm1286, %v3485, %v3489
        %v3492 = vshrl.u32 %v3170, 16
        %v3494 = vrot.slane %v3492, 4
        %v3495 = vshll.u32 %v3170, 16
        %v3497 = vrot.slane %v3495, 5
        %v3498 = vor.u32 %v3494, %v3497
        %v3499 = vrot.slane %v3498, 4
        %v3501 = vshll.u32 %v3171, 16
        %v3503 = vrot.slane %v3501, 5
        %v3504 = vsel %vm1286, %v3499, %v3503
        %v3505 = vshrl.u32 %v3171, 16
        %v3507 = vrot.slane %v3505, 4
        %v3508 = vor.u32 %v3507, %v3503
        %v3509 = vrot.slane %v3508, 4
        %v3511 = vshll.u32 %v3172, 16
        %v3513 = vrot.slane %v3511, 5
        %v3514 = vsel %vm1286, %v3509, %v3513
        %v3516 = vshrl.u32 %v3173, 16
        %v3518 = vrot.slane %v3516, 4
        %v3519 = vshll.u32 %v3173, 16
        %v3521 = vrot.slane %v3519, 5
        %v3522 = vor.u32 %v3518, %v3521
        %v3523 = vrot.slane %v3522, 4
        %v3525 = vshll.u32 %v3174, 16
        %v3527 = vrot.slane %v3525, 5
        %v3528 = vsel %vm1286, %v3523, %v3527
        %v3529 = vshrl.u32 %v3174, 16
        %v3531 = vrot.slane %v3529, 4
        %v3532 = vor.u32 %v3531, %v3527
        %v3533 = vrot.slane %v3532, 4
        %v3535 = vshll.u32 %v3175, 16
        %v3537 = vrot.slane %v3535, 5
        %v3538 = vsel %vm1286, %v3533, %v3537
        %v3540 = vshrl.u32 %v3176, 16
        %v3542 = vrot.slane %v3540, 4
        %v3543 = vshll.u32 %v3176, 16
        %v3545 = vrot.slane %v3543, 5
        %v3546 = vor.u32 %v3542, %v3545
        %v3547 = vrot.slane %v3546, 4
        %v3549 = vshll.u32 %v3177, 16
        %v3551 = vrot.slane %v3549, 5
        %v3552 = vsel %vm1286, %v3547, %v3551
        %v3553 = vshrl.u32 %v3177, 16
        %v3555 = vrot.slane %v3553, 4
        %v3556 = vor.u32 %v3555, %v3551
        %v3557 = vrot.slane %v3556, 4
        %v3559 = vshll.u32 %v3178, 16
        %v3561 = vrot.slane %v3559, 5
        %v3562 = vsel %vm1286, %v3557, %v3561
        %v3563 = vunpack.c.l.b16 %v3192
        %v3564 = vunpack.c.l.b16 %v3202
        %v3565 = vunpack.c.l.b16 %v3216
        %v3566 = vunpack.c.l.b16 %v3226
        %v3567 = vunpack.c.l.b16 %v3240
        %v3568 = vunpack.c.l.b16 %v3250
        %v3569 = vunpack.c.l.b16 %v3264
        %v3570 = vunpack.c.l.b16 %v3274
        %v3571 = vunpack.c.l.b16 %v3288
        %v3572 = vunpack.c.l.b16 %v3298
        %v3573 = vunpack.c.l.b16 %v3312
        %v3574 = vunpack.c.l.b16 %v3322
        %v3575 = vunpack.c.l.b16 %v3336
        %v3576 = vunpack.c.l.b16 %v3346
        %v3577 = vunpack.c.l.b16 %v3360
        %v3578 = vunpack.c.l.b16 %v3370
        %v3579 = vunpack.c.l.b16 %v3384
        %v3580 = vunpack.c.l.b16 %v3394
        %v3581 = vunpack.c.l.b16 %v3408
        %v3582 = vunpack.c.l.b16 %v3418
        %v3583 = vunpack.c.l.b16 %v3432
        %v3584 = vunpack.c.l.b16 %v3442
        %v3585 = vunpack.c.l.b16 %v3456
        %v3586 = vunpack.c.l.b16 %v3466
        %v3587 = vunpack.c.l.b16 %v3480
        %v3588 = vunpack.c.l.b16 %v3490
        %v3589 = vunpack.c.l.b16 %v3504
        %v3590 = vunpack.c.l.b16 %v3514
        %v3591 = vunpack.c.l.b16 %v3528
        %v3592 = vunpack.c.l.b16 %v3538
        %v3593 = vunpack.c.l.b16 %v3552
        %v3594 = vunpack.c.l.b16 %v3562
        %v3595 = vpack.c.b16 %v3564, %v3563
        %v3596 = vpack.c.b16 %v3566, %v3565
        %v3597 = vpack.c.b16 %v3568, %v3567
        %v3598 = vpack.c.b16 %v3570, %v3569
        %v3599 = vpack.c.b16 %v3572, %v3571
        %v3600 = vpack.c.b16 %v3574, %v3573
        %v3601 = vpack.c.b16 %v3576, %v3575
        %v3602 = vpack.c.b16 %v3578, %v3577
        %v3603 = vpack.c.b16 %v3580, %v3579
        %v3604 = vpack.c.b16 %v3582, %v3581
        %v3605 = vpack.c.b16 %v3584, %v3583
        %v3606 = vpack.c.b16 %v3586, %v3585
        %v3607 = vpack.c.b16 %v3588, %v3587
        %v3608 = vpack.c.b16 %v3590, %v3589
        %v3609 = vpack.c.b16 %v3592, %v3591
        %v3610 = vpack.c.b16 %v3594, %v3593
        %3627 = vst [vmem:[#allocation3 + $0x38] sm:$0xff] %v3595
        %3628 = vst [vmem:[#allocation3 + $0x80] sm:$0xff] %v3596
        %3629 = vst [vmem:[#allocation3 + $0xc8] sm:$0xff] %v3597
        %3630 = vst [vmem:[#allocation3 + $0x110] sm:$0xff] %v3598
        %3631 = vst [vmem:[#allocation3 + $0x158] sm:$0xff] %v3599
        %3632 = vst [vmem:[#allocation3 + $0x1a0] sm:$0xff] %v3600
        %3633 = vst [vmem:[#allocation3 + $0x1e8] sm:$0xff] %v3601
        %3634 = vst [vmem:[#allocation3 + $0x230] sm:$0xff] %v3602
        %3635 = vst [vmem:[#allocation3 + $0x278] sm:$0xff] %v3603
        %3636 = vst [vmem:[#allocation3 + $0x2c0] sm:$0xff] %v3604
        %3637 = vst [vmem:[#allocation3 + $0x308] sm:$0xff] %v3605
        %3638 = vst [vmem:[#allocation3 + $0x350] sm:$0xff] %v3606
        %3639 = vst [vmem:[#allocation3 + $0x398] sm:$0xff] %v3607
        %3640 = vst [vmem:[#allocation3 + $0x3e0] sm:$0xff] %v3608
        %3641 = vst [vmem:[#allocation3 + $0x428] sm:$0xff] %v3609
        %3642 = vst [vmem:[#allocation3 + $0x470] sm:$0xff] %v3610
        %v3643 = vld [vmem:[%s2986] sm:$0xe]
        %v3644 = vld [vmem:[%s2986 + $0x4] sm:$0xf]
        %v3645 = vld [vmem:[%s2986 + $0x8] sm:$0x1]
        %v3646 = vld [vmem:[%s2986 + $0xc] sm:$0xe]
        %v3647 = vld [vmem:[%s2986 + $0x10] sm:$0xf]
        %v3648 = vld [vmem:[%s2986 + $0x14] sm:$0x1]
        %v3649 = vld [vmem:[%s2986 + $0x18] sm:$0xe]
        %v3650 = vld [vmem:[%s2986 + $0x1c] sm:$0xf]
        %v3651 = vld [vmem:[%s2986 + $0x20] sm:$0x1]
        %v3652 = vld [vmem:[%s2986 + $0x24] sm:$0xe]
        %v3653 = vld [vmem:[%s2986 + $0x28] sm:$0xf]
        %v3654 = vld [vmem:[%s2986 + $0x2c] sm:$0x1]
        %v3655 = vld [vmem:[%s2986 + $0x30] sm:$0xe]
        %v3656 = vld [vmem:[%s2986 + $0x34] sm:$0xf]
        %v3657 = vld [vmem:[%s2986 + $0x38] sm:$0x1]
        %v3658 = vld [vmem:[%s2986 + $0x3c] sm:$0xe]
        %v3659 = vld [vmem:[%s2986 + $0x40] sm:$0xf]
        %v3660 = vld [vmem:[%s2986 + $0x44] sm:$0x1]
        %v3661 = vld [vmem:[%s2986 + $0x48] sm:$0xe]
        %v3662 = vld [vmem:[%s2986 + $0x4c] sm:$0xf]
        %v3663 = vld [vmem:[%s2986 + $0x50] sm:$0x1]
        %v3664 = vld [vmem:[%s2986 + $0x54] sm:$0xe]
        %v3665 = vld [vmem:[%s2986 + $0x58] sm:$0xf]
        %v3666 = vld [vmem:[%s2986 + $0x5c] sm:$0x1]
        %v3667 = vld [vmem:[%s2986 + $0x60] sm:$0xe]
        %v3668 = vld [vmem:[%s2986 + $0x64] sm:$0xf]
        %v3669 = vld [vmem:[%s2986 + $0x68] sm:$0x1]
        %v3670 = vld [vmem:[%s2986 + $0x6c] sm:$0xe]
        %v3671 = vld [vmem:[%s2986 + $0x70] sm:$0xf]
        %v3672 = vld [vmem:[%s2986 + $0x74] sm:$0x1]
        %v3673 = vld [vmem:[%s2986 + $0x78] sm:$0xe]
        %v3674 = vld [vmem:[%s2986 + $0x7c] sm:$0xf]
        %v3675 = vld [vmem:[%s2986 + $0x80] sm:$0x1]
        %v3676 = vld [vmem:[%s2986 + $0x84] sm:$0xe]
        %v3677 = vld [vmem:[%s2986 + $0x88] sm:$0xf]
        %v3678 = vld [vmem:[%s2986 + $0x8c] sm:$0x1]
        %v3679 = vld [vmem:[%s2986 + $0x90] sm:$0xe]
        %v3680 = vld [vmem:[%s2986 + $0x94] sm:$0xf]
        %v3681 = vld [vmem:[%s2986 + $0x98] sm:$0x1]
        %v3682 = vld [vmem:[%s2986 + $0x9c] sm:$0xe]
        %v3683 = vld [vmem:[%s2986 + $0xa0] sm:$0xf]
        %v3684 = vld [vmem:[%s2986 + $0xa4] sm:$0x1]
        %v3685 = vld [vmem:[%s2986 + $0xa8] sm:$0xe]
        %v3686 = vld [vmem:[%s2986 + $0xac] sm:$0xf]
        %v3687 = vld [vmem:[%s2986 + $0xb0] sm:$0x1]
        %v3688 = vld [vmem:[%s2986 + $0xb4] sm:$0xe]
        %v3689 = vld [vmem:[%s2986 + $0xb8] sm:$0xf]
        %v3690 = vld [vmem:[%s2986 + $0xbc] sm:$0x1]
        %v3739 = vrot.slane %v3643, 5
        %v3740 = vrot.slane %v3739, 4
        %v3741 = vrot.slane %v3644, 5
        %v3742 = vsel %vm1849, %v3740, %v3741
        %v3743 = vrot.slane %v3741, 4
        %v3744 = vrot.slane %v3645, 5
        %v3745 = vsel %vm1849, %v3743, %v3744
        %v3746 = vrot.slane %v3646, 5
        %v3747 = vrot.slane %v3746, 4
        %v3748 = vrot.slane %v3647, 5
        %v3749 = vsel %vm1849, %v3747, %v3748
        %v3750 = vrot.slane %v3748, 4
        %v3751 = vrot.slane %v3648, 5
        %v3752 = vsel %vm1849, %v3750, %v3751
        %v3753 = vrot.slane %v3649, 5
        %v3754 = vrot.slane %v3753, 4
        %v3755 = vrot.slane %v3650, 5
        %v3756 = vsel %vm1849, %v3754, %v3755
        %v3757 = vrot.slane %v3755, 4
        %v3758 = vrot.slane %v3651, 5
        %v3759 = vsel %vm1849, %v3757, %v3758
        %v3760 = vrot.slane %v3652, 5
        %v3761 = vrot.slane %v3760, 4
        %v3762 = vrot.slane %v3653, 5
        %v3763 = vsel %vm1849, %v3761, %v3762
        %v3764 = vrot.slane %v3762, 4
        %v3765 = vrot.slane %v3654, 5
        %v3766 = vsel %vm1849, %v3764, %v3765
        %v3767 = vrot.slane %v3655, 5
        %v3768 = vrot.slane %v3767, 4
        %v3769 = vrot.slane %v3656, 5
        %v3770 = vsel %vm1849, %v3768, %v3769
        %v3771 = vrot.slane %v3769, 4
        %v3772 = vrot.slane %v3657, 5
        %v3773 = vsel %vm1849, %v3771, %v3772
        %v3774 = vrot.slane %v3658, 5
        %v3775 = vrot.slane %v3774, 4
        %v3776 = vrot.slane %v3659, 5
        %v3777 = vsel %vm1849, %v3775, %v3776
        %v3778 = vrot.slane %v3776, 4
        %v3779 = vrot.slane %v3660, 5
        %v3780 = vsel %vm1849, %v3778, %v3779
        %v3781 = vrot.slane %v3661, 5
        %v3782 = vrot.slane %v3781, 4
        %v3783 = vrot.slane %v3662, 5
        %v3784 = vsel %vm1849, %v3782, %v3783
        %v3785 = vrot.slane %v3783, 4
        %v3786 = vrot.slane %v3663, 5
        %v3787 = vsel %vm1849, %v3785, %v3786
        %v3788 = vrot.slane %v3664, 5
        %v3789 = vrot.slane %v3788, 4
        %v3790 = vrot.slane %v3665, 5
        %v3791 = vsel %vm1849, %v3789, %v3790
        %v3792 = vrot.slane %v3790, 4
        %v3793 = vrot.slane %v3666, 5
        %v3794 = vsel %vm1849, %v3792, %v3793
        %v3795 = vrot.slane %v3667, 5
        %v3796 = vrot.slane %v3795, 4
        %v3797 = vrot.slane %v3668, 5
        %v3798 = vsel %vm1849, %v3796, %v3797
        %v3799 = vrot.slane %v3797, 4
        %v3800 = vrot.slane %v3669, 5
        %v3801 = vsel %vm1849, %v3799, %v3800
        %v3802 = vrot.slane %v3670, 5
        %v3803 = vrot.slane %v3802, 4
        %v3804 = vrot.slane %v3671, 5
        %v3805 = vsel %vm1849, %v3803, %v3804
        %v3806 = vrot.slane %v3804, 4
        %v3807 = vrot.slane %v3672, 5
        %v3808 = vsel %vm1849, %v3806, %v3807
        %v3809 = vrot.slane %v3673, 5
        %v3810 = vrot.slane %v3809, 4
        %v3811 = vrot.slane %v3674, 5
        %v3812 = vsel %vm1849, %v3810, %v3811
        %v3813 = vrot.slane %v3811, 4
        %v3814 = vrot.slane %v3675, 5
        %v3815 = vsel %vm1849, %v3813, %v3814
        %v3816 = vrot.slane %v3676, 5
        %v3817 = vrot.slane %v3816, 4
        %v3818 = vrot.slane %v3677, 5
        %v3819 = vsel %vm1849, %v3817, %v3818
        %v3820 = vrot.slane %v3818, 4
        %v3821 = vrot.slane %v3678, 5
        %v3822 = vsel %vm1849, %v3820, %v3821
        %v3823 = vrot.slane %v3679, 5
        %v3824 = vrot.slane %v3823, 4
        %v3825 = vrot.slane %v3680, 5
        %v3826 = vsel %vm1849, %v3824, %v3825
        %v3827 = vrot.slane %v3825, 4
        %v3828 = vrot.slane %v3681, 5
        %v3829 = vsel %vm1849, %v3827, %v3828
        %v3830 = vrot.slane %v3682, 5
        %v3831 = vrot.slane %v3830, 4
        %v3832 = vrot.slane %v3683, 5
        %v3833 = vsel %vm1849, %v3831, %v3832
        %v3834 = vrot.slane %v3832, 4
        %v3835 = vrot.slane %v3684, 5
        %v3836 = vsel %vm1849, %v3834, %v3835
        %v3837 = vrot.slane %v3685, 5
        %v3838 = vrot.slane %v3837, 4
        %v3839 = vrot.slane %v3686, 5
        %v3840 = vsel %vm1849, %v3838, %v3839
        %v3841 = vrot.slane %v3839, 4
        %v3842 = vrot.slane %v3687, 5
        %v3843 = vsel %vm1849, %v3841, %v3842
        %v3844 = vrot.slane %v3688, 5
        %v3845 = vrot.slane %v3844, 4
        %v3846 = vrot.slane %v3689, 5
        %v3847 = vsel %vm1849, %v3845, %v3846
        %v3848 = vrot.slane %v3846, 4
        %v3849 = vrot.slane %v3690, 5
        %v3850 = vsel %vm1849, %v3848, %v3849
        %v3851 = vunpack.c.l.b16 %v3742
        %v3852 = vunpack.c.l.b16 %v3745
        %v3853 = vunpack.c.l.b16 %v3749
        %v3854 = vunpack.c.l.b16 %v3752
        %v3855 = vunpack.c.l.b16 %v3756
        %v3856 = vunpack.c.l.b16 %v3759
        %v3857 = vunpack.c.l.b16 %v3763
        %v3858 = vunpack.c.l.b16 %v3766
        %v3859 = vunpack.c.l.b16 %v3770
        %v3860 = vunpack.c.l.b16 %v3773
        %v3861 = vunpack.c.l.b16 %v3777
        %v3862 = vunpack.c.l.b16 %v3780
        %v3863 = vunpack.c.l.b16 %v3784
        %v3864 = vunpack.c.l.b16 %v3787
        %v3865 = vunpack.c.l.b16 %v3791
        %v3866 = vunpack.c.l.b16 %v3794
        %v3867 = vunpack.c.l.b16 %v3798
        %v3868 = vunpack.c.l.b16 %v3801
        %v3869 = vunpack.c.l.b16 %v3805
        %v3870 = vunpack.c.l.b16 %v3808
        %v3871 = vunpack.c.l.b16 %v3812
        %v3872 = vunpack.c.l.b16 %v3815
        %v3873 = vunpack.c.l.b16 %v3819
        %v3874 = vunpack.c.l.b16 %v3822
        %v3875 = vunpack.c.l.b16 %v3826
        %v3876 = vunpack.c.l.b16 %v3829
        %v3877 = vunpack.c.l.b16 %v3833
        %v3878 = vunpack.c.l.b16 %v3836
        %v3879 = vunpack.c.l.b16 %v3840
        %v3880 = vunpack.c.l.b16 %v3843
        %v3881 = vunpack.c.l.b16 %v3847
        %v3882 = vunpack.c.l.b16 %v3850
        %v3883 = vpack.c.b16 %v3852, %v3851
        %v3884 = vpack.c.b16 %v3854, %v3853
        %v3885 = vpack.c.b16 %v3856, %v3855
        %v3886 = vpack.c.b16 %v3858, %v3857
        %v3887 = vpack.c.b16 %v3860, %v3859
        %v3888 = vpack.c.b16 %v3862, %v3861
        %v3889 = vpack.c.b16 %v3864, %v3863
        %v3890 = vpack.c.b16 %v3866, %v3865
        %v3891 = vpack.c.b16 %v3868, %v3867
        %v3892 = vpack.c.b16 %v3870, %v3869
        %v3893 = vpack.c.b16 %v3872, %v3871
        %v3894 = vpack.c.b16 %v3874, %v3873
        %v3895 = vpack.c.b16 %v3876, %v3875
        %v3896 = vpack.c.b16 %v3878, %v3877
        %v3897 = vpack.c.b16 %v3880, %v3879
        %v3898 = vpack.c.b16 %v3882, %v3881
        %3915 = vst [vmem:[#allocation3 + $0x40] sm:$0xff] %v3883
        %3916 = vst [vmem:[#allocation3 + $0x88] sm:$0xff] %v3884
        %3917 = vst [vmem:[#allocation3 + $0xd0] sm:$0xff] %v3885
        %3918 = vst [vmem:[#allocation3 + $0x118] sm:$0xff] %v3886
        %3919 = vst [vmem:[#allocation3 + $0x160] sm:$0xff] %v3887
        %3920 = vst [vmem:[#allocation3 + $0x1a8] sm:$0xff] %v3888
        %3921 = vst [vmem:[#allocation3 + $0x1f0] sm:$0xff] %v3889
        %3922 = vst [vmem:[#allocation3 + $0x238] sm:$0xff] %v3890
        %3923 = vst [vmem:[#allocation3 + $0x280] sm:$0xff] %v3891
        %3924 = vst [vmem:[#allocation3 + $0x2c8] sm:$0xff] %v3892
        %3925 = vst [vmem:[#allocation3 + $0x310] sm:$0xff] %v3893
        %3926 = vst [vmem:[#allocation3 + $0x358] sm:$0xff] %v3894
        %3927 = vst [vmem:[#allocation3 + $0x3a0] sm:$0xff] %v3895
        %3928 = vst [vmem:[#allocation3 + $0x3e8] sm:$0xff] %v3896
        %3929 = vst [vmem:[#allocation3 + $0x430] sm:$0xff] %v3897
        %3930 = vst [vmem:[#allocation3 + $0x478] sm:$0xff] %v3898
        %v3931 = vld [vmem:[#allocation3] sm:$0xff]
        %v3932 = vld [vmem:[#allocation3 + $0x8] sm:$0xff]
        %v3933 = vld [vmem:[#allocation3 + $0x10] sm:$0xff]
        %v3934 = vld [vmem:[#allocation3 + $0x18] sm:$0xff]
        %v3935 = vld [vmem:[#allocation3 + $0x20] sm:$0xff]
        %v3936 = vld [vmem:[#allocation3 + $0x28] sm:$0xff]
        %v3937 = vld [vmem:[#allocation3 + $0x30] sm:$0xff]
        %v3938 = vld [vmem:[#allocation3 + $0x38] sm:$0xff]
        %v3939 = vld [vmem:[#allocation3 + $0x40] sm:$0xff]
        %v3940 = vld [vmem:[#allocation3 + $0x48] sm:$0xff]
        %v3941 = vld [vmem:[#allocation3 + $0x50] sm:$0xff]
        %v3942 = vld [vmem:[#allocation3 + $0x58] sm:$0xff]
        %v3943 = vld [vmem:[#allocation3 + $0x60] sm:$0xff]
        %v3944 = vld [vmem:[#allocation3 + $0x68] sm:$0xff]
        %v3945 = vld [vmem:[#allocation3 + $0x70] sm:$0xff]
        %v3946 = vld [vmem:[#allocation3 + $0x78] sm:$0xff]
        %v3947 = vld [vmem:[#allocation3 + $0x80] sm:$0xff]
        %v3948 = vld [vmem:[#allocation3 + $0x88] sm:$0xff]
        %v3949 = vld [vmem:[#allocation3 + $0x90] sm:$0xff]
        %v3950 = vld [vmem:[#allocation3 + $0x98] sm:$0xff]
        %v3951 = vld [vmem:[#allocation3 + $0xa0] sm:$0xff]
        %v3952 = vld [vmem:[#allocation3 + $0xa8] sm:$0xff]
        %v3953 = vld [vmem:[#allocation3 + $0xb0] sm:$0xff]
        %v3954 = vld [vmem:[#allocation3 + $0xb8] sm:$0xff]
        %v3955 = vld [vmem:[#allocation3 + $0xc0] sm:$0xff]
        %v3956 = vld [vmem:[#allocation3 + $0xc8] sm:$0xff]
        %v3957 = vld [vmem:[#allocation3 + $0xd0] sm:$0xff]
        %v3958 = vld [vmem:[#allocation3 + $0xd8] sm:$0xff]
        %v3959 = vld [vmem:[#allocation3 + $0xe0] sm:$0xff]
        %v3960 = vld [vmem:[#allocation3 + $0xe8] sm:$0xff]
        %v3961 = vld [vmem:[#allocation3 + $0xf0] sm:$0xff]
        %v3962 = vld [vmem:[#allocation3 + $0xf8] sm:$0xff]
        %v3963 = vld [vmem:[#allocation3 + $0x100] sm:$0xff]
        %v3964 = vld [vmem:[#allocation3 + $0x108] sm:$0xff]
        %v3965 = vld [vmem:[#allocation3 + $0x110] sm:$0xff]
        %v3966 = vld [vmem:[#allocation3 + $0x118] sm:$0xff]
        %v3967 = vld [vmem:[#allocation3 + $0x120] sm:$0xff]
        %v3968 = vld [vmem:[#allocation3 + $0x128] sm:$0xff]
        %v3969 = vld [vmem:[#allocation3 + $0x130] sm:$0xff]
        %v3970 = vld [vmem:[#allocation3 + $0x138] sm:$0xff]
        %v3971 = vld [vmem:[#allocation3 + $0x140] sm:$0xff]
        %v3972 = vld [vmem:[#allocation3 + $0x148] sm:$0xff]
        %v3973 = vld [vmem:[#allocation3 + $0x150] sm:$0xff]
        %v3974 = vld [vmem:[#allocation3 + $0x158] sm:$0xff]
        %v3975 = vld [vmem:[#allocation3 + $0x160] sm:$0xff]
        %v3976 = vld [vmem:[#allocation3 + $0x168] sm:$0xff]
        %v3977 = vld [vmem:[#allocation3 + $0x170] sm:$0xff]
        %v3978 = vld [vmem:[#allocation3 + $0x178] sm:$0xff]
        %v3979 = vld [vmem:[#allocation3 + $0x180] sm:$0xff]
        %v3980 = vld [vmem:[#allocation3 + $0x188] sm:$0xff]
        %v3981 = vld [vmem:[#allocation3 + $0x190] sm:$0xff]
        %v3982 = vld [vmem:[#allocation3 + $0x198] sm:$0xff]
        %v3983 = vld [vmem:[#allocation3 + $0x1a0] sm:$0xff]
        %v3984 = vld [vmem:[#allocation3 + $0x1a8] sm:$0xff]
        %v3985 = vld [vmem:[#allocation3 + $0x1b0] sm:$0xff]
        %v3986 = vld [vmem:[#allocation3 + $0x1b8] sm:$0xff]
        %v3987 = vld [vmem:[#allocation3 + $0x1c0] sm:$0xff]
        %v3988 = vld [vmem:[#allocation3 + $0x1c8] sm:$0xff]
        %v3989 = vld [vmem:[#allocation3 + $0x1d0] sm:$0xff]
        %v3990 = vld [vmem:[#allocation3 + $0x1d8] sm:$0xff]
        %v3991 = vld [vmem:[#allocation3 + $0x1e0] sm:$0xff]
        %v3992 = vld [vmem:[#allocation3 + $0x1e8] sm:$0xff]
        %v3993 = vld [vmem:[#allocation3 + $0x1f0] sm:$0xff]
        %v3994 = vld [vmem:[#allocation3 + $0x1f8] sm:$0xff]
        %v3995 = vld [vmem:[#allocation3 + $0x200] sm:$0xff]
        %v3996 = vld [vmem:[#allocation3 + $0x208] sm:$0xff]
        %v3997 = vld [vmem:[#allocation3 + $0x210] sm:$0xff]
        %v3998 = vld [vmem:[#allocation3 + $0x218] sm:$0xff]
        %v3999 = vld [vmem:[#allocation3 + $0x220] sm:$0xff]
        %v4000 = vld [vmem:[#allocation3 + $0x228] sm:$0xff]
        %v4001 = vld [vmem:[#allocation3 + $0x230] sm:$0xff]
        %v4002 = vld [vmem:[#allocation3 + $0x238] sm:$0xff]
        %v4003 = vld [vmem:[#allocation3 + $0x240] sm:$0xff]
        %v4004 = vld [vmem:[#allocation3 + $0x248] sm:$0xff]
        %v4005 = vld [vmem:[#allocation3 + $0x250] sm:$0xff]
        %v4006 = vld [vmem:[#allocation3 + $0x258] sm:$0xff]
        %v4007 = vld [vmem:[#allocation3 + $0x260] sm:$0xff]
        %v4008 = vld [vmem:[#allocation3 + $0x268] sm:$0xff]
        %v4009 = vld [vmem:[#allocation3 + $0x270] sm:$0xff]
        %v4010 = vld [vmem:[#allocation3 + $0x278] sm:$0xff]
        %v4011 = vld [vmem:[#allocation3 + $0x280] sm:$0xff]
        %v4012 = vld [vmem:[#allocation3 + $0x288] sm:$0xff]
        %v4013 = vld [vmem:[#allocation3 + $0x290] sm:$0xff]
        %v4014 = vld [vmem:[#allocation3 + $0x298] sm:$0xff]
        %v4015 = vld [vmem:[#allocation3 + $0x2a0] sm:$0xff]
        %v4016 = vld [vmem:[#allocation3 + $0x2a8] sm:$0xff]
        %v4017 = vld [vmem:[#allocation3 + $0x2b0] sm:$0xff]
        %v4018 = vld [vmem:[#allocation3 + $0x2b8] sm:$0xff]
        %v4019 = vld [vmem:[#allocation3 + $0x2c0] sm:$0xff]
        %v4020 = vld [vmem:[#allocation3 + $0x2c8] sm:$0xff]
        %v4021 = vld [vmem:[#allocation3 + $0x2d0] sm:$0xff]
        %v4022 = vld [vmem:[#allocation3 + $0x2d8] sm:$0xff]
        %v4023 = vld [vmem:[#allocation3 + $0x2e0] sm:$0xff]
        %v4024 = vld [vmem:[#allocation3 + $0x2e8] sm:$0xff]
        %v4025 = vld [vmem:[#allocation3 + $0x2f0] sm:$0xff]
        %v4026 = vld [vmem:[#allocation3 + $0x2f8] sm:$0xff]
        %v4027 = vld [vmem:[#allocation3 + $0x300] sm:$0xff]
        %v4028 = vld [vmem:[#allocation3 + $0x308] sm:$0xff]
        %v4029 = vld [vmem:[#allocation3 + $0x310] sm:$0xff]
        %v4030 = vld [vmem:[#allocation3 + $0x318] sm:$0xff]
        %v4031 = vld [vmem:[#allocation3 + $0x320] sm:$0xff]
        %v4032 = vld [vmem:[#allocation3 + $0x328] sm:$0xff]
        %v4033 = vld [vmem:[#allocation3 + $0x330] sm:$0xff]
        %v4034 = vld [vmem:[#allocation3 + $0x338] sm:$0xff]
        %v4035 = vld [vmem:[#allocation3 + $0x340] sm:$0xff]
        %v4036 = vld [vmem:[#allocation3 + $0x348] sm:$0xff]
        %v4037 = vld [vmem:[#allocation3 + $0x350] sm:$0xff]
        %v4038 = vld [vmem:[#allocation3 + $0x358] sm:$0xff]
        %v4039 = vld [vmem:[#allocation3 + $0x360] sm:$0xff]
        %v4040 = vld [vmem:[#allocation3 + $0x368] sm:$0xff]
        %v4041 = vld [vmem:[#allocation3 + $0x370] sm:$0xff]
        %v4042 = vld [vmem:[#allocation3 + $0x378] sm:$0xff]
        %v4043 = vld [vmem:[#allocation3 + $0x380] sm:$0xff]
        %v4044 = vld [vmem:[#allocation3 + $0x388] sm:$0xff]
        %v4045 = vld [vmem:[#allocation3 + $0x390] sm:$0xff]
        %v4046 = vld [vmem:[#allocation3 + $0x398] sm:$0xff]
        %v4047 = vld [vmem:[#allocation3 + $0x3a0] sm:$0xff]
        %v4048 = vld [vmem:[#allocation3 + $0x3a8] sm:$0xff]
        %v4049 = vld [vmem:[#allocation3 + $0x3b0] sm:$0xff]
        %v4050 = vld [vmem:[#allocation3 + $0x3b8] sm:$0xff]
        %v4051 = vld [vmem:[#allocation3 + $0x3c0] sm:$0xff]
        %v4052 = vld [vmem:[#allocation3 + $0x3c8] sm:$0xff]
        %v4053 = vld [vmem:[#allocation3 + $0x3d0] sm:$0xff]
        %v4054 = vld [vmem:[#allocation3 + $0x3d8] sm:$0xff]
        %v4055 = vld [vmem:[#allocation3 + $0x3e0] sm:$0xff]
        %v4056 = vld [vmem:[#allocation3 + $0x3e8] sm:$0xff]
        %v4057 = vld [vmem:[#allocation3 + $0x3f0] sm:$0xff]
        %v4058 = vld [vmem:[#allocation3 + $0x3f8] sm:$0xff]
        %v4059 = vld [vmem:[#allocation3 + $0x400] sm:$0xff]
        %v4060 = vld [vmem:[#allocation3 + $0x408] sm:$0xff]
        %v4061 = vld [vmem:[#allocation3 + $0x410] sm:$0xff]
        %v4062 = vld [vmem:[#allocation3 + $0x418] sm:$0xff]
        %v4063 = vld [vmem:[#allocation3 + $0x420] sm:$0xff]
        %v4064 = vld [vmem:[#allocation3 + $0x428] sm:$0xff]
        %v4065 = vld [vmem:[#allocation3 + $0x430] sm:$0xff]
        %v4066 = vld [vmem:[#allocation3 + $0x438] sm:$0xff]
        %v4067 = vld [vmem:[#allocation3 + $0x440] sm:$0xff]
        %v4068 = vld [vmem:[#allocation3 + $0x448] sm:$0xff]
        %v4069 = vld [vmem:[#allocation3 + $0x450] sm:$0xff]
        %v4070 = vld [vmem:[#allocation3 + $0x458] sm:$0xff]
        %v4071 = vld [vmem:[#allocation3 + $0x460] sm:$0xff]
        %v4072 = vld [vmem:[#allocation3 + $0x468] sm:$0xff]
        %v4073 = vld [vmem:[#allocation3 + $0x470] sm:$0xff]
        %v4074 = vld [vmem:[#allocation3 + $0x478] sm:$0xff]
        %v4075 = vld [vmem:[#allocation7] sm:$0xf]
        %v4076 = vld [vmem:[#allocation7 + $0x4] sm:$0xf]
        %v4077 = vld [vmem:[#allocation7 + $0x8] sm:$0xf]
        %v4078 = vld [vmem:[#allocation7 + $0xc] sm:$0xf]
        %v4079 = vld [vmem:[#allocation7 + $0x10] sm:$0xf]
        %v4080 = vld [vmem:[#allocation7 + $0x14] sm:$0xf]
        %v4081 = vld [vmem:[#allocation7 + $0x18] sm:$0xf]
        %v4082 = vld [vmem:[#allocation7 + $0x1c] sm:$0xf]
        %v4083 = vld [vmem:[#allocation7 + $0x20] sm:$0xf]
        %v4084 = vld [vmem:[#allocation7 + $0x24] sm:$0xf]
        %v4085 = vld [vmem:[#allocation7 + $0x28] sm:$0xf]
        %v4086 = vld [vmem:[#allocation7 + $0x2c] sm:$0xf]
        %v4087 = vld [vmem:[#allocation7 + $0x30] sm:$0xf]
        %v4088 = vld [vmem:[#allocation7 + $0x34] sm:$0xf]
        %v4089 = vld [vmem:[#allocation7 + $0x38] sm:$0xf]
        %v4090 = vld [vmem:[#allocation7 + $0x3c] sm:$0xf]
        %v4091 = vld [vmem:[#allocation7 + $0x40] sm:$0xf]
        %v4092 = vld [vmem:[#allocation7 + $0x44] sm:$0xf]
        %v4093 = vld [vmem:[#allocation7 + $0x48] sm:$0xf]
        %v4094 = vld [vmem:[#allocation7 + $0x4c] sm:$0xf]
        %v4095 = vld [vmem:[#allocation7 + $0x50] sm:$0xf]
        %v4096 = vld [vmem:[#allocation7 + $0x54] sm:$0xf]
        %v4097 = vld [vmem:[#allocation7 + $0x58] sm:$0xf]
        %v4098 = vld [vmem:[#allocation7 + $0x5c] sm:$0xf]
        %v4099 = vld [vmem:[#allocation7 + $0x60] sm:$0xf]
        %v4100 = vld [vmem:[#allocation7 + $0x64] sm:$0xf]
        %v4101 = vld [vmem:[#allocation7 + $0x68] sm:$0xf]
        %v4102 = vld [vmem:[#allocation7 + $0x6c] sm:$0xf]
        %v4103 = vld [vmem:[#allocation7 + $0x70] sm:$0xf]
        %v4104 = vld [vmem:[#allocation7 + $0x74] sm:$0xf]
        %v4105 = vld [vmem:[#allocation7 + $0x78] sm:$0xf]
        %v4106 = vld [vmem:[#allocation7 + $0x7c] sm:$0xf]
        %v4107 = vld [vmem:[#allocation7 + $0x80] sm:$0xf]
        %v4108 = vld [vmem:[#allocation7 + $0x84] sm:$0xf]
        %v4109 = vld [vmem:[#allocation7 + $0x88] sm:$0xf]
        %v4110 = vld [vmem:[#allocation7 + $0x8c] sm:$0xf]
        %v4111 = vld [vmem:[#allocation7 + $0x90] sm:$0xf]
        %v4112 = vld [vmem:[#allocation7 + $0x94] sm:$0xf]
        %v4113 = vld [vmem:[#allocation7 + $0x98] sm:$0xf]
        %v4114 = vld [vmem:[#allocation7 + $0x9c] sm:$0xf]
        %v4115 = vld [vmem:[#allocation7 + $0xa0] sm:$0xf]
        %v4116 = vld [vmem:[#allocation7 + $0xa4] sm:$0xf]
        %v4117 = vld [vmem:[#allocation7 + $0xa8] sm:$0xf]
        %v4118 = vld [vmem:[#allocation7 + $0xac] sm:$0xf]
        %v4119 = vld [vmem:[#allocation7 + $0xb0] sm:$0xf]
        %v4120 = vld [vmem:[#allocation7 + $0xb4] sm:$0xf]
        %v4121 = vld [vmem:[#allocation7 + $0xb8] sm:$0xf]
        %v4122 = vld [vmem:[#allocation7 + $0xbc] sm:$0xf]
        %v4123 = vld [vmem:[#allocation7 + $0xc0] sm:$0xf]
        %v4124 = vld [vmem:[#allocation7 + $0xc4] sm:$0xf]
        %v4125 = vld [vmem:[#allocation7 + $0xc8] sm:$0xf]
        %v4126 = vld [vmem:[#allocation7 + $0xcc] sm:$0xf]
        %v4127 = vld [vmem:[#allocation7 + $0xd0] sm:$0xf]
        %v4128 = vld [vmem:[#allocation7 + $0xd4] sm:$0xf]
        %v4129 = vld [vmem:[#allocation7 + $0xd8] sm:$0xf]
        %v4130 = vld [vmem:[#allocation7 + $0xdc] sm:$0xf]
        %v4131 = vld [vmem:[#allocation7 + $0xe0] sm:$0xf]
        %v4132 = vld [vmem:[#allocation7 + $0xe4] sm:$0xf]
        %v4133 = vld [vmem:[#allocation7 + $0xe8] sm:$0xf]
        %v4134 = vld [vmem:[#allocation7 + $0xec] sm:$0xf]
        %v4135 = vld [vmem:[#allocation7 + $0xf0] sm:$0xf]
        %v4136 = vld [vmem:[#allocation7 + $0xf4] sm:$0xf]
        %v4137 = vld [vmem:[#allocation7 + $0xf8] sm:$0xf]
        %v4138 = vld [vmem:[#allocation7 + $0xfc] sm:$0xf]
        %v4139 = vld [vmem:[#allocation7 + $0x100] sm:$0xf]
        %v4140 = vld [vmem:[#allocation7 + $0x104] sm:$0xf]
        %v4141 = vld [vmem:[#allocation7 + $0x108] sm:$0xf]
        %v4142 = vld [vmem:[#allocation7 + $0x10c] sm:$0xf]
        %v4143 = vld [vmem:[#allocation7 + $0x110] sm:$0xf]
        %v4144 = vld [vmem:[#allocation7 + $0x114] sm:$0xf]
        %v4145 = vld [vmem:[#allocation7 + $0x118] sm:$0xf]
        %v4146 = vld [vmem:[#allocation7 + $0x11c] sm:$0xf]
        %v4147 = vld [vmem:[#allocation7 + $0x120] sm:$0xf]
        %v4148 = vld [vmem:[#allocation7 + $0x124] sm:$0xf]
        %v4149 = vld [vmem:[#allocation7 + $0x128] sm:$0xf]
        %v4150 = vld [vmem:[#allocation7 + $0x12c] sm:$0xf]
        %v4151 = vld [vmem:[#allocation7 + $0x130] sm:$0xf]
        %v4152 = vld [vmem:[#allocation7 + $0x134] sm:$0xf]
        %v4153 = vld [vmem:[#allocation7 + $0x138] sm:$0xf]
        %v4154 = vld [vmem:[#allocation7 + $0x13c] sm:$0xf]
        %v4155 = vld [vmem:[#allocation7 + $0x140] sm:$0xf]
        %v4156 = vld [vmem:[#allocation7 + $0x144] sm:$0xf]
        %v4157 = vld [vmem:[#allocation7 + $0x148] sm:$0xf]
        %v4158 = vld [vmem:[#allocation7 + $0x14c] sm:$0xf]
        %v4159 = vld [vmem:[#allocation7 + $0x150] sm:$0xf]
        %v4160 = vld [vmem:[#allocation7 + $0x154] sm:$0xf]
        %v4161 = vld [vmem:[#allocation7 + $0x158] sm:$0xf]
        %v4162 = vld [vmem:[#allocation7 + $0x15c] sm:$0xf]
        %v4163 = vld [vmem:[#allocation7 + $0x160] sm:$0xf]
        %v4164 = vld [vmem:[#allocation7 + $0x164] sm:$0xf]
        %v4165 = vld [vmem:[#allocation7 + $0x168] sm:$0xf]
        %v4166 = vld [vmem:[#allocation7 + $0x16c] sm:$0xf]
        %v4167 = vld [vmem:[#allocation7 + $0x170] sm:$0xf]
        %v4168 = vld [vmem:[#allocation7 + $0x174] sm:$0xf]
        %v4169 = vld [vmem:[#allocation7 + $0x178] sm:$0xf]
        %v4170 = vld [vmem:[#allocation7 + $0x17c] sm:$0xf]
        %v4171 = vld [vmem:[#allocation7 + $0x180] sm:$0xf]
        %v4172 = vld [vmem:[#allocation7 + $0x184] sm:$0xf]
        %v4173 = vld [vmem:[#allocation7 + $0x188] sm:$0xf]
        %v4174 = vld [vmem:[#allocation7 + $0x18c] sm:$0xf]
        %v4175 = vld [vmem:[#allocation7 + $0x190] sm:$0xf]
        %v4176 = vld [vmem:[#allocation7 + $0x194] sm:$0xf]
        %v4177 = vld [vmem:[#allocation7 + $0x198] sm:$0xf]
        %v4178 = vld [vmem:[#allocation7 + $0x19c] sm:$0xf]
        %v4179 = vld [vmem:[#allocation7 + $0x1a0] sm:$0xf]
        %v4180 = vld [vmem:[#allocation7 + $0x1a4] sm:$0xf]
        %v4181 = vld [vmem:[#allocation7 + $0x1a8] sm:$0xf]
        %v4182 = vld [vmem:[#allocation7 + $0x1ac] sm:$0xf]
        %v4183 = vld [vmem:[#allocation7 + $0x1b0] sm:$0xf]
        %v4184 = vld [vmem:[#allocation7 + $0x1b4] sm:$0xf]
        %v4185 = vld [vmem:[#allocation7 + $0x1b8] sm:$0xf]
        %v4186 = vld [vmem:[#allocation7 + $0x1bc] sm:$0xf]
        %v4187 = vld [vmem:[#allocation7 + $0x1c0] sm:$0xf]
        %v4188 = vld [vmem:[#allocation7 + $0x1c4] sm:$0xf]
        %v4189 = vld [vmem:[#allocation7 + $0x1c8] sm:$0xf]
        %v4190 = vld [vmem:[#allocation7 + $0x1cc] sm:$0xf]
        %v4191 = vld [vmem:[#allocation7 + $0x1d0] sm:$0xf]
        %v4192 = vld [vmem:[#allocation7 + $0x1d4] sm:$0xf]
        %v4193 = vld [vmem:[#allocation7 + $0x1d8] sm:$0xf]
        %v4194 = vld [vmem:[#allocation7 + $0x1dc] sm:$0xf]
        %v4195 = vld [vmem:[#allocation7 + $0x1e0] sm:$0xf]
        %v4196 = vld [vmem:[#allocation7 + $0x1e4] sm:$0xf]
        %v4197 = vld [vmem:[#allocation7 + $0x1e8] sm:$0xf]
        %v4198 = vld [vmem:[#allocation7 + $0x1ec] sm:$0xf]
        %v4199 = vld [vmem:[#allocation7 + $0x1f0] sm:$0xf]
        %v4200 = vld [vmem:[#allocation7 + $0x1f4] sm:$0xf]
        %v4201 = vld [vmem:[#allocation7 + $0x1f8] sm:$0xf]
        %v4202 = vld [vmem:[#allocation7 + $0x1fc] sm:$0xf]
        %v4203 = vld [vmem:[#allocation7 + $0x200] sm:$0xf]
        %v4204 = vld [vmem:[#allocation7 + $0x204] sm:$0xf]
        %v4205 = vld [vmem:[#allocation7 + $0x208] sm:$0xf]
        %v4206 = vld [vmem:[#allocation7 + $0x20c] sm:$0xf]
        %v4207 = vld [vmem:[#allocation7 + $0x210] sm:$0xf]
        %v4208 = vld [vmem:[#allocation7 + $0x214] sm:$0xf]
        %v4209 = vld [vmem:[#allocation7 + $0x218] sm:$0xf]
        %v4210 = vld [vmem:[#allocation7 + $0x21c] sm:$0xf]
        %v4211 = vld [vmem:[#allocation7 + $0x220] sm:$0xf]
        %v4212 = vld [vmem:[#allocation7 + $0x224] sm:$0xf]
        %v4213 = vld [vmem:[#allocation7 + $0x228] sm:$0xf]
        %v4214 = vld [vmem:[#allocation7 + $0x22c] sm:$0xf]
        %v4215 = vld [vmem:[#allocation7 + $0x230] sm:$0xf]
        %v4216 = vld [vmem:[#allocation7 + $0x234] sm:$0xf]
        %v4217 = vld [vmem:[#allocation7 + $0x238] sm:$0xf]
        %v4218 = vld [vmem:[#allocation7 + $0x23c] sm:$0xf]
        %v4363 = vunpack.c.l.b16 %v4075
        %v4364 = vunpack.c.l.b16 %v4076
        %v4365 = vunpack.c.l.b16 %v4077
        %v4366 = vunpack.c.l.b16 %v4078
        %v4367 = vunpack.c.l.b16 %v4079
        %v4368 = vunpack.c.l.b16 %v4080
        %v4369 = vunpack.c.l.b16 %v4081
        %v4370 = vunpack.c.l.b16 %v4082
        %v4371 = vunpack.c.l.b16 %v4083
        %v4372 = vunpack.c.l.b16 %v4084
        %v4373 = vunpack.c.l.b16 %v4085
        %v4374 = vunpack.c.l.b16 %v4086
        %v4375 = vunpack.c.l.b16 %v4087
        %v4376 = vunpack.c.l.b16 %v4088
        %v4377 = vunpack.c.l.b16 %v4089
        %v4378 = vunpack.c.l.b16 %v4090
        %v4379 = vunpack.c.l.b16 %v4091
        %v4380 = vunpack.c.l.b16 %v4092
        %v4381 = vunpack.c.l.b16 %v4093
        %v4382 = vunpack.c.l.b16 %v4094
        %v4383 = vunpack.c.l.b16 %v4095
        %v4384 = vunpack.c.l.b16 %v4096
        %v4385 = vunpack.c.l.b16 %v4097
        %v4386 = vunpack.c.l.b16 %v4098
        %v4387 = vunpack.c.l.b16 %v4099
        %v4388 = vunpack.c.l.b16 %v4100
        %v4389 = vunpack.c.l.b16 %v4101
        %v4390 = vunpack.c.l.b16 %v4102
        %v4391 = vunpack.c.l.b16 %v4103
        %v4392 = vunpack.c.l.b16 %v4104
        %v4393 = vunpack.c.l.b16 %v4105
        %v4394 = vunpack.c.l.b16 %v4106
        %v4395 = vunpack.c.l.b16 %v4107
        %v4396 = vunpack.c.l.b16 %v4108
        %v4397 = vunpack.c.l.b16 %v4109
        %v4398 = vunpack.c.l.b16 %v4110
        %v4399 = vunpack.c.l.b16 %v4111
        %v4400 = vunpack.c.l.b16 %v4112
        %v4401 = vunpack.c.l.b16 %v4113
        %v4402 = vunpack.c.l.b16 %v4114
        %v4403 = vunpack.c.l.b16 %v4115
        %v4404 = vunpack.c.l.b16 %v4116
        %v4405 = vunpack.c.l.b16 %v4117
        %v4406 = vunpack.c.l.b16 %v4118
        %v4407 = vunpack.c.l.b16 %v4119
        %v4408 = vunpack.c.l.b16 %v4120
        %v4409 = vunpack.c.l.b16 %v4121
        %v4410 = vunpack.c.l.b16 %v4122
        %v4411 = vunpack.c.l.b16 %v4123
        %v4412 = vunpack.c.l.b16 %v4124
        %v4413 = vunpack.c.l.b16 %v4125
        %v4414 = vunpack.c.l.b16 %v4126
        %v4415 = vunpack.c.l.b16 %v4127
        %v4416 = vunpack.c.l.b16 %v4128
        %v4417 = vunpack.c.l.b16 %v4129
        %v4418 = vunpack.c.l.b16 %v4130
        %v4419 = vunpack.c.l.b16 %v4131
        %v4420 = vunpack.c.l.b16 %v4132
        %v4421 = vunpack.c.l.b16 %v4133
        %v4422 = vunpack.c.l.b16 %v4134
        %v4423 = vunpack.c.l.b16 %v4135
        %v4424 = vunpack.c.l.b16 %v4136
        %v4425 = vunpack.c.l.b16 %v4137
        %v4426 = vunpack.c.l.b16 %v4138
        %v4427 = vunpack.c.l.b16 %v4139
        %v4428 = vunpack.c.l.b16 %v4140
        %v4429 = vunpack.c.l.b16 %v4141
        %v4430 = vunpack.c.l.b16 %v4142
        %v4431 = vunpack.c.l.b16 %v4143
        %v4432 = vunpack.c.l.b16 %v4144
        %v4433 = vunpack.c.l.b16 %v4145
        %v4434 = vunpack.c.l.b16 %v4146
        %v4435 = vunpack.c.l.b16 %v4147
        %v4436 = vunpack.c.l.b16 %v4148
        %v4437 = vunpack.c.l.b16 %v4149
        %v4438 = vunpack.c.l.b16 %v4150
        %v4439 = vunpack.c.l.b16 %v4151
        %v4440 = vunpack.c.l.b16 %v4152
        %v4441 = vunpack.c.l.b16 %v4153
        %v4442 = vunpack.c.l.b16 %v4154
        %v4443 = vunpack.c.l.b16 %v4155
        %v4444 = vunpack.c.l.b16 %v4156
        %v4445 = vunpack.c.l.b16 %v4157
        %v4446 = vunpack.c.l.b16 %v4158
        %v4447 = vunpack.c.l.b16 %v4159
        %v4448 = vunpack.c.l.b16 %v4160
        %v4449 = vunpack.c.l.b16 %v4161
        %v4450 = vunpack.c.l.b16 %v4162
        %v4451 = vunpack.c.l.b16 %v4163
        %v4452 = vunpack.c.l.b16 %v4164
        %v4453 = vunpack.c.l.b16 %v4165
        %v4454 = vunpack.c.l.b16 %v4166
        %v4455 = vunpack.c.l.b16 %v4167
        %v4456 = vunpack.c.l.b16 %v4168
        %v4457 = vunpack.c.l.b16 %v4169
        %v4458 = vunpack.c.l.b16 %v4170
        %v4459 = vunpack.c.l.b16 %v4171
        %v4460 = vunpack.c.l.b16 %v4172
        %v4461 = vunpack.c.l.b16 %v4173
        %v4462 = vunpack.c.l.b16 %v4174
        %v4463 = vunpack.c.l.b16 %v4175
        %v4464 = vunpack.c.l.b16 %v4176
        %v4465 = vunpack.c.l.b16 %v4177
        %v4466 = vunpack.c.l.b16 %v4178
        %v4467 = vunpack.c.l.b16 %v4179
        %v4468 = vunpack.c.l.b16 %v4180
        %v4469 = vunpack.c.l.b16 %v4181
        %v4470 = vunpack.c.l.b16 %v4182
        %v4471 = vunpack.c.l.b16 %v4183
        %v4472 = vunpack.c.l.b16 %v4184
        %v4473 = vunpack.c.l.b16 %v4185
        %v4474 = vunpack.c.l.b16 %v4186
        %v4475 = vunpack.c.l.b16 %v4187
        %v4476 = vunpack.c.l.b16 %v4188
        %v4477 = vunpack.c.l.b16 %v4189
        %v4478 = vunpack.c.l.b16 %v4190
        %v4479 = vunpack.c.l.b16 %v4191
        %v4480 = vunpack.c.l.b16 %v4192
        %v4481 = vunpack.c.l.b16 %v4193
        %v4482 = vunpack.c.l.b16 %v4194
        %v4483 = vunpack.c.l.b16 %v4195
        %v4484 = vunpack.c.l.b16 %v4196
        %v4485 = vunpack.c.l.b16 %v4197
        %v4486 = vunpack.c.l.b16 %v4198
        %v4487 = vunpack.c.l.b16 %v4199
        %v4488 = vunpack.c.l.b16 %v4200
        %v4489 = vunpack.c.l.b16 %v4201
        %v4490 = vunpack.c.l.b16 %v4202
        %v4491 = vunpack.c.l.b16 %v4203
        %v4492 = vunpack.c.l.b16 %v4204
        %v4493 = vunpack.c.l.b16 %v4205
        %v4494 = vunpack.c.l.b16 %v4206
        %v4495 = vunpack.c.l.b16 %v4207
        %v4496 = vunpack.c.l.b16 %v4208
        %v4497 = vunpack.c.l.b16 %v4209
        %v4498 = vunpack.c.l.b16 %v4210
        %v4499 = vunpack.c.l.b16 %v4211
        %v4500 = vunpack.c.l.b16 %v4212
        %v4501 = vunpack.c.l.b16 %v4213
        %v4502 = vunpack.c.l.b16 %v4214
        %v4503 = vunpack.c.l.b16 %v4215
        %v4504 = vunpack.c.l.b16 %v4216
        %v4505 = vunpack.c.l.b16 %v4217
        %v4506 = vunpack.c.l.b16 %v4218
        %v4507 = vpack.c.b16 %v4364, %v4363
        %v4508 = vpack.c.b16 %v4366, %v4365
        %v4509 = vpack.c.b16 %v4368, %v4367
        %v4510 = vpack.c.b16 %v4370, %v4369
        %v4511 = vpack.c.b16 %v4372, %v4371
        %v4512 = vpack.c.b16 %v4374, %v4373
        %v4513 = vpack.c.b16 %v4376, %v4375
        %v4514 = vpack.c.b16 %v4378, %v4377
        %v4515 = vpack.c.b16 %v4380, %v4379
        %v4516 = vpack.c.b16 %v4382, %v4381
        %v4517 = vpack.c.b16 %v4384, %v4383
        %v4518 = vpack.c.b16 %v4386, %v4385
        %v4519 = vpack.c.b16 %v4388, %v4387
        %v4520 = vpack.c.b16 %v4390, %v4389
        %v4521 = vpack.c.b16 %v4392, %v4391
        %v4522 = vpack.c.b16 %v4394, %v4393
        %v4523 = vpack.c.b16 %v4396, %v4395
        %v4524 = vpack.c.b16 %v4398, %v4397
        %v4525 = vpack.c.b16 %v4400, %v4399
        %v4526 = vpack.c.b16 %v4402, %v4401
        %v4527 = vpack.c.b16 %v4404, %v4403
        %v4528 = vpack.c.b16 %v4406, %v4405
        %v4529 = vpack.c.b16 %v4408, %v4407
        %v4530 = vpack.c.b16 %v4410, %v4409
        %v4531 = vpack.c.b16 %v4412, %v4411
        %v4532 = vpack.c.b16 %v4414, %v4413
        %v4533 = vpack.c.b16 %v4416, %v4415
        %v4534 = vpack.c.b16 %v4418, %v4417
        %v4535 = vpack.c.b16 %v4420, %v4419
        %v4536 = vpack.c.b16 %v4422, %v4421
        %v4537 = vpack.c.b16 %v4424, %v4423
        %v4538 = vpack.c.b16 %v4426, %v4425
        %v4539 = vpack.c.b16 %v4428, %v4427
        %v4540 = vpack.c.b16 %v4430, %v4429
        %v4541 = vpack.c.b16 %v4432, %v4431
        %v4542 = vpack.c.b16 %v4434, %v4433
        %v4543 = vpack.c.b16 %v4436, %v4435
        %v4544 = vpack.c.b16 %v4438, %v4437
        %v4545 = vpack.c.b16 %v4440, %v4439
        %v4546 = vpack.c.b16 %v4442, %v4441
        %v4547 = vpack.c.b16 %v4444, %v4443
        %v4548 = vpack.c.b16 %v4446, %v4445
        %v4549 = vpack.c.b16 %v4448, %v4447
        %v4550 = vpack.c.b16 %v4450, %v4449
        %v4551 = vpack.c.b16 %v4452, %v4451
        %v4552 = vpack.c.b16 %v4454, %v4453
        %v4553 = vpack.c.b16 %v4456, %v4455
        %v4554 = vpack.c.b16 %v4458, %v4457
        %v4555 = vpack.c.b16 %v4460, %v4459
        %v4556 = vpack.c.b16 %v4462, %v4461
        %v4557 = vpack.c.b16 %v4464, %v4463
        %v4558 = vpack.c.b16 %v4466, %v4465
        %v4559 = vpack.c.b16 %v4468, %v4467
        %v4560 = vpack.c.b16 %v4470, %v4469
        %v4561 = vpack.c.b16 %v4472, %v4471
        %v4562 = vpack.c.b16 %v4474, %v4473
        %v4563 = vpack.c.b16 %v4476, %v4475
        %v4564 = vpack.c.b16 %v4478, %v4477
        %v4565 = vpack.c.b16 %v4480, %v4479
        %v4566 = vpack.c.b16 %v4482, %v4481
        %v4567 = vpack.c.b16 %v4484, %v4483
        %v4568 = vpack.c.b16 %v4486, %v4485
        %v4569 = vpack.c.b16 %v4488, %v4487
        %v4570 = vpack.c.b16 %v4490, %v4489
        %v4571 = vpack.c.b16 %v4492, %v4491
        %v4572 = vpack.c.b16 %v4494, %v4493
        %v4573 = vpack.c.b16 %v4496, %v4495
        %v4574 = vpack.c.b16 %v4498, %v4497
        %v4575 = vpack.c.b16 %v4500, %v4499
        %v4576 = vpack.c.b16 %v4502, %v4501
        %v4577 = vpack.c.b16 %v4504, %v4503
        %v4578 = vpack.c.b16 %v4506, %v4505
        %4651 = vmatprep.subr.bf16.mxu0 0
        %4652 = vmatpush1.bf16.msra.mxu0 %v4507
        %4653 = vmatprep.subr.bf16.mxu0 0
        %4654 = vmatpush1.bf16.msra.mxu0 %v4508
        %4655 = vmatprep.subr.bf16.mxu0 0
        %4656 = vmatpush1.bf16.msra.mxu0 %v4509
        %4657 = vmatprep.subr.bf16.mxu0 0
        %4658 = vmatpush1.bf16.msra.mxu0 %v4510
        %4659 = vmatprep.subr.bf16.mxu0 0
        %4660 = vmatpush1.bf16.msra.mxu0 %v4511
        %4661 = vmatprep.subr.bf16.mxu0 0
        %4662 = vmatpush1.bf16.msra.mxu0 %v4512
        %4663 = vmatprep.subr.bf16.mxu0 0
        %4664 = vmatpush1.bf16.msra.mxu0 %v4513
        %4665 = vmatprep.subr.bf16.mxu0 0
        %4666 = vmatpush1.bf16.msra.mxu0 %v4514
        %4667 = vmatprep.subr.bf16.mxu0 0
        %4668 = vmatpush1.bf16.msra.mxu0 %v4515
        %4669 = vmatprep.subr.bf16.mxu0 0
        %4670 = vmatpush1.bf16.msra.mxu0 %v4516
        %4671 = vmatprep.subr.bf16.mxu0 0
        %4672 = vmatpush1.bf16.msra.mxu0 %v4517
        %4673 = vmatprep.subr.bf16.mxu0 0
        %4674 = vmatpush1.bf16.msra.mxu0 %v4518
        %4675 = vmatprep.subr.bf16.mxu0 0
        %4676 = vmatpush1.bf16.msra.mxu0 %v4519
        %4677 = vmatprep.subr.bf16.mxu0 0
        %4678 = vmatpush1.bf16.msra.mxu0 %v4520
        %4679 = vmatprep.subr.bf16.mxu0 0
        %4680 = vmatpush1.bf16.msra.mxu0 %v4521
        %4681 = vmatprep.subr.bf16.mxu0 0
        %4682 = vmatpush1.bf16.msra.mxu0 %v4522
        %4683 = vmatprep.mubr.bf16.mxu0 %v3932
        %4684 = vmatmul.mubr.bf16.gmra.mrb[0].mxu0 %v3931
        %v4685 = vpop.f32.mrb[0].mxu0
        %v4686 = vadd.f32 0.0, %v4685
        %v4687 = vpop.f32.mrb[0].mxu0
        %v4688 = vpop.f32.mrb[0].mxu0
        %v4689 = vadd.f32 0.0, %v4688
        %v4690 = vpop.f32.mrb[0].mxu0
        %4691 = vmatprep.mubr.bf16.mxu0 %v3941
        %4692 = vmatmul.mubr.bf16.gmra.mrb[0].mxu0 %v3940
        %v4693 = vpop.f32.mrb[0].mxu0
        %v4694 = vadd.f32 0.0, %v4693
        %v4695 = vpop.f32.mrb[0].mxu0
        %v4696 = vpop.f32.mrb[0].mxu0
        %v4697 = vadd.f32 0.0, %v4696
        %v4698 = vpop.f32.mrb[0].mxu0
        %4699 = vmatprep.mubr.bf16.mxu0 %v3950
        %4700 = vmatmul.mubr.bf16.gmra.mrb[0].mxu0 %v3949
        %v4701 = vpop.f32.mrb[0].mxu0
        %v4702 = vadd.f32 0.0, %v4701
        %v4703 = vpop.f32.mrb[0].mxu0
        %v4704 = vpop.f32.mrb[0].mxu0
        %v4705 = vadd.f32 0.0, %v4704
        %v4706 = vpop.f32.mrb[0].mxu0
        %4707 = vmatprep.mubr.bf16.mxu0 %v3959
        %4708 = vmatmul.mubr.bf16.gmra.mrb[0].mxu0 %v3958
        %v4709 = vpop.f32.mrb[0].mxu0
        %v4710 = vadd.f32 0.0, %v4709
        %v4711 = vpop.f32.mrb[0].mxu0
        %v4712 = vpop.f32.mrb[0].mxu0
        %v4713 = vadd.f32 0.0, %v4712
        %v4714 = vpop.f32.mrb[0].mxu0
        %4715 = vmatprep.mubr.bf16.mxu0 %v3968
        %4716 = vmatmul.mubr.bf16.gmra.mrb[0].mxu0 %v3967
        %v4717 = vpop.f32.mrb[0].mxu0
        %v4718 = vadd.f32 0.0, %v4717
        %v4719 = vpop.f32.mrb[0].mxu0
        %v4720 = vpop.f32.mrb[0].mxu0
        %v4721 = vadd.f32 0.0, %v4720
        %v4722 = vpop.f32.mrb[0].mxu0
        %4723 = vmatprep.mubr.bf16.mxu0 %v3977
        %4724 = vmatmul.mubr.bf16.gmra.mrb[0].mxu0 %v3976
        %v4725 = vpop.f32.mrb[0].mxu0
        %v4726 = vadd.f32 0.0, %v4725
        %v4727 = vpop.f32.mrb[0].mxu0
        %v4728 = vpop.f32.mrb[0].mxu0
        %v4729 = vadd.f32 0.0, %v4728
        %v4730 = vpop.f32.mrb[0].mxu0
        %4731 = vmatprep.mubr.bf16.mxu0 %v3986
        %4732 = vmatmul.mubr.bf16.gmra.mrb[0].mxu0 %v3985
        %v4733 = vpop.f32.mrb[0].mxu0
        %v4734 = vadd.f32 0.0, %v4733
        %v4735 = vpop.f32.mrb[0].mxu0
        %v4736 = vpop.f32.mrb[0].mxu0
        %v4737 = vadd.f32 0.0, %v4736
        %v4738 = vpop.f32.mrb[0].mxu0
        %4739 = vmatprep.mubr.bf16.mxu0 %v3995
        %4740 = vmatmul.mubr.bf16.gmra.mrb[0].mxu0 %v3994
        %v4741 = vpop.f32.mrb[0].mxu0
        %v4742 = vadd.f32 0.0, %v4741
        %v4743 = vpop.f32.mrb[0].mxu0
        %v4744 = vpop.f32.mrb[0].mxu0
        %v4745 = vadd.f32 0.0, %v4744
        %v4746 = vpop.f32.mrb[0].mxu0
        %4747 = vmatprep.mubr.bf16.mxu0 %v4004
        %4748 = vmatmul.mubr.bf16.gmra.mrb[0].mxu0 %v4003
        %v4749 = vpop.f32.mrb[0].mxu0
        %v4750 = vadd.f32 0.0, %v4749
        %v4751 = vpop.f32.mrb[0].mxu0
        %v4752 = vpop.f32.mrb[0].mxu0
        %v4753 = vadd.f32 0.0, %v4752
        %v4754 = vpop.f32.mrb[0].mxu0
        %4755 = vmatprep.mubr.bf16.mxu0 %v4013
        %4756 = vmatmul.mubr.bf16.gmra.mrb[0].mxu0 %v4012
        %v4757 = vpop.f32.mrb[0].mxu0
        %v4758 = vadd.f32 0.0, %v4757
        %v4759 = vpop.f32.mrb[0].mxu0
        %v4760 = vpop.f32.mrb[0].mxu0
        %v4761 = vadd.f32 0.0, %v4760
        %v4762 = vpop.f32.mrb[0].mxu0
        %4763 = vmatprep.mubr.bf16.mxu0 %v4022
        %4764 = vmatmul.mubr.bf16.gmra.mrb[0].mxu0 %v4021
        %v4765 = vpop.f32.mrb[0].mxu0
        %v4766 = vadd.f32 0.0, %v4765
        %v4767 = vpop.f32.mrb[0].mxu0
        %v4768 = vpop.f32.mrb[0].mxu0
        %v4769 = vadd.f32 0.0, %v4768
        %v4770 = vpop.f32.mrb[0].mxu0
        %4771 = vmatprep.mubr.bf16.mxu0 %v4031
        %4772 = vmatmul.mubr.bf16.gmra.mrb[0].mxu0 %v4030
        %v4773 = vpop.f32.mrb[0].mxu0
        %v4774 = vadd.f32 0.0, %v4773
        %v4775 = vpop.f32.mrb[0].mxu0
        %v4776 = vpop.f32.mrb[0].mxu0
        %v4777 = vadd.f32 0.0, %v4776
        %v4778 = vpop.f32.mrb[0].mxu0
        %4779 = vmatprep.mubr.bf16.mxu0 %v4040
        %4780 = vmatmul.mubr.bf16.gmra.mrb[0].mxu0 %v4039
        %v4781 = vpop.f32.mrb[0].mxu0
        %v4782 = vadd.f32 0.0, %v4781
        %v4783 = vpop.f32.mrb[0].mxu0
        %v4784 = vpop.f32.mrb[0].mxu0
        %v4785 = vadd.f32 0.0, %v4784
        %v4786 = vpop.f32.mrb[0].mxu0
        %4787 = vmatprep.mubr.bf16.mxu0 %v4049
        %4788 = vmatmul.mubr.bf16.gmra.mrb[0].mxu0 %v4048
        %v4789 = vpop.f32.mrb[0].mxu0
        %v4790 = vadd.f32 0.0, %v4789
        %v4791 = vpop.f32.mrb[0].mxu0
        %v4792 = vpop.f32.mrb[0].mxu0
        %v4793 = vadd.f32 0.0, %v4792
        %v4794 = vpop.f32.mrb[0].mxu0
        %4795 = vmatprep.mubr.bf16.mxu0 %v4058
        %4796 = vmatmul.mubr.bf16.gmra.mrb[0].mxu0 %v4057
        %v4797 = vpop.f32.mrb[0].mxu0
        %v4798 = vadd.f32 0.0, %v4797
        %v4799 = vpop.f32.mrb[0].mxu0
        %v4800 = vpop.f32.mrb[0].mxu0
        %v4801 = vadd.f32 0.0, %v4800
        %v4802 = vpop.f32.mrb[0].mxu0
        %4803 = vmatprep.mubr.bf16.mxu0 %v4067
        %4804 = vmatmul.mubr.bf16.gmra.mrb[0].mxu0 %v4066
        %v4805 = vpop.f32.mrb[0].mxu0
        %v4806 = vadd.f32 0.0, %v4805
        %v4807 = vpop.f32.mrb[0].mxu0
        %v4808 = vpop.f32.mrb[0].mxu0
        %v4809 = vadd.f32 0.0, %v4808
        %v4810 = vpop.f32.mrb[0].mxu0
        %4811 = vdwg.mxu0
        %4812 = vmatprep.subr.bf16.mxu0 0
        %4813 = vmatpush1.bf16.msra.mxu0 %v4523
        %4814 = vmatprep.subr.bf16.mxu0 0
        %4815 = vmatpush1.bf16.msra.mxu0 %v4524
        %4816 = vmatprep.subr.bf16.mxu0 0
        %4817 = vmatpush1.bf16.msra.mxu0 %v4525
        %4818 = vmatprep.subr.bf16.mxu0 0
        %4819 = vmatpush1.bf16.msra.mxu0 %v4526
        %4820 = vmatprep.subr.bf16.mxu0 0
        %4821 = vmatpush1.bf16.msra.mxu0 %v4527
        %4822 = vmatprep.subr.bf16.mxu0 0
        %4823 = vmatpush1.bf16.msra.mxu0 %v4528
        %4824 = vmatprep.subr.bf16.mxu0 0
        %4825 = vmatpush1.bf16.msra.mxu0 %v4529
        %4826 = vmatprep.subr.bf16.mxu0 0
        %4827 = vmatpush1.bf16.msra.mxu0 %v4530
        %4828 = vmatprep.subr.bf16.mxu0 0
        %4829 = vmatpush1.bf16.msra.mxu0 %v4531
        %4830 = vmatprep.subr.bf16.mxu0 0
        %4831 = vmatpush1.bf16.msra.mxu0 %v4532
        %4832 = vmatprep.subr.bf16.mxu0 0
        %4833 = vmatpush1.bf16.msra.mxu0 %v4533
        %4834 = vmatprep.subr.bf16.mxu0 0
        %4835 = vmatpush1.bf16.msra.mxu0 %v4534
        %4836 = vmatprep.subr.bf16.mxu0 0
        %4837 = vmatpush1.bf16.msra.mxu0 %v4535
        %4838 = vmatprep.subr.bf16.mxu0 0
        %4839 = vmatpush1.bf16.msra.mxu0 %v4536
        %4840 = vmatprep.subr.bf16.mxu0 0
        %4841 = vmatpush1.bf16.msra.mxu0 %v4537
        %4842 = vmatprep.subr.bf16.mxu0 0
        %4843 = vmatpush1.bf16.msra.mxu0 %v4538
        %4844 = vmatprep.mubr.bf16.mxu0 %v3934
        %4845 = vmatmul.mubr.bf16.gmra.mrb[0].mxu0 %v3933
        %v4846 = vpop.f32.mrb[0].mxu0
        %v4847 = vadd.f32 %v4686, %v4846
        %v4848 = vpop.f32.mrb[0].mxu0
        %v4849 = vpop.f32.mrb[0].mxu0
        %v4850 = vadd.f32 %v4689, %v4849
        %v4851 = vpop.f32.mrb[0].mxu0
        %4852 = vmatprep.mubr.bf16.mxu0 %v3943
        %4853 = vmatmul.mubr.bf16.gmra.mrb[0].mxu0 %v3942
        %v4854 = vpop.f32.mrb[0].mxu0
        %v4855 = vadd.f32 %v4694, %v4854
        %v4856 = vpop.f32.mrb[0].mxu0
        %v4857 = vpop.f32.mrb[0].mxu0
        %v4858 = vadd.f32 %v4697, %v4857
        %v4859 = vpop.f32.mrb[0].mxu0
        %4860 = vmatprep.mubr.bf16.mxu0 %v3952
        %4861 = vmatmul.mubr.bf16.gmra.mrb[0].mxu0 %v3951
        %v4862 = vpop.f32.mrb[0].mxu0
        %v4863 = vadd.f32 %v4702, %v4862
        %v4864 = vpop.f32.mrb[0].mxu0
        %v4865 = vpop.f32.mrb[0].mxu0
        %v4866 = vadd.f32 %v4705, %v4865
        %v4867 = vpop.f32.mrb[0].mxu0
        %4868 = vmatprep.mubr.bf16.mxu0 %v3961
        %4869 = vmatmul.mubr.bf16.gmra.mrb[0].mxu0 %v3960
        %v4870 = vpop.f32.mrb[0].mxu0
        %v4871 = vadd.f32 %v4710, %v4870
        %v4872 = vpop.f32.mrb[0].mxu0
        %v4873 = vpop.f32.mrb[0].mxu0
        %v4874 = vadd.f32 %v4713, %v4873
        %v4875 = vpop.f32.mrb[0].mxu0
        %4876 = vmatprep.mubr.bf16.mxu0 %v3970
        %4877 = vmatmul.mubr.bf16.gmra.mrb[0].mxu0 %v3969
        %v4878 = vpop.f32.mrb[0].mxu0
        %v4879 = vadd.f32 %v4718, %v4878
        %v4880 = vpop.f32.mrb[0].mxu0
        %v4881 = vpop.f32.mrb[0].mxu0
        %v4882 = vadd.f32 %v4721, %v4881
        %v4883 = vpop.f32.mrb[0].mxu0
        %4884 = vmatprep.mubr.bf16.mxu0 %v3979
        %4885 = vmatmul.mubr.bf16.gmra.mrb[0].mxu0 %v3978
        %v4886 = vpop.f32.mrb[0].mxu0
        %v4887 = vadd.f32 %v4726, %v4886
        %v4888 = vpop.f32.mrb[0].mxu0
        %v4889 = vpop.f32.mrb[0].mxu0
        %v4890 = vadd.f32 %v4729, %v4889
        %v4891 = vpop.f32.mrb[0].mxu0
        %4892 = vmatprep.mubr.bf16.mxu0 %v3988
        %4893 = vmatmul.mubr.bf16.gmra.mrb[0].mxu0 %v3987
        %v4894 = vpop.f32.mrb[0].mxu0
        %v4895 = vadd.f32 %v4734, %v4894
        %v4896 = vpop.f32.mrb[0].mxu0
        %v4897 = vpop.f32.mrb[0].mxu0
        %v4898 = vadd.f32 %v4737, %v4897
        %v4899 = vpop.f32.mrb[0].mxu0
        %4900 = vmatprep.mubr.bf16.mxu0 %v3997
        %4901 = vmatmul.mubr.bf16.gmra.mrb[0].mxu0 %v3996
        %v4902 = vpop.f32.mrb[0].mxu0
        %v4903 = vadd.f32 %v4742, %v4902
        %v4904 = vpop.f32.mrb[0].mxu0
        %v4905 = vpop.f32.mrb[0].mxu0
        %v4906 = vadd.f32 %v4745, %v4905
        %v4907 = vpop.f32.mrb[0].mxu0
        %4908 = vmatprep.mubr.bf16.mxu0 %v4006
        %4909 = vmatmul.mubr.bf16.gmra.mrb[0].mxu0 %v4005
        %v4910 = vpop.f32.mrb[0].mxu0
        %v4911 = vadd.f32 %v4750, %v4910
        %v4912 = vpop.f32.mrb[0].mxu0
        %v4913 = vpop.f32.mrb[0].mxu0
        %v4914 = vadd.f32 %v4753, %v4913
        %v4915 = vpop.f32.mrb[0].mxu0
        %4916 = vmatprep.mubr.bf16.mxu0 %v4015
        %4917 = vmatmul.mubr.bf16.gmra.mrb[0].mxu0 %v4014
        %v4918 = vpop.f32.mrb[0].mxu0
        %v4919 = vadd.f32 %v4758, %v4918
        %v4920 = vpop.f32.mrb[0].mxu0
        %v4921 = vpop.f32.mrb[0].mxu0
        %v4922 = vadd.f32 %v4761, %v4921
        %v4923 = vpop.f32.mrb[0].mxu0
        %4924 = vmatprep.mubr.bf16.mxu0 %v4024
        %4925 = vmatmul.mubr.bf16.gmra.mrb[0].mxu0 %v4023
        %v4926 = vpop.f32.mrb[0].mxu0
        %v4927 = vadd.f32 %v4766, %v4926
        %v4928 = vpop.f32.mrb[0].mxu0
        %v4929 = vpop.f32.mrb[0].mxu0
        %v4930 = vadd.f32 %v4769, %v4929
        %v4931 = vpop.f32.mrb[0].mxu0
        %4932 = vmatprep.mubr.bf16.mxu0 %v4033
        %4933 = vmatmul.mubr.bf16.gmra.mrb[0].mxu0 %v4032
        %v4934 = vpop.f32.mrb[0].mxu0
        %v4935 = vadd.f32 %v4774, %v4934
        %v4936 = vpop.f32.mrb[0].mxu0
        %v4937 = vpop.f32.mrb[0].mxu0
        %v4938 = vadd.f32 %v4777, %v4937
        %v4939 = vpop.f32.mrb[0].mxu0
        %4940 = vmatprep.mubr.bf16.mxu0 %v4042
        %4941 = vmatmul.mubr.bf16.gmra.mrb[0].mxu0 %v4041
        %v4942 = vpop.f32.mrb[0].mxu0
        %v4943 = vadd.f32 %v4782, %v4942
        %v4944 = vpop.f32.mrb[0].mxu0
        %v4945 = vpop.f32.mrb[0].mxu0
        %v4946 = vadd.f32 %v4785, %v4945
        %v4947 = vpop.f32.mrb[0].mxu0
        %4948 = vmatprep.mubr.bf16.mxu0 %v4051
        %4949 = vmatmul.mubr.bf16.gmra.mrb[0].mxu0 %v4050
        %v4950 = vpop.f32.mrb[0].mxu0
        %v4951 = vadd.f32 %v4790, %v4950
        %v4952 = vpop.f32.mrb[0].mxu0
        %v4953 = vpop.f32.mrb[0].mxu0
        %v4954 = vadd.f32 %v4793, %v4953
        %v4955 = vpop.f32.mrb[0].mxu0
        %4956 = vmatprep.mubr.bf16.mxu0 %v4060
        %4957 = vmatmul.mubr.bf16.gmra.mrb[0].mxu0 %v4059
        %v4958 = vpop.f32.mrb[0].mxu0
        %v4959 = vadd.f32 %v4798, %v4958
        %v4960 = vpop.f32.mrb[0].mxu0
        %v4961 = vpop.f32.mrb[0].mxu0
        %v4962 = vadd.f32 %v4801, %v4961
        %v4963 = vpop.f32.mrb[0].mxu0
        %4964 = vmatprep.mubr.bf16.mxu0 %v4069
        %4965 = vmatmul.mubr.bf16.gmra.mrb[0].mxu0 %v4068
        %v4966 = vpop.f32.mrb[0].mxu0
        %v4967 = vadd.f32 %v4806, %v4966
        %v4968 = vpop.f32.mrb[0].mxu0
        %v4969 = vpop.f32.mrb[0].mxu0
        %v4970 = vadd.f32 %v4809, %v4969
        %v4971 = vpop.f32.mrb[0].mxu0
        %4972 = vdwg.mxu0
        %4973 = vmatprep.subr.bf16.mxu0 0
        %4974 = vmatpush1.bf16.msra.mxu0 %v4539
        %4975 = vmatprep.subr.bf16.mxu0 0
        %4976 = vmatpush1.bf16.msra.mxu0 %v4540
        %4977 = vmatprep.subr.bf16.mxu0 0
        %4978 = vmatpush1.bf16.msra.mxu0 %v4541
        %4979 = vmatprep.subr.bf16.mxu0 0
        %4980 = vmatpush1.bf16.msra.mxu0 %v4542
        %4981 = vmatprep.subr.bf16.mxu0 0
        %4982 = vmatpush1.bf16.msra.mxu0 %v4543
        %4983 = vmatprep.subr.bf16.mxu0 0
        %4984 = vmatpush1.bf16.msra.mxu0 %v4544
        %4985 = vmatprep.subr.bf16.mxu0 0
        %4986 = vmatpush1.bf16.msra.mxu0 %v4545
        %4987 = vmatprep.subr.bf16.mxu0 0
        %4988 = vmatpush1.bf16.msra.mxu0 %v4546
        %4989 = vmatprep.subr.bf16.mxu0 0
        %4990 = vmatpush1.bf16.msra.mxu0 %v4547
        %4991 = vmatprep.subr.bf16.mxu0 0
        %4992 = vmatpush1.bf16.msra.mxu0 %v4548
        %4993 = vmatprep.subr.bf16.mxu0 0
        %4994 = vmatpush1.bf16.msra.mxu0 %v4549
        %4995 = vmatprep.subr.bf16.mxu0 0
        %4996 = vmatpush1.bf16.msra.mxu0 %v4550
        %4997 = vmatprep.subr.bf16.mxu0 0
        %4998 = vmatpush1.bf16.msra.mxu0 %v4551
        %4999 = vmatprep.subr.bf16.mxu0 0
        %5000 = vmatpush1.bf16.msra.mxu0 %v4552
        %5001 = vmatprep.subr.bf16.mxu0 0
        %5002 = vmatpush1.bf16.msra.mxu0 %v4553
        %5003 = vmatprep.subr.bf16.mxu0 0
        %5004 = vmatpush1.bf16.msra.mxu0 %v4554
        %5005 = vmatprep.mubr.bf16.mxu0 %v3936
        %5006 = vmatmul.mubr.bf16.gmra.mrb[0].mxu0 %v3935
        %v5007 = vpop.f32.mrb[0].mxu0
        %v5008 = vadd.f32 %v4847, %v5007
        %v5009 = vpop.f32.mrb[0].mxu0
        %v5010 = vpop.f32.mrb[0].mxu0
        %v5011 = vadd.f32 %v4850, %v5010
        %v5012 = vpop.f32.mrb[0].mxu0
        %5013 = vmatprep.mubr.bf16.mxu0 %v3945
        %5014 = vmatmul.mubr.bf16.gmra.mrb[0].mxu0 %v3944
        %v5015 = vpop.f32.mrb[0].mxu0
        %v5016 = vadd.f32 %v4855, %v5015
        %v5017 = vpop.f32.mrb[0].mxu0
        %v5018 = vpop.f32.mrb[0].mxu0
        %v5019 = vadd.f32 %v4858, %v5018
        %v5020 = vpop.f32.mrb[0].mxu0
        %5021 = vmatprep.mubr.bf16.mxu0 %v3954
        %5022 = vmatmul.mubr.bf16.gmra.mrb[0].mxu0 %v3953
        %v5023 = vpop.f32.mrb[0].mxu0
        %v5024 = vadd.f32 %v4863, %v5023
        %v5025 = vpop.f32.mrb[0].mxu0
        %v5026 = vpop.f32.mrb[0].mxu0
        %v5027 = vadd.f32 %v4866, %v5026
        %v5028 = vpop.f32.mrb[0].mxu0
        %5029 = vmatprep.mubr.bf16.mxu0 %v3963
        %5030 = vmatmul.mubr.bf16.gmra.mrb[0].mxu0 %v3962
        %v5031 = vpop.f32.mrb[0].mxu0
        %v5032 = vadd.f32 %v4871, %v5031
        %v5033 = vpop.f32.mrb[0].mxu0
        %v5034 = vpop.f32.mrb[0].mxu0
        %v5035 = vadd.f32 %v4874, %v5034
        %v5036 = vpop.f32.mrb[0].mxu0
        %5037 = vmatprep.mubr.bf16.mxu0 %v3972
        %5038 = vmatmul.mubr.bf16.gmra.mrb[0].mxu0 %v3971
        %v5039 = vpop.f32.mrb[0].mxu0
        %v5040 = vadd.f32 %v4879, %v5039
        %v5041 = vpop.f32.mrb[0].mxu0
        %v5042 = vpop.f32.mrb[0].mxu0
        %v5043 = vadd.f32 %v4882, %v5042
        %v5044 = vpop.f32.mrb[0].mxu0
        %5045 = vmatprep.mubr.bf16.mxu0 %v3981
        %5046 = vmatmul.mubr.bf16.gmra.mrb[0].mxu0 %v3980
        %v5047 = vpop.f32.mrb[0].mxu0
        %v5048 = vadd.f32 %v4887, %v5047
        %v5049 = vpop.f32.mrb[0].mxu0
        %v5050 = vpop.f32.mrb[0].mxu0
        %v5051 = vadd.f32 %v4890, %v5050
        %v5052 = vpop.f32.mrb[0].mxu0
        %5053 = vmatprep.mubr.bf16.mxu0 %v3990
        %5054 = vmatmul.mubr.bf16.gmra.mrb[0].mxu0 %v3989
        %v5055 = vpop.f32.mrb[0].mxu0
        %v5056 = vadd.f32 %v4895, %v5055
        %v5057 = vpop.f32.mrb[0].mxu0
        %v5058 = vpop.f32.mrb[0].mxu0
        %v5059 = vadd.f32 %v4898, %v5058
        %v5060 = vpop.f32.mrb[0].mxu0
        %5061 = vmatprep.mubr.bf16.mxu0 %v3999
        %5062 = vmatmul.mubr.bf16.gmra.mrb[0].mxu0 %v3998
        %v5063 = vpop.f32.mrb[0].mxu0
        %v5064 = vadd.f32 %v4903, %v5063
        %v5065 = vpop.f32.mrb[0].mxu0
        %v5066 = vpop.f32.mrb[0].mxu0
        %v5067 = vadd.f32 %v4906, %v5066
        %v5068 = vpop.f32.mrb[0].mxu0
        %5069 = vmatprep.mubr.bf16.mxu0 %v4008
        %5070 = vmatmul.mubr.bf16.gmra.mrb[0].mxu0 %v4007
        %v5071 = vpop.f32.mrb[0].mxu0
        %v5072 = vadd.f32 %v4911, %v5071
        %v5073 = vpop.f32.mrb[0].mxu0
        %v5074 = vpop.f32.mrb[0].mxu0
        %v5075 = vadd.f32 %v4914, %v5074
        %v5076 = vpop.f32.mrb[0].mxu0
        %5077 = vmatprep.mubr.bf16.mxu0 %v4017
        %5078 = vmatmul.mubr.bf16.gmra.mrb[0].mxu0 %v4016
        %v5079 = vpop.f32.mrb[0].mxu0
        %v5080 = vadd.f32 %v4919, %v5079
        %v5081 = vpop.f32.mrb[0].mxu0
        %v5082 = vpop.f32.mrb[0].mxu0
        %v5083 = vadd.f32 %v4922, %v5082
        %v5084 = vpop.f32.mrb[0].mxu0
        %5085 = vmatprep.mubr.bf16.mxu0 %v4026
        %5086 = vmatmul.mubr.bf16.gmra.mrb[0].mxu0 %v4025
        %v5087 = vpop.f32.mrb[0].mxu0
        %v5088 = vadd.f32 %v4927, %v5087
        %v5089 = vpop.f32.mrb[0].mxu0
        %v5090 = vpop.f32.mrb[0].mxu0
        %v5091 = vadd.f32 %v4930, %v5090
        %v5092 = vpop.f32.mrb[0].mxu0
        %5093 = vmatprep.mubr.bf16.mxu0 %v4035
        %5094 = vmatmul.mubr.bf16.gmra.mrb[0].mxu0 %v4034
        %v5095 = vpop.f32.mrb[0].mxu0
        %v5096 = vadd.f32 %v4935, %v5095
        %v5097 = vpop.f32.mrb[0].mxu0
        %v5098 = vpop.f32.mrb[0].mxu0
        %v5099 = vadd.f32 %v4938, %v5098
        %v5100 = vpop.f32.mrb[0].mxu0
        %5101 = vmatprep.mubr.bf16.mxu0 %v4044
        %5102 = vmatmul.mubr.bf16.gmra.mrb[0].mxu0 %v4043
        %v5103 = vpop.f32.mrb[0].mxu0
        %v5104 = vadd.f32 %v4943, %v5103
        %v5105 = vpop.f32.mrb[0].mxu0
        %v5106 = vpop.f32.mrb[0].mxu0
        %v5107 = vadd.f32 %v4946, %v5106
        %v5108 = vpop.f32.mrb[0].mxu0
        %5109 = vmatprep.mubr.bf16.mxu0 %v4053
        %5110 = vmatmul.mubr.bf16.gmra.mrb[0].mxu0 %v4052
        %v5111 = vpop.f32.mrb[0].mxu0
        %v5112 = vadd.f32 %v4951, %v5111
        %v5113 = vpop.f32.mrb[0].mxu0
        %v5114 = vpop.f32.mrb[0].mxu0
        %v5115 = vadd.f32 %v4954, %v5114
        %v5116 = vpop.f32.mrb[0].mxu0
        %5117 = vmatprep.mubr.bf16.mxu0 %v4062
        %5118 = vmatmul.mubr.bf16.gmra.mrb[0].mxu0 %v4061
        %v5119 = vpop.f32.mrb[0].mxu0
        %v5120 = vadd.f32 %v4959, %v5119
        %v5121 = vpop.f32.mrb[0].mxu0
        %v5122 = vpop.f32.mrb[0].mxu0
        %v5123 = vadd.f32 %v4962, %v5122
        %v5124 = vpop.f32.mrb[0].mxu0
        %5125 = vmatprep.mubr.bf16.mxu0 %v4071
        %5126 = vmatmul.mubr.bf16.gmra.mrb[0].mxu0 %v4070
        %v5127 = vpop.f32.mrb[0].mxu0
        %v5128 = vadd.f32 %v4967, %v5127
        %v5129 = vpop.f32.mrb[0].mxu0
        %v5130 = vpop.f32.mrb[0].mxu0
        %v5131 = vadd.f32 %v4970, %v5130
        %v5132 = vpop.f32.mrb[0].mxu0
        %5133 = vdwg.mxu0
        %5134 = vmatprep.subr.bf16.mxu0 0
        %5135 = vmatpush1.bf16.msra.mxu0 %v4555
        %5136 = vmatprep.subr.bf16.mxu0 0
        %5137 = vmatpush1.bf16.msra.mxu0 %v4556
        %5138 = vmatprep.subr.bf16.mxu0 0
        %5139 = vmatpush1.bf16.msra.mxu0 %v4557
        %5140 = vmatprep.subr.bf16.mxu0 0
        %5141 = vmatpush1.bf16.msra.mxu0 %v4558
        %5142 = vmatprep.subr.bf16.mxu0 0
        %5143 = vmatpush1.bf16.msra.mxu0 %v4559
        %5144 = vmatprep.subr.bf16.mxu0 0
        %5145 = vmatpush1.bf16.msra.mxu0 %v4560
        %5146 = vmatprep.subr.bf16.mxu0 0
        %5147 = vmatpush1.bf16.msra.mxu0 %v4561
        %5148 = vmatprep.subr.bf16.mxu0 0
        %5149 = vmatpush1.bf16.msra.mxu0 %v4562
        %5150 = vmatprep.subr.bf16.mxu0 0
        %5151 = vmatpush1.bf16.msra.mxu0 %v4563
        %5152 = vmatprep.subr.bf16.mxu0 0
        %5153 = vmatpush1.bf16.msra.mxu0 %v4564
        %5154 = vmatprep.subr.bf16.mxu0 0
        %5155 = vmatpush1.bf16.msra.mxu0 %v4565
        %5156 = vmatprep.subr.bf16.mxu0 0
        %5157 = vmatpush1.bf16.msra.mxu0 %v4566
        %5158 = vmatprep.subr.bf16.mxu0 0
        %5159 = vmatpush1.bf16.msra.mxu0 %v4567
        %5160 = vmatprep.subr.bf16.mxu0 0
        %5161 = vmatpush1.bf16.msra.mxu0 %v4568
        %5162 = vmatprep.subr.bf16.mxu0 0
        %5163 = vmatpush1.bf16.msra.mxu0 %v4569
        %5164 = vmatprep.subr.bf16.mxu0 0
        %5165 = vmatpush1.bf16.msra.mxu0 %v4570
        %5166 = vmatprep.mubr.bf16.mxu0 %v3938
        %5167 = vmatmul.mubr.bf16.gmra.mrb[0].mxu0 %v3937
        %v5168 = vpop.f32.mrb[0].mxu0
        %v5169 = vadd.f32 %v5008, %v5168
        %v5170 = vpop.f32.mrb[0].mxu0
        %v5171 = vpop.f32.mrb[0].mxu0
        %v5172 = vadd.f32 %v5011, %v5171
        %v5173 = vpop.f32.mrb[0].mxu0
        %5174 = vmatprep.mubr.bf16.mxu0 %v3947
        %5175 = vmatmul.mubr.bf16.gmra.mrb[0].mxu0 %v3946
        %v5176 = vpop.f32.mrb[0].mxu0
        %v5177 = vadd.f32 %v5016, %v5176
        %v5178 = vpop.f32.mrb[0].mxu0
        %v5179 = vpop.f32.mrb[0].mxu0
        %v5180 = vadd.f32 %v5019, %v5179
        %v5181 = vpop.f32.mrb[0].mxu0
        %5182 = vmatprep.mubr.bf16.mxu0 %v3956
        %5183 = vmatmul.mubr.bf16.gmra.mrb[0].mxu0 %v3955
        %v5184 = vpop.f32.mrb[0].mxu0
        %v5185 = vadd.f32 %v5024, %v5184
        %v5186 = vpop.f32.mrb[0].mxu0
        %v5187 = vpop.f32.mrb[0].mxu0
        %v5188 = vadd.f32 %v5027, %v5187
        %v5189 = vpop.f32.mrb[0].mxu0
        %5190 = vmatprep.mubr.bf16.mxu0 %v3965
        %5191 = vmatmul.mubr.bf16.gmra.mrb[0].mxu0 %v3964
        %v5192 = vpop.f32.mrb[0].mxu0
        %v5193 = vadd.f32 %v5032, %v5192
        %v5194 = vpop.f32.mrb[0].mxu0
        %v5195 = vpop.f32.mrb[0].mxu0
        %v5196 = vadd.f32 %v5035, %v5195
        %v5197 = vpop.f32.mrb[0].mxu0
        %5198 = vmatprep.mubr.bf16.mxu0 %v3974
        %5199 = vmatmul.mubr.bf16.gmra.mrb[0].mxu0 %v3973
        %v5200 = vpop.f32.mrb[0].mxu0
        %v5201 = vadd.f32 %v5040, %v5200
        %v5202 = vpop.f32.mrb[0].mxu0
        %v5203 = vpop.f32.mrb[0].mxu0
        %v5204 = vadd.f32 %v5043, %v5203
        %v5205 = vpop.f32.mrb[0].mxu0
        %5206 = vmatprep.mubr.bf16.mxu0 %v3983
        %5207 = vmatmul.mubr.bf16.gmra.mrb[0].mxu0 %v3982
        %v5208 = vpop.f32.mrb[0].mxu0
        %v5209 = vadd.f32 %v5048, %v5208
        %v5210 = vpop.f32.mrb[0].mxu0
        %v5211 = vpop.f32.mrb[0].mxu0
        %v5212 = vadd.f32 %v5051, %v5211
        %v5213 = vpop.f32.mrb[0].mxu0
        %5214 = vmatprep.mubr.bf16.mxu0 %v3992
        %5215 = vmatmul.mubr.bf16.gmra.mrb[0].mxu0 %v3991
        %v5216 = vpop.f32.mrb[0].mxu0
        %v5217 = vadd.f32 %v5056, %v5216
        %v5218 = vpop.f32.mrb[0].mxu0
        %v5219 = vpop.f32.mrb[0].mxu0
        %v5220 = vadd.f32 %v5059, %v5219
        %v5221 = vpop.f32.mrb[0].mxu0
        %5222 = vmatprep.mubr.bf16.mxu0 %v4001
        %5223 = vmatmul.mubr.bf16.gmra.mrb[0].mxu0 %v4000
        %v5224 = vpop.f32.mrb[0].mxu0
        %v5225 = vadd.f32 %v5064, %v5224
        %v5226 = vpop.f32.mrb[0].mxu0
        %v5227 = vpop.f32.mrb[0].mxu0
        %v5228 = vadd.f32 %v5067, %v5227
        %v5229 = vpop.f32.mrb[0].mxu0
        %5230 = vmatprep.mubr.bf16.mxu0 %v4010
        %5231 = vmatmul.mubr.bf16.gmra.mrb[0].mxu0 %v4009
        %v5232 = vpop.f32.mrb[0].mxu0
        %v5233 = vadd.f32 %v5072, %v5232
        %v5234 = vpop.f32.mrb[0].mxu0
        %v5235 = vpop.f32.mrb[0].mxu0
        %v5236 = vadd.f32 %v5075, %v5235
        %v5237 = vpop.f32.mrb[0].mxu0
        %5238 = vmatprep.mubr.bf16.mxu0 %v4019
        %5239 = vmatmul.mubr.bf16.gmra.mrb[0].mxu0 %v4018
        %v5240 = vpop.f32.mrb[0].mxu0
        %v5241 = vadd.f32 %v5080, %v5240
        %v5242 = vpop.f32.mrb[0].mxu0
        %v5243 = vpop.f32.mrb[0].mxu0
        %v5244 = vadd.f32 %v5083, %v5243
        %v5245 = vpop.f32.mrb[0].mxu0
        %5246 = vmatprep.mubr.bf16.mxu0 %v4028
        %5247 = vmatmul.mubr.bf16.gmra.mrb[0].mxu0 %v4027
        %v5248 = vpop.f32.mrb[0].mxu0
        %v5249 = vadd.f32 %v5088, %v5248
        %v5250 = vpop.f32.mrb[0].mxu0
        %v5251 = vpop.f32.mrb[0].mxu0
        %v5252 = vadd.f32 %v5091, %v5251
        %v5253 = vpop.f32.mrb[0].mxu0
        %5254 = vmatprep.mubr.bf16.mxu0 %v4037
        %5255 = vmatmul.mubr.bf16.gmra.mrb[0].mxu0 %v4036
        %v5256 = vpop.f32.mrb[0].mxu0
        %v5257 = vadd.f32 %v5096, %v5256
        %v5258 = vpop.f32.mrb[0].mxu0
        %v5259 = vpop.f32.mrb[0].mxu0
        %v5260 = vadd.f32 %v5099, %v5259
        %v5261 = vpop.f32.mrb[0].mxu0
        %5262 = vmatprep.mubr.bf16.mxu0 %v4046
        %5263 = vmatmul.mubr.bf16.gmra.mrb[0].mxu0 %v4045
        %v5264 = vpop.f32.mrb[0].mxu0
        %v5265 = vadd.f32 %v5104, %v5264
        %v5266 = vpop.f32.mrb[0].mxu0
        %v5267 = vpop.f32.mrb[0].mxu0
        %v5268 = vadd.f32 %v5107, %v5267
        %v5269 = vpop.f32.mrb[0].mxu0
        %5270 = vmatprep.mubr.bf16.mxu0 %v4055
        %5271 = vmatmul.mubr.bf16.gmra.mrb[0].mxu0 %v4054
        %v5272 = vpop.f32.mrb[0].mxu0
        %v5273 = vadd.f32 %v5112, %v5272
        %v5274 = vpop.f32.mrb[0].mxu0
        %v5275 = vpop.f32.mrb[0].mxu0
        %v5276 = vadd.f32 %v5115, %v5275
        %v5277 = vpop.f32.mrb[0].mxu0
        %5278 = vmatprep.mubr.bf16.mxu0 %v4064
        %5279 = vmatmul.mubr.bf16.gmra.mrb[0].mxu0 %v4063
        %v5280 = vpop.f32.mrb[0].mxu0
        %v5281 = vadd.f32 %v5120, %v5280
        %v5282 = vpop.f32.mrb[0].mxu0
        %v5283 = vpop.f32.mrb[0].mxu0
        %v5284 = vadd.f32 %v5123, %v5283
        %v5285 = vpop.f32.mrb[0].mxu0
        %5286 = vmatprep.mubr.bf16.mxu0 %v4073
        %5287 = vmatmul.mubr.bf16.gmra.mrb[0].mxu0 %v4072
        %v5288 = vpop.f32.mrb[0].mxu0
        %v5289 = vadd.f32 %v5128, %v5288
        %v5290 = vpop.f32.mrb[0].mxu0
        %v5291 = vpop.f32.mrb[0].mxu0
        %v5292 = vadd.f32 %v5131, %v5291
        %v5293 = vpop.f32.mrb[0].mxu0
        %5294 = vdwg.mxu0
        %5295 = vmatprep.subr.bf16.mxu0 0
        %5296 = vmatpush1.bf16.msra.mxu0 %v4571
        %5297 = vmatprep.subr.bf16.mxu0 0
        %5298 = vmatpush1.bf16.msra.mxu0 %v4572
        %5299 = vmatprep.subr.bf16.mxu0 0
        %5300 = vmatpush1.bf16.msra.mxu0 %v4573
        %5301 = vmatprep.subr.bf16.mxu0 0
        %5302 = vmatpush1.bf16.msra.mxu0 %v4574
        %5303 = vmatprep.subr.bf16.mxu0 0
        %5304 = vmatpush1.bf16.msra.mxu0 %v4575
        %5305 = vmatprep.subr.bf16.mxu0 0
        %5306 = vmatpush1.bf16.msra.mxu0 %v4576
        %5307 = vmatprep.subr.bf16.mxu0 0
        %5308 = vmatpush1.bf16.msra.mxu0 %v4577
        %5309 = vmatprep.subr.bf16.mxu0 0
        %5310 = vmatpush1.bf16.msra.mxu0 %v4578
        %5311 = vmatprep.subr.bf16.mxu0 0
        %5312 = vmatpush1.bf16.msra.mxu0 0
        %5313 = vmatprep.subr.bf16.mxu0 0
        %5314 = vmatpush1.bf16.msra.mxu0 0
        %5315 = vmatprep.subr.bf16.mxu0 0
        %5316 = vmatpush1.bf16.msra.mxu0 0
        %5317 = vmatprep.subr.bf16.mxu0 0
        %5318 = vmatpush1.bf16.msra.mxu0 0
        %5319 = vmatprep.subr.bf16.mxu0 0
        %5320 = vmatpush1.bf16.msra.mxu0 0
        %5321 = vmatprep.subr.bf16.mxu0 0
        %5322 = vmatpush1.bf16.msra.mxu0 0
        %5323 = vmatprep.subr.bf16.mxu0 0
        %5324 = vmatpush1.bf16.msra.mxu0 0
        %5325 = vmatprep.subr.bf16.mxu0 0
        %5326 = vmatpush1.bf16.msra.mxu0 0
        %5327 = vmatprep.mubr.bf16.mxu0 0
        %5328 = vmatmul.mubr.bf16.gmra.mrb[0].mxu0 %v3939
        %v5329 = vpop.f32.mrb[0].mxu0
        %v5330 = vadd.f32 %v5169, %v5329
        %v5331 = vpop.f32.mrb[0].mxu0
        %v5332 = vpop.f32.mrb[0].mxu0
        %v5333 = vadd.f32 %v5172, %v5332
        %v5334 = vpop.f32.mrb[0].mxu0
        %5335 = vmatprep.mubr.bf16.mxu0 0
        %5336 = vmatmul.mubr.bf16.gmra.mrb[0].mxu0 %v3948
        %v5337 = vpop.f32.mrb[0].mxu0
        %v5338 = vadd.f32 %v5177, %v5337
        %v5339 = vpop.f32.mrb[0].mxu0
        %v5340 = vpop.f32.mrb[0].mxu0
        %v5341 = vadd.f32 %v5180, %v5340
        %v5342 = vpop.f32.mrb[0].mxu0
        %5343 = vmatprep.mubr.bf16.mxu0 0
        %5344 = vmatmul.mubr.bf16.gmra.mrb[0].mxu0 %v3957
        %v5345 = vpop.f32.mrb[0].mxu0
        %v5346 = vadd.f32 %v5185, %v5345
        %v5347 = vpop.f32.mrb[0].mxu0
        %v5348 = vpop.f32.mrb[0].mxu0
        %v5349 = vadd.f32 %v5188, %v5348
        %v5350 = vpop.f32.mrb[0].mxu0
        %5351 = vmatprep.mubr.bf16.mxu0 0
        %5352 = vmatmul.mubr.bf16.gmra.mrb[0].mxu0 %v3966
        %v5353 = vpop.f32.mrb[0].mxu0
        %v5354 = vadd.f32 %v5193, %v5353
        %v5355 = vpop.f32.mrb[0].mxu0
        %v5356 = vpop.f32.mrb[0].mxu0
        %v5357 = vadd.f32 %v5196, %v5356
        %v5358 = vpop.f32.mrb[0].mxu0
        %5359 = vmatprep.mubr.bf16.mxu0 0
        %5360 = vmatmul.mubr.bf16.gmra.mrb[0].mxu0 %v3975
        %v5361 = vpop.f32.mrb[0].mxu0
        %v5362 = vadd.f32 %v5201, %v5361
        %v5363 = vpop.f32.mrb[0].mxu0
        %v5364 = vpop.f32.mrb[0].mxu0
        %v5365 = vadd.f32 %v5204, %v5364
        %v5366 = vpop.f32.mrb[0].mxu0
        %5367 = vmatprep.mubr.bf16.mxu0 0
        %5368 = vmatmul.mubr.bf16.gmra.mrb[0].mxu0 %v3984
        %v5369 = vpop.f32.mrb[0].mxu0
        %v5370 = vadd.f32 %v5209, %v5369
        %v5371 = vpop.f32.mrb[0].mxu0
        %v5372 = vpop.f32.mrb[0].mxu0
        %v5373 = vadd.f32 %v5212, %v5372
        %v5374 = vpop.f32.mrb[0].mxu0
        %5375 = vmatprep.mubr.bf16.mxu0 0
        %5376 = vmatmul.mubr.bf16.gmra.mrb[0].mxu0 %v3993
        %v5377 = vpop.f32.mrb[0].mxu0
        %v5378 = vadd.f32 %v5217, %v5377
        %v5379 = vpop.f32.mrb[0].mxu0
        %v5380 = vpop.f32.mrb[0].mxu0
        %v5381 = vadd.f32 %v5220, %v5380
        %v5382 = vpop.f32.mrb[0].mxu0
        %5383 = vmatprep.mubr.bf16.mxu0 0
        %5384 = vmatmul.mubr.bf16.gmra.mrb[0].mxu0 %v4002
        %v5385 = vpop.f32.mrb[0].mxu0
        %v5386 = vadd.f32 %v5225, %v5385
        %v5387 = vpop.f32.mrb[0].mxu0
        %v5388 = vpop.f32.mrb[0].mxu0
        %v5389 = vadd.f32 %v5228, %v5388
        %v5390 = vpop.f32.mrb[0].mxu0
        %5391 = vmatprep.mubr.bf16.mxu0 0
        %5392 = vmatmul.mubr.bf16.gmra.mrb[0].mxu0 %v4011
        %v5393 = vpop.f32.mrb[0].mxu0
        %v5394 = vadd.f32 %v5233, %v5393
        %v5395 = vpop.f32.mrb[0].mxu0
        %v5396 = vpop.f32.mrb[0].mxu0
        %v5397 = vadd.f32 %v5236, %v5396
        %v5398 = vpop.f32.mrb[0].mxu0
        %5399 = vmatprep.mubr.bf16.mxu0 0
        %5400 = vmatmul.mubr.bf16.gmra.mrb[0].mxu0 %v4020
        %v5401 = vpop.f32.mrb[0].mxu0
        %v5402 = vadd.f32 %v5241, %v5401
        %v5403 = vpop.f32.mrb[0].mxu0
        %v5404 = vpop.f32.mrb[0].mxu0
        %v5405 = vadd.f32 %v5244, %v5404
        %v5406 = vpop.f32.mrb[0].mxu0
        %5407 = vmatprep.mubr.bf16.mxu0 0
        %5408 = vmatmul.mubr.bf16.gmra.mrb[0].mxu0 %v4029
        %v5409 = vpop.f32.mrb[0].mxu0
        %v5410 = vadd.f32 %v5249, %v5409
        %v5411 = vpop.f32.mrb[0].mxu0
        %v5412 = vpop.f32.mrb[0].mxu0
        %v5413 = vadd.f32 %v5252, %v5412
        %v5414 = vpop.f32.mrb[0].mxu0
        %5415 = vmatprep.mubr.bf16.mxu0 0
        %5416 = vmatmul.mubr.bf16.gmra.mrb[0].mxu0 %v4038
        %v5417 = vpop.f32.mrb[0].mxu0
        %v5418 = vadd.f32 %v5257, %v5417
        %v5419 = vpop.f32.mrb[0].mxu0
        %v5420 = vpop.f32.mrb[0].mxu0
        %v5421 = vadd.f32 %v5260, %v5420
        %v5422 = vpop.f32.mrb[0].mxu0
        %5423 = vmatprep.mubr.bf16.mxu0 0
        %5424 = vmatmul.mubr.bf16.gmra.mrb[0].mxu0 %v4047
        %v5425 = vpop.f32.mrb[0].mxu0
        %v5426 = vadd.f32 %v5265, %v5425
        %v5427 = vpop.f32.mrb[0].mxu0
        %v5428 = vpop.f32.mrb[0].mxu0
        %v5429 = vadd.f32 %v5268, %v5428
        %v5430 = vpop.f32.mrb[0].mxu0
        %5431 = vmatprep.mubr.bf16.mxu0 0
        %5432 = vmatmul.mubr.bf16.gmra.mrb[0].mxu0 %v4056
        %v5433 = vpop.f32.mrb[0].mxu0
        %v5434 = vadd.f32 %v5273, %v5433
        %v5435 = vpop.f32.mrb[0].mxu0
        %v5436 = vpop.f32.mrb[0].mxu0
        %v5437 = vadd.f32 %v5276, %v5436
        %v5438 = vpop.f32.mrb[0].mxu0
        %5439 = vmatprep.mubr.bf16.mxu0 0
        %5440 = vmatmul.mubr.bf16.gmra.mrb[0].mxu0 %v4065
        %v5441 = vpop.f32.mrb[0].mxu0
        %v5442 = vadd.f32 %v5281, %v5441
        %v5443 = vpop.f32.mrb[0].mxu0
        %v5444 = vpop.f32.mrb[0].mxu0
        %v5445 = vadd.f32 %v5284, %v5444
        %v5446 = vpop.f32.mrb[0].mxu0
        %5447 = vmatprep.mubr.bf16.mxu0 0
        %5448 = vmatmul.mubr.bf16.gmra.mrb[0].mxu0 %v4074
        %v5449 = vpop.f32.mrb[0].mxu0
        %v5450 = vadd.f32 %v5289, %v5449
        %v5451 = vpop.f32.mrb[0].mxu0
        %v5452 = vpop.f32.mrb[0].mxu0
        %v5453 = vadd.f32 %v5292, %v5452
        %v5454 = vpop.f32.mrb[0].mxu0
        %5455 = vdwg.mxu0
        %v5456 = vadd.f32 %v5330, %v5333
        %v5457 = vadd.f32 %v5456, %v5338
        %v5458 = vadd.f32 %v5457, %v5341
        %v5459 = vadd.f32 %v5458, %v5346
        %v5460 = vadd.f32 %v5459, %v5349
        %v5461 = vadd.f32 %v5460, %v5354
        %v5462 = vadd.f32 %v5461, %v5357
        %v5463 = vadd.f32 %v5462, %v5362
        %v5464 = vadd.f32 %v5463, %v5365
        %v5465 = vadd.f32 %v5464, %v5370
        %v5466 = vadd.f32 %v5465, %v5373
        %v5467 = vadd.f32 %v5466, %v5378
        %v5468 = vadd.f32 %v5467, %v5381
        %v5469 = vadd.f32 %v5468, %v5386
        %v5470 = vadd.f32 %v5469, %v5389
        %v5471 = vadd.f32 %v5470, %v5394
        %v5472 = vadd.f32 %v5471, %v5397
        %v5473 = vadd.f32 %v5472, %v5402
        %v5474 = vadd.f32 %v5473, %v5405
        %v5475 = vadd.f32 %v5474, %v5410
        %v5476 = vadd.f32 %v5475, %v5413
        %v5477 = vadd.f32 %v5476, %v5418
        %v5478 = vadd.f32 %v5477, %v5421
        %v5479 = vadd.f32 %v5478, %v5426
        %v5480 = vadd.f32 %v5479, %v5429
        %v5481 = vadd.f32 %v5480, %v5434
        %v5482 = vadd.f32 %v5481, %v5437
        %v5483 = vadd.f32 %v5482, %v5442
        %v5484 = vadd.f32 %v5483, %v5445
        %v5485 = vadd.f32 %v5484, %v5450
        %v5486 = vadd.f32 %v5485, %v5453
        %v5487 = vrot.slane %v5486, 4
        %v5488 = vadd.f32 %v5486, %v5487
        %v5489 = vrot.slane %v5488, 2
        %v5490 = vadd.f32 %v5488, %v5489
        %v5491 = vrot.slane %v5490, 1
        %v5492 = vadd.f32 %v5490, %v5491
        %v5493 = vmul.f32 %v5330, %v5330
        %v5494 = vmul.f32 %v5333, %v5333
        %v5495 = vmul.f32 %v5338, %v5338
        %v5496 = vmul.f32 %v5341, %v5341
        %v5497 = vmul.f32 %v5346, %v5346
        %v5498 = vmul.f32 %v5349, %v5349
        %v5499 = vmul.f32 %v5354, %v5354
        %v5500 = vmul.f32 %v5357, %v5357
        %v5501 = vmul.f32 %v5362, %v5362
        %v5502 = vmul.f32 %v5365, %v5365
        %v5503 = vmul.f32 %v5370, %v5370
        %v5504 = vmul.f32 %v5373, %v5373
        %v5505 = vmul.f32 %v5378, %v5378
        %v5506 = vmul.f32 %v5381, %v5381
        %v5507 = vmul.f32 %v5386, %v5386
        %v5508 = vmul.f32 %v5389, %v5389
        %v5509 = vmul.f32 %v5394, %v5394
        %v5510 = vmul.f32 %v5397, %v5397
        %v5511 = vmul.f32 %v5402, %v5402
        %v5512 = vmul.f32 %v5405, %v5405
        %v5513 = vmul.f32 %v5410, %v5410
        %v5514 = vmul.f32 %v5413, %v5413
        %v5515 = vmul.f32 %v5418, %v5418
        %v5516 = vmul.f32 %v5421, %v5421
        %v5517 = vmul.f32 %v5426, %v5426
        %v5518 = vmul.f32 %v5429, %v5429
        %v5519 = vmul.f32 %v5434, %v5434
        %v5520 = vmul.f32 %v5437, %v5437
        %v5521 = vmul.f32 %v5442, %v5442
        %v5522 = vmul.f32 %v5445, %v5445
        %v5523 = vmul.f32 %v5450, %v5450
        %v5524 = vmul.f32 %v5453, %v5453
        %v5525 = vadd.f32 %v5493, %v5494
        %v5526 = vadd.f32 %v5525, %v5495
        %v5527 = vadd.f32 %v5526, %v5496
        %v5528 = vadd.f32 %v5527, %v5497
        %v5529 = vadd.f32 %v5528, %v5498
        %v5530 = vadd.f32 %v5529, %v5499
        %v5531 = vadd.f32 %v5530, %v5500
        %v5532 = vadd.f32 %v5531, %v5501
        %v5533 = vadd.f32 %v5532, %v5502
        %v5534 = vadd.f32 %v5533, %v5503
        %v5535 = vadd.f32 %v5534, %v5504
        %v5536 = vadd.f32 %v5535, %v5505
        %v5537 = vadd.f32 %v5536, %v5506
        %v5538 = vadd.f32 %v5537, %v5507
        %v5539 = vadd.f32 %v5538, %v5508
        %v5540 = vadd.f32 %v5539, %v5509
        %v5541 = vadd.f32 %v5540, %v5510
        %v5542 = vadd.f32 %v5541, %v5511
        %v5543 = vadd.f32 %v5542, %v5512
        %v5544 = vadd.f32 %v5543, %v5513
        %v5545 = vadd.f32 %v5544, %v5514
        %v5546 = vadd.f32 %v5545, %v5515
        %v5547 = vadd.f32 %v5546, %v5516
        %v5548 = vadd.f32 %v5547, %v5517
        %v5549 = vadd.f32 %v5548, %v5518
        %v5550 = vadd.f32 %v5549, %v5519
        %v5551 = vadd.f32 %v5550, %v5520
        %v5552 = vadd.f32 %v5551, %v5521
        %v5553 = vadd.f32 %v5552, %v5522
        %v5554 = vadd.f32 %v5553, %v5523
        %v5555 = vadd.f32 %v5554, %v5524
        %v5556 = vrot.slane %v5555, 4
        %v5557 = vadd.f32 %v5555, %v5556
        %v5558 = vrot.slane %v5557, 2
        %v5559 = vadd.f32 %v5557, %v5558
        %v5560 = vrot.slane %v5559, 1
        %v5561 = vadd.f32 %v5559, %v5560
        %v5562 = vmul.f32 %v5492, 0.00390625
        %v5563 = vmul.f32 %v5561, 0.00390625
        %v5564 = vmul.f32 %v5562, %v5562
        %v5565 = vsub.f32 %v5563, %v5564
        %v5566 = vsub.f32 %v5330, %v5562
        %v5567 = vsub.f32 %v5333, %v5562
        %v5568 = vsub.f32 %v5338, %v5562
        %v5569 = vsub.f32 %v5341, %v5562
        %v5570 = vsub.f32 %v5346, %v5562
        %v5571 = vsub.f32 %v5349, %v5562
        %v5572 = vsub.f32 %v5354, %v5562
        %v5573 = vsub.f32 %v5357, %v5562
        %v5574 = vsub.f32 %v5362, %v5562
        %v5575 = vsub.f32 %v5365, %v5562
        %v5576 = vsub.f32 %v5370, %v5562
        %v5577 = vsub.f32 %v5373, %v5562
        %v5578 = vsub.f32 %v5378, %v5562
        %v5579 = vsub.f32 %v5381, %v5562
        %v5580 = vsub.f32 %v5386, %v5562
        %v5581 = vsub.f32 %v5389, %v5562
        %v5582 = vsub.f32 %v5394, %v5562
        %v5583 = vsub.f32 %v5397, %v5562
        %v5584 = vsub.f32 %v5402, %v5562
        %v5585 = vsub.f32 %v5405, %v5562
        %v5586 = vsub.f32 %v5410, %v5562
        %v5587 = vsub.f32 %v5413, %v5562
        %v5588 = vsub.f32 %v5418, %v5562
        %v5589 = vsub.f32 %v5421, %v5562
        %v5590 = vsub.f32 %v5426, %v5562
        %v5591 = vsub.f32 %v5429, %v5562
        %v5592 = vsub.f32 %v5434, %v5562
        %v5593 = vsub.f32 %v5437, %v5562
        %v5594 = vsub.f32 %v5442, %v5562
        %v5595 = vsub.f32 %v5445, %v5562
        %v5596 = vsub.f32 %v5450, %v5562
        %v5597 = vsub.f32 %v5453, %v5562
        %v5598 = vadd.f32 %v5565, 1e-05
        %v5599 = vrsqrt.pop %v5598
        %v5600 = vmul.f32 %v5566, %v5599
        %v5601 = vmul.f32 %v5567, %v5599
        %v5602 = vmul.f32 %v5568, %v5599
        %v5603 = vmul.f32 %v5569, %v5599
        %v5604 = vmul.f32 %v5570, %v5599
        %v5605 = vmul.f32 %v5571, %v5599
        %v5606 = vmul.f32 %v5572, %v5599
        %v5607 = vmul.f32 %v5573, %v5599
        %v5608 = vmul.f32 %v5574, %v5599
        %v5609 = vmul.f32 %v5575, %v5599
        %v5610 = vmul.f32 %v5576, %v5599
        %v5611 = vmul.f32 %v5577, %v5599
        %v5612 = vmul.f32 %v5578, %v5599
        %v5613 = vmul.f32 %v5579, %v5599
        %v5614 = vmul.f32 %v5580, %v5599
        %v5615 = vmul.f32 %v5581, %v5599
        %v5616 = vmul.f32 %v5582, %v5599
        %v5617 = vmul.f32 %v5583, %v5599
        %v5618 = vmul.f32 %v5584, %v5599
        %v5619 = vmul.f32 %v5585, %v5599
        %v5620 = vmul.f32 %v5586, %v5599
        %v5621 = vmul.f32 %v5587, %v5599
        %v5622 = vmul.f32 %v5588, %v5599
        %v5623 = vmul.f32 %v5589, %v5599
        %v5624 = vmul.f32 %v5590, %v5599
        %v5625 = vmul.f32 %v5591, %v5599
        %v5626 = vmul.f32 %v5592, %v5599
        %v5627 = vmul.f32 %v5593, %v5599
        %v5628 = vmul.f32 %v5594, %v5599
        %v5629 = vmul.f32 %v5595, %v5599
        %v5630 = vmul.f32 %v5596, %v5599
        %v5631 = vmul.f32 %v5597, %v5599
        %v5632 = vmax.f32 %v5600, 0.0
        %v5633 = vmax.f32 %v5601, 0.0
        %v5634 = vmax.f32 %v5602, 0.0
        %v5635 = vmax.f32 %v5603, 0.0
        %v5636 = vmax.f32 %v5604, 0.0
        %v5637 = vmax.f32 %v5605, 0.0
        %v5638 = vmax.f32 %v5606, 0.0
        %v5639 = vmax.f32 %v5607, 0.0
        %v5640 = vmax.f32 %v5608, 0.0
        %v5641 = vmax.f32 %v5609, 0.0
        %v5642 = vmax.f32 %v5610, 0.0
        %v5643 = vmax.f32 %v5611, 0.0
        %v5644 = vmax.f32 %v5612, 0.0
        %v5645 = vmax.f32 %v5613, 0.0
        %v5646 = vmax.f32 %v5614, 0.0
        %v5647 = vmax.f32 %v5615, 0.0
        %v5648 = vmax.f32 %v5616, 0.0
        %v5649 = vmax.f32 %v5617, 0.0
        %v5650 = vmax.f32 %v5618, 0.0
        %v5651 = vmax.f32 %v5619, 0.0
        %v5652 = vmax.f32 %v5620, 0.0
        %v5653 = vmax.f32 %v5621, 0.0
        %v5654 = vmax.f32 %v5622, 0.0
        %v5655 = vmax.f32 %v5623, 0.0
        %v5656 = vmax.f32 %v5624, 0.0
        %v5657 = vmax.f32 %v5625, 0.0
        %v5658 = vmax.f32 %v5626, 0.0
        %v5659 = vmax.f32 %v5627, 0.0
        %v5660 = vmax.f32 %v5628, 0.0
        %v5661 = vmax.f32 %v5629, 0.0
        %v5662 = vmax.f32 %v5630, 0.0
        %v5663 = vmax.f32 %v5631, 0.0
        %v5664 = vpack.c.bf16 %v5633, %v5632
        %v5665 = vpack.c.bf16 %v5635, %v5634
        %v5666 = vpack.c.bf16 %v5637, %v5636
        %v5667 = vpack.c.bf16 %v5639, %v5638
        %v5668 = vpack.c.bf16 %v5641, %v5640
        %v5669 = vpack.c.bf16 %v5643, %v5642
        %v5670 = vpack.c.bf16 %v5645, %v5644
        %v5671 = vpack.c.bf16 %v5647, %v5646
        %v5672 = vpack.c.bf16 %v5649, %v5648
        %v5673 = vpack.c.bf16 %v5651, %v5650
        %v5674 = vpack.c.bf16 %v5653, %v5652
        %v5675 = vpack.c.bf16 %v5655, %v5654
        %v5676 = vpack.c.bf16 %v5657, %v5656
        %v5677 = vpack.c.bf16 %v5659, %v5658
        %v5678 = vpack.c.bf16 %v5661, %v5660
        %v5679 = vpack.c.bf16 %v5663, %v5662
        %v5696 = vunpack.c.l.b16 %v5664
        %v5697 = vunpack.c.h.b16 %v5664
        %v5698 = vunpack.c.l.b16 %v5665
        %v5699 = vunpack.c.h.b16 %v5665
        %v5700 = vunpack.c.l.b16 %v5666
        %v5701 = vunpack.c.h.b16 %v5666
        %v5702 = vunpack.c.l.b16 %v5667
        %v5703 = vunpack.c.h.b16 %v5667
        %v5704 = vunpack.c.l.b16 %v5668
        %v5705 = vunpack.c.h.b16 %v5668
        %v5706 = vunpack.c.l.b16 %v5669
        %v5707 = vunpack.c.h.b16 %v5669
        %v5708 = vunpack.c.l.b16 %v5670
        %v5709 = vunpack.c.h.b16 %v5670
        %v5710 = vunpack.c.l.b16 %v5671
        %v5711 = vunpack.c.h.b16 %v5671
        %v5712 = vunpack.c.l.b16 %v5672
        %v5713 = vunpack.c.h.b16 %v5672
        %v5714 = vunpack.c.l.b16 %v5673
        %v5715 = vunpack.c.h.b16 %v5673
        %v5716 = vunpack.c.l.b16 %v5674
        %v5717 = vunpack.c.h.b16 %v5674
        %v5718 = vunpack.c.l.b16 %v5675
        %v5719 = vunpack.c.h.b16 %v5675
        %v5720 = vunpack.c.l.b16 %v5676
        %v5721 = vunpack.c.h.b16 %v5676
        %v5722 = vunpack.c.l.b16 %v5677
        %v5723 = vunpack.c.h.b16 %v5677
        %v5724 = vunpack.c.l.b16 %v5678
        %v5725 = vunpack.c.h.b16 %v5678
        %v5726 = vunpack.c.l.b16 %v5679
        %v5727 = vunpack.c.h.b16 %v5679
        %v5728 = vpack.c.b16 %v5696, %v5696
        %v5729 = vpack.c.b16 %v5697, %v5697
        %v5730 = vpack.c.b16 %v5698, %v5698
        %v5731 = vpack.c.b16 %v5699, %v5699
        %v5732 = vpack.c.b16 %v5700, %v5700
        %v5733 = vpack.c.b16 %v5701, %v5701
        %v5734 = vpack.c.b16 %v5702, %v5702
        %v5735 = vpack.c.b16 %v5703, %v5703
        %v5736 = vpack.c.b16 %v5704, %v5704
        %v5737 = vpack.c.b16 %v5705, %v5705
        %v5738 = vpack.c.b16 %v5706, %v5706
        %v5739 = vpack.c.b16 %v5707, %v5707
        %v5740 = vpack.c.b16 %v5708, %v5708
        %v5741 = vpack.c.b16 %v5709, %v5709
        %v5742 = vpack.c.b16 %v5710, %v5710
        %v5743 = vpack.c.b16 %v5711, %v5711
        %v5744 = vpack.c.b16 %v5712, %v5712
        %v5745 = vpack.c.b16 %v5713, %v5713
        %v5746 = vpack.c.b16 %v5714, %v5714
        %v5747 = vpack.c.b16 %v5715, %v5715
        %v5748 = vpack.c.b16 %v5716, %v5716
        %v5749 = vpack.c.b16 %v5717, %v5717
        %v5750 = vpack.c.b16 %v5718, %v5718
        %v5751 = vpack.c.b16 %v5719, %v5719
        %v5752 = vpack.c.b16 %v5720, %v5720
        %v5753 = vpack.c.b16 %v5721, %v5721
        %v5754 = vpack.c.b16 %v5722, %v5722
        %v5755 = vpack.c.b16 %v5723, %v5723
        %v5756 = vpack.c.b16 %v5724, %v5724
        %v5757 = vpack.c.b16 %v5725, %v5725
        %v5758 = vpack.c.b16 %v5726, %v5726
        %v5759 = vpack.c.b16 %v5727, %v5727
        %v5761 = vshrl.u32 %v5728, 16
        %v5763 = vrot.slane %v5761, 7
        %v5764 = vshll.u32 %v5728, 16
        %v5766 = vor.u32 %v5763, %v5764
        %v5767 = vrot.slane %v5763, 4
        %v5769 = vshrl.u32 %v5729, 16
        %v5771 = vrot.slane %v5769, 7
        %v5772 = vshll.u32 %v5729, 16
        %v5774 = vor.u32 %v5771, %v5772
        %v5775 = vsel %vm349, %v5767, %v5774
        %v5776 = vrot.slane %v5771, 4
        %v5778 = vshrl.u32 %v5730, 16
        %v5780 = vrot.slane %v5778, 7
        %v5781 = vshll.u32 %v5730, 16
        %v5783 = vor.u32 %v5780, %v5781
        %v5784 = vrot.slane %v5780, 4
        %v5786 = vshrl.u32 %v5731, 16
        %v5788 = vrot.slane %v5786, 7
        %v5789 = vshll.u32 %v5731, 16
        %v5791 = vor.u32 %v5788, %v5789
        %v5792 = vsel %vm349, %v5784, %v5791
        %v5793 = vrot.slane %v5788, 4
        %v5795 = vshrl.u32 %v5732, 16
        %v5797 = vrot.slane %v5795, 7
        %v5798 = vshll.u32 %v5732, 16
        %v5800 = vor.u32 %v5797, %v5798
        %v5801 = vrot.slane %v5797, 4
        %v5803 = vshrl.u32 %v5733, 16
        %v5805 = vrot.slane %v5803, 7
        %v5806 = vshll.u32 %v5733, 16
        %v5808 = vor.u32 %v5805, %v5806
        %v5809 = vsel %vm349, %v5801, %v5808
        %v5810 = vrot.slane %v5805, 4
        %v5812 = vshrl.u32 %v5734, 16
        %v5814 = vrot.slane %v5812, 7
        %v5815 = vshll.u32 %v5734, 16
        %v5817 = vor.u32 %v5814, %v5815
        %v5818 = vrot.slane %v5814, 4
        %v5820 = vshrl.u32 %v5735, 16
        %v5822 = vrot.slane %v5820, 7
        %v5823 = vshll.u32 %v5735, 16
        %v5825 = vor.u32 %v5822, %v5823
        %v5826 = vsel %vm349, %v5818, %v5825
        %v5827 = vrot.slane %v5822, 4
        %v5829 = vshrl.u32 %v5736, 16
        %v5831 = vrot.slane %v5829, 7
        %v5832 = vshll.u32 %v5736, 16
        %v5834 = vor.u32 %v5831, %v5832
        %v5835 = vrot.slane %v5831, 4
        %v5837 = vshrl.u32 %v5737, 16
        %v5839 = vrot.slane %v5837, 7
        %v5840 = vshll.u32 %v5737, 16
        %v5842 = vor.u32 %v5839, %v5840
        %v5843 = vsel %vm349, %v5835, %v5842
        %v5844 = vrot.slane %v5839, 4
        %v5846 = vshrl.u32 %v5738, 16
        %v5848 = vrot.slane %v5846, 7
        %v5849 = vshll.u32 %v5738, 16
        %v5851 = vor.u32 %v5848, %v5849
        %v5852 = vrot.slane %v5848, 4
        %v5854 = vshrl.u32 %v5739, 16
        %v5856 = vrot.slane %v5854, 7
        %v5857 = vshll.u32 %v5739, 16
        %v5859 = vor.u32 %v5856, %v5857
        %v5860 = vsel %vm349, %v5852, %v5859
        %v5861 = vrot.slane %v5856, 4
        %v5863 = vshrl.u32 %v5740, 16
        %v5865 = vrot.slane %v5863, 7
        %v5866 = vshll.u32 %v5740, 16
        %v5868 = vor.u32 %v5865, %v5866
        %v5869 = vrot.slane %v5865, 4
        %v5871 = vshrl.u32 %v5741, 16
        %v5873 = vrot.slane %v5871, 7
        %v5874 = vshll.u32 %v5741, 16
        %v5876 = vor.u32 %v5873, %v5874
        %v5877 = vsel %vm349, %v5869, %v5876
        %v5878 = vrot.slane %v5873, 4
        %v5880 = vshrl.u32 %v5742, 16
        %v5882 = vrot.slane %v5880, 7
        %v5883 = vshll.u32 %v5742, 16
        %v5885 = vor.u32 %v5882, %v5883
        %v5886 = vrot.slane %v5882, 4
        %v5888 = vshrl.u32 %v5743, 16
        %v5890 = vrot.slane %v5888, 7
        %v5891 = vshll.u32 %v5743, 16
        %v5893 = vor.u32 %v5890, %v5891
        %v5894 = vsel %vm349, %v5886, %v5893
        %v5895 = vrot.slane %v5890, 4
        %v5897 = vshrl.u32 %v5744, 16
        %v5899 = vrot.slane %v5897, 7
        %v5900 = vshll.u32 %v5744, 16
        %v5902 = vor.u32 %v5899, %v5900
        %v5903 = vrot.slane %v5899, 4
        %v5905 = vshrl.u32 %v5745, 16
        %v5907 = vrot.slane %v5905, 7
        %v5908 = vshll.u32 %v5745, 16
        %v5910 = vor.u32 %v5907, %v5908
        %v5911 = vsel %vm349, %v5903, %v5910
        %v5912 = vrot.slane %v5907, 4
        %v5914 = vshrl.u32 %v5746, 16
        %v5916 = vrot.slane %v5914, 7
        %v5917 = vshll.u32 %v5746, 16
        %v5919 = vor.u32 %v5916, %v5917
        %v5920 = vrot.slane %v5916, 4
        %v5922 = vshrl.u32 %v5747, 16
        %v5924 = vrot.slane %v5922, 7
        %v5925 = vshll.u32 %v5747, 16
        %v5927 = vor.u32 %v5924, %v5925
        %v5928 = vsel %vm349, %v5920, %v5927
        %v5929 = vrot.slane %v5924, 4
        %v5931 = vshrl.u32 %v5748, 16
        %v5933 = vrot.slane %v5931, 7
        %v5934 = vshll.u32 %v5748, 16
        %v5936 = vor.u32 %v5933, %v5934
        %v5937 = vrot.slane %v5933, 4
        %v5939 = vshrl.u32 %v5749, 16
        %v5941 = vrot.slane %v5939, 7
        %v5942 = vshll.u32 %v5749, 16
        %v5944 = vor.u32 %v5941, %v5942
        %v5945 = vsel %vm349, %v5937, %v5944
        %v5946 = vrot.slane %v5941, 4
        %v5948 = vshrl.u32 %v5750, 16
        %v5950 = vrot.slane %v5948, 7
        %v5951 = vshll.u32 %v5750, 16
        %v5953 = vor.u32 %v5950, %v5951
        %v5954 = vrot.slane %v5950, 4
        %v5956 = vshrl.u32 %v5751, 16
        %v5958 = vrot.slane %v5956, 7
        %v5959 = vshll.u32 %v5751, 16
        %v5961 = vor.u32 %v5958, %v5959
        %v5962 = vsel %vm349, %v5954, %v5961
        %v5963 = vrot.slane %v5958, 4
        %v5965 = vshrl.u32 %v5752, 16
        %v5967 = vrot.slane %v5965, 7
        %v5968 = vshll.u32 %v5752, 16
        %v5970 = vor.u32 %v5967, %v5968
        %v5971 = vrot.slane %v5967, 4
        %v5973 = vshrl.u32 %v5753, 16
        %v5975 = vrot.slane %v5973, 7
        %v5976 = vshll.u32 %v5753, 16
        %v5978 = vor.u32 %v5975, %v5976
        %v5979 = vsel %vm349, %v5971, %v5978
        %v5980 = vrot.slane %v5975, 4
        %v5982 = vshrl.u32 %v5754, 16
        %v5984 = vrot.slane %v5982, 7
        %v5985 = vshll.u32 %v5754, 16
        %v5987 = vor.u32 %v5984, %v5985
        %v5988 = vrot.slane %v5984, 4
        %v5990 = vshrl.u32 %v5755, 16
        %v5992 = vrot.slane %v5990, 7
        %v5993 = vshll.u32 %v5755, 16
        %v5995 = vor.u32 %v5992, %v5993
        %v5996 = vsel %vm349, %v5988, %v5995
        %v5997 = vrot.slane %v5992, 4
        %v5999 = vshrl.u32 %v5756, 16
        %v6001 = vrot.slane %v5999, 7
        %v6002 = vshll.u32 %v5756, 16
        %v6004 = vor.u32 %v6001, %v6002
        %v6005 = vrot.slane %v6001, 4
        %v6007 = vshrl.u32 %v5757, 16
        %v6009 = vrot.slane %v6007, 7
        %v6010 = vshll.u32 %v5757, 16
        %v6012 = vor.u32 %v6009, %v6010
        %v6013 = vsel %vm349, %v6005, %v6012
        %v6014 = vrot.slane %v6009, 4
        %v6016 = vshrl.u32 %v5758, 16
        %v6018 = vrot.slane %v6016, 7
        %v6019 = vshll.u32 %v5758, 16
        %v6021 = vor.u32 %v6018, %v6019
        %v6022 = vrot.slane %v6018, 4
        %v6024 = vshrl.u32 %v5759, 16
        %v6026 = vrot.slane %v6024, 7
        %v6027 = vshll.u32 %v5759, 16
        %v6029 = vor.u32 %v6026, %v6027
        %v6030 = vsel %vm349, %v6022, %v6029
        %v6031 = vrot.slane %v6026, 4
        %v6080 = vld [vmem:[%s670] sm:$0xf]
        %v6081 = vsel %vm673, %v5766, %v6080
        %6082 = vst [vmem:[%s670] sm:$0xf] %v6081
        %6083 = vst [vmem:[%s670 + $0x4] sm:$0xf] %v5775
        %v6084 = vld [vmem:[%s670 + $0x8] sm:$0x1]
        %v6085 = vsel %vm679, %v5776, %v6084
        %6086 = vst [vmem:[%s670 + $0x8] sm:$0x1] %v6085
        %v6087 = vld [vmem:[%s670 + $0xc] sm:$0xf]
        %v6088 = vsel %vm673, %v5783, %v6087
        %6089 = vst [vmem:[%s670 + $0xc] sm:$0xf] %v6088
        %6090 = vst [vmem:[%s670 + $0x10] sm:$0xf] %v5792
        %v6091 = vld [vmem:[%s670 + $0x14] sm:$0x1]
        %v6092 = vsel %vm679, %v5793, %v6091
        %6093 = vst [vmem:[%s670 + $0x14] sm:$0x1] %v6092
        %v6094 = vld [vmem:[%s670 + $0x18] sm:$0xf]
        %v6095 = vsel %vm673, %v5800, %v6094
        %6096 = vst [vmem:[%s670 + $0x18] sm:$0xf] %v6095
        %6097 = vst [vmem:[%s670 + $0x1c] sm:$0xf] %v5809
        %v6098 = vld [vmem:[%s670 + $0x20] sm:$0x1]
        %v6099 = vsel %vm679, %v5810, %v6098
        %6100 = vst [vmem:[%s670 + $0x20] sm:$0x1] %v6099
        %v6101 = vld [vmem:[%s670 + $0x24] sm:$0xf]
        %v6102 = vsel %vm673, %v5817, %v6101
        %6103 = vst [vmem:[%s670 + $0x24] sm:$0xf] %v6102
        %6104 = vst [vmem:[%s670 + $0x28] sm:$0xf] %v5826
        %v6105 = vld [vmem:[%s670 + $0x2c] sm:$0x1]
        %v6106 = vsel %vm679, %v5827, %v6105
        %6107 = vst [vmem:[%s670 + $0x2c] sm:$0x1] %v6106
        %v6108 = vld [vmem:[%s670 + $0x30] sm:$0xf]
        %v6109 = vsel %vm673, %v5834, %v6108
        %6110 = vst [vmem:[%s670 + $0x30] sm:$0xf] %v6109
        %6111 = vst [vmem:[%s670 + $0x34] sm:$0xf] %v5843
        %v6112 = vld [vmem:[%s670 + $0x38] sm:$0x1]
        %v6113 = vsel %vm679, %v5844, %v6112
        %6114 = vst [vmem:[%s670 + $0x38] sm:$0x1] %v6113
        %v6115 = vld [vmem:[%s670 + $0x3c] sm:$0xf]
        %v6116 = vsel %vm673, %v5851, %v6115
        %6117 = vst [vmem:[%s670 + $0x3c] sm:$0xf] %v6116
        %6118 = vst [vmem:[%s670 + $0x40] sm:$0xf] %v5860
        %v6119 = vld [vmem:[%s670 + $0x44] sm:$0x1]
        %v6120 = vsel %vm679, %v5861, %v6119
        %6121 = vst [vmem:[%s670 + $0x44] sm:$0x1] %v6120
        %v6122 = vld [vmem:[%s670 + $0x48] sm:$0xf]
        %v6123 = vsel %vm673, %v5868, %v6122
        %6124 = vst [vmem:[%s670 + $0x48] sm:$0xf] %v6123
        %6125 = vst [vmem:[%s670 + $0x4c] sm:$0xf] %v5877
        %v6126 = vld [vmem:[%s670 + $0x50] sm:$0x1]
        %v6127 = vsel %vm679, %v5878, %v6126
        %6128 = vst [vmem:[%s670 + $0x50] sm:$0x1] %v6127
        %v6129 = vld [vmem:[%s670 + $0x54] sm:$0xf]
        %v6130 = vsel %vm673, %v5885, %v6129
        %6131 = vst [vmem:[%s670 + $0x54] sm:$0xf] %v6130
        %6132 = vst [vmem:[%s670 + $0x58] sm:$0xf] %v5894
        %v6133 = vld [vmem:[%s670 + $0x5c] sm:$0x1]
        %v6134 = vsel %vm679, %v5895, %v6133
        %6135 = vst [vmem:[%s670 + $0x5c] sm:$0x1] %v6134
        %v6136 = vld [vmem:[%s670 + $0x60] sm:$0xf]
        %v6137 = vsel %vm673, %v5902, %v6136
        %6138 = vst [vmem:[%s670 + $0x60] sm:$0xf] %v6137
        %6139 = vst [vmem:[%s670 + $0x64] sm:$0xf] %v5911
        %v6140 = vld [vmem:[%s670 + $0x68] sm:$0x1]
        %v6141 = vsel %vm679, %v5912, %v6140
        %6142 = vst [vmem:[%s670 + $0x68] sm:$0x1] %v6141
        %v6143 = vld [vmem:[%s670 + $0x6c] sm:$0xf]
        %v6144 = vsel %vm673, %v5919, %v6143
        %6145 = vst [vmem:[%s670 + $0x6c] sm:$0xf] %v6144
        %6146 = vst [vmem:[%s670 + $0x70] sm:$0xf] %v5928
        %v6147 = vld [vmem:[%s670 + $0x74] sm:$0x1]
        %v6148 = vsel %vm679, %v5929, %v6147
        %6149 = vst [vmem:[%s670 + $0x74] sm:$0x1] %v6148
        %v6150 = vld [vmem:[%s670 + $0x78] sm:$0xf]
        %v6151 = vsel %vm673, %v5936, %v6150
        %6152 = vst [vmem:[%s670 + $0x78] sm:$0xf] %v6151
        %6153 = vst [vmem:[%s670 + $0x7c] sm:$0xf] %v5945
        %v6154 = vld [vmem:[%s670 + $0x80] sm:$0x1]
        %v6155 = vsel %vm679, %v5946, %v6154
        %6156 = vst [vmem:[%s670 + $0x80] sm:$0x1] %v6155
        %v6157 = vld [vmem:[%s670 + $0x84] sm:$0xf]
        %v6158 = vsel %vm673, %v5953, %v6157
        %6159 = vst [vmem:[%s670 + $0x84] sm:$0xf] %v6158
        %6160 = vst [vmem:[%s670 + $0x88] sm:$0xf] %v5962
        %v6161 = vld [vmem:[%s670 + $0x8c] sm:$0x1]
        %v6162 = vsel %vm679, %v5963, %v6161
        %6163 = vst [vmem:[%s670 + $0x8c] sm:$0x1] %v6162
        %v6164 = vld [vmem:[%s670 + $0x90] sm:$0xf]
        %v6165 = vsel %vm673, %v5970, %v6164
        %6166 = vst [vmem:[%s670 + $0x90] sm:$0xf] %v6165
        %6167 = vst [vmem:[%s670 + $0x94] sm:$0xf] %v5979
        %v6168 = vld [vmem:[%s670 + $0x98] sm:$0x1]
        %v6169 = vsel %vm679, %v5980, %v6168
        %6170 = vst [vmem:[%s670 + $0x98] sm:$0x1] %v6169
        %v6171 = vld [vmem:[%s670 + $0x9c] sm:$0xf]
        %v6172 = vsel %vm673, %v5987, %v6171
        %6173 = vst [vmem:[%s670 + $0x9c] sm:$0xf] %v6172
        %6174 = vst [vmem:[%s670 + $0xa0] sm:$0xf] %v5996
        %v6175 = vld [vmem:[%s670 + $0xa4] sm:$0x1]
        %v6176 = vsel %vm679, %v5997, %v6175
        %6177 = vst [vmem:[%s670 + $0xa4] sm:$0x1] %v6176
        %v6178 = vld [vmem:[%s670 + $0xa8] sm:$0xf]
        %v6179 = vsel %vm673, %v6004, %v6178
        %6180 = vst [vmem:[%s670 + $0xa8] sm:$0xf] %v6179
        %6181 = vst [vmem:[%s670 + $0xac] sm:$0xf] %v6013
        %v6182 = vld [vmem:[%s670 + $0xb0] sm:$0x1]
        %v6183 = vsel %vm679, %v6014, %v6182
        %6184 = vst [vmem:[%s670 + $0xb0] sm:$0x1] %v6183
        %v6185 = vld [vmem:[%s670 + $0xb4] sm:$0xf]
        %v6186 = vsel %vm673, %v6021, %v6185
        %6187 = vst [vmem:[%s670 + $0xb4] sm:$0xf] %v6186
        %6188 = vst [vmem:[%s670 + $0xb8] sm:$0xf] %v6030
        %v6189 = vld [vmem:[%s670 + $0xbc] sm:$0x1]
        %v6190 = vsel %vm679, %v6031, %v6189
        %6191 = vst [vmem:[%s670 + $0xbc] sm:$0x1] %v6190
        %v6192 = vld [vmem:[#allocation2] sm:$0xf]
        %v6193 = vsel %vm673, %v5783, %v6192
        %6194 = vst [vmem:[#allocation2] sm:$0xf] %v6193
        %6195 = vst [vmem:[#allocation2 + $0x4] sm:$0xf] %v5792
        %v6196 = vld [vmem:[#allocation2 + $0x8] sm:$0x1]
        %v6197 = vsel %vm679, %v5793, %v6196
        %6198 = vst [vmem:[#allocation2 + $0x8] sm:$0x1] %v6197
        %v6199 = vld [vmem:[%s795] sm:$0xf]
        %v6200 = vsel %vm673, %v6004, %v6199
        %6201 = vst [vmem:[%s795] sm:$0xf] %v6200
        %6202 = vst [vmem:[%s795 + $0x4] sm:$0xf] %v6013
        %v6203 = vld [vmem:[%s795 + $0x8] sm:$0x1]
        %v6204 = vsel %vm679, %v6014, %v6203
        %6205 = vst [vmem:[%s795 + $0x8] sm:$0x1] %v6204
        %v6206 = vld [vmem:[#allocation2] sm:$0x2]
        %v6207 = vld [vmem:[#allocation2 + $0xc] sm:$0x2]
        %v6208 = vld [vmem:[#allocation2 + $0x18] sm:$0x2]
        %v6209 = vld [vmem:[#allocation2 + $0x24] sm:$0x2]
        %v6210 = vld [vmem:[#allocation2 + $0x30] sm:$0x2]
        %v6211 = vld [vmem:[#allocation2 + $0x3c] sm:$0x2]
        %v6212 = vld [vmem:[#allocation2 + $0x48] sm:$0x2]
        %v6213 = vld [vmem:[#allocation2 + $0x54] sm:$0x2]
        %v6214 = vld [vmem:[#allocation2 + $0x60] sm:$0x2]
        %v6215 = vld [vmem:[#allocation2 + $0x6c] sm:$0x2]
        %v6216 = vld [vmem:[#allocation2 + $0x78] sm:$0x2]
        %v6217 = vld [vmem:[#allocation2 + $0x84] sm:$0x2]
        %v6218 = vld [vmem:[#allocation2 + $0x90] sm:$0x2]
        %v6219 = vld [vmem:[#allocation2 + $0x9c] sm:$0x2]
        %v6220 = vld [vmem:[#allocation2 + $0xa8] sm:$0x2]
        %v6221 = vld [vmem:[#allocation2 + $0xb4] sm:$0x2]
        %v6222 = vld [vmem:[#allocation2 + $0xc0] sm:$0x2]
        %v6223 = vld [vmem:[#allocation2 + $0xcc] sm:$0x2]
        %v6242 = vrot.slane %v6206, 5
        %v6243 = vrot.slane %v6242, 4
        %v6244 = vrot.slane %v6207, 5
        %v6245 = vrot.slane %v6244, 4
        %v6246 = vrot.slane %v6208, 5
        %v6247 = vrot.slane %v6246, 4
        %v6248 = vrot.slane %v6209, 5
        %v6249 = vrot.slane %v6248, 4
        %v6250 = vrot.slane %v6210, 5
        %v6251 = vrot.slane %v6250, 4
        %v6252 = vrot.slane %v6211, 5
        %v6253 = vrot.slane %v6252, 4
        %v6254 = vrot.slane %v6212, 5
        %v6255 = vrot.slane %v6254, 4
        %v6256 = vrot.slane %v6213, 5
        %v6257 = vrot.slane %v6256, 4
        %v6258 = vrot.slane %v6214, 5
        %v6259 = vrot.slane %v6258, 4
        %v6260 = vrot.slane %v6215, 5
        %v6261 = vrot.slane %v6260, 4
        %v6262 = vrot.slane %v6216, 5
        %v6263 = vrot.slane %v6262, 4
        %v6264 = vrot.slane %v6217, 5
        %v6265 = vrot.slane %v6264, 4
        %v6266 = vrot.slane %v6218, 5
        %v6267 = vrot.slane %v6266, 4
        %v6268 = vrot.slane %v6219, 5
        %v6269 = vrot.slane %v6268, 4
        %v6270 = vrot.slane %v6220, 5
        %v6271 = vrot.slane %v6270, 4
        %v6272 = vrot.slane %v6221, 5
        %v6273 = vrot.slane %v6272, 4
        %v6274 = vrot.slane %v6222, 5
        %v6275 = vrot.slane %v6274, 4
        %v6276 = vrot.slane %v6223, 5
        %v6277 = vrot.slane %v6276, 4
        %v6296 = vld [vmem:[#allocation2] sm:$0x1]
        %v6297 = vsel %vm679, %v6243, %v6296
        %6298 = vst [vmem:[#allocation2] sm:$0x1] %v6297
        %v6299 = vld [vmem:[#allocation2 + $0xc] sm:$0x1]
        %v6300 = vsel %vm679, %v6245, %v6299
        %6301 = vst [vmem:[#allocation2 + $0xc] sm:$0x1] %v6300
        %v6302 = vld [vmem:[#allocation2 + $0x18] sm:$0x1]
        %v6303 = vsel %vm679, %v6247, %v6302
        %6304 = vst [vmem:[#allocation2 + $0x18] sm:$0x1] %v6303
        %v6305 = vld [vmem:[#allocation2 + $0x24] sm:$0x1]
        %v6306 = vsel %vm679, %v6249, %v6305
        %6307 = vst [vmem:[#allocation2 + $0x24] sm:$0x1] %v6306
        %v6308 = vld [vmem:[#allocation2 + $0x30] sm:$0x1]
        %v6309 = vsel %vm679, %v6251, %v6308
        %6310 = vst [vmem:[#allocation2 + $0x30] sm:$0x1] %v6309
        %v6311 = vld [vmem:[#allocation2 + $0x3c] sm:$0x1]
        %v6312 = vsel %vm679, %v6253, %v6311
        %6313 = vst [vmem:[#allocation2 + $0x3c] sm:$0x1] %v6312
        %v6314 = vld [vmem:[#allocation2 + $0x48] sm:$0x1]
        %v6315 = vsel %vm679, %v6255, %v6314
        %6316 = vst [vmem:[#allocation2 + $0x48] sm:$0x1] %v6315
        %v6317 = vld [vmem:[#allocation2 + $0x54] sm:$0x1]
        %v6318 = vsel %vm679, %v6257, %v6317
        %6319 = vst [vmem:[#allocation2 + $0x54] sm:$0x1] %v6318
        %v6320 = vld [vmem:[#allocation2 + $0x60] sm:$0x1]
        %v6321 = vsel %vm679, %v6259, %v6320
        %6322 = vst [vmem:[#allocation2 + $0x60] sm:$0x1] %v6321
        %v6323 = vld [vmem:[#allocation2 + $0x6c] sm:$0x1]
        %v6324 = vsel %vm679, %v6261, %v6323
        %6325 = vst [vmem:[#allocation2 + $0x6c] sm:$0x1] %v6324
        %v6326 = vld [vmem:[#allocation2 + $0x78] sm:$0x1]
        %v6327 = vsel %vm679, %v6263, %v6326
        %6328 = vst [vmem:[#allocation2 + $0x78] sm:$0x1] %v6327
        %v6329 = vld [vmem:[#allocation2 + $0x84] sm:$0x1]
        %v6330 = vsel %vm679, %v6265, %v6329
        %6331 = vst [vmem:[#allocation2 + $0x84] sm:$0x1] %v6330
        %v6332 = vld [vmem:[#allocation2 + $0x90] sm:$0x1]
        %v6333 = vsel %vm679, %v6267, %v6332
        %6334 = vst [vmem:[#allocation2 + $0x90] sm:$0x1] %v6333
        %v6335 = vld [vmem:[#allocation2 + $0x9c] sm:$0x1]
        %v6336 = vsel %vm679, %v6269, %v6335
        %6337 = vst [vmem:[#allocation2 + $0x9c] sm:$0x1] %v6336
        %v6338 = vld [vmem:[#allocation2 + $0xa8] sm:$0x1]
        %v6339 = vsel %vm679, %v6271, %v6338
        %6340 = vst [vmem:[#allocation2 + $0xa8] sm:$0x1] %v6339
        %v6341 = vld [vmem:[#allocation2 + $0xb4] sm:$0x1]
        %v6342 = vsel %vm679, %v6273, %v6341
        %6343 = vst [vmem:[#allocation2 + $0xb4] sm:$0x1] %v6342
        %v6344 = vld [vmem:[#allocation2 + $0xc0] sm:$0x1]
        %v6345 = vsel %vm679, %v6275, %v6344
        %6346 = vst [vmem:[#allocation2 + $0xc0] sm:$0x1] %v6345
        %v6347 = vld [vmem:[#allocation2 + $0xcc] sm:$0x1]
        %v6348 = vsel %vm679, %v6277, %v6347
        %6349 = vst [vmem:[#allocation2 + $0xcc] sm:$0x1] %v6348
        %v6350 = vld [vmem:[#allocation2 + $0x4] sm:$0x8]
        %v6351 = vld [vmem:[#allocation2 + $0x10] sm:$0x8]
        %v6352 = vld [vmem:[#allocation2 + $0x1c] sm:$0x8]
        %v6353 = vld [vmem:[#allocation2 + $0x28] sm:$0x8]
        %v6354 = vld [vmem:[#allocation2 + $0x34] sm:$0x8]
        %v6355 = vld [vmem:[#allocation2 + $0x40] sm:$0x8]
        %v6356 = vld [vmem:[#allocation2 + $0x4c] sm:$0x8]
        %v6357 = vld [vmem:[#allocation2 + $0x58] sm:$0x8]
        %v6358 = vld [vmem:[#allocation2 + $0x64] sm:$0x8]
        %v6359 = vld [vmem:[#allocation2 + $0x70] sm:$0x8]
        %v6360 = vld [vmem:[#allocation2 + $0x7c] sm:$0x8]
        %v6361 = vld [vmem:[#allocation2 + $0x88] sm:$0x8]
        %v6362 = vld [vmem:[#allocation2 + $0x94] sm:$0x8]
        %v6363 = vld [vmem:[#allocation2 + $0xa0] sm:$0x8]
        %v6364 = vld [vmem:[#allocation2 + $0xac] sm:$0x8]
        %v6365 = vld [vmem:[#allocation2 + $0xb8] sm:$0x8]
        %v6366 = vld [vmem:[#allocation2 + $0xc4] sm:$0x8]
        %v6367 = vld [vmem:[#allocation2 + $0xd0] sm:$0x8]
        %v6386 = vrot.slane %v6350, 7
        %v6387 = vrot.slane %v6386, 4
        %v6388 = vrot.slane %v6351, 7
        %v6389 = vrot.slane %v6388, 4
        %v6390 = vrot.slane %v6352, 7
        %v6391 = vrot.slane %v6390, 4
        %v6392 = vrot.slane %v6353, 7
        %v6393 = vrot.slane %v6392, 4
        %v6394 = vrot.slane %v6354, 7
        %v6395 = vrot.slane %v6394, 4
        %v6396 = vrot.slane %v6355, 7
        %v6397 = vrot.slane %v6396, 4
        %v6398 = vrot.slane %v6356, 7
        %v6399 = vrot.slane %v6398, 4
        %v6400 = vrot.slane %v6357, 7
        %v6401 = vrot.slane %v6400, 4
        %v6402 = vrot.slane %v6358, 7
        %v6403 = vrot.slane %v6402, 4
        %v6404 = vrot.slane %v6359, 7
        %v6405 = vrot.slane %v6404, 4
        %v6406 = vrot.slane %v6360, 7
        %v6407 = vrot.slane %v6406, 4
        %v6408 = vrot.slane %v6361, 7
        %v6409 = vrot.slane %v6408, 4
        %v6410 = vrot.slane %v6362, 7
        %v6411 = vrot.slane %v6410, 4
        %v6412 = vrot.slane %v6363, 7
        %v6413 = vrot.slane %v6412, 4
        %v6414 = vrot.slane %v6364, 7
        %v6415 = vrot.slane %v6414, 4
        %v6416 = vrot.slane %v6365, 7
        %v6417 = vrot.slane %v6416, 4
        %v6418 = vrot.slane %v6366, 7
        %v6419 = vrot.slane %v6418, 4
        %v6420 = vrot.slane %v6367, 7
        %v6421 = vrot.slane %v6420, 4
        %v6440 = vld [vmem:[#allocation2 + $0x8] sm:$0x1]
        %v6441 = vsel %vm1037, %v6387, %v6440
        %6442 = vst [vmem:[#allocation2 + $0x8] sm:$0x1] %v6441
        %v6443 = vld [vmem:[#allocation2 + $0x14] sm:$0x1]
        %v6444 = vsel %vm1037, %v6389, %v6443
        %6445 = vst [vmem:[#allocation2 + $0x14] sm:$0x1] %v6444
        %v6446 = vld [vmem:[#allocation2 + $0x20] sm:$0x1]
        %v6447 = vsel %vm1037, %v6391, %v6446
        %6448 = vst [vmem:[#allocation2 + $0x20] sm:$0x1] %v6447
        %v6449 = vld [vmem:[#allocation2 + $0x2c] sm:$0x1]
        %v6450 = vsel %vm1037, %v6393, %v6449
        %6451 = vst [vmem:[#allocation2 + $0x2c] sm:$0x1] %v6450
        %v6452 = vld [vmem:[#allocation2 + $0x38] sm:$0x1]
        %v6453 = vsel %vm1037, %v6395, %v6452
        %6454 = vst [vmem:[#allocation2 + $0x38] sm:$0x1] %v6453
        %v6455 = vld [vmem:[#allocation2 + $0x44] sm:$0x1]
        %v6456 = vsel %vm1037, %v6397, %v6455
        %6457 = vst [vmem:[#allocation2 + $0x44] sm:$0x1] %v6456
        %v6458 = vld [vmem:[#allocation2 + $0x50] sm:$0x1]
        %v6459 = vsel %vm1037, %v6399, %v6458
        %6460 = vst [vmem:[#allocation2 + $0x50] sm:$0x1] %v6459
        %v6461 = vld [vmem:[#allocation2 + $0x5c] sm:$0x1]
        %v6462 = vsel %vm1037, %v6401, %v6461
        %6463 = vst [vmem:[#allocation2 + $0x5c] sm:$0x1] %v6462
        %v6464 = vld [vmem:[#allocation2 + $0x68] sm:$0x1]
        %v6465 = vsel %vm1037, %v6403, %v6464
        %6466 = vst [vmem:[#allocation2 + $0x68] sm:$0x1] %v6465
        %v6467 = vld [vmem:[#allocation2 + $0x74] sm:$0x1]
        %v6468 = vsel %vm1037, %v6405, %v6467
        %6469 = vst [vmem:[#allocation2 + $0x74] sm:$0x1] %v6468
        %v6470 = vld [vmem:[#allocation2 + $0x80] sm:$0x1]
        %v6471 = vsel %vm1037, %v6407, %v6470
        %6472 = vst [vmem:[#allocation2 + $0x80] sm:$0x1] %v6471
        %v6473 = vld [vmem:[#allocation2 + $0x8c] sm:$0x1]
        %v6474 = vsel %vm1037, %v6409, %v6473
        %6475 = vst [vmem:[#allocation2 + $0x8c] sm:$0x1] %v6474
        %v6476 = vld [vmem:[#allocation2 + $0x98] sm:$0x1]
        %v6477 = vsel %vm1037, %v6411, %v6476
        %6478 = vst [vmem:[#allocation2 + $0x98] sm:$0x1] %v6477
        %v6479 = vld [vmem:[#allocation2 + $0xa4] sm:$0x1]
        %v6480 = vsel %vm1037, %v6413, %v6479
        %6481 = vst [vmem:[#allocation2 + $0xa4] sm:$0x1] %v6480
        %v6482 = vld [vmem:[#allocation2 + $0xb0] sm:$0x1]
        %v6483 = vsel %vm1037, %v6415, %v6482
        %6484 = vst [vmem:[#allocation2 + $0xb0] sm:$0x1] %v6483
        %v6485 = vld [vmem:[#allocation2 + $0xbc] sm:$0x1]
        %v6486 = vsel %vm1037, %v6417, %v6485
        %6487 = vst [vmem:[#allocation2 + $0xbc] sm:$0x1] %v6486
        %v6488 = vld [vmem:[#allocation2 + $0xc8] sm:$0x1]
        %v6489 = vsel %vm1037, %v6419, %v6488
        %6490 = vst [vmem:[#allocation2 + $0xc8] sm:$0x1] %v6489
        %v6491 = vld [vmem:[#allocation2 + $0xd4] sm:$0x1]
        %v6492 = vsel %vm1037, %v6421, %v6491
        %6493 = vst [vmem:[#allocation2 + $0xd4] sm:$0x1] %v6492
        %v6494 = vld [vmem:[#allocation2] sm:$0xf]
        %v6495 = vld [vmem:[#allocation2 + $0x4] sm:$0xf]
        %v6496 = vld [vmem:[#allocation2 + $0xc] sm:$0xf]
        %v6497 = vld [vmem:[#allocation2 + $0x10] sm:$0xf]
        %v6498 = vld [vmem:[#allocation2 + $0x18] sm:$0xf]
        %v6499 = vld [vmem:[#allocation2 + $0x1c] sm:$0xf]
        %v6500 = vld [vmem:[#allocation2 + $0x24] sm:$0xf]
        %v6501 = vld [vmem:[#allocation2 + $0x28] sm:$0xf]
        %v6502 = vld [vmem:[#allocation2 + $0x30] sm:$0xf]
        %v6503 = vld [vmem:[#allocation2 + $0x34] sm:$0xf]
        %v6504 = vld [vmem:[#allocation2 + $0x3c] sm:$0xf]
        %v6505 = vld [vmem:[#allocation2 + $0x40] sm:$0xf]
        %v6506 = vld [vmem:[#allocation2 + $0x48] sm:$0xf]
        %v6507 = vld [vmem:[#allocation2 + $0x4c] sm:$0xf]
        %v6508 = vld [vmem:[#allocation2 + $0x54] sm:$0xf]
        %v6509 = vld [vmem:[#allocation2 + $0x58] sm:$0xf]
        %v6510 = vld [vmem:[#allocation2 + $0x60] sm:$0xf]
        %v6511 = vld [vmem:[#allocation2 + $0x64] sm:$0xf]
        %v6512 = vld [vmem:[#allocation2 + $0x6c] sm:$0xf]
        %v6513 = vld [vmem:[#allocation2 + $0x70] sm:$0xf]
        %v6514 = vld [vmem:[#allocation2 + $0x78] sm:$0xf]
        %v6515 = vld [vmem:[#allocation2 + $0x7c] sm:$0xf]
        %v6516 = vld [vmem:[#allocation2 + $0x84] sm:$0xf]
        %v6517 = vld [vmem:[#allocation2 + $0x88] sm:$0xf]
        %v6518 = vld [vmem:[#allocation2 + $0x90] sm:$0xf]
        %v6519 = vld [vmem:[#allocation2 + $0x94] sm:$0xf]
        %v6520 = vld [vmem:[#allocation2 + $0x9c] sm:$0xf]
        %v6521 = vld [vmem:[#allocation2 + $0xa0] sm:$0xf]
        %v6522 = vld [vmem:[#allocation2 + $0xa8] sm:$0xf]
        %v6523 = vld [vmem:[#allocation2 + $0xac] sm:$0xf]
        %v6524 = vld [vmem:[#allocation2 + $0xb4] sm:$0xf]
        %v6525 = vld [vmem:[#allocation2 + $0xb8] sm:$0xf]
        %v6558 = vunpack.c.l.b16 %v6494
        %v6559 = vunpack.c.l.b16 %v6495
        %v6560 = vunpack.c.l.b16 %v6496
        %v6561 = vunpack.c.l.b16 %v6497
        %v6562 = vunpack.c.l.b16 %v6498
        %v6563 = vunpack.c.l.b16 %v6499
        %v6564 = vunpack.c.l.b16 %v6500
        %v6565 = vunpack.c.l.b16 %v6501
        %v6566 = vunpack.c.l.b16 %v6502
        %v6567 = vunpack.c.l.b16 %v6503
        %v6568 = vunpack.c.l.b16 %v6504
        %v6569 = vunpack.c.l.b16 %v6505
        %v6570 = vunpack.c.l.b16 %v6506
        %v6571 = vunpack.c.l.b16 %v6507
        %v6572 = vunpack.c.l.b16 %v6508
        %v6573 = vunpack.c.l.b16 %v6509
        %v6574 = vunpack.c.l.b16 %v6510
        %v6575 = vunpack.c.l.b16 %v6511
        %v6576 = vunpack.c.l.b16 %v6512
        %v6577 = vunpack.c.l.b16 %v6513
        %v6578 = vunpack.c.l.b16 %v6514
        %v6579 = vunpack.c.l.b16 %v6515
        %v6580 = vunpack.c.l.b16 %v6516
        %v6581 = vunpack.c.l.b16 %v6517
        %v6582 = vunpack.c.l.b16 %v6518
        %v6583 = vunpack.c.l.b16 %v6519
        %v6584 = vunpack.c.l.b16 %v6520
        %v6585 = vunpack.c.l.b16 %v6521
        %v6586 = vunpack.c.l.b16 %v6522
        %v6587 = vunpack.c.l.b16 %v6523
        %v6588 = vunpack.c.l.b16 %v6524
        %v6589 = vunpack.c.l.b16 %v6525
        %v6590 = vpack.c.b16 %v6559, %v6558
        %v6591 = vpack.c.b16 %v6561, %v6560
        %v6592 = vpack.c.b16 %v6563, %v6562
        %v6593 = vpack.c.b16 %v6565, %v6564
        %v6594 = vpack.c.b16 %v6567, %v6566
        %v6595 = vpack.c.b16 %v6569, %v6568
        %v6596 = vpack.c.b16 %v6571, %v6570
        %v6597 = vpack.c.b16 %v6573, %v6572
        %v6598 = vpack.c.b16 %v6575, %v6574
        %v6599 = vpack.c.b16 %v6577, %v6576
        %v6600 = vpack.c.b16 %v6579, %v6578
        %v6601 = vpack.c.b16 %v6581, %v6580
        %v6602 = vpack.c.b16 %v6583, %v6582
        %v6603 = vpack.c.b16 %v6585, %v6584
        %v6604 = vpack.c.b16 %v6587, %v6586
        %v6605 = vpack.c.b16 %v6589, %v6588
        %6622 = vst [vmem:[#allocation3] sm:$0xff] %v6590
        %6623 = vst [vmem:[#allocation3 + $0x48] sm:$0xff] %v6591
        %6624 = vst [vmem:[#allocation3 + $0x90] sm:$0xff] %v6592
        %6625 = vst [vmem:[#allocation3 + $0xd8] sm:$0xff] %v6593
        %6626 = vst [vmem:[#allocation3 + $0x120] sm:$0xff] %v6594
        %6627 = vst [vmem:[#allocation3 + $0x168] sm:$0xff] %v6595
        %6628 = vst [vmem:[#allocation3 + $0x1b0] sm:$0xff] %v6596
        %6629 = vst [vmem:[#allocation3 + $0x1f8] sm:$0xff] %v6597
        %6630 = vst [vmem:[#allocation3 + $0x240] sm:$0xff] %v6598
        %6631 = vst [vmem:[#allocation3 + $0x288] sm:$0xff] %v6599
        %6632 = vst [vmem:[#allocation3 + $0x2d0] sm:$0xff] %v6600
        %6633 = vst [vmem:[#allocation3 + $0x318] sm:$0xff] %v6601
        %6634 = vst [vmem:[#allocation3 + $0x360] sm:$0xff] %v6602
        %6635 = vst [vmem:[#allocation3 + $0x3a8] sm:$0xff] %v6603
        %6636 = vst [vmem:[#allocation3 + $0x3f0] sm:$0xff] %v6604
        %6637 = vst [vmem:[#allocation3 + $0x438] sm:$0xff] %v6605
        %v6638 = vld [vmem:[#allocation2] sm:$0xf]
        %v6639 = vld [vmem:[#allocation2 + $0x4] sm:$0xf]
        %v6640 = vld [vmem:[#allocation2 + $0x8] sm:$0x1]
        %v6641 = vld [vmem:[#allocation2 + $0xc] sm:$0xf]
        %v6642 = vld [vmem:[#allocation2 + $0x10] sm:$0xf]
        %v6643 = vld [vmem:[#allocation2 + $0x14] sm:$0x1]
        %v6644 = vld [vmem:[#allocation2 + $0x18] sm:$0xf]
        %v6645 = vld [vmem:[#allocation2 + $0x1c] sm:$0xf]
        %v6646 = vld [vmem:[#allocation2 + $0x20] sm:$0x1]
        %v6647 = vld [vmem:[#allocation2 + $0x24] sm:$0xf]
        %v6648 = vld [vmem:[#allocation2 + $0x28] sm:$0xf]
        %v6649 = vld [vmem:[#allocation2 + $0x2c] sm:$0x1]
        %v6650 = vld [vmem:[#allocation2 + $0x30] sm:$0xf]
        %v6651 = vld [vmem:[#allocation2 + $0x34] sm:$0xf]
        %v6652 = vld [vmem:[#allocation2 + $0x38] sm:$0x1]
        %v6653 = vld [vmem:[#allocation2 + $0x3c] sm:$0xf]
        %v6654 = vld [vmem:[#allocation2 + $0x40] sm:$0xf]
        %v6655 = vld [vmem:[#allocation2 + $0x44] sm:$0x1]
        %v6656 = vld [vmem:[#allocation2 + $0x48] sm:$0xf]
        %v6657 = vld [vmem:[#allocation2 + $0x4c] sm:$0xf]
        %v6658 = vld [vmem:[#allocation2 + $0x50] sm:$0x1]
        %v6659 = vld [vmem:[#allocation2 + $0x54] sm:$0xf]
        %v6660 = vld [vmem:[#allocation2 + $0x58] sm:$0xf]
        %v6661 = vld [vmem:[#allocation2 + $0x5c] sm:$0x1]
        %v6662 = vld [vmem:[#allocation2 + $0x60] sm:$0xf]
        %v6663 = vld [vmem:[#allocation2 + $0x64] sm:$0xf]
        %v6664 = vld [vmem:[#allocation2 + $0x68] sm:$0x1]
        %v6665 = vld [vmem:[#allocation2 + $0x6c] sm:$0xf]
        %v6666 = vld [vmem:[#allocation2 + $0x70] sm:$0xf]
        %v6667 = vld [vmem:[#allocation2 + $0x74] sm:$0x1]
        %v6668 = vld [vmem:[#allocation2 + $0x78] sm:$0xf]
        %v6669 = vld [vmem:[#allocation2 + $0x7c] sm:$0xf]
        %v6670 = vld [vmem:[#allocation2 + $0x80] sm:$0x1]
        %v6671 = vld [vmem:[#allocation2 + $0x84] sm:$0xf]
        %v6672 = vld [vmem:[#allocation2 + $0x88] sm:$0xf]
        %v6673 = vld [vmem:[#allocation2 + $0x8c] sm:$0x1]
        %v6674 = vld [vmem:[#allocation2 + $0x90] sm:$0xf]
        %v6675 = vld [vmem:[#allocation2 + $0x94] sm:$0xf]
        %v6676 = vld [vmem:[#allocation2 + $0x98] sm:$0x1]
        %v6677 = vld [vmem:[#allocation2 + $0x9c] sm:$0xf]
        %v6678 = vld [vmem:[#allocation2 + $0xa0] sm:$0xf]
        %v6679 = vld [vmem:[#allocation2 + $0xa4] sm:$0x1]
        %v6680 = vld [vmem:[#allocation2 + $0xa8] sm:$0xf]
        %v6681 = vld [vmem:[#allocation2 + $0xac] sm:$0xf]
        %v6682 = vld [vmem:[#allocation2 + $0xb0] sm:$0x1]
        %v6683 = vld [vmem:[#allocation2 + $0xb4] sm:$0xf]
        %v6684 = vld [vmem:[#allocation2 + $0xb8] sm:$0xf]
        %v6685 = vld [vmem:[#allocation2 + $0xbc] sm:$0x1]
        %v6687 = vshrl.u32 %v6638, 16
        %v6689 = vrot.slane %v6687, 4
        %v6690 = vshll.u32 %v6638, 16
        %v6692 = vrot.slane %v6690, 5
        %v6693 = vor.u32 %v6689, %v6692
        %v6694 = vrot.slane %v6693, 4
        %v6696 = vshll.u32 %v6639, 16
        %v6698 = vrot.slane %v6696, 5
        %v6699 = vsel %vm1286, %v6694, %v6698
        %v6700 = vshrl.u32 %v6639, 16
        %v6702 = vrot.slane %v6700, 4
        %v6703 = vor.u32 %v6702, %v6698
        %v6704 = vrot.slane %v6703, 4
        %v6706 = vshll.u32 %v6640, 16
        %v6708 = vrot.slane %v6706, 5
        %v6709 = vsel %vm1286, %v6704, %v6708
        %v6711 = vshrl.u32 %v6641, 16
        %v6713 = vrot.slane %v6711, 4
        %v6714 = vshll.u32 %v6641, 16
        %v6716 = vrot.slane %v6714, 5
        %v6717 = vor.u32 %v6713, %v6716
        %v6718 = vrot.slane %v6717, 4
        %v6720 = vshll.u32 %v6642, 16
        %v6722 = vrot.slane %v6720, 5
        %v6723 = vsel %vm1286, %v6718, %v6722
        %v6724 = vshrl.u32 %v6642, 16
        %v6726 = vrot.slane %v6724, 4
        %v6727 = vor.u32 %v6726, %v6722
        %v6728 = vrot.slane %v6727, 4
        %v6730 = vshll.u32 %v6643, 16
        %v6732 = vrot.slane %v6730, 5
        %v6733 = vsel %vm1286, %v6728, %v6732
        %v6735 = vshrl.u32 %v6644, 16
        %v6737 = vrot.slane %v6735, 4
        %v6738 = vshll.u32 %v6644, 16
        %v6740 = vrot.slane %v6738, 5
        %v6741 = vor.u32 %v6737, %v6740
        %v6742 = vrot.slane %v6741, 4
        %v6744 = vshll.u32 %v6645, 16
        %v6746 = vrot.slane %v6744, 5
        %v6747 = vsel %vm1286, %v6742, %v6746
        %v6748 = vshrl.u32 %v6645, 16
        %v6750 = vrot.slane %v6748, 4
        %v6751 = vor.u32 %v6750, %v6746
        %v6752 = vrot.slane %v6751, 4
        %v6754 = vshll.u32 %v6646, 16
        %v6756 = vrot.slane %v6754, 5
        %v6757 = vsel %vm1286, %v6752, %v6756
        %v6759 = vshrl.u32 %v6647, 16
        %v6761 = vrot.slane %v6759, 4
        %v6762 = vshll.u32 %v6647, 16
        %v6764 = vrot.slane %v6762, 5
        %v6765 = vor.u32 %v6761, %v6764
        %v6766 = vrot.slane %v6765, 4
        %v6768 = vshll.u32 %v6648, 16
        %v6770 = vrot.slane %v6768, 5
        %v6771 = vsel %vm1286, %v6766, %v6770
        %v6772 = vshrl.u32 %v6648, 16
        %v6774 = vrot.slane %v6772, 4
        %v6775 = vor.u32 %v6774, %v6770
        %v6776 = vrot.slane %v6775, 4
        %v6778 = vshll.u32 %v6649, 16
        %v6780 = vrot.slane %v6778, 5
        %v6781 = vsel %vm1286, %v6776, %v6780
        %v6783 = vshrl.u32 %v6650, 16
        %v6785 = vrot.slane %v6783, 4
        %v6786 = vshll.u32 %v6650, 16
        %v6788 = vrot.slane %v6786, 5
        %v6789 = vor.u32 %v6785, %v6788
        %v6790 = vrot.slane %v6789, 4
        %v6792 = vshll.u32 %v6651, 16
        %v6794 = vrot.slane %v6792, 5
        %v6795 = vsel %vm1286, %v6790, %v6794
        %v6796 = vshrl.u32 %v6651, 16
        %v6798 = vrot.slane %v6796, 4
        %v6799 = vor.u32 %v6798, %v6794
        %v6800 = vrot.slane %v6799, 4
        %v6802 = vshll.u32 %v6652, 16
        %v6804 = vrot.slane %v6802, 5
        %v6805 = vsel %vm1286, %v6800, %v6804
        %v6807 = vshrl.u32 %v6653, 16
        %v6809 = vrot.slane %v6807, 4
        %v6810 = vshll.u32 %v6653, 16
        %v6812 = vrot.slane %v6810, 5
        %v6813 = vor.u32 %v6809, %v6812
        %v6814 = vrot.slane %v6813, 4
        %v6816 = vshll.u32 %v6654, 16
        %v6818 = vrot.slane %v6816, 5
        %v6819 = vsel %vm1286, %v6814, %v6818
        %v6820 = vshrl.u32 %v6654, 16
        %v6822 = vrot.slane %v6820, 4
        %v6823 = vor.u32 %v6822, %v6818
        %v6824 = vrot.slane %v6823, 4
        %v6826 = vshll.u32 %v6655, 16
        %v6828 = vrot.slane %v6826, 5
        %v6829 = vsel %vm1286, %v6824, %v6828
        %v6831 = vshrl.u32 %v6656, 16
        %v6833 = vrot.slane %v6831, 4
        %v6834 = vshll.u32 %v6656, 16
        %v6836 = vrot.slane %v6834, 5
        %v6837 = vor.u32 %v6833, %v6836
        %v6838 = vrot.slane %v6837, 4
        %v6840 = vshll.u32 %v6657, 16
        %v6842 = vrot.slane %v6840, 5
        %v6843 = vsel %vm1286, %v6838, %v6842
        %v6844 = vshrl.u32 %v6657, 16
        %v6846 = vrot.slane %v6844, 4
        %v6847 = vor.u32 %v6846, %v6842
        %v6848 = vrot.slane %v6847, 4
        %v6850 = vshll.u32 %v6658, 16
        %v6852 = vrot.slane %v6850, 5
        %v6853 = vsel %vm1286, %v6848, %v6852
        %v6855 = vshrl.u32 %v6659, 16
        %v6857 = vrot.slane %v6855, 4
        %v6858 = vshll.u32 %v6659, 16
        %v6860 = vrot.slane %v6858, 5
        %v6861 = vor.u32 %v6857, %v6860
        %v6862 = vrot.slane %v6861, 4
        %v6864 = vshll.u32 %v6660, 16
        %v6866 = vrot.slane %v6864, 5
        %v6867 = vsel %vm1286, %v6862, %v6866
        %v6868 = vshrl.u32 %v6660, 16
        %v6870 = vrot.slane %v6868, 4
        %v6871 = vor.u32 %v6870, %v6866
        %v6872 = vrot.slane %v6871, 4
        %v6874 = vshll.u32 %v6661, 16
        %v6876 = vrot.slane %v6874, 5
        %v6877 = vsel %vm1286, %v6872, %v6876
        %v6879 = vshrl.u32 %v6662, 16
        %v6881 = vrot.slane %v6879, 4
        %v6882 = vshll.u32 %v6662, 16
        %v6884 = vrot.slane %v6882, 5
        %v6885 = vor.u32 %v6881, %v6884
        %v6886 = vrot.slane %v6885, 4
        %v6888 = vshll.u32 %v6663, 16
        %v6890 = vrot.slane %v6888, 5
        %v6891 = vsel %vm1286, %v6886, %v6890
        %v6892 = vshrl.u32 %v6663, 16
        %v6894 = vrot.slane %v6892, 4
        %v6895 = vor.u32 %v6894, %v6890
        %v6896 = vrot.slane %v6895, 4
        %v6898 = vshll.u32 %v6664, 16
        %v6900 = vrot.slane %v6898, 5
        %v6901 = vsel %vm1286, %v6896, %v6900
        %v6903 = vshrl.u32 %v6665, 16
        %v6905 = vrot.slane %v6903, 4
        %v6906 = vshll.u32 %v6665, 16
        %v6908 = vrot.slane %v6906, 5
        %v6909 = vor.u32 %v6905, %v6908
        %v6910 = vrot.slane %v6909, 4
        %v6912 = vshll.u32 %v6666, 16
        %v6914 = vrot.slane %v6912, 5
        %v6915 = vsel %vm1286, %v6910, %v6914
        %v6916 = vshrl.u32 %v6666, 16
        %v6918 = vrot.slane %v6916, 4
        %v6919 = vor.u32 %v6918, %v6914
        %v6920 = vrot.slane %v6919, 4
        %v6922 = vshll.u32 %v6667, 16
        %v6924 = vrot.slane %v6922, 5
        %v6925 = vsel %vm1286, %v6920, %v6924
        %v6927 = vshrl.u32 %v6668, 16
        %v6929 = vrot.slane %v6927, 4
        %v6930 = vshll.u32 %v6668, 16
        %v6932 = vrot.slane %v6930, 5
        %v6933 = vor.u32 %v6929, %v6932
        %v6934 = vrot.slane %v6933, 4
        %v6936 = vshll.u32 %v6669, 16
        %v6938 = vrot.slane %v6936, 5
        %v6939 = vsel %vm1286, %v6934, %v6938
        %v6940 = vshrl.u32 %v6669, 16
        %v6942 = vrot.slane %v6940, 4
        %v6943 = vor.u32 %v6942, %v6938
        %v6944 = vrot.slane %v6943, 4
        %v6946 = vshll.u32 %v6670, 16
        %v6948 = vrot.slane %v6946, 5
        %v6949 = vsel %vm1286, %v6944, %v6948
        %v6951 = vshrl.u32 %v6671, 16
        %v6953 = vrot.slane %v6951, 4
        %v6954 = vshll.u32 %v6671, 16
        %v6956 = vrot.slane %v6954, 5
        %v6957 = vor.u32 %v6953, %v6956
        %v6958 = vrot.slane %v6957, 4
        %v6960 = vshll.u32 %v6672, 16
        %v6962 = vrot.slane %v6960, 5
        %v6963 = vsel %vm1286, %v6958, %v6962
        %v6964 = vshrl.u32 %v6672, 16
        %v6966 = vrot.slane %v6964, 4
        %v6967 = vor.u32 %v6966, %v6962
        %v6968 = vrot.slane %v6967, 4
        %v6970 = vshll.u32 %v6673, 16
        %v6972 = vrot.slane %v6970, 5
        %v6973 = vsel %vm1286, %v6968, %v6972
        %v6975 = vshrl.u32 %v6674, 16
        %v6977 = vrot.slane %v6975, 4
        %v6978 = vshll.u32 %v6674, 16
        %v6980 = vrot.slane %v6978, 5
        %v6981 = vor.u32 %v6977, %v6980
        %v6982 = vrot.slane %v6981, 4
        %v6984 = vshll.u32 %v6675, 16
        %v6986 = vrot.slane %v6984, 5
        %v6987 = vsel %vm1286, %v6982, %v6986
        %v6988 = vshrl.u32 %v6675, 16
        %v6990 = vrot.slane %v6988, 4
        %v6991 = vor.u32 %v6990, %v6986
        %v6992 = vrot.slane %v6991, 4
        %v6994 = vshll.u32 %v6676, 16
        %v6996 = vrot.slane %v6994, 5
        %v6997 = vsel %vm1286, %v6992, %v6996
        %v6999 = vshrl.u32 %v6677, 16
        %v7001 = vrot.slane %v6999, 4
        %v7002 = vshll.u32 %v6677, 16
        %v7004 = vrot.slane %v7002, 5
        %v7005 = vor.u32 %v7001, %v7004
        %v7006 = vrot.slane %v7005, 4
        %v7008 = vshll.u32 %v6678, 16
        %v7010 = vrot.slane %v7008, 5
        %v7011 = vsel %vm1286, %v7006, %v7010
        %v7012 = vshrl.u32 %v6678, 16
        %v7014 = vrot.slane %v7012, 4
        %v7015 = vor.u32 %v7014, %v7010
        %v7016 = vrot.slane %v7015, 4
        %v7018 = vshll.u32 %v6679, 16
        %v7020 = vrot.slane %v7018, 5
        %v7021 = vsel %vm1286, %v7016, %v7020
        %v7023 = vshrl.u32 %v6680, 16
        %v7025 = vrot.slane %v7023, 4
        %v7026 = vshll.u32 %v6680, 16
        %v7028 = vrot.slane %v7026, 5
        %v7029 = vor.u32 %v7025, %v7028
        %v7030 = vrot.slane %v7029, 4
        %v7032 = vshll.u32 %v6681, 16
        %v7034 = vrot.slane %v7032, 5
        %v7035 = vsel %vm1286, %v7030, %v7034
        %v7036 = vshrl.u32 %v6681, 16
        %v7038 = vrot.slane %v7036, 4
        %v7039 = vor.u32 %v7038, %v7034
        %v7040 = vrot.slane %v7039, 4
        %v7042 = vshll.u32 %v6682, 16
        %v7044 = vrot.slane %v7042, 5
        %v7045 = vsel %vm1286, %v7040, %v7044
        %v7047 = vshrl.u32 %v6683, 16
        %v7049 = vrot.slane %v7047, 4
        %v7050 = vshll.u32 %v6683, 16
        %v7052 = vrot.slane %v7050, 5
        %v7053 = vor.u32 %v7049, %v7052
        %v7054 = vrot.slane %v7053, 4
        %v7056 = vshll.u32 %v6684, 16
        %v7058 = vrot.slane %v7056, 5
        %v7059 = vsel %vm1286, %v7054, %v7058
        %v7060 = vshrl.u32 %v6684, 16
        %v7062 = vrot.slane %v7060, 4
        %v7063 = vor.u32 %v7062, %v7058
        %v7064 = vrot.slane %v7063, 4
        %v7066 = vshll.u32 %v6685, 16
        %v7068 = vrot.slane %v7066, 5
        %v7069 = vsel %vm1286, %v7064, %v7068
        %v7070 = vunpack.c.l.b16 %v6699
        %v7071 = vunpack.c.l.b16 %v6709
        %v7072 = vunpack.c.l.b16 %v6723
        %v7073 = vunpack.c.l.b16 %v6733
        %v7074 = vunpack.c.l.b16 %v6747
        %v7075 = vunpack.c.l.b16 %v6757
        %v7076 = vunpack.c.l.b16 %v6771
        %v7077 = vunpack.c.l.b16 %v6781
        %v7078 = vunpack.c.l.b16 %v6795
        %v7079 = vunpack.c.l.b16 %v6805
        %v7080 = vunpack.c.l.b16 %v6819
        %v7081 = vunpack.c.l.b16 %v6829
        %v7082 = vunpack.c.l.b16 %v6843
        %v7083 = vunpack.c.l.b16 %v6853
        %v7084 = vunpack.c.l.b16 %v6867
        %v7085 = vunpack.c.l.b16 %v6877
        %v7086 = vunpack.c.l.b16 %v6891
        %v7087 = vunpack.c.l.b16 %v6901
        %v7088 = vunpack.c.l.b16 %v6915
        %v7089 = vunpack.c.l.b16 %v6925
        %v7090 = vunpack.c.l.b16 %v6939
        %v7091 = vunpack.c.l.b16 %v6949
        %v7092 = vunpack.c.l.b16 %v6963
        %v7093 = vunpack.c.l.b16 %v6973
        %v7094 = vunpack.c.l.b16 %v6987
        %v7095 = vunpack.c.l.b16 %v6997
        %v7096 = vunpack.c.l.b16 %v7011
        %v7097 = vunpack.c.l.b16 %v7021
        %v7098 = vunpack.c.l.b16 %v7035
        %v7099 = vunpack.c.l.b16 %v7045
        %v7100 = vunpack.c.l.b16 %v7059
        %v7101 = vunpack.c.l.b16 %v7069
        %v7102 = vpack.c.b16 %v7071, %v7070
        %v7103 = vpack.c.b16 %v7073, %v7072
        %v7104 = vpack.c.b16 %v7075, %v7074
        %v7105 = vpack.c.b16 %v7077, %v7076
        %v7106 = vpack.c.b16 %v7079, %v7078
        %v7107 = vpack.c.b16 %v7081, %v7080
        %v7108 = vpack.c.b16 %v7083, %v7082
        %v7109 = vpack.c.b16 %v7085, %v7084
        %v7110 = vpack.c.b16 %v7087, %v7086
        %v7111 = vpack.c.b16 %v7089, %v7088
        %v7112 = vpack.c.b16 %v7091, %v7090
        %v7113 = vpack.c.b16 %v7093, %v7092
        %v7114 = vpack.c.b16 %v7095, %v7094
        %v7115 = vpack.c.b16 %v7097, %v7096
        %v7116 = vpack.c.b16 %v7099, %v7098
        %v7117 = vpack.c.b16 %v7101, %v7100
        %7134 = vst [vmem:[#allocation3 + $0x8] sm:$0xff] %v7102
        %7135 = vst [vmem:[#allocation3 + $0x50] sm:$0xff] %v7103
        %7136 = vst [vmem:[#allocation3 + $0x98] sm:$0xff] %v7104
        %7137 = vst [vmem:[#allocation3 + $0xe0] sm:$0xff] %v7105
        %7138 = vst [vmem:[#allocation3 + $0x128] sm:$0xff] %v7106
        %7139 = vst [vmem:[#allocation3 + $0x170] sm:$0xff] %v7107
        %7140 = vst [vmem:[#allocation3 + $0x1b8] sm:$0xff] %v7108
        %7141 = vst [vmem:[#allocation3 + $0x200] sm:$0xff] %v7109
        %7142 = vst [vmem:[#allocation3 + $0x248] sm:$0xff] %v7110
        %7143 = vst [vmem:[#allocation3 + $0x290] sm:$0xff] %v7111
        %7144 = vst [vmem:[#allocation3 + $0x2d8] sm:$0xff] %v7112
        %7145 = vst [vmem:[#allocation3 + $0x320] sm:$0xff] %v7113
        %7146 = vst [vmem:[#allocation3 + $0x368] sm:$0xff] %v7114
        %7147 = vst [vmem:[#allocation3 + $0x3b0] sm:$0xff] %v7115
        %7148 = vst [vmem:[#allocation3 + $0x3f8] sm:$0xff] %v7116
        %7149 = vst [vmem:[#allocation3 + $0x440] sm:$0xff] %v7117
        %v7150 = vld [vmem:[#allocation2] sm:$0xe]
        %v7151 = vld [vmem:[#allocation2 + $0x4] sm:$0xf]
        %v7152 = vld [vmem:[#allocation2 + $0x8] sm:$0x1]
        %v7153 = vld [vmem:[#allocation2 + $0xc] sm:$0xe]
        %v7154 = vld [vmem:[#allocation2 + $0x10] sm:$0xf]
        %v7155 = vld [vmem:[#allocation2 + $0x14] sm:$0x1]
        %v7156 = vld [vmem:[#allocation2 + $0x18] sm:$0xe]
        %v7157 = vld [vmem:[#allocation2 + $0x1c] sm:$0xf]
        %v7158 = vld [vmem:[#allocation2 + $0x20] sm:$0x1]
        %v7159 = vld [vmem:[#allocation2 + $0x24] sm:$0xe]
        %v7160 = vld [vmem:[#allocation2 + $0x28] sm:$0xf]
        %v7161 = vld [vmem:[#allocation2 + $0x2c] sm:$0x1]
        %v7162 = vld [vmem:[#allocation2 + $0x30] sm:$0xe]
        %v7163 = vld [vmem:[#allocation2 + $0x34] sm:$0xf]
        %v7164 = vld [vmem:[#allocation2 + $0x38] sm:$0x1]
        %v7165 = vld [vmem:[#allocation2 + $0x3c] sm:$0xe]
        %v7166 = vld [vmem:[#allocation2 + $0x40] sm:$0xf]
        %v7167 = vld [vmem:[#allocation2 + $0x44] sm:$0x1]
        %v7168 = vld [vmem:[#allocation2 + $0x48] sm:$0xe]
        %v7169 = vld [vmem:[#allocation2 + $0x4c] sm:$0xf]
        %v7170 = vld [vmem:[#allocation2 + $0x50] sm:$0x1]
        %v7171 = vld [vmem:[#allocation2 + $0x54] sm:$0xe]
        %v7172 = vld [vmem:[#allocation2 + $0x58] sm:$0xf]
        %v7173 = vld [vmem:[#allocation2 + $0x5c] sm:$0x1]
        %v7174 = vld [vmem:[#allocation2 + $0x60] sm:$0xe]
        %v7175 = vld [vmem:[#allocation2 + $0x64] sm:$0xf]
        %v7176 = vld [vmem:[#allocation2 + $0x68] sm:$0x1]
        %v7177 = vld [vmem:[#allocation2 + $0x6c] sm:$0xe]
        %v7178 = vld [vmem:[#allocation2 + $0x70] sm:$0xf]
        %v7179 = vld [vmem:[#allocation2 + $0x74] sm:$0x1]
        %v7180 = vld [vmem:[#allocation2 + $0x78] sm:$0xe]
        %v7181 = vld [vmem:[#allocation2 + $0x7c] sm:$0xf]
        %v7182 = vld [vmem:[#allocation2 + $0x80] sm:$0x1]
        %v7183 = vld [vmem:[#allocation2 + $0x84] sm:$0xe]
        %v7184 = vld [vmem:[#allocation2 + $0x88] sm:$0xf]
        %v7185 = vld [vmem:[#allocation2 + $0x8c] sm:$0x1]
        %v7186 = vld [vmem:[#allocation2 + $0x90] sm:$0xe]
        %v7187 = vld [vmem:[#allocation2 + $0x94] sm:$0xf]
        %v7188 = vld [vmem:[#allocation2 + $0x98] sm:$0x1]
        %v7189 = vld [vmem:[#allocation2 + $0x9c] sm:$0xe]
        %v7190 = vld [vmem:[#allocation2 + $0xa0] sm:$0xf]
        %v7191 = vld [vmem:[#allocation2 + $0xa4] sm:$0x1]
        %v7192 = vld [vmem:[#allocation2 + $0xa8] sm:$0xe]
        %v7193 = vld [vmem:[#allocation2 + $0xac] sm:$0xf]
        %v7194 = vld [vmem:[#allocation2 + $0xb0] sm:$0x1]
        %v7195 = vld [vmem:[#allocation2 + $0xb4] sm:$0xe]
        %v7196 = vld [vmem:[#allocation2 + $0xb8] sm:$0xf]
        %v7197 = vld [vmem:[#allocation2 + $0xbc] sm:$0x1]
        %v7246 = vrot.slane %v7150, 5
        %v7247 = vrot.slane %v7246, 4
        %v7248 = vrot.slane %v7151, 5
        %v7249 = vsel %vm1849, %v7247, %v7248
        %v7250 = vrot.slane %v7248, 4
        %v7251 = vrot.slane %v7152, 5
        %v7252 = vsel %vm1849, %v7250, %v7251
        %v7253 = vrot.slane %v7153, 5
        %v7254 = vrot.slane %v7253, 4
        %v7255 = vrot.slane %v7154, 5
        %v7256 = vsel %vm1849, %v7254, %v7255
        %v7257 = vrot.slane %v7255, 4
        %v7258 = vrot.slane %v7155, 5
        %v7259 = vsel %vm1849, %v7257, %v7258
        %v7260 = vrot.slane %v7156, 5
        %v7261 = vrot.slane %v7260, 4
        %v7262 = vrot.slane %v7157, 5
        %v7263 = vsel %vm1849, %v7261, %v7262
        %v7264 = vrot.slane %v7262, 4
        %v7265 = vrot.slane %v7158, 5
        %v7266 = vsel %vm1849, %v7264, %v7265
        %v7267 = vrot.slane %v7159, 5
        %v7268 = vrot.slane %v7267, 4
        %v7269 = vrot.slane %v7160, 5
        %v7270 = vsel %vm1849, %v7268, %v7269
        %v7271 = vrot.slane %v7269, 4
        %v7272 = vrot.slane %v7161, 5
        %v7273 = vsel %vm1849, %v7271, %v7272
        %v7274 = vrot.slane %v7162, 5
        %v7275 = vrot.slane %v7274, 4
        %v7276 = vrot.slane %v7163, 5
        %v7277 = vsel %vm1849, %v7275, %v7276
        %v7278 = vrot.slane %v7276, 4
        %v7279 = vrot.slane %v7164, 5
        %v7280 = vsel %vm1849, %v7278, %v7279
        %v7281 = vrot.slane %v7165, 5
        %v7282 = vrot.slane %v7281, 4
        %v7283 = vrot.slane %v7166, 5
        %v7284 = vsel %vm1849, %v7282, %v7283
        %v7285 = vrot.slane %v7283, 4
        %v7286 = vrot.slane %v7167, 5
        %v7287 = vsel %vm1849, %v7285, %v7286
        %v7288 = vrot.slane %v7168, 5
        %v7289 = vrot.slane %v7288, 4
        %v7290 = vrot.slane %v7169, 5
        %v7291 = vsel %vm1849, %v7289, %v7290
        %v7292 = vrot.slane %v7290, 4
        %v7293 = vrot.slane %v7170, 5
        %v7294 = vsel %vm1849, %v7292, %v7293
        %v7295 = vrot.slane %v7171, 5
        %v7296 = vrot.slane %v7295, 4
        %v7297 = vrot.slane %v7172, 5
        %v7298 = vsel %vm1849, %v7296, %v7297
        %v7299 = vrot.slane %v7297, 4
        %v7300 = vrot.slane %v7173, 5
        %v7301 = vsel %vm1849, %v7299, %v7300
        %v7302 = vrot.slane %v7174, 5
        %v7303 = vrot.slane %v7302, 4
        %v7304 = vrot.slane %v7175, 5
        %v7305 = vsel %vm1849, %v7303, %v7304
        %v7306 = vrot.slane %v7304, 4
        %v7307 = vrot.slane %v7176, 5
        %v7308 = vsel %vm1849, %v7306, %v7307
        %v7309 = vrot.slane %v7177, 5
        %v7310 = vrot.slane %v7309, 4
        %v7311 = vrot.slane %v7178, 5
        %v7312 = vsel %vm1849, %v7310, %v7311
        %v7313 = vrot.slane %v7311, 4
        %v7314 = vrot.slane %v7179, 5
        %v7315 = vsel %vm1849, %v7313, %v7314
        %v7316 = vrot.slane %v7180, 5
        %v7317 = vrot.slane %v7316, 4
        %v7318 = vrot.slane %v7181, 5
        %v7319 = vsel %vm1849, %v7317, %v7318
        %v7320 = vrot.slane %v7318, 4
        %v7321 = vrot.slane %v7182, 5
        %v7322 = vsel %vm1849, %v7320, %v7321
        %v7323 = vrot.slane %v7183, 5
        %v7324 = vrot.slane %v7323, 4
        %v7325 = vrot.slane %v7184, 5
        %v7326 = vsel %vm1849, %v7324, %v7325
        %v7327 = vrot.slane %v7325, 4
        %v7328 = vrot.slane %v7185, 5
        %v7329 = vsel %vm1849, %v7327, %v7328
        %v7330 = vrot.slane %v7186, 5
        %v7331 = vrot.slane %v7330, 4
        %v7332 = vrot.slane %v7187, 5
        %v7333 = vsel %vm1849, %v7331, %v7332
        %v7334 = vrot.slane %v7332, 4
        %v7335 = vrot.slane %v7188, 5
        %v7336 = vsel %vm1849, %v7334, %v7335
        %v7337 = vrot.slane %v7189, 5
        %v7338 = vrot.slane %v7337, 4
        %v7339 = vrot.slane %v7190, 5
        %v7340 = vsel %vm1849, %v7338, %v7339
        %v7341 = vrot.slane %v7339, 4
        %v7342 = vrot.slane %v7191, 5
        %v7343 = vsel %vm1849, %v7341, %v7342
        %v7344 = vrot.slane %v7192, 5
        %v7345 = vrot.slane %v7344, 4
        %v7346 = vrot.slane %v7193, 5
        %v7347 = vsel %vm1849, %v7345, %v7346
        %v7348 = vrot.slane %v7346, 4
        %v7349 = vrot.slane %v7194, 5
        %v7350 = vsel %vm1849, %v7348, %v7349
        %v7351 = vrot.slane %v7195, 5
        %v7352 = vrot.slane %v7351, 4
        %v7353 = vrot.slane %v7196, 5
        %v7354 = vsel %vm1849, %v7352, %v7353
        %v7355 = vrot.slane %v7353, 4
        %v7356 = vrot.slane %v7197, 5
        %v7357 = vsel %vm1849, %v7355, %v7356
        %v7358 = vunpack.c.l.b16 %v7249
        %v7359 = vunpack.c.l.b16 %v7252
        %v7360 = vunpack.c.l.b16 %v7256
        %v7361 = vunpack.c.l.b16 %v7259
        %v7362 = vunpack.c.l.b16 %v7263
        %v7363 = vunpack.c.l.b16 %v7266
        %v7364 = vunpack.c.l.b16 %v7270
        %v7365 = vunpack.c.l.b16 %v7273
        %v7366 = vunpack.c.l.b16 %v7277
        %v7367 = vunpack.c.l.b16 %v7280
        %v7368 = vunpack.c.l.b16 %v7284
        %v7369 = vunpack.c.l.b16 %v7287
        %v7370 = vunpack.c.l.b16 %v7291
        %v7371 = vunpack.c.l.b16 %v7294
        %v7372 = vunpack.c.l.b16 %v7298
        %v7373 = vunpack.c.l.b16 %v7301
        %v7374 = vunpack.c.l.b16 %v7305
        %v7375 = vunpack.c.l.b16 %v7308
        %v7376 = vunpack.c.l.b16 %v7312
        %v7377 = vunpack.c.l.b16 %v7315
        %v7378 = vunpack.c.l.b16 %v7319
        %v7379 = vunpack.c.l.b16 %v7322
        %v7380 = vunpack.c.l.b16 %v7326
        %v7381 = vunpack.c.l.b16 %v7329
        %v7382 = vunpack.c.l.b16 %v7333
        %v7383 = vunpack.c.l.b16 %v7336
        %v7384 = vunpack.c.l.b16 %v7340
        %v7385 = vunpack.c.l.b16 %v7343
        %v7386 = vunpack.c.l.b16 %v7347
        %v7387 = vunpack.c.l.b16 %v7350
        %v7388 = vunpack.c.l.b16 %v7354
        %v7389 = vunpack.c.l.b16 %v7357
        %v7390 = vpack.c.b16 %v7359, %v7358
        %v7391 = vpack.c.b16 %v7361, %v7360
        %v7392 = vpack.c.b16 %v7363, %v7362
        %v7393 = vpack.c.b16 %v7365, %v7364
        %v7394 = vpack.c.b16 %v7367, %v7366
        %v7395 = vpack.c.b16 %v7369, %v7368
        %v7396 = vpack.c.b16 %v7371, %v7370
        %v7397 = vpack.c.b16 %v7373, %v7372
        %v7398 = vpack.c.b16 %v7375, %v7374
        %v7399 = vpack.c.b16 %v7377, %v7376
        %v7400 = vpack.c.b16 %v7379, %v7378
        %v7401 = vpack.c.b16 %v7381, %v7380
        %v7402 = vpack.c.b16 %v7383, %v7382
        %v7403 = vpack.c.b16 %v7385, %v7384
        %v7404 = vpack.c.b16 %v7387, %v7386
        %v7405 = vpack.c.b16 %v7389, %v7388
        %7422 = vst [vmem:[#allocation3 + $0x10] sm:$0xff] %v7390
        %7423 = vst [vmem:[#allocation3 + $0x58] sm:$0xff] %v7391
        %7424 = vst [vmem:[#allocation3 + $0xa0] sm:$0xff] %v7392
        %7425 = vst [vmem:[#allocation3 + $0xe8] sm:$0xff] %v7393
        %7426 = vst [vmem:[#allocation3 + $0x130] sm:$0xff] %v7394
        %7427 = vst [vmem:[#allocation3 + $0x178] sm:$0xff] %v7395
        %7428 = vst [vmem:[#allocation3 + $0x1c0] sm:$0xff] %v7396
        %7429 = vst [vmem:[#allocation3 + $0x208] sm:$0xff] %v7397
        %7430 = vst [vmem:[#allocation3 + $0x250] sm:$0xff] %v7398
        %7431 = vst [vmem:[#allocation3 + $0x298] sm:$0xff] %v7399
        %7432 = vst [vmem:[#allocation3 + $0x2e0] sm:$0xff] %v7400
        %7433 = vst [vmem:[#allocation3 + $0x328] sm:$0xff] %v7401
        %7434 = vst [vmem:[#allocation3 + $0x370] sm:$0xff] %v7402
        %7435 = vst [vmem:[#allocation3 + $0x3b8] sm:$0xff] %v7403
        %7436 = vst [vmem:[#allocation3 + $0x400] sm:$0xff] %v7404
        %7437 = vst [vmem:[#allocation3 + $0x448] sm:$0xff] %v7405
        %v7438 = vld [vmem:[%s670] sm:$0xf]
        %v7439 = vld [vmem:[%s670 + $0x4] sm:$0xf]
        %v7440 = vld [vmem:[%s670 + $0xc] sm:$0xf]
        %v7441 = vld [vmem:[%s670 + $0x10] sm:$0xf]
        %v7442 = vld [vmem:[%s670 + $0x18] sm:$0xf]
        %v7443 = vld [vmem:[%s670 + $0x1c] sm:$0xf]
        %v7444 = vld [vmem:[%s670 + $0x24] sm:$0xf]
        %v7445 = vld [vmem:[%s670 + $0x28] sm:$0xf]
        %v7446 = vld [vmem:[%s670 + $0x30] sm:$0xf]
        %v7447 = vld [vmem:[%s670 + $0x34] sm:$0xf]
        %v7448 = vld [vmem:[%s670 + $0x3c] sm:$0xf]
        %v7449 = vld [vmem:[%s670 + $0x40] sm:$0xf]
        %v7450 = vld [vmem:[%s670 + $0x48] sm:$0xf]
        %v7451 = vld [vmem:[%s670 + $0x4c] sm:$0xf]
        %v7452 = vld [vmem:[%s670 + $0x54] sm:$0xf]
        %v7453 = vld [vmem:[%s670 + $0x58] sm:$0xf]
        %v7454 = vld [vmem:[%s670 + $0x60] sm:$0xf]
        %v7455 = vld [vmem:[%s670 + $0x64] sm:$0xf]
        %v7456 = vld [vmem:[%s670 + $0x6c] sm:$0xf]
        %v7457 = vld [vmem:[%s670 + $0x70] sm:$0xf]
        %v7458 = vld [vmem:[%s670 + $0x78] sm:$0xf]
        %v7459 = vld [vmem:[%s670 + $0x7c] sm:$0xf]
        %v7460 = vld [vmem:[%s670 + $0x84] sm:$0xf]
        %v7461 = vld [vmem:[%s670 + $0x88] sm:$0xf]
        %v7462 = vld [vmem:[%s670 + $0x90] sm:$0xf]
        %v7463 = vld [vmem:[%s670 + $0x94] sm:$0xf]
        %v7464 = vld [vmem:[%s670 + $0x9c] sm:$0xf]
        %v7465 = vld [vmem:[%s670 + $0xa0] sm:$0xf]
        %v7466 = vld [vmem:[%s670 + $0xa8] sm:$0xf]
        %v7467 = vld [vmem:[%s670 + $0xac] sm:$0xf]
        %v7468 = vld [vmem:[%s670 + $0xb4] sm:$0xf]
        %v7469 = vld [vmem:[%s670 + $0xb8] sm:$0xf]
        %v7502 = vunpack.c.l.b16 %v7438
        %v7503 = vunpack.c.l.b16 %v7439
        %v7504 = vunpack.c.l.b16 %v7440
        %v7505 = vunpack.c.l.b16 %v7441
        %v7506 = vunpack.c.l.b16 %v7442
        %v7507 = vunpack.c.l.b16 %v7443
        %v7508 = vunpack.c.l.b16 %v7444
        %v7509 = vunpack.c.l.b16 %v7445
        %v7510 = vunpack.c.l.b16 %v7446
        %v7511 = vunpack.c.l.b16 %v7447
        %v7512 = vunpack.c.l.b16 %v7448
        %v7513 = vunpack.c.l.b16 %v7449
        %v7514 = vunpack.c.l.b16 %v7450
        %v7515 = vunpack.c.l.b16 %v7451
        %v7516 = vunpack.c.l.b16 %v7452
        %v7517 = vunpack.c.l.b16 %v7453
        %v7518 = vunpack.c.l.b16 %v7454
        %v7519 = vunpack.c.l.b16 %v7455
        %v7520 = vunpack.c.l.b16 %v7456
        %v7521 = vunpack.c.l.b16 %v7457
        %v7522 = vunpack.c.l.b16 %v7458
        %v7523 = vunpack.c.l.b16 %v7459
        %v7524 = vunpack.c.l.b16 %v7460
        %v7525 = vunpack.c.l.b16 %v7461
        %v7526 = vunpack.c.l.b16 %v7462
        %v7527 = vunpack.c.l.b16 %v7463
        %v7528 = vunpack.c.l.b16 %v7464
        %v7529 = vunpack.c.l.b16 %v7465
        %v7530 = vunpack.c.l.b16 %v7466
        %v7531 = vunpack.c.l.b16 %v7467
        %v7532 = vunpack.c.l.b16 %v7468
        %v7533 = vunpack.c.l.b16 %v7469
        %v7534 = vpack.c.b16 %v7503, %v7502
        %v7535 = vpack.c.b16 %v7505, %v7504
        %v7536 = vpack.c.b16 %v7507, %v7506
        %v7537 = vpack.c.b16 %v7509, %v7508
        %v7538 = vpack.c.b16 %v7511, %v7510
        %v7539 = vpack.c.b16 %v7513, %v7512
        %v7540 = vpack.c.b16 %v7515, %v7514
        %v7541 = vpack.c.b16 %v7517, %v7516
        %v7542 = vpack.c.b16 %v7519, %v7518
        %v7543 = vpack.c.b16 %v7521, %v7520
        %v7544 = vpack.c.b16 %v7523, %v7522
        %v7545 = vpack.c.b16 %v7525, %v7524
        %v7546 = vpack.c.b16 %v7527, %v7526
        %v7547 = vpack.c.b16 %v7529, %v7528
        %v7548 = vpack.c.b16 %v7531, %v7530
        %v7549 = vpack.c.b16 %v7533, %v7532
        %7566 = vst [vmem:[#allocation3 + $0x18] sm:$0xff] %v7534
        %7567 = vst [vmem:[#allocation3 + $0x60] sm:$0xff] %v7535
        %7568 = vst [vmem:[#allocation3 + $0xa8] sm:$0xff] %v7536
        %7569 = vst [vmem:[#allocation3 + $0xf0] sm:$0xff] %v7537
        %7570 = vst [vmem:[#allocation3 + $0x138] sm:$0xff] %v7538
        %7571 = vst [vmem:[#allocation3 + $0x180] sm:$0xff] %v7539
        %7572 = vst [vmem:[#allocation3 + $0x1c8] sm:$0xff] %v7540
        %7573 = vst [vmem:[#allocation3 + $0x210] sm:$0xff] %v7541
        %7574 = vst [vmem:[#allocation3 + $0x258] sm:$0xff] %v7542
        %7575 = vst [vmem:[#allocation3 + $0x2a0] sm:$0xff] %v7543
        %7576 = vst [vmem:[#allocation3 + $0x2e8] sm:$0xff] %v7544
        %7577 = vst [vmem:[#allocation3 + $0x330] sm:$0xff] %v7545
        %7578 = vst [vmem:[#allocation3 + $0x378] sm:$0xff] %v7546
        %7579 = vst [vmem:[#allocation3 + $0x3c0] sm:$0xff] %v7547
        %7580 = vst [vmem:[#allocation3 + $0x408] sm:$0xff] %v7548
        %7581 = vst [vmem:[#allocation3 + $0x450] sm:$0xff] %v7549
        %v7582 = vld [vmem:[%s670] sm:$0xf]
        %v7583 = vld [vmem:[%s670 + $0x4] sm:$0xf]
        %v7584 = vld [vmem:[%s670 + $0x8] sm:$0x1]
        %v7585 = vld [vmem:[%s670 + $0xc] sm:$0xf]
        %v7586 = vld [vmem:[%s670 + $0x10] sm:$0xf]
        %v7587 = vld [vmem:[%s670 + $0x14] sm:$0x1]
        %v7588 = vld [vmem:[%s670 + $0x18] sm:$0xf]
        %v7589 = vld [vmem:[%s670 + $0x1c] sm:$0xf]
        %v7590 = vld [vmem:[%s670 + $0x20] sm:$0x1]
        %v7591 = vld [vmem:[%s670 + $0x24] sm:$0xf]
        %v7592 = vld [vmem:[%s670 + $0x28] sm:$0xf]
        %v7593 = vld [vmem:[%s670 + $0x2c] sm:$0x1]
        %v7594 = vld [vmem:[%s670 + $0x30] sm:$0xf]
        %v7595 = vld [vmem:[%s670 + $0x34] sm:$0xf]
        %v7596 = vld [vmem:[%s670 + $0x38] sm:$0x1]
        %v7597 = vld [vmem:[%s670 + $0x3c] sm:$0xf]
        %v7598 = vld [vmem:[%s670 + $0x40] sm:$0xf]
        %v7599 = vld [vmem:[%s670 + $0x44] sm:$0x1]
        %v7600 = vld [vmem:[%s670 + $0x48] sm:$0xf]
        %v7601 = vld [vmem:[%s670 + $0x4c] sm:$0xf]
        %v7602 = vld [vmem:[%s670 + $0x50] sm:$0x1]
        %v7603 = vld [vmem:[%s670 + $0x54] sm:$0xf]
        %v7604 = vld [vmem:[%s670 + $0x58] sm:$0xf]
        %v7605 = vld [vmem:[%s670 + $0x5c] sm:$0x1]
        %v7606 = vld [vmem:[%s670 + $0x60] sm:$0xf]
        %v7607 = vld [vmem:[%s670 + $0x64] sm:$0xf]
        %v7608 = vld [vmem:[%s670 + $0x68] sm:$0x1]
        %v7609 = vld [vmem:[%s670 + $0x6c] sm:$0xf]
        %v7610 = vld [vmem:[%s670 + $0x70] sm:$0xf]
        %v7611 = vld [vmem:[%s670 + $0x74] sm:$0x1]
        %v7612 = vld [vmem:[%s670 + $0x78] sm:$0xf]
        %v7613 = vld [vmem:[%s670 + $0x7c] sm:$0xf]
        %v7614 = vld [vmem:[%s670 + $0x80] sm:$0x1]
        %v7615 = vld [vmem:[%s670 + $0x84] sm:$0xf]
        %v7616 = vld [vmem:[%s670 + $0x88] sm:$0xf]
        %v7617 = vld [vmem:[%s670 + $0x8c] sm:$0x1]
        %v7618 = vld [vmem:[%s670 + $0x90] sm:$0xf]
        %v7619 = vld [vmem:[%s670 + $0x94] sm:$0xf]
        %v7620 = vld [vmem:[%s670 + $0x98] sm:$0x1]
        %v7621 = vld [vmem:[%s670 + $0x9c] sm:$0xf]
        %v7622 = vld [vmem:[%s670 + $0xa0] sm:$0xf]
        %v7623 = vld [vmem:[%s670 + $0xa4] sm:$0x1]
        %v7624 = vld [vmem:[%s670 + $0xa8] sm:$0xf]
        %v7625 = vld [vmem:[%s670 + $0xac] sm:$0xf]
        %v7626 = vld [vmem:[%s670 + $0xb0] sm:$0x1]
        %v7627 = vld [vmem:[%s670 + $0xb4] sm:$0xf]
        %v7628 = vld [vmem:[%s670 + $0xb8] sm:$0xf]
        %v7629 = vld [vmem:[%s670 + $0xbc] sm:$0x1]
        %v7631 = vshrl.u32 %v7582, 16
        %v7633 = vrot.slane %v7631, 4
        %v7634 = vshll.u32 %v7582, 16
        %v7636 = vrot.slane %v7634, 5
        %v7637 = vor.u32 %v7633, %v7636
        %v7638 = vrot.slane %v7637, 4
        %v7640 = vshll.u32 %v7583, 16
        %v7642 = vrot.slane %v7640, 5
        %v7643 = vsel %vm1286, %v7638, %v7642
        %v7644 = vshrl.u32 %v7583, 16
        %v7646 = vrot.slane %v7644, 4
        %v7647 = vor.u32 %v7646, %v7642
        %v7648 = vrot.slane %v7647, 4
        %v7650 = vshll.u32 %v7584, 16
        %v7652 = vrot.slane %v7650, 5
        %v7653 = vsel %vm1286, %v7648, %v7652
        %v7655 = vshrl.u32 %v7585, 16
        %v7657 = vrot.slane %v7655, 4
        %v7658 = vshll.u32 %v7585, 16
        %v7660 = vrot.slane %v7658, 5
        %v7661 = vor.u32 %v7657, %v7660
        %v7662 = vrot.slane %v7661, 4
        %v7664 = vshll.u32 %v7586, 16
        %v7666 = vrot.slane %v7664, 5
        %v7667 = vsel %vm1286, %v7662, %v7666
        %v7668 = vshrl.u32 %v7586, 16
        %v7670 = vrot.slane %v7668, 4
        %v7671 = vor.u32 %v7670, %v7666
        %v7672 = vrot.slane %v7671, 4
        %v7674 = vshll.u32 %v7587, 16
        %v7676 = vrot.slane %v7674, 5
        %v7677 = vsel %vm1286, %v7672, %v7676
        %v7679 = vshrl.u32 %v7588, 16
        %v7681 = vrot.slane %v7679, 4
        %v7682 = vshll.u32 %v7588, 16
        %v7684 = vrot.slane %v7682, 5
        %v7685 = vor.u32 %v7681, %v7684
        %v7686 = vrot.slane %v7685, 4
        %v7688 = vshll.u32 %v7589, 16
        %v7690 = vrot.slane %v7688, 5
        %v7691 = vsel %vm1286, %v7686, %v7690
        %v7692 = vshrl.u32 %v7589, 16
        %v7694 = vrot.slane %v7692, 4
        %v7695 = vor.u32 %v7694, %v7690
        %v7696 = vrot.slane %v7695, 4
        %v7698 = vshll.u32 %v7590, 16
        %v7700 = vrot.slane %v7698, 5
        %v7701 = vsel %vm1286, %v7696, %v7700
        %v7703 = vshrl.u32 %v7591, 16
        %v7705 = vrot.slane %v7703, 4
        %v7706 = vshll.u32 %v7591, 16
        %v7708 = vrot.slane %v7706, 5
        %v7709 = vor.u32 %v7705, %v7708
        %v7710 = vrot.slane %v7709, 4
        %v7712 = vshll.u32 %v7592, 16
        %v7714 = vrot.slane %v7712, 5
        %v7715 = vsel %vm1286, %v7710, %v7714
        %v7716 = vshrl.u32 %v7592, 16
        %v7718 = vrot.slane %v7716, 4
        %v7719 = vor.u32 %v7718, %v7714
        %v7720 = vrot.slane %v7719, 4
        %v7722 = vshll.u32 %v7593, 16
        %v7724 = vrot.slane %v7722, 5
        %v7725 = vsel %vm1286, %v7720, %v7724
        %v7727 = vshrl.u32 %v7594, 16
        %v7729 = vrot.slane %v7727, 4
        %v7730 = vshll.u32 %v7594, 16
        %v7732 = vrot.slane %v7730, 5
        %v7733 = vor.u32 %v7729, %v7732
        %v7734 = vrot.slane %v7733, 4
        %v7736 = vshll.u32 %v7595, 16
        %v7738 = vrot.slane %v7736, 5
        %v7739 = vsel %vm1286, %v7734, %v7738
        %v7740 = vshrl.u32 %v7595, 16
        %v7742 = vrot.slane %v7740, 4
        %v7743 = vor.u32 %v7742, %v7738
        %v7744 = vrot.slane %v7743, 4
        %v7746 = vshll.u32 %v7596, 16
        %v7748 = vrot.slane %v7746, 5
        %v7749 = vsel %vm1286, %v7744, %v7748
        %v7751 = vshrl.u32 %v7597, 16
        %v7753 = vrot.slane %v7751, 4
        %v7754 = vshll.u32 %v7597, 16
        %v7756 = vrot.slane %v7754, 5
        %v7757 = vor.u32 %v7753, %v7756
        %v7758 = vrot.slane %v7757, 4
        %v7760 = vshll.u32 %v7598, 16
        %v7762 = vrot.slane %v7760, 5
        %v7763 = vsel %vm1286, %v7758, %v7762
        %v7764 = vshrl.u32 %v7598, 16
        %v7766 = vrot.slane %v7764, 4
        %v7767 = vor.u32 %v7766, %v7762
        %v7768 = vrot.slane %v7767, 4
        %v7770 = vshll.u32 %v7599, 16
        %v7772 = vrot.slane %v7770, 5
        %v7773 = vsel %vm1286, %v7768, %v7772
        %v7775 = vshrl.u32 %v7600, 16
        %v7777 = vrot.slane %v7775, 4
        %v7778 = vshll.u32 %v7600, 16
        %v7780 = vrot.slane %v7778, 5
        %v7781 = vor.u32 %v7777, %v7780
        %v7782 = vrot.slane %v7781, 4
        %v7784 = vshll.u32 %v7601, 16
        %v7786 = vrot.slane %v7784, 5
        %v7787 = vsel %vm1286, %v7782, %v7786
        %v7788 = vshrl.u32 %v7601, 16
        %v7790 = vrot.slane %v7788, 4
        %v7791 = vor.u32 %v7790, %v7786
        %v7792 = vrot.slane %v7791, 4
        %v7794 = vshll.u32 %v7602, 16
        %v7796 = vrot.slane %v7794, 5
        %v7797 = vsel %vm1286, %v7792, %v7796
        %v7799 = vshrl.u32 %v7603, 16
        %v7801 = vrot.slane %v7799, 4
        %v7802 = vshll.u32 %v7603, 16
        %v7804 = vrot.slane %v7802, 5
        %v7805 = vor.u32 %v7801, %v7804
        %v7806 = vrot.slane %v7805, 4
        %v7808 = vshll.u32 %v7604, 16
        %v7810 = vrot.slane %v7808, 5
        %v7811 = vsel %vm1286, %v7806, %v7810
        %v7812 = vshrl.u32 %v7604, 16
        %v7814 = vrot.slane %v7812, 4
        %v7815 = vor.u32 %v7814, %v7810
        %v7816 = vrot.slane %v7815, 4
        %v7818 = vshll.u32 %v7605, 16
        %v7820 = vrot.slane %v7818, 5
        %v7821 = vsel %vm1286, %v7816, %v7820
        %v7823 = vshrl.u32 %v7606, 16
        %v7825 = vrot.slane %v7823, 4
        %v7826 = vshll.u32 %v7606, 16
        %v7828 = vrot.slane %v7826, 5
        %v7829 = vor.u32 %v7825, %v7828
        %v7830 = vrot.slane %v7829, 4
        %v7832 = vshll.u32 %v7607, 16
        %v7834 = vrot.slane %v7832, 5
        %v7835 = vsel %vm1286, %v7830, %v7834
        %v7836 = vshrl.u32 %v7607, 16
        %v7838 = vrot.slane %v7836, 4
        %v7839 = vor.u32 %v7838, %v7834
        %v7840 = vrot.slane %v7839, 4
        %v7842 = vshll.u32 %v7608, 16
        %v7844 = vrot.slane %v7842, 5
        %v7845 = vsel %vm1286, %v7840, %v7844
        %v7847 = vshrl.u32 %v7609, 16
        %v7849 = vrot.slane %v7847, 4
        %v7850 = vshll.u32 %v7609, 16
        %v7852 = vrot.slane %v7850, 5
        %v7853 = vor.u32 %v7849, %v7852
        %v7854 = vrot.slane %v7853, 4
        %v7856 = vshll.u32 %v7610, 16
        %v7858 = vrot.slane %v7856, 5
        %v7859 = vsel %vm1286, %v7854, %v7858
        %v7860 = vshrl.u32 %v7610, 16
        %v7862 = vrot.slane %v7860, 4
        %v7863 = vor.u32 %v7862, %v7858
        %v7864 = vrot.slane %v7863, 4
        %v7866 = vshll.u32 %v7611, 16
        %v7868 = vrot.slane %v7866, 5
        %v7869 = vsel %vm1286, %v7864, %v7868
        %v7871 = vshrl.u32 %v7612, 16
        %v7873 = vrot.slane %v7871, 4
        %v7874 = vshll.u32 %v7612, 16
        %v7876 = vrot.slane %v7874, 5
        %v7877 = vor.u32 %v7873, %v7876
        %v7878 = vrot.slane %v7877, 4
        %v7880 = vshll.u32 %v7613, 16
        %v7882 = vrot.slane %v7880, 5
        %v7883 = vsel %vm1286, %v7878, %v7882
        %v7884 = vshrl.u32 %v7613, 16
        %v7886 = vrot.slane %v7884, 4
        %v7887 = vor.u32 %v7886, %v7882
        %v7888 = vrot.slane %v7887, 4
        %v7890 = vshll.u32 %v7614, 16
        %v7892 = vrot.slane %v7890, 5
        %v7893 = vsel %vm1286, %v7888, %v7892
        %v7895 = vshrl.u32 %v7615, 16
        %v7897 = vrot.slane %v7895, 4
        %v7898 = vshll.u32 %v7615, 16
        %v7900 = vrot.slane %v7898, 5
        %v7901 = vor.u32 %v7897, %v7900
        %v7902 = vrot.slane %v7901, 4
        %v7904 = vshll.u32 %v7616, 16
        %v7906 = vrot.slane %v7904, 5
        %v7907 = vsel %vm1286, %v7902, %v7906
        %v7908 = vshrl.u32 %v7616, 16
        %v7910 = vrot.slane %v7908, 4
        %v7911 = vor.u32 %v7910, %v7906
        %v7912 = vrot.slane %v7911, 4
        %v7914 = vshll.u32 %v7617, 16
        %v7916 = vrot.slane %v7914, 5
        %v7917 = vsel %vm1286, %v7912, %v7916
        %v7919 = vshrl.u32 %v7618, 16
        %v7921 = vrot.slane %v7919, 4
        %v7922 = vshll.u32 %v7618, 16
        %v7924 = vrot.slane %v7922, 5
        %v7925 = vor.u32 %v7921, %v7924
        %v7926 = vrot.slane %v7925, 4
        %v7928 = vshll.u32 %v7619, 16
        %v7930 = vrot.slane %v7928, 5
        %v7931 = vsel %vm1286, %v7926, %v7930
        %v7932 = vshrl.u32 %v7619, 16
        %v7934 = vrot.slane %v7932, 4
        %v7935 = vor.u32 %v7934, %v7930
        %v7936 = vrot.slane %v7935, 4
        %v7938 = vshll.u32 %v7620, 16
        %v7940 = vrot.slane %v7938, 5
        %v7941 = vsel %vm1286, %v7936, %v7940
        %v7943 = vshrl.u32 %v7621, 16
        %v7945 = vrot.slane %v7943, 4
        %v7946 = vshll.u32 %v7621, 16
        %v7948 = vrot.slane %v7946, 5
        %v7949 = vor.u32 %v7945, %v7948
        %v7950 = vrot.slane %v7949, 4
        %v7952 = vshll.u32 %v7622, 16
        %v7954 = vrot.slane %v7952, 5
        %v7955 = vsel %vm1286, %v7950, %v7954
        %v7956 = vshrl.u32 %v7622, 16
        %v7958 = vrot.slane %v7956, 4
        %v7959 = vor.u32 %v7958, %v7954
        %v7960 = vrot.slane %v7959, 4
        %v7962 = vshll.u32 %v7623, 16
        %v7964 = vrot.slane %v7962, 5
        %v7965 = vsel %vm1286, %v7960, %v7964
        %v7967 = vshrl.u32 %v7624, 16
        %v7969 = vrot.slane %v7967, 4
        %v7970 = vshll.u32 %v7624, 16
        %v7972 = vrot.slane %v7970, 5
        %v7973 = vor.u32 %v7969, %v7972
        %v7974 = vrot.slane %v7973, 4
        %v7976 = vshll.u32 %v7625, 16
        %v7978 = vrot.slane %v7976, 5
        %v7979 = vsel %vm1286, %v7974, %v7978
        %v7980 = vshrl.u32 %v7625, 16
        %v7982 = vrot.slane %v7980, 4
        %v7983 = vor.u32 %v7982, %v7978
        %v7984 = vrot.slane %v7983, 4
        %v7986 = vshll.u32 %v7626, 16
        %v7988 = vrot.slane %v7986, 5
        %v7989 = vsel %vm1286, %v7984, %v7988
        %v7991 = vshrl.u32 %v7627, 16
        %v7993 = vrot.slane %v7991, 4
        %v7994 = vshll.u32 %v7627, 16
        %v7996 = vrot.slane %v7994, 5
        %v7997 = vor.u32 %v7993, %v7996
        %v7998 = vrot.slane %v7997, 4
        %v8000 = vshll.u32 %v7628, 16
        %v8002 = vrot.slane %v8000, 5
        %v8003 = vsel %vm1286, %v7998, %v8002
        %v8004 = vshrl.u32 %v7628, 16
        %v8006 = vrot.slane %v8004, 4
        %v8007 = vor.u32 %v8006, %v8002
        %v8008 = vrot.slane %v8007, 4
        %v8010 = vshll.u32 %v7629, 16
        %v8012 = vrot.slane %v8010, 5
        %v8013 = vsel %vm1286, %v8008, %v8012
        %v8014 = vunpack.c.l.b16 %v7643
        %v8015 = vunpack.c.l.b16 %v7653
        %v8016 = vunpack.c.l.b16 %v7667
        %v8017 = vunpack.c.l.b16 %v7677
        %v8018 = vunpack.c.l.b16 %v7691
        %v8019 = vunpack.c.l.b16 %v7701
        %v8020 = vunpack.c.l.b16 %v7715
        %v8021 = vunpack.c.l.b16 %v7725
        %v8022 = vunpack.c.l.b16 %v7739
        %v8023 = vunpack.c.l.b16 %v7749
        %v8024 = vunpack.c.l.b16 %v7763
        %v8025 = vunpack.c.l.b16 %v7773
        %v8026 = vunpack.c.l.b16 %v7787
        %v8027 = vunpack.c.l.b16 %v7797
        %v8028 = vunpack.c.l.b16 %v7811
        %v8029 = vunpack.c.l.b16 %v7821
        %v8030 = vunpack.c.l.b16 %v7835
        %v8031 = vunpack.c.l.b16 %v7845
        %v8032 = vunpack.c.l.b16 %v7859
        %v8033 = vunpack.c.l.b16 %v7869
        %v8034 = vunpack.c.l.b16 %v7883
        %v8035 = vunpack.c.l.b16 %v7893
        %v8036 = vunpack.c.l.b16 %v7907
        %v8037 = vunpack.c.l.b16 %v7917
        %v8038 = vunpack.c.l.b16 %v7931
        %v8039 = vunpack.c.l.b16 %v7941
        %v8040 = vunpack.c.l.b16 %v7955
        %v8041 = vunpack.c.l.b16 %v7965
        %v8042 = vunpack.c.l.b16 %v7979
        %v8043 = vunpack.c.l.b16 %v7989
        %v8044 = vunpack.c.l.b16 %v8003
        %v8045 = vunpack.c.l.b16 %v8013
        %v8046 = vpack.c.b16 %v8015, %v8014
        %v8047 = vpack.c.b16 %v8017, %v8016
        %v8048 = vpack.c.b16 %v8019, %v8018
        %v8049 = vpack.c.b16 %v8021, %v8020
        %v8050 = vpack.c.b16 %v8023, %v8022
        %v8051 = vpack.c.b16 %v8025, %v8024
        %v8052 = vpack.c.b16 %v8027, %v8026
        %v8053 = vpack.c.b16 %v8029, %v8028
        %v8054 = vpack.c.b16 %v8031, %v8030
        %v8055 = vpack.c.b16 %v8033, %v8032
        %v8056 = vpack.c.b16 %v8035, %v8034
        %v8057 = vpack.c.b16 %v8037, %v8036
        %v8058 = vpack.c.b16 %v8039, %v8038
        %v8059 = vpack.c.b16 %v8041, %v8040
        %v8060 = vpack.c.b16 %v8043, %v8042
        %v8061 = vpack.c.b16 %v8045, %v8044
        %8078 = vst [vmem:[#allocation3 + $0x20] sm:$0xff] %v8046
        %8079 = vst [vmem:[#allocation3 + $0x68] sm:$0xff] %v8047
        %8080 = vst [vmem:[#allocation3 + $0xb0] sm:$0xff] %v8048
        %8081 = vst [vmem:[#allocation3 + $0xf8] sm:$0xff] %v8049
        %8082 = vst [vmem:[#allocation3 + $0x140] sm:$0xff] %v8050
        %8083 = vst [vmem:[#allocation3 + $0x188] sm:$0xff] %v8051
        %8084 = vst [vmem:[#allocation3 + $0x1d0] sm:$0xff] %v8052
        %8085 = vst [vmem:[#allocation3 + $0x218] sm:$0xff] %v8053
        %8086 = vst [vmem:[#allocation3 + $0x260] sm:$0xff] %v8054
        %8087 = vst [vmem:[#allocation3 + $0x2a8] sm:$0xff] %v8055
        %8088 = vst [vmem:[#allocation3 + $0x2f0] sm:$0xff] %v8056
        %8089 = vst [vmem:[#allocation3 + $0x338] sm:$0xff] %v8057
        %8090 = vst [vmem:[#allocation3 + $0x380] sm:$0xff] %v8058
        %8091 = vst [vmem:[#allocation3 + $0x3c8] sm:$0xff] %v8059
        %8092 = vst [vmem:[#allocation3 + $0x410] sm:$0xff] %v8060
        %8093 = vst [vmem:[#allocation3 + $0x458] sm:$0xff] %v8061
        %v8094 = vld [vmem:[%s670] sm:$0xe]
        %v8095 = vld [vmem:[%s670 + $0x4] sm:$0xf]
        %v8096 = vld [vmem:[%s670 + $0x8] sm:$0x1]
        %v8097 = vld [vmem:[%s670 + $0xc] sm:$0xe]
        %v8098 = vld [vmem:[%s670 + $0x10] sm:$0xf]
        %v8099 = vld [vmem:[%s670 + $0x14] sm:$0x1]
        %v8100 = vld [vmem:[%s670 + $0x18] sm:$0xe]
        %v8101 = vld [vmem:[%s670 + $0x1c] sm:$0xf]
        %v8102 = vld [vmem:[%s670 + $0x20] sm:$0x1]
        %v8103 = vld [vmem:[%s670 + $0x24] sm:$0xe]
        %v8104 = vld [vmem:[%s670 + $0x28] sm:$0xf]
        %v8105 = vld [vmem:[%s670 + $0x2c] sm:$0x1]
        %v8106 = vld [vmem:[%s670 + $0x30] sm:$0xe]
        %v8107 = vld [vmem:[%s670 + $0x34] sm:$0xf]
        %v8108 = vld [vmem:[%s670 + $0x38] sm:$0x1]
        %v8109 = vld [vmem:[%s670 + $0x3c] sm:$0xe]
        %v8110 = vld [vmem:[%s670 + $0x40] sm:$0xf]
        %v8111 = vld [vmem:[%s670 + $0x44] sm:$0x1]
        %v8112 = vld [vmem:[%s670 + $0x48] sm:$0xe]
        %v8113 = vld [vmem:[%s670 + $0x4c] sm:$0xf]
        %v8114 = vld [vmem:[%s670 + $0x50] sm:$0x1]
        %v8115 = vld [vmem:[%s670 + $0x54] sm:$0xe]
        %v8116 = vld [vmem:[%s670 + $0x58] sm:$0xf]
        %v8117 = vld [vmem:[%s670 + $0x5c] sm:$0x1]
        %v8118 = vld [vmem:[%s670 + $0x60] sm:$0xe]
        %v8119 = vld [vmem:[%s670 + $0x64] sm:$0xf]
        %v8120 = vld [vmem:[%s670 + $0x68] sm:$0x1]
        %v8121 = vld [vmem:[%s670 + $0x6c] sm:$0xe]
        %v8122 = vld [vmem:[%s670 + $0x70] sm:$0xf]
        %v8123 = vld [vmem:[%s670 + $0x74] sm:$0x1]
        %v8124 = vld [vmem:[%s670 + $0x78] sm:$0xe]
        %v8125 = vld [vmem:[%s670 + $0x7c] sm:$0xf]
        %v8126 = vld [vmem:[%s670 + $0x80] sm:$0x1]
        %v8127 = vld [vmem:[%s670 + $0x84] sm:$0xe]
        %v8128 = vld [vmem:[%s670 + $0x88] sm:$0xf]
        %v8129 = vld [vmem:[%s670 + $0x8c] sm:$0x1]
        %v8130 = vld [vmem:[%s670 + $0x90] sm:$0xe]
        %v8131 = vld [vmem:[%s670 + $0x94] sm:$0xf]
        %v8132 = vld [vmem:[%s670 + $0x98] sm:$0x1]
        %v8133 = vld [vmem:[%s670 + $0x9c] sm:$0xe]
        %v8134 = vld [vmem:[%s670 + $0xa0] sm:$0xf]
        %v8135 = vld [vmem:[%s670 + $0xa4] sm:$0x1]
        %v8136 = vld [vmem:[%s670 + $0xa8] sm:$0xe]
        %v8137 = vld [vmem:[%s670 + $0xac] sm:$0xf]
        %v8138 = vld [vmem:[%s670 + $0xb0] sm:$0x1]
        %v8139 = vld [vmem:[%s670 + $0xb4] sm:$0xe]
        %v8140 = vld [vmem:[%s670 + $0xb8] sm:$0xf]
        %v8141 = vld [vmem:[%s670 + $0xbc] sm:$0x1]
        %v8190 = vrot.slane %v8094, 5
        %v8191 = vrot.slane %v8190, 4
        %v8192 = vrot.slane %v8095, 5
        %v8193 = vsel %vm1849, %v8191, %v8192
        %v8194 = vrot.slane %v8192, 4
        %v8195 = vrot.slane %v8096, 5
        %v8196 = vsel %vm1849, %v8194, %v8195
        %v8197 = vrot.slane %v8097, 5
        %v8198 = vrot.slane %v8197, 4
        %v8199 = vrot.slane %v8098, 5
        %v8200 = vsel %vm1849, %v8198, %v8199
        %v8201 = vrot.slane %v8199, 4
        %v8202 = vrot.slane %v8099, 5
        %v8203 = vsel %vm1849, %v8201, %v8202
        %v8204 = vrot.slane %v8100, 5
        %v8205 = vrot.slane %v8204, 4
        %v8206 = vrot.slane %v8101, 5
        %v8207 = vsel %vm1849, %v8205, %v8206
        %v8208 = vrot.slane %v8206, 4
        %v8209 = vrot.slane %v8102, 5
        %v8210 = vsel %vm1849, %v8208, %v8209
        %v8211 = vrot.slane %v8103, 5
        %v8212 = vrot.slane %v8211, 4
        %v8213 = vrot.slane %v8104, 5
        %v8214 = vsel %vm1849, %v8212, %v8213
        %v8215 = vrot.slane %v8213, 4
        %v8216 = vrot.slane %v8105, 5
        %v8217 = vsel %vm1849, %v8215, %v8216
        %v8218 = vrot.slane %v8106, 5
        %v8219 = vrot.slane %v8218, 4
        %v8220 = vrot.slane %v8107, 5
        %v8221 = vsel %vm1849, %v8219, %v8220
        %v8222 = vrot.slane %v8220, 4
        %v8223 = vrot.slane %v8108, 5
        %v8224 = vsel %vm1849, %v8222, %v8223
        %v8225 = vrot.slane %v8109, 5
        %v8226 = vrot.slane %v8225, 4
        %v8227 = vrot.slane %v8110, 5
        %v8228 = vsel %vm1849, %v8226, %v8227
        %v8229 = vrot.slane %v8227, 4
        %v8230 = vrot.slane %v8111, 5
        %v8231 = vsel %vm1849, %v8229, %v8230
        %v8232 = vrot.slane %v8112, 5
        %v8233 = vrot.slane %v8232, 4
        %v8234 = vrot.slane %v8113, 5
        %v8235 = vsel %vm1849, %v8233, %v8234
        %v8236 = vrot.slane %v8234, 4
        %v8237 = vrot.slane %v8114, 5
        %v8238 = vsel %vm1849, %v8236, %v8237
        %v8239 = vrot.slane %v8115, 5
        %v8240 = vrot.slane %v8239, 4
        %v8241 = vrot.slane %v8116, 5
        %v8242 = vsel %vm1849, %v8240, %v8241
        %v8243 = vrot.slane %v8241, 4
        %v8244 = vrot.slane %v8117, 5
        %v8245 = vsel %vm1849, %v8243, %v8244
        %v8246 = vrot.slane %v8118, 5
        %v8247 = vrot.slane %v8246, 4
        %v8248 = vrot.slane %v8119, 5
        %v8249 = vsel %vm1849, %v8247, %v8248
        %v8250 = vrot.slane %v8248, 4
        %v8251 = vrot.slane %v8120, 5
        %v8252 = vsel %vm1849, %v8250, %v8251
        %v8253 = vrot.slane %v8121, 5
        %v8254 = vrot.slane %v8253, 4
        %v8255 = vrot.slane %v8122, 5
        %v8256 = vsel %vm1849, %v8254, %v8255
        %v8257 = vrot.slane %v8255, 4
        %v8258 = vrot.slane %v8123, 5
        %v8259 = vsel %vm1849, %v8257, %v8258
        %v8260 = vrot.slane %v8124, 5
        %v8261 = vrot.slane %v8260, 4
        %v8262 = vrot.slane %v8125, 5
        %v8263 = vsel %vm1849, %v8261, %v8262
        %v8264 = vrot.slane %v8262, 4
        %v8265 = vrot.slane %v8126, 5
        %v8266 = vsel %vm1849, %v8264, %v8265
        %v8267 = vrot.slane %v8127, 5
        %v8268 = vrot.slane %v8267, 4
        %v8269 = vrot.slane %v8128, 5
        %v8270 = vsel %vm1849, %v8268, %v8269
        %v8271 = vrot.slane %v8269, 4
        %v8272 = vrot.slane %v8129, 5
        %v8273 = vsel %vm1849, %v8271, %v8272
        %v8274 = vrot.slane %v8130, 5
        %v8275 = vrot.slane %v8274, 4
        %v8276 = vrot.slane %v8131, 5
        %v8277 = vsel %vm1849, %v8275, %v8276
        %v8278 = vrot.slane %v8276, 4
        %v8279 = vrot.slane %v8132, 5
        %v8280 = vsel %vm1849, %v8278, %v8279
        %v8281 = vrot.slane %v8133, 5
        %v8282 = vrot.slane %v8281, 4
        %v8283 = vrot.slane %v8134, 5
        %v8284 = vsel %vm1849, %v8282, %v8283
        %v8285 = vrot.slane %v8283, 4
        %v8286 = vrot.slane %v8135, 5
        %v8287 = vsel %vm1849, %v8285, %v8286
        %v8288 = vrot.slane %v8136, 5
        %v8289 = vrot.slane %v8288, 4
        %v8290 = vrot.slane %v8137, 5
        %v8291 = vsel %vm1849, %v8289, %v8290
        %v8292 = vrot.slane %v8290, 4
        %v8293 = vrot.slane %v8138, 5
        %v8294 = vsel %vm1849, %v8292, %v8293
        %v8295 = vrot.slane %v8139, 5
        %v8296 = vrot.slane %v8295, 4
        %v8297 = vrot.slane %v8140, 5
        %v8298 = vsel %vm1849, %v8296, %v8297
        %v8299 = vrot.slane %v8297, 4
        %v8300 = vrot.slane %v8141, 5
        %v8301 = vsel %vm1849, %v8299, %v8300
        %v8302 = vunpack.c.l.b16 %v8193
        %v8303 = vunpack.c.l.b16 %v8196
        %v8304 = vunpack.c.l.b16 %v8200
        %v8305 = vunpack.c.l.b16 %v8203
        %v8306 = vunpack.c.l.b16 %v8207
        %v8307 = vunpack.c.l.b16 %v8210
        %v8308 = vunpack.c.l.b16 %v8214
        %v8309 = vunpack.c.l.b16 %v8217
        %v8310 = vunpack.c.l.b16 %v8221
        %v8311 = vunpack.c.l.b16 %v8224
        %v8312 = vunpack.c.l.b16 %v8228
        %v8313 = vunpack.c.l.b16 %v8231
        %v8314 = vunpack.c.l.b16 %v8235
        %v8315 = vunpack.c.l.b16 %v8238
        %v8316 = vunpack.c.l.b16 %v8242
        %v8317 = vunpack.c.l.b16 %v8245
        %v8318 = vunpack.c.l.b16 %v8249
        %v8319 = vunpack.c.l.b16 %v8252
        %v8320 = vunpack.c.l.b16 %v8256
        %v8321 = vunpack.c.l.b16 %v8259
        %v8322 = vunpack.c.l.b16 %v8263
        %v8323 = vunpack.c.l.b16 %v8266
        %v8324 = vunpack.c.l.b16 %v8270
        %v8325 = vunpack.c.l.b16 %v8273
        %v8326 = vunpack.c.l.b16 %v8277
        %v8327 = vunpack.c.l.b16 %v8280
        %v8328 = vunpack.c.l.b16 %v8284
        %v8329 = vunpack.c.l.b16 %v8287
        %v8330 = vunpack.c.l.b16 %v8291
        %v8331 = vunpack.c.l.b16 %v8294
        %v8332 = vunpack.c.l.b16 %v8298
        %v8333 = vunpack.c.l.b16 %v8301
        %v8334 = vpack.c.b16 %v8303, %v8302
        %v8335 = vpack.c.b16 %v8305, %v8304
        %v8336 = vpack.c.b16 %v8307, %v8306
        %v8337 = vpack.c.b16 %v8309, %v8308
        %v8338 = vpack.c.b16 %v8311, %v8310
        %v8339 = vpack.c.b16 %v8313, %v8312
        %v8340 = vpack.c.b16 %v8315, %v8314
        %v8341 = vpack.c.b16 %v8317, %v8316
        %v8342 = vpack.c.b16 %v8319, %v8318
        %v8343 = vpack.c.b16 %v8321, %v8320
        %v8344 = vpack.c.b16 %v8323, %v8322
        %v8345 = vpack.c.b16 %v8325, %v8324
        %v8346 = vpack.c.b16 %v8327, %v8326
        %v8347 = vpack.c.b16 %v8329, %v8328
        %v8348 = vpack.c.b16 %v8331, %v8330
        %v8349 = vpack.c.b16 %v8333, %v8332
        %8366 = vst [vmem:[#allocation3 + $0x28] sm:$0xff] %v8334
        %8367 = vst [vmem:[#allocation3 + $0x70] sm:$0xff] %v8335
        %8368 = vst [vmem:[#allocation3 + $0xb8] sm:$0xff] %v8336
        %8369 = vst [vmem:[#allocation3 + $0x100] sm:$0xff] %v8337
        %8370 = vst [vmem:[#allocation3 + $0x148] sm:$0xff] %v8338
        %8371 = vst [vmem:[#allocation3 + $0x190] sm:$0xff] %v8339
        %8372 = vst [vmem:[#allocation3 + $0x1d8] sm:$0xff] %v8340
        %8373 = vst [vmem:[#allocation3 + $0x220] sm:$0xff] %v8341
        %8374 = vst [vmem:[#allocation3 + $0x268] sm:$0xff] %v8342
        %8375 = vst [vmem:[#allocation3 + $0x2b0] sm:$0xff] %v8343
        %8376 = vst [vmem:[#allocation3 + $0x2f8] sm:$0xff] %v8344
        %8377 = vst [vmem:[#allocation3 + $0x340] sm:$0xff] %v8345
        %8378 = vst [vmem:[#allocation3 + $0x388] sm:$0xff] %v8346
        %8379 = vst [vmem:[#allocation3 + $0x3d0] sm:$0xff] %v8347
        %8380 = vst [vmem:[#allocation3 + $0x418] sm:$0xff] %v8348
        %8381 = vst [vmem:[#allocation3 + $0x460] sm:$0xff] %v8349
        %v8382 = vld [vmem:[%s2986] sm:$0xf]
        %v8383 = vld [vmem:[%s2986 + $0x4] sm:$0xf]
        %v8384 = vld [vmem:[%s2986 + $0xc] sm:$0xf]
        %v8385 = vld [vmem:[%s2986 + $0x10] sm:$0xf]
        %v8386 = vld [vmem:[%s2986 + $0x18] sm:$0xf]
        %v8387 = vld [vmem:[%s2986 + $0x1c] sm:$0xf]
        %v8388 = vld [vmem:[%s2986 + $0x24] sm:$0xf]
        %v8389 = vld [vmem:[%s2986 + $0x28] sm:$0xf]
        %v8390 = vld [vmem:[%s2986 + $0x30] sm:$0xf]
        %v8391 = vld [vmem:[%s2986 + $0x34] sm:$0xf]
        %v8392 = vld [vmem:[%s2986 + $0x3c] sm:$0xf]
        %v8393 = vld [vmem:[%s2986 + $0x40] sm:$0xf]
        %v8394 = vld [vmem:[%s2986 + $0x48] sm:$0xf]
        %v8395 = vld [vmem:[%s2986 + $0x4c] sm:$0xf]
        %v8396 = vld [vmem:[%s2986 + $0x54] sm:$0xf]
        %v8397 = vld [vmem:[%s2986 + $0x58] sm:$0xf]
        %v8398 = vld [vmem:[%s2986 + $0x60] sm:$0xf]
        %v8399 = vld [vmem:[%s2986 + $0x64] sm:$0xf]
        %v8400 = vld [vmem:[%s2986 + $0x6c] sm:$0xf]
        %v8401 = vld [vmem:[%s2986 + $0x70] sm:$0xf]
        %v8402 = vld [vmem:[%s2986 + $0x78] sm:$0xf]
        %v8403 = vld [vmem:[%s2986 + $0x7c] sm:$0xf]
        %v8404 = vld [vmem:[%s2986 + $0x84] sm:$0xf]
        %v8405 = vld [vmem:[%s2986 + $0x88] sm:$0xf]
        %v8406 = vld [vmem:[%s2986 + $0x90] sm:$0xf]
        %v8407 = vld [vmem:[%s2986 + $0x94] sm:$0xf]
        %v8408 = vld [vmem:[%s2986 + $0x9c] sm:$0xf]
        %v8409 = vld [vmem:[%s2986 + $0xa0] sm:$0xf]
        %v8410 = vld [vmem:[%s2986 + $0xa8] sm:$0xf]
        %v8411 = vld [vmem:[%s2986 + $0xac] sm:$0xf]
        %v8412 = vld [vmem:[%s2986 + $0xb4] sm:$0xf]
        %v8413 = vld [vmem:[%s2986 + $0xb8] sm:$0xf]
        %v8446 = vunpack.c.l.b16 %v8382
        %v8447 = vunpack.c.l.b16 %v8383
        %v8448 = vunpack.c.l.b16 %v8384
        %v8449 = vunpack.c.l.b16 %v8385
        %v8450 = vunpack.c.l.b16 %v8386
        %v8451 = vunpack.c.l.b16 %v8387
        %v8452 = vunpack.c.l.b16 %v8388
        %v8453 = vunpack.c.l.b16 %v8389
        %v8454 = vunpack.c.l.b16 %v8390
        %v8455 = vunpack.c.l.b16 %v8391
        %v8456 = vunpack.c.l.b16 %v8392
        %v8457 = vunpack.c.l.b16 %v8393
        %v8458 = vunpack.c.l.b16 %v8394
        %v8459 = vunpack.c.l.b16 %v8395
        %v8460 = vunpack.c.l.b16 %v8396
        %v8461 = vunpack.c.l.b16 %v8397
        %v8462 = vunpack.c.l.b16 %v8398
        %v8463 = vunpack.c.l.b16 %v8399
        %v8464 = vunpack.c.l.b16 %v8400
        %v8465 = vunpack.c.l.b16 %v8401
        %v8466 = vunpack.c.l.b16 %v8402
        %v8467 = vunpack.c.l.b16 %v8403
        %v8468 = vunpack.c.l.b16 %v8404
        %v8469 = vunpack.c.l.b16 %v8405
        %v8470 = vunpack.c.l.b16 %v8406
        %v8471 = vunpack.c.l.b16 %v8407
        %v8472 = vunpack.c.l.b16 %v8408
        %v8473 = vunpack.c.l.b16 %v8409
        %v8474 = vunpack.c.l.b16 %v8410
        %v8475 = vunpack.c.l.b16 %v8411
        %v8476 = vunpack.c.l.b16 %v8412
        %v8477 = vunpack.c.l.b16 %v8413
        %v8478 = vpack.c.b16 %v8447, %v8446
        %v8479 = vpack.c.b16 %v8449, %v8448
        %v8480 = vpack.c.b16 %v8451, %v8450
        %v8481 = vpack.c.b16 %v8453, %v8452
        %v8482 = vpack.c.b16 %v8455, %v8454
        %v8483 = vpack.c.b16 %v8457, %v8456
        %v8484 = vpack.c.b16 %v8459, %v8458
        %v8485 = vpack.c.b16 %v8461, %v8460
        %v8486 = vpack.c.b16 %v8463, %v8462
        %v8487 = vpack.c.b16 %v8465, %v8464
        %v8488 = vpack.c.b16 %v8467, %v8466
        %v8489 = vpack.c.b16 %v8469, %v8468
        %v8490 = vpack.c.b16 %v8471, %v8470
        %v8491 = vpack.c.b16 %v8473, %v8472
        %v8492 = vpack.c.b16 %v8475, %v8474
        %v8493 = vpack.c.b16 %v8477, %v8476
        %8510 = vst [vmem:[#allocation3 + $0x30] sm:$0xff] %v8478
        %8511 = vst [vmem:[#allocation3 + $0x78] sm:$0xff] %v8479
        %8512 = vst [vmem:[#allocation3 + $0xc0] sm:$0xff] %v8480
        %8513 = vst [vmem:[#allocation3 + $0x108] sm:$0xff] %v8481
        %8514 = vst [vmem:[#allocation3 + $0x150] sm:$0xff] %v8482
        %8515 = vst [vmem:[#allocation3 + $0x198] sm:$0xff] %v8483
        %8516 = vst [vmem:[#allocation3 + $0x1e0] sm:$0xff] %v8484
        %8517 = vst [vmem:[#allocation3 + $0x228] sm:$0xff] %v8485
        %8518 = vst [vmem:[#allocation3 + $0x270] sm:$0xff] %v8486
        %8519 = vst [vmem:[#allocation3 + $0x2b8] sm:$0xff] %v8487
        %8520 = vst [vmem:[#allocation3 + $0x300] sm:$0xff] %v8488
        %8521 = vst [vmem:[#allocation3 + $0x348] sm:$0xff] %v8489
        %8522 = vst [vmem:[#allocation3 + $0x390] sm:$0xff] %v8490
        %8523 = vst [vmem:[#allocation3 + $0x3d8] sm:$0xff] %v8491
        %8524 = vst [vmem:[#allocation3 + $0x420] sm:$0xff] %v8492
        %8525 = vst [vmem:[#allocation3 + $0x468] sm:$0xff] %v8493
        %v8526 = vld [vmem:[%s2986] sm:$0xf]
        %v8527 = vld [vmem:[%s2986 + $0x4] sm:$0xf]
        %v8528 = vld [vmem:[%s2986 + $0x8] sm:$0x1]
        %v8529 = vld [vmem:[%s2986 + $0xc] sm:$0xf]
        %v8530 = vld [vmem:[%s2986 + $0x10] sm:$0xf]
        %v8531 = vld [vmem:[%s2986 + $0x14] sm:$0x1]
        %v8532 = vld [vmem:[%s2986 + $0x18] sm:$0xf]
        %v8533 = vld [vmem:[%s2986 + $0x1c] sm:$0xf]
        %v8534 = vld [vmem:[%s2986 + $0x20] sm:$0x1]
        %v8535 = vld [vmem:[%s2986 + $0x24] sm:$0xf]
        %v8536 = vld [vmem:[%s2986 + $0x28] sm:$0xf]
        %v8537 = vld [vmem:[%s2986 + $0x2c] sm:$0x1]
        %v8538 = vld [vmem:[%s2986 + $0x30] sm:$0xf]
        %v8539 = vld [vmem:[%s2986 + $0x34] sm:$0xf]
        %v8540 = vld [vmem:[%s2986 + $0x38] sm:$0x1]
        %v8541 = vld [vmem:[%s2986 + $0x3c] sm:$0xf]
        %v8542 = vld [vmem:[%s2986 + $0x40] sm:$0xf]
        %v8543 = vld [vmem:[%s2986 + $0x44] sm:$0x1]
        %v8544 = vld [vmem:[%s2986 + $0x48] sm:$0xf]
        %v8545 = vld [vmem:[%s2986 + $0x4c] sm:$0xf]
        %v8546 = vld [vmem:[%s2986 + $0x50] sm:$0x1]
        %v8547 = vld [vmem:[%s2986 + $0x54] sm:$0xf]
        %v8548 = vld [vmem:[%s2986 + $0x58] sm:$0xf]
        %v8549 = vld [vmem:[%s2986 + $0x5c] sm:$0x1]
        %v8550 = vld [vmem:[%s2986 + $0x60] sm:$0xf]
        %v8551 = vld [vmem:[%s2986 + $0x64] sm:$0xf]
        %v8552 = vld [vmem:[%s2986 + $0x68] sm:$0x1]
        %v8553 = vld [vmem:[%s2986 + $0x6c] sm:$0xf]
        %v8554 = vld [vmem:[%s2986 + $0x70] sm:$0xf]
        %v8555 = vld [vmem:[%s2986 + $0x74] sm:$0x1]
        %v8556 = vld [vmem:[%s2986 + $0x78] sm:$0xf]
        %v8557 = vld [vmem:[%s2986 + $0x7c] sm:$0xf]
        %v8558 = vld [vmem:[%s2986 + $0x80] sm:$0x1]
        %v8559 = vld [vmem:[%s2986 + $0x84] sm:$0xf]
        %v8560 = vld [vmem:[%s2986 + $0x88] sm:$0xf]
        %v8561 = vld [vmem:[%s2986 + $0x8c] sm:$0x1]
        %v8562 = vld [vmem:[%s2986 + $0x90] sm:$0xf]
        %v8563 = vld [vmem:[%s2986 + $0x94] sm:$0xf]
        %v8564 = vld [vmem:[%s2986 + $0x98] sm:$0x1]
        %v8565 = vld [vmem:[%s2986 + $0x9c] sm:$0xf]
        %v8566 = vld [vmem:[%s2986 + $0xa0] sm:$0xf]
        %v8567 = vld [vmem:[%s2986 + $0xa4] sm:$0x1]
        %v8568 = vld [vmem:[%s2986 + $0xa8] sm:$0xf]
        %v8569 = vld [vmem:[%s2986 + $0xac] sm:$0xf]
        %v8570 = vld [vmem:[%s2986 + $0xb0] sm:$0x1]
        %v8571 = vld [vmem:[%s2986 + $0xb4] sm:$0xf]
        %v8572 = vld [vmem:[%s2986 + $0xb8] sm:$0xf]
        %v8573 = vld [vmem:[%s2986 + $0xbc] sm:$0x1]
        %v8575 = vshrl.u32 %v8526, 16
        %v8577 = vrot.slane %v8575, 4
        %v8578 = vshll.u32 %v8526, 16
        %v8580 = vrot.slane %v8578, 5
        %v8581 = vor.u32 %v8577, %v8580
        %v8582 = vrot.slane %v8581, 4
        %v8584 = vshll.u32 %v8527, 16
        %v8586 = vrot.slane %v8584, 5
        %v8587 = vsel %vm1286, %v8582, %v8586
        %v8588 = vshrl.u32 %v8527, 16
        %v8590 = vrot.slane %v8588, 4
        %v8591 = vor.u32 %v8590, %v8586
        %v8592 = vrot.slane %v8591, 4
        %v8594 = vshll.u32 %v8528, 16
        %v8596 = vrot.slane %v8594, 5
        %v8597 = vsel %vm1286, %v8592, %v8596
        %v8599 = vshrl.u32 %v8529, 16
        %v8601 = vrot.slane %v8599, 4
        %v8602 = vshll.u32 %v8529, 16
        %v8604 = vrot.slane %v8602, 5
        %v8605 = vor.u32 %v8601, %v8604
        %v8606 = vrot.slane %v8605, 4
        %v8608 = vshll.u32 %v8530, 16
        %v8610 = vrot.slane %v8608, 5
        %v8611 = vsel %vm1286, %v8606, %v8610
        %v8612 = vshrl.u32 %v8530, 16
        %v8614 = vrot.slane %v8612, 4
        %v8615 = vor.u32 %v8614, %v8610
        %v8616 = vrot.slane %v8615, 4
        %v8618 = vshll.u32 %v8531, 16
        %v8620 = vrot.slane %v8618, 5
        %v8621 = vsel %vm1286, %v8616, %v8620
        %v8623 = vshrl.u32 %v8532, 16
        %v8625 = vrot.slane %v8623, 4
        %v8626 = vshll.u32 %v8532, 16
        %v8628 = vrot.slane %v8626, 5
        %v8629 = vor.u32 %v8625, %v8628
        %v8630 = vrot.slane %v8629, 4
        %v8632 = vshll.u32 %v8533, 16
        %v8634 = vrot.slane %v8632, 5
        %v8635 = vsel %vm1286, %v8630, %v8634
        %v8636 = vshrl.u32 %v8533, 16
        %v8638 = vrot.slane %v8636, 4
        %v8639 = vor.u32 %v8638, %v8634
        %v8640 = vrot.slane %v8639, 4
        %v8642 = vshll.u32 %v8534, 16
        %v8644 = vrot.slane %v8642, 5
        %v8645 = vsel %vm1286, %v8640, %v8644
        %v8647 = vshrl.u32 %v8535, 16
        %v8649 = vrot.slane %v8647, 4
        %v8650 = vshll.u32 %v8535, 16
        %v8652 = vrot.slane %v8650, 5
        %v8653 = vor.u32 %v8649, %v8652
        %v8654 = vrot.slane %v8653, 4
        %v8656 = vshll.u32 %v8536, 16
        %v8658 = vrot.slane %v8656, 5
        %v8659 = vsel %vm1286, %v8654, %v8658
        %v8660 = vshrl.u32 %v8536, 16
        %v8662 = vrot.slane %v8660, 4
        %v8663 = vor.u32 %v8662, %v8658
        %v8664 = vrot.slane %v8663, 4
        %v8666 = vshll.u32 %v8537, 16
        %v8668 = vrot.slane %v8666, 5
        %v8669 = vsel %vm1286, %v8664, %v8668
        %v8671 = vshrl.u32 %v8538, 16
        %v8673 = vrot.slane %v8671, 4
        %v8674 = vshll.u32 %v8538, 16
        %v8676 = vrot.slane %v8674, 5
        %v8677 = vor.u32 %v8673, %v8676
        %v8678 = vrot.slane %v8677, 4
        %v8680 = vshll.u32 %v8539, 16
        %v8682 = vrot.slane %v8680, 5
        %v8683 = vsel %vm1286, %v8678, %v8682
        %v8684 = vshrl.u32 %v8539, 16
        %v8686 = vrot.slane %v8684, 4
        %v8687 = vor.u32 %v8686, %v8682
        %v8688 = vrot.slane %v8687, 4
        %v8690 = vshll.u32 %v8540, 16
        %v8692 = vrot.slane %v8690, 5
        %v8693 = vsel %vm1286, %v8688, %v8692
        %v8695 = vshrl.u32 %v8541, 16
        %v8697 = vrot.slane %v8695, 4
        %v8698 = vshll.u32 %v8541, 16
        %v8700 = vrot.slane %v8698, 5
        %v8701 = vor.u32 %v8697, %v8700
        %v8702 = vrot.slane %v8701, 4
        %v8704 = vshll.u32 %v8542, 16
        %v8706 = vrot.slane %v8704, 5
        %v8707 = vsel %vm1286, %v8702, %v8706
        %v8708 = vshrl.u32 %v8542, 16
        %v8710 = vrot.slane %v8708, 4
        %v8711 = vor.u32 %v8710, %v8706
        %v8712 = vrot.slane %v8711, 4
        %v8714 = vshll.u32 %v8543, 16
        %v8716 = vrot.slane %v8714, 5
        %v8717 = vsel %vm1286, %v8712, %v8716
        %v8719 = vshrl.u32 %v8544, 16
        %v8721 = vrot.slane %v8719, 4
        %v8722 = vshll.u32 %v8544, 16
        %v8724 = vrot.slane %v8722, 5
        %v8725 = vor.u32 %v8721, %v8724
        %v8726 = vrot.slane %v8725, 4
        %v8728 = vshll.u32 %v8545, 16
        %v8730 = vrot.slane %v8728, 5
        %v8731 = vsel %vm1286, %v8726, %v8730
        %v8732 = vshrl.u32 %v8545, 16
        %v8734 = vrot.slane %v8732, 4
        %v8735 = vor.u32 %v8734, %v8730
        %v8736 = vrot.slane %v8735, 4
        %v8738 = vshll.u32 %v8546, 16
        %v8740 = vrot.slane %v8738, 5
        %v8741 = vsel %vm1286, %v8736, %v8740
        %v8743 = vshrl.u32 %v8547, 16
        %v8745 = vrot.slane %v8743, 4
        %v8746 = vshll.u32 %v8547, 16
        %v8748 = vrot.slane %v8746, 5
        %v8749 = vor.u32 %v8745, %v8748
        %v8750 = vrot.slane %v8749, 4
        %v8752 = vshll.u32 %v8548, 16
        %v8754 = vrot.slane %v8752, 5
        %v8755 = vsel %vm1286, %v8750, %v8754
        %v8756 = vshrl.u32 %v8548, 16
        %v8758 = vrot.slane %v8756, 4
        %v8759 = vor.u32 %v8758, %v8754
        %v8760 = vrot.slane %v8759, 4
        %v8762 = vshll.u32 %v8549, 16
        %v8764 = vrot.slane %v8762, 5
        %v8765 = vsel %vm1286, %v8760, %v8764
        %v8767 = vshrl.u32 %v8550, 16
        %v8769 = vrot.slane %v8767, 4
        %v8770 = vshll.u32 %v8550, 16
        %v8772 = vrot.slane %v8770, 5
        %v8773 = vor.u32 %v8769, %v8772
        %v8774 = vrot.slane %v8773, 4
        %v8776 = vshll.u32 %v8551, 16
        %v8778 = vrot.slane %v8776, 5
        %v8779 = vsel %vm1286, %v8774, %v8778
        %v8780 = vshrl.u32 %v8551, 16
        %v8782 = vrot.slane %v8780, 4
        %v8783 = vor.u32 %v8782, %v8778
        %v8784 = vrot.slane %v8783, 4
        %v8786 = vshll.u32 %v8552, 16
        %v8788 = vrot.slane %v8786, 5
        %v8789 = vsel %vm1286, %v8784, %v8788
        %v8791 = vshrl.u32 %v8553, 16
        %v8793 = vrot.slane %v8791, 4
        %v8794 = vshll.u32 %v8553, 16
        %v8796 = vrot.slane %v8794, 5
        %v8797 = vor.u32 %v8793, %v8796
        %v8798 = vrot.slane %v8797, 4
        %v8800 = vshll.u32 %v8554, 16
        %v8802 = vrot.slane %v8800, 5
        %v8803 = vsel %vm1286, %v8798, %v8802
        %v8804 = vshrl.u32 %v8554, 16
        %v8806 = vrot.slane %v8804, 4
        %v8807 = vor.u32 %v8806, %v8802
        %v8808 = vrot.slane %v8807, 4
        %v8810 = vshll.u32 %v8555, 16
        %v8812 = vrot.slane %v8810, 5
        %v8813 = vsel %vm1286, %v8808, %v8812
        %v8815 = vshrl.u32 %v8556, 16
        %v8817 = vrot.slane %v8815, 4
        %v8818 = vshll.u32 %v8556, 16
        %v8820 = vrot.slane %v8818, 5
        %v8821 = vor.u32 %v8817, %v8820
        %v8822 = vrot.slane %v8821, 4
        %v8824 = vshll.u32 %v8557, 16
        %v8826 = vrot.slane %v8824, 5
        %v8827 = vsel %vm1286, %v8822, %v8826
        %v8828 = vshrl.u32 %v8557, 16
        %v8830 = vrot.slane %v8828, 4
        %v8831 = vor.u32 %v8830, %v8826
        %v8832 = vrot.slane %v8831, 4
        %v8834 = vshll.u32 %v8558, 16
        %v8836 = vrot.slane %v8834, 5
        %v8837 = vsel %vm1286, %v8832, %v8836
        %v8839 = vshrl.u32 %v8559, 16
        %v8841 = vrot.slane %v8839, 4
        %v8842 = vshll.u32 %v8559, 16
        %v8844 = vrot.slane %v8842, 5
        %v8845 = vor.u32 %v8841, %v8844
        %v8846 = vrot.slane %v8845, 4
        %v8848 = vshll.u32 %v8560, 16
        %v8850 = vrot.slane %v8848, 5
        %v8851 = vsel %vm1286, %v8846, %v8850
        %v8852 = vshrl.u32 %v8560, 16
        %v8854 = vrot.slane %v8852, 4
        %v8855 = vor.u32 %v8854, %v8850
        %v8856 = vrot.slane %v8855, 4
        %v8858 = vshll.u32 %v8561, 16
        %v8860 = vrot.slane %v8858, 5
        %v8861 = vsel %vm1286, %v8856, %v8860
        %v8863 = vshrl.u32 %v8562, 16
        %v8865 = vrot.slane %v8863, 4
        %v8866 = vshll.u32 %v8562, 16
        %v8868 = vrot.slane %v8866, 5
        %v8869 = vor.u32 %v8865, %v8868
        %v8870 = vrot.slane %v8869, 4
        %v8872 = vshll.u32 %v8563, 16
        %v8874 = vrot.slane %v8872, 5
        %v8875 = vsel %vm1286, %v8870, %v8874
        %v8876 = vshrl.u32 %v8563, 16
        %v8878 = vrot.slane %v8876, 4
        %v8879 = vor.u32 %v8878, %v8874
        %v8880 = vrot.slane %v8879, 4
        %v8882 = vshll.u32 %v8564, 16
        %v8884 = vrot.slane %v8882, 5
        %v8885 = vsel %vm1286, %v8880, %v8884
        %v8887 = vshrl.u32 %v8565, 16
        %v8889 = vrot.slane %v8887, 4
        %v8890 = vshll.u32 %v8565, 16
        %v8892 = vrot.slane %v8890, 5
        %v8893 = vor.u32 %v8889, %v8892
        %v8894 = vrot.slane %v8893, 4
        %v8896 = vshll.u32 %v8566, 16
        %v8898 = vrot.slane %v8896, 5
        %v8899 = vsel %vm1286, %v8894, %v8898
        %v8900 = vshrl.u32 %v8566, 16
        %v8902 = vrot.slane %v8900, 4
        %v8903 = vor.u32 %v8902, %v8898
        %v8904 = vrot.slane %v8903, 4
        %v8906 = vshll.u32 %v8567, 16
        %v8908 = vrot.slane %v8906, 5
        %v8909 = vsel %vm1286, %v8904, %v8908
        %v8911 = vshrl.u32 %v8568, 16
        %v8913 = vrot.slane %v8911, 4
        %v8914 = vshll.u32 %v8568, 16
        %v8916 = vrot.slane %v8914, 5
        %v8917 = vor.u32 %v8913, %v8916
        %v8918 = vrot.slane %v8917, 4
        %v8920 = vshll.u32 %v8569, 16
        %v8922 = vrot.slane %v8920, 5
        %v8923 = vsel %vm1286, %v8918, %v8922
        %v8924 = vshrl.u32 %v8569, 16
        %v8926 = vrot.slane %v8924, 4
        %v8927 = vor.u32 %v8926, %v8922
        %v8928 = vrot.slane %v8927, 4
        %v8930 = vshll.u32 %v8570, 16
        %v8932 = vrot.slane %v8930, 5
        %v8933 = vsel %vm1286, %v8928, %v8932
        %v8935 = vshrl.u32 %v8571, 16
        %v8937 = vrot.slane %v8935, 4
        %v8938 = vshll.u32 %v8571, 16
        %v8940 = vrot.slane %v8938, 5
        %v8941 = vor.u32 %v8937, %v8940
        %v8942 = vrot.slane %v8941, 4
        %v8944 = vshll.u32 %v8572, 16
        %v8946 = vrot.slane %v8944, 5
        %v8947 = vsel %vm1286, %v8942, %v8946
        %v8948 = vshrl.u32 %v8572, 16
        %v8950 = vrot.slane %v8948, 4
        %v8951 = vor.u32 %v8950, %v8946
        %v8952 = vrot.slane %v8951, 4
        %v8954 = vshll.u32 %v8573, 16
        %v8956 = vrot.slane %v8954, 5
        %v8957 = vsel %vm1286, %v8952, %v8956
        %v8958 = vunpack.c.l.b16 %v8587
        %v8959 = vunpack.c.l.b16 %v8597
        %v8960 = vunpack.c.l.b16 %v8611
        %v8961 = vunpack.c.l.b16 %v8621
        %v8962 = vunpack.c.l.b16 %v8635
        %v8963 = vunpack.c.l.b16 %v8645
        %v8964 = vunpack.c.l.b16 %v8659
        %v8965 = vunpack.c.l.b16 %v8669
        %v8966 = vunpack.c.l.b16 %v8683
        %v8967 = vunpack.c.l.b16 %v8693
        %v8968 = vunpack.c.l.b16 %v8707
        %v8969 = vunpack.c.l.b16 %v8717
        %v8970 = vunpack.c.l.b16 %v8731
        %v8971 = vunpack.c.l.b16 %v8741
        %v8972 = vunpack.c.l.b16 %v8755
        %v8973 = vunpack.c.l.b16 %v8765
        %v8974 = vunpack.c.l.b16 %v8779
        %v8975 = vunpack.c.l.b16 %v8789
        %v8976 = vunpack.c.l.b16 %v8803
        %v8977 = vunpack.c.l.b16 %v8813
        %v8978 = vunpack.c.l.b16 %v8827
        %v8979 = vunpack.c.l.b16 %v8837
        %v8980 = vunpack.c.l.b16 %v8851
        %v8981 = vunpack.c.l.b16 %v8861
        %v8982 = vunpack.c.l.b16 %v8875
        %v8983 = vunpack.c.l.b16 %v8885
        %v8984 = vunpack.c.l.b16 %v8899
        %v8985 = vunpack.c.l.b16 %v8909
        %v8986 = vunpack.c.l.b16 %v8923
        %v8987 = vunpack.c.l.b16 %v8933
        %v8988 = vunpack.c.l.b16 %v8947
        %v8989 = vunpack.c.l.b16 %v8957
        %v8990 = vpack.c.b16 %v8959, %v8958
        %v8991 = vpack.c.b16 %v8961, %v8960
        %v8992 = vpack.c.b16 %v8963, %v8962
        %v8993 = vpack.c.b16 %v8965, %v8964
        %v8994 = vpack.c.b16 %v8967, %v8966
        %v8995 = vpack.c.b16 %v8969, %v8968
        %v8996 = vpack.c.b16 %v8971, %v8970
        %v8997 = vpack.c.b16 %v8973, %v8972
        %v8998 = vpack.c.b16 %v8975, %v8974
        %v8999 = vpack.c.b16 %v8977, %v8976
        %v9000 = vpack.c.b16 %v8979, %v8978
        %v9001 = vpack.c.b16 %v8981, %v8980
        %v9002 = vpack.c.b16 %v8983, %v8982
        %v9003 = vpack.c.b16 %v8985, %v8984
        %v9004 = vpack.c.b16 %v8987, %v8986
        %v9005 = vpack.c.b16 %v8989, %v8988
        %9022 = vst [vmem:[#allocation3 + $0x38] sm:$0xff] %v8990
        %9023 = vst [vmem:[#allocation3 + $0x80] sm:$0xff] %v8991
        %9024 = vst [vmem:[#allocation3 + $0xc8] sm:$0xff] %v8992
        %9025 = vst [vmem:[#allocation3 + $0x110] sm:$0xff] %v8993
        %9026 = vst [vmem:[#allocation3 + $0x158] sm:$0xff] %v8994
        %9027 = vst [vmem:[#allocation3 + $0x1a0] sm:$0xff] %v8995
        %9028 = vst [vmem:[#allocation3 + $0x1e8] sm:$0xff] %v8996
        %9029 = vst [vmem:[#allocation3 + $0x230] sm:$0xff] %v8997
        %9030 = vst [vmem:[#allocation3 + $0x278] sm:$0xff] %v8998
        %9031 = vst [vmem:[#allocation3 + $0x2c0] sm:$0xff] %v8999
        %9032 = vst [vmem:[#allocation3 + $0x308] sm:$0xff] %v9000
        %9033 = vst [vmem:[#allocation3 + $0x350] sm:$0xff] %v9001
        %9034 = vst [vmem:[#allocation3 + $0x398] sm:$0xff] %v9002
        %9035 = vst [vmem:[#allocation3 + $0x3e0] sm:$0xff] %v9003
        %9036 = vst [vmem:[#allocation3 + $0x428] sm:$0xff] %v9004
        %9037 = vst [vmem:[#allocation3 + $0x470] sm:$0xff] %v9005
        %v9038 = vld [vmem:[%s2986] sm:$0xe]
        %v9039 = vld [vmem:[%s2986 + $0x4] sm:$0xf]
        %v9040 = vld [vmem:[%s2986 + $0x8] sm:$0x1]
        %v9041 = vld [vmem:[%s2986 + $0xc] sm:$0xe]
        %v9042 = vld [vmem:[%s2986 + $0x10] sm:$0xf]
        %v9043 = vld [vmem:[%s2986 + $0x14] sm:$0x1]
        %v9044 = vld [vmem:[%s2986 + $0x18] sm:$0xe]
        %v9045 = vld [vmem:[%s2986 + $0x1c] sm:$0xf]
        %v9046 = vld [vmem:[%s2986 + $0x20] sm:$0x1]
        %v9047 = vld [vmem:[%s2986 + $0x24] sm:$0xe]
        %v9048 = vld [vmem:[%s2986 + $0x28] sm:$0xf]
        %v9049 = vld [vmem:[%s2986 + $0x2c] sm:$0x1]
        %v9050 = vld [vmem:[%s2986 + $0x30] sm:$0xe]
        %v9051 = vld [vmem:[%s2986 + $0x34] sm:$0xf]
        %v9052 = vld [vmem:[%s2986 + $0x38] sm:$0x1]
        %v9053 = vld [vmem:[%s2986 + $0x3c] sm:$0xe]
        %v9054 = vld [vmem:[%s2986 + $0x40] sm:$0xf]
        %v9055 = vld [vmem:[%s2986 + $0x44] sm:$0x1]
        %v9056 = vld [vmem:[%s2986 + $0x48] sm:$0xe]
        %v9057 = vld [vmem:[%s2986 + $0x4c] sm:$0xf]
        %v9058 = vld [vmem:[%s2986 + $0x50] sm:$0x1]
        %v9059 = vld [vmem:[%s2986 + $0x54] sm:$0xe]
        %v9060 = vld [vmem:[%s2986 + $0x58] sm:$0xf]
        %v9061 = vld [vmem:[%s2986 + $0x5c] sm:$0x1]
        %v9062 = vld [vmem:[%s2986 + $0x60] sm:$0xe]
        %v9063 = vld [vmem:[%s2986 + $0x64] sm:$0xf]
        %v9064 = vld [vmem:[%s2986 + $0x68] sm:$0x1]
        %v9065 = vld [vmem:[%s2986 + $0x6c] sm:$0xe]
        %v9066 = vld [vmem:[%s2986 + $0x70] sm:$0xf]
        %v9067 = vld [vmem:[%s2986 + $0x74] sm:$0x1]
        %v9068 = vld [vmem:[%s2986 + $0x78] sm:$0xe]
        %v9069 = vld [vmem:[%s2986 + $0x7c] sm:$0xf]
        %v9070 = vld [vmem:[%s2986 + $0x80] sm:$0x1]
        %v9071 = vld [vmem:[%s2986 + $0x84] sm:$0xe]
        %v9072 = vld [vmem:[%s2986 + $0x88] sm:$0xf]
        %v9073 = vld [vmem:[%s2986 + $0x8c] sm:$0x1]
        %v9074 = vld [vmem:[%s2986 + $0x90] sm:$0xe]
        %v9075 = vld [vmem:[%s2986 + $0x94] sm:$0xf]
        %v9076 = vld [vmem:[%s2986 + $0x98] sm:$0x1]
        %v9077 = vld [vmem:[%s2986 + $0x9c] sm:$0xe]
        %v9078 = vld [vmem:[%s2986 + $0xa0] sm:$0xf]
        %v9079 = vld [vmem:[%s2986 + $0xa4] sm:$0x1]
        %v9080 = vld [vmem:[%s2986 + $0xa8] sm:$0xe]
        %v9081 = vld [vmem:[%s2986 + $0xac] sm:$0xf]
        %v9082 = vld [vmem:[%s2986 + $0xb0] sm:$0x1]
        %v9083 = vld [vmem:[%s2986 + $0xb4] sm:$0xe]
        %v9084 = vld [vmem:[%s2986 + $0xb8] sm:$0xf]
        %v9085 = vld [vmem:[%s2986 + $0xbc] sm:$0x1]
        %v9134 = vrot.slane %v9038, 5
        %v9135 = vrot.slane %v9134, 4
        %v9136 = vrot.slane %v9039, 5
        %v9137 = vsel %vm1849, %v9135, %v9136
        %v9138 = vrot.slane %v9136, 4
        %v9139 = vrot.slane %v9040, 5
        %v9140 = vsel %vm1849, %v9138, %v9139
        %v9141 = vrot.slane %v9041, 5
        %v9142 = vrot.slane %v9141, 4
        %v9143 = vrot.slane %v9042, 5
        %v9144 = vsel %vm1849, %v9142, %v9143
        %v9145 = vrot.slane %v9143, 4
        %v9146 = vrot.slane %v9043, 5
        %v9147 = vsel %vm1849, %v9145, %v9146
        %v9148 = vrot.slane %v9044, 5
        %v9149 = vrot.slane %v9148, 4
        %v9150 = vrot.slane %v9045, 5
        %v9151 = vsel %vm1849, %v9149, %v9150
        %v9152 = vrot.slane %v9150, 4
        %v9153 = vrot.slane %v9046, 5
        %v9154 = vsel %vm1849, %v9152, %v9153
        %v9155 = vrot.slane %v9047, 5
        %v9156 = vrot.slane %v9155, 4
        %v9157 = vrot.slane %v9048, 5
        %v9158 = vsel %vm1849, %v9156, %v9157
        %v9159 = vrot.slane %v9157, 4
        %v9160 = vrot.slane %v9049, 5
        %v9161 = vsel %vm1849, %v9159, %v9160
        %v9162 = vrot.slane %v9050, 5
        %v9163 = vrot.slane %v9162, 4
        %v9164 = vrot.slane %v9051, 5
        %v9165 = vsel %vm1849, %v9163, %v9164
        %v9166 = vrot.slane %v9164, 4
        %v9167 = vrot.slane %v9052, 5
        %v9168 = vsel %vm1849, %v9166, %v9167
        %v9169 = vrot.slane %v9053, 5
        %v9170 = vrot.slane %v9169, 4
        %v9171 = vrot.slane %v9054, 5
        %v9172 = vsel %vm1849, %v9170, %v9171
        %v9173 = vrot.slane %v9171, 4
        %v9174 = vrot.slane %v9055, 5
        %v9175 = vsel %vm1849, %v9173, %v9174
        %v9176 = vrot.slane %v9056, 5
        %v9177 = vrot.slane %v9176, 4
        %v9178 = vrot.slane %v9057, 5
        %v9179 = vsel %vm1849, %v9177, %v9178
        %v9180 = vrot.slane %v9178, 4
        %v9181 = vrot.slane %v9058, 5
        %v9182 = vsel %vm1849, %v9180, %v9181
        %v9183 = vrot.slane %v9059, 5
        %v9184 = vrot.slane %v9183, 4
        %v9185 = vrot.slane %v9060, 5
        %v9186 = vsel %vm1849, %v9184, %v9185
        %v9187 = vrot.slane %v9185, 4
        %v9188 = vrot.slane %v9061, 5
        %v9189 = vsel %vm1849, %v9187, %v9188
        %v9190 = vrot.slane %v9062, 5
        %v9191 = vrot.slane %v9190, 4
        %v9192 = vrot.slane %v9063, 5
        %v9193 = vsel %vm1849, %v9191, %v9192
        %v9194 = vrot.slane %v9192, 4
        %v9195 = vrot.slane %v9064, 5
        %v9196 = vsel %vm1849, %v9194, %v9195
        %v9197 = vrot.slane %v9065, 5
        %v9198 = vrot.slane %v9197, 4
        %v9199 = vrot.slane %v9066, 5
        %v9200 = vsel %vm1849, %v9198, %v9199
        %v9201 = vrot.slane %v9199, 4
        %v9202 = vrot.slane %v9067, 5
        %v9203 = vsel %vm1849, %v9201, %v9202
        %v9204 = vrot.slane %v9068, 5
        %v9205 = vrot.slane %v9204, 4
        %v9206 = vrot.slane %v9069, 5
        %v9207 = vsel %vm1849, %v9205, %v9206
        %v9208 = vrot.slane %v9206, 4
        %v9209 = vrot.slane %v9070, 5
        %v9210 = vsel %vm1849, %v9208, %v9209
        %v9211 = vrot.slane %v9071, 5
        %v9212 = vrot.slane %v9211, 4
        %v9213 = vrot.slane %v9072, 5
        %v9214 = vsel %vm1849, %v9212, %v9213
        %v9215 = vrot.slane %v9213, 4
        %v9216 = vrot.slane %v9073, 5
        %v9217 = vsel %vm1849, %v9215, %v9216
        %v9218 = vrot.slane %v9074, 5
        %v9219 = vrot.slane %v9218, 4
        %v9220 = vrot.slane %v9075, 5
        %v9221 = vsel %vm1849, %v9219, %v9220
        %v9222 = vrot.slane %v9220, 4
        %v9223 = vrot.slane %v9076, 5
        %v9224 = vsel %vm1849, %v9222, %v9223
        %v9225 = vrot.slane %v9077, 5
        %v9226 = vrot.slane %v9225, 4
        %v9227 = vrot.slane %v9078, 5
        %v9228 = vsel %vm1849, %v9226, %v9227
        %v9229 = vrot.slane %v9227, 4
        %v9230 = vrot.slane %v9079, 5
        %v9231 = vsel %vm1849, %v9229, %v9230
        %v9232 = vrot.slane %v9080, 5
        %v9233 = vrot.slane %v9232, 4
        %v9234 = vrot.slane %v9081, 5
        %v9235 = vsel %vm1849, %v9233, %v9234
        %v9236 = vrot.slane %v9234, 4
        %v9237 = vrot.slane %v9082, 5
        %v9238 = vsel %vm1849, %v9236, %v9237
        %v9239 = vrot.slane %v9083, 5
        %v9240 = vrot.slane %v9239, 4
        %v9241 = vrot.slane %v9084, 5
        %v9242 = vsel %vm1849, %v9240, %v9241
        %v9243 = vrot.slane %v9241, 4
        %v9244 = vrot.slane %v9085, 5
        %v9245 = vsel %vm1849, %v9243, %v9244
        %v9246 = vunpack.c.l.b16 %v9137
        %v9247 = vunpack.c.l.b16 %v9140
        %v9248 = vunpack.c.l.b16 %v9144
        %v9249 = vunpack.c.l.b16 %v9147
        %v9250 = vunpack.c.l.b16 %v9151
        %v9251 = vunpack.c.l.b16 %v9154
        %v9252 = vunpack.c.l.b16 %v9158
        %v9253 = vunpack.c.l.b16 %v9161
        %v9254 = vunpack.c.l.b16 %v9165
        %v9255 = vunpack.c.l.b16 %v9168
        %v9256 = vunpack.c.l.b16 %v9172
        %v9257 = vunpack.c.l.b16 %v9175
        %v9258 = vunpack.c.l.b16 %v9179
        %v9259 = vunpack.c.l.b16 %v9182
        %v9260 = vunpack.c.l.b16 %v9186
        %v9261 = vunpack.c.l.b16 %v9189
        %v9262 = vunpack.c.l.b16 %v9193
        %v9263 = vunpack.c.l.b16 %v9196
        %v9264 = vunpack.c.l.b16 %v9200
        %v9265 = vunpack.c.l.b16 %v9203
        %v9266 = vunpack.c.l.b16 %v9207
        %v9267 = vunpack.c.l.b16 %v9210
        %v9268 = vunpack.c.l.b16 %v9214
        %v9269 = vunpack.c.l.b16 %v9217
        %v9270 = vunpack.c.l.b16 %v9221
        %v9271 = vunpack.c.l.b16 %v9224
        %v9272 = vunpack.c.l.b16 %v9228
        %v9273 = vunpack.c.l.b16 %v9231
        %v9274 = vunpack.c.l.b16 %v9235
        %v9275 = vunpack.c.l.b16 %v9238
        %v9276 = vunpack.c.l.b16 %v9242
        %v9277 = vunpack.c.l.b16 %v9245
        %v9278 = vpack.c.b16 %v9247, %v9246
        %v9279 = vpack.c.b16 %v9249, %v9248
        %v9280 = vpack.c.b16 %v9251, %v9250
        %v9281 = vpack.c.b16 %v9253, %v9252
        %v9282 = vpack.c.b16 %v9255, %v9254
        %v9283 = vpack.c.b16 %v9257, %v9256
        %v9284 = vpack.c.b16 %v9259, %v9258
        %v9285 = vpack.c.b16 %v9261, %v9260
        %v9286 = vpack.c.b16 %v9263, %v9262
        %v9287 = vpack.c.b16 %v9265, %v9264
        %v9288 = vpack.c.b16 %v9267, %v9266
        %v9289 = vpack.c.b16 %v9269, %v9268
        %v9290 = vpack.c.b16 %v9271, %v9270
        %v9291 = vpack.c.b16 %v9273, %v9272
        %v9292 = vpack.c.b16 %v9275, %v9274
        %v9293 = vpack.c.b16 %v9277, %v9276
        %9310 = vst [vmem:[#allocation3 + $0x40] sm:$0xff] %v9278
        %9311 = vst [vmem:[#allocation3 + $0x88] sm:$0xff] %v9279
        %9312 = vst [vmem:[#allocation3 + $0xd0] sm:$0xff] %v9280
        %9313 = vst [vmem:[#allocation3 + $0x118] sm:$0xff] %v9281
        %9314 = vst [vmem:[#allocation3 + $0x160] sm:$0xff] %v9282
        %9315 = vst [vmem:[#allocation3 + $0x1a8] sm:$0xff] %v9283
        %9316 = vst [vmem:[#allocation3 + $0x1f0] sm:$0xff] %v9284
        %9317 = vst [vmem:[#allocation3 + $0x238] sm:$0xff] %v9285
        %9318 = vst [vmem:[#allocation3 + $0x280] sm:$0xff] %v9286
        %9319 = vst [vmem:[#allocation3 + $0x2c8] sm:$0xff] %v9287
        %9320 = vst [vmem:[#allocation3 + $0x310] sm:$0xff] %v9288
        %9321 = vst [vmem:[#allocation3 + $0x358] sm:$0xff] %v9289
        %9322 = vst [vmem:[#allocation3 + $0x3a0] sm:$0xff] %v9290
        %9323 = vst [vmem:[#allocation3 + $0x3e8] sm:$0xff] %v9291
        %9324 = vst [vmem:[#allocation3 + $0x430] sm:$0xff] %v9292
        %9325 = vst [vmem:[#allocation3 + $0x478] sm:$0xff] %v9293
        %v9326 = vld [vmem:[#allocation3] sm:$0xff]
        %v9327 = vld [vmem:[#allocation3 + $0x8] sm:$0xff]
        %v9328 = vld [vmem:[#allocation3 + $0x10] sm:$0xff]
        %v9329 = vld [vmem:[#allocation3 + $0x18] sm:$0xff]
        %v9330 = vld [vmem:[#allocation3 + $0x20] sm:$0xff]
        %v9331 = vld [vmem:[#allocation3 + $0x28] sm:$0xff]
        %v9332 = vld [vmem:[#allocation3 + $0x30] sm:$0xff]
        %v9333 = vld [vmem:[#allocation3 + $0x38] sm:$0xff]
        %v9334 = vld [vmem:[#allocation3 + $0x40] sm:$0xff]
        %v9335 = vld [vmem:[#allocation3 + $0x48] sm:$0xff]
        %v9336 = vld [vmem:[#allocation3 + $0x50] sm:$0xff]
        %v9337 = vld [vmem:[#allocation3 + $0x58] sm:$0xff]
        %v9338 = vld [vmem:[#allocation3 + $0x60] sm:$0xff]
        %v9339 = vld [vmem:[#allocation3 + $0x68] sm:$0xff]
        %v9340 = vld [vmem:[#allocation3 + $0x70] sm:$0xff]
        %v9341 = vld [vmem:[#allocation3 + $0x78] sm:$0xff]
        %v9342 = vld [vmem:[#allocation3 + $0x80] sm:$0xff]
        %v9343 = vld [vmem:[#allocation3 + $0x88] sm:$0xff]
        %v9344 = vld [vmem:[#allocation3 + $0x90] sm:$0xff]
        %v9345 = vld [vmem:[#allocation3 + $0x98] sm:$0xff]
        %v9346 = vld [vmem:[#allocation3 + $0xa0] sm:$0xff]
        %v9347 = vld [vmem:[#allocation3 + $0xa8] sm:$0xff]
        %v9348 = vld [vmem:[#allocation3 + $0xb0] sm:$0xff]
        %v9349 = vld [vmem:[#allocation3 + $0xb8] sm:$0xff]
        %v9350 = vld [vmem:[#allocation3 + $0xc0] sm:$0xff]
        %v9351 = vld [vmem:[#allocation3 + $0xc8] sm:$0xff]
        %v9352 = vld [vmem:[#allocation3 + $0xd0] sm:$0xff]
        %v9353 = vld [vmem:[#allocation3 + $0xd8] sm:$0xff]
        %v9354 = vld [vmem:[#allocation3 + $0xe0] sm:$0xff]
        %v9355 = vld [vmem:[#allocation3 + $0xe8] sm:$0xff]
        %v9356 = vld [vmem:[#allocation3 + $0xf0] sm:$0xff]
        %v9357 = vld [vmem:[#allocation3 + $0xf8] sm:$0xff]
        %v9358 = vld [vmem:[#allocation3 + $0x100] sm:$0xff]
        %v9359 = vld [vmem:[#allocation3 + $0x108] sm:$0xff]
        %v9360 = vld [vmem:[#allocation3 + $0x110] sm:$0xff]
        %v9361 = vld [vmem:[#allocation3 + $0x118] sm:$0xff]
        %v9362 = vld [vmem:[#allocation3 + $0x120] sm:$0xff]
        %v9363 = vld [vmem:[#allocation3 + $0x128] sm:$0xff]
        %v9364 = vld [vmem:[#allocation3 + $0x130] sm:$0xff]
        %v9365 = vld [vmem:[#allocation3 + $0x138] sm:$0xff]
        %v9366 = vld [vmem:[#allocation3 + $0x140] sm:$0xff]
        %v9367 = vld [vmem:[#allocation3 + $0x148] sm:$0xff]
        %v9368 = vld [vmem:[#allocation3 + $0x150] sm:$0xff]
        %v9369 = vld [vmem:[#allocation3 + $0x158] sm:$0xff]
        %v9370 = vld [vmem:[#allocation3 + $0x160] sm:$0xff]
        %v9371 = vld [vmem:[#allocation3 + $0x168] sm:$0xff]
        %v9372 = vld [vmem:[#allocation3 + $0x170] sm:$0xff]
        %v9373 = vld [vmem:[#allocation3 + $0x178] sm:$0xff]
        %v9374 = vld [vmem:[#allocation3 + $0x180] sm:$0xff]
        %v9375 = vld [vmem:[#allocation3 + $0x188] sm:$0xff]
        %v9376 = vld [vmem:[#allocation3 + $0x190] sm:$0xff]
        %v9377 = vld [vmem:[#allocation3 + $0x198] sm:$0xff]
        %v9378 = vld [vmem:[#allocation3 + $0x1a0] sm:$0xff]
        %v9379 = vld [vmem:[#allocation3 + $0x1a8] sm:$0xff]
        %v9380 = vld [vmem:[#allocation3 + $0x1b0] sm:$0xff]
        %v9381 = vld [vmem:[#allocation3 + $0x1b8] sm:$0xff]
        %v9382 = vld [vmem:[#allocation3 + $0x1c0] sm:$0xff]
        %v9383 = vld [vmem:[#allocation3 + $0x1c8] sm:$0xff]
        %v9384 = vld [vmem:[#allocation3 + $0x1d0] sm:$0xff]
        %v9385 = vld [vmem:[#allocation3 + $0x1d8] sm:$0xff]
        %v9386 = vld [vmem:[#allocation3 + $0x1e0] sm:$0xff]
        %v9387 = vld [vmem:[#allocation3 + $0x1e8] sm:$0xff]
        %v9388 = vld [vmem:[#allocation3 + $0x1f0] sm:$0xff]
        %v9389 = vld [vmem:[#allocation3 + $0x1f8] sm:$0xff]
        %v9390 = vld [vmem:[#allocation3 + $0x200] sm:$0xff]
        %v9391 = vld [vmem:[#allocation3 + $0x208] sm:$0xff]
        %v9392 = vld [vmem:[#allocation3 + $0x210] sm:$0xff]
        %v9393 = vld [vmem:[#allocation3 + $0x218] sm:$0xff]
        %v9394 = vld [vmem:[#allocation3 + $0x220] sm:$0xff]
        %v9395 = vld [vmem:[#allocation3 + $0x228] sm:$0xff]
        %v9396 = vld [vmem:[#allocation3 + $0x230] sm:$0xff]
        %v9397 = vld [vmem:[#allocation3 + $0x238] sm:$0xff]
        %v9398 = vld [vmem:[#allocation3 + $0x240] sm:$0xff]
        %v9399 = vld [vmem:[#allocation3 + $0x248] sm:$0xff]
        %v9400 = vld [vmem:[#allocation3 + $0x250] sm:$0xff]
        %v9401 = vld [vmem:[#allocation3 + $0x258] sm:$0xff]
        %v9402 = vld [vmem:[#allocation3 + $0x260] sm:$0xff]
        %v9403 = vld [vmem:[#allocation3 + $0x268] sm:$0xff]
        %v9404 = vld [vmem:[#allocation3 + $0x270] sm:$0xff]
        %v9405 = vld [vmem:[#allocation3 + $0x278] sm:$0xff]
        %v9406 = vld [vmem:[#allocation3 + $0x280] sm:$0xff]
        %v9407 = vld [vmem:[#allocation3 + $0x288] sm:$0xff]
        %v9408 = vld [vmem:[#allocation3 + $0x290] sm:$0xff]
        %v9409 = vld [vmem:[#allocation3 + $0x298] sm:$0xff]
        %v9410 = vld [vmem:[#allocation3 + $0x2a0] sm:$0xff]
        %v9411 = vld [vmem:[#allocation3 + $0x2a8] sm:$0xff]
        %v9412 = vld [vmem:[#allocation3 + $0x2b0] sm:$0xff]
        %v9413 = vld [vmem:[#allocation3 + $0x2b8] sm:$0xff]
        %v9414 = vld [vmem:[#allocation3 + $0x2c0] sm:$0xff]
        %v9415 = vld [vmem:[#allocation3 + $0x2c8] sm:$0xff]
        %v9416 = vld [vmem:[#allocation3 + $0x2d0] sm:$0xff]
        %v9417 = vld [vmem:[#allocation3 + $0x2d8] sm:$0xff]
        %v9418 = vld [vmem:[#allocation3 + $0x2e0] sm:$0xff]
        %v9419 = vld [vmem:[#allocation3 + $0x2e8] sm:$0xff]
        %v9420 = vld [vmem:[#allocation3 + $0x2f0] sm:$0xff]
        %v9421 = vld [vmem:[#allocation3 + $0x2f8] sm:$0xff]
        %v9422 = vld [vmem:[#allocation3 + $0x300] sm:$0xff]
        %v9423 = vld [vmem:[#allocation3 + $0x308] sm:$0xff]
        %v9424 = vld [vmem:[#allocation3 + $0x310] sm:$0xff]
        %v9425 = vld [vmem:[#allocation3 + $0x318] sm:$0xff]
        %v9426 = vld [vmem:[#allocation3 + $0x320] sm:$0xff]
        %v9427 = vld [vmem:[#allocation3 + $0x328] sm:$0xff]
        %v9428 = vld [vmem:[#allocation3 + $0x330] sm:$0xff]
        %v9429 = vld [vmem:[#allocation3 + $0x338] sm:$0xff]
        %v9430 = vld [vmem:[#allocation3 + $0x340] sm:$0xff]
        %v9431 = vld [vmem:[#allocation3 + $0x348] sm:$0xff]
        %v9432 = vld [vmem:[#allocation3 + $0x350] sm:$0xff]
        %v9433 = vld [vmem:[#allocation3 + $0x358] sm:$0xff]
        %v9434 = vld [vmem:[#allocation3 + $0x360] sm:$0xff]
        %v9435 = vld [vmem:[#allocation3 + $0x368] sm:$0xff]
        %v9436 = vld [vmem:[#allocation3 + $0x370] sm:$0xff]
        %v9437 = vld [vmem:[#allocation3 + $0x378] sm:$0xff]
        %v9438 = vld [vmem:[#allocation3 + $0x380] sm:$0xff]
        %v9439 = vld [vmem:[#allocation3 + $0x388] sm:$0xff]
        %v9440 = vld [vmem:[#allocation3 + $0x390] sm:$0xff]
        %v9441 = vld [vmem:[#allocation3 + $0x398] sm:$0xff]
        %v9442 = vld [vmem:[#allocation3 + $0x3a0] sm:$0xff]
        %v9443 = vld [vmem:[#allocation3 + $0x3a8] sm:$0xff]
        %v9444 = vld [vmem:[#allocation3 + $0x3b0] sm:$0xff]
        %v9445 = vld [vmem:[#allocation3 + $0x3b8] sm:$0xff]
        %v9446 = vld [vmem:[#allocation3 + $0x3c0] sm:$0xff]
        %v9447 = vld [vmem:[#allocation3 + $0x3c8] sm:$0xff]
        %v9448 = vld [vmem:[#allocation3 + $0x3d0] sm:$0xff]
        %v9449 = vld [vmem:[#allocation3 + $0x3d8] sm:$0xff]
        %v9450 = vld [vmem:[#allocation3 + $0x3e0] sm:$0xff]
        %v9451 = vld [vmem:[#allocation3 + $0x3e8] sm:$0xff]
        %v9452 = vld [vmem:[#allocation3 + $0x3f0] sm:$0xff]
        %v9453 = vld [vmem:[#allocation3 + $0x3f8] sm:$0xff]
        %v9454 = vld [vmem:[#allocation3 + $0x400] sm:$0xff]
        %v9455 = vld [vmem:[#allocation3 + $0x408] sm:$0xff]
        %v9456 = vld [vmem:[#allocation3 + $0x410] sm:$0xff]
        %v9457 = vld [vmem:[#allocation3 + $0x418] sm:$0xff]
        %v9458 = vld [vmem:[#allocation3 + $0x420] sm:$0xff]
        %v9459 = vld [vmem:[#allocation3 + $0x428] sm:$0xff]
        %v9460 = vld [vmem:[#allocation3 + $0x430] sm:$0xff]
        %v9461 = vld [vmem:[#allocation3 + $0x438] sm:$0xff]
        %v9462 = vld [vmem:[#allocation3 + $0x440] sm:$0xff]
        %v9463 = vld [vmem:[#allocation3 + $0x448] sm:$0xff]
        %v9464 = vld [vmem:[#allocation3 + $0x450] sm:$0xff]
        %v9465 = vld [vmem:[#allocation3 + $0x458] sm:$0xff]
        %v9466 = vld [vmem:[#allocation3 + $0x460] sm:$0xff]
        %v9467 = vld [vmem:[#allocation3 + $0x468] sm:$0xff]
        %v9468 = vld [vmem:[#allocation3 + $0x470] sm:$0xff]
        %v9469 = vld [vmem:[#allocation3 + $0x478] sm:$0xff]
        %v9470 = vld [vmem:[#allocation9] sm:$0xf]
        %v9471 = vld [vmem:[#allocation9 + $0x4] sm:$0xf]
        %v9472 = vld [vmem:[#allocation9 + $0x8] sm:$0xf]
        %v9473 = vld [vmem:[#allocation9 + $0xc] sm:$0xf]
        %v9474 = vld [vmem:[#allocation9 + $0x10] sm:$0xf]
        %v9475 = vld [vmem:[#allocation9 + $0x14] sm:$0xf]
        %v9476 = vld [vmem:[#allocation9 + $0x18] sm:$0xf]
        %v9477 = vld [vmem:[#allocation9 + $0x1c] sm:$0xf]
        %v9478 = vld [vmem:[#allocation9 + $0x20] sm:$0xf]
        %v9479 = vld [vmem:[#allocation9 + $0x24] sm:$0xf]
        %v9480 = vld [vmem:[#allocation9 + $0x28] sm:$0xf]
        %v9481 = vld [vmem:[#allocation9 + $0x2c] sm:$0xf]
        %v9482 = vld [vmem:[#allocation9 + $0x30] sm:$0xf]
        %v9483 = vld [vmem:[#allocation9 + $0x34] sm:$0xf]
        %v9484 = vld [vmem:[#allocation9 + $0x38] sm:$0xf]
        %v9485 = vld [vmem:[#allocation9 + $0x3c] sm:$0xf]
        %v9486 = vld [vmem:[#allocation9 + $0x40] sm:$0xf]
        %v9487 = vld [vmem:[#allocation9 + $0x44] sm:$0xf]
        %v9488 = vld [vmem:[#allocation9 + $0x48] sm:$0xf]
        %v9489 = vld [vmem:[#allocation9 + $0x4c] sm:$0xf]
        %v9490 = vld [vmem:[#allocation9 + $0x50] sm:$0xf]
        %v9491 = vld [vmem:[#allocation9 + $0x54] sm:$0xf]
        %v9492 = vld [vmem:[#allocation9 + $0x58] sm:$0xf]
        %v9493 = vld [vmem:[#allocation9 + $0x5c] sm:$0xf]
        %v9494 = vld [vmem:[#allocation9 + $0x60] sm:$0xf]
        %v9495 = vld [vmem:[#allocation9 + $0x64] sm:$0xf]
        %v9496 = vld [vmem:[#allocation9 + $0x68] sm:$0xf]
        %v9497 = vld [vmem:[#allocation9 + $0x6c] sm:$0xf]
        %v9498 = vld [vmem:[#allocation9 + $0x70] sm:$0xf]
        %v9499 = vld [vmem:[#allocation9 + $0x74] sm:$0xf]
        %v9500 = vld [vmem:[#allocation9 + $0x78] sm:$0xf]
        %v9501 = vld [vmem:[#allocation9 + $0x7c] sm:$0xf]
        %v9502 = vld [vmem:[#allocation9 + $0x80] sm:$0xf]
        %v9503 = vld [vmem:[#allocation9 + $0x84] sm:$0xf]
        %v9504 = vld [vmem:[#allocation9 + $0x88] sm:$0xf]
        %v9505 = vld [vmem:[#allocation9 + $0x8c] sm:$0xf]
        %v9506 = vld [vmem:[#allocation9 + $0x90] sm:$0xf]
        %v9507 = vld [vmem:[#allocation9 + $0x94] sm:$0xf]
        %v9508 = vld [vmem:[#allocation9 + $0x98] sm:$0xf]
        %v9509 = vld [vmem:[#allocation9 + $0x9c] sm:$0xf]
        %v9510 = vld [vmem:[#allocation9 + $0xa0] sm:$0xf]
        %v9511 = vld [vmem:[#allocation9 + $0xa4] sm:$0xf]
        %v9512 = vld [vmem:[#allocation9 + $0xa8] sm:$0xf]
        %v9513 = vld [vmem:[#allocation9 + $0xac] sm:$0xf]
        %v9514 = vld [vmem:[#allocation9 + $0xb0] sm:$0xf]
        %v9515 = vld [vmem:[#allocation9 + $0xb4] sm:$0xf]
        %v9516 = vld [vmem:[#allocation9 + $0xb8] sm:$0xf]
        %v9517 = vld [vmem:[#allocation9 + $0xbc] sm:$0xf]
        %v9518 = vld [vmem:[#allocation9 + $0xc0] sm:$0xf]
        %v9519 = vld [vmem:[#allocation9 + $0xc4] sm:$0xf]
        %v9520 = vld [vmem:[#allocation9 + $0xc8] sm:$0xf]
        %v9521 = vld [vmem:[#allocation9 + $0xcc] sm:$0xf]
        %v9522 = vld [vmem:[#allocation9 + $0xd0] sm:$0xf]
        %v9523 = vld [vmem:[#allocation9 + $0xd4] sm:$0xf]
        %v9524 = vld [vmem:[#allocation9 + $0xd8] sm:$0xf]
        %v9525 = vld [vmem:[#allocation9 + $0xdc] sm:$0xf]
        %v9526 = vld [vmem:[#allocation9 + $0xe0] sm:$0xf]
        %v9527 = vld [vmem:[#allocation9 + $0xe4] sm:$0xf]
        %v9528 = vld [vmem:[#allocation9 + $0xe8] sm:$0xf]
        %v9529 = vld [vmem:[#allocation9 + $0xec] sm:$0xf]
        %v9530 = vld [vmem:[#allocation9 + $0xf0] sm:$0xf]
        %v9531 = vld [vmem:[#allocation9 + $0xf4] sm:$0xf]
        %v9532 = vld [vmem:[#allocation9 + $0xf8] sm:$0xf]
        %v9533 = vld [vmem:[#allocation9 + $0xfc] sm:$0xf]
        %v9534 = vld [vmem:[#allocation9 + $0x100] sm:$0xf]
        %v9535 = vld [vmem:[#allocation9 + $0x104] sm:$0xf]
        %v9536 = vld [vmem:[#allocation9 + $0x108] sm:$0xf]
        %v9537 = vld [vmem:[#allocation9 + $0x10c] sm:$0xf]
        %v9538 = vld [vmem:[#allocation9 + $0x110] sm:$0xf]
        %v9539 = vld [vmem:[#allocation9 + $0x114] sm:$0xf]
        %v9540 = vld [vmem:[#allocation9 + $0x118] sm:$0xf]
        %v9541 = vld [vmem:[#allocation9 + $0x11c] sm:$0xf]
        %v9542 = vld [vmem:[#allocation9 + $0x120] sm:$0xf]
        %v9543 = vld [vmem:[#allocation9 + $0x124] sm:$0xf]
        %v9544 = vld [vmem:[#allocation9 + $0x128] sm:$0xf]
        %v9545 = vld [vmem:[#allocation9 + $0x12c] sm:$0xf]
        %v9546 = vld [vmem:[#allocation9 + $0x130] sm:$0xf]
        %v9547 = vld [vmem:[#allocation9 + $0x134] sm:$0xf]
        %v9548 = vld [vmem:[#allocation9 + $0x138] sm:$0xf]
        %v9549 = vld [vmem:[#allocation9 + $0x13c] sm:$0xf]
        %v9550 = vld [vmem:[#allocation9 + $0x140] sm:$0xf]
        %v9551 = vld [vmem:[#allocation9 + $0x144] sm:$0xf]
        %v9552 = vld [vmem:[#allocation9 + $0x148] sm:$0xf]
        %v9553 = vld [vmem:[#allocation9 + $0x14c] sm:$0xf]
        %v9554 = vld [vmem:[#allocation9 + $0x150] sm:$0xf]
        %v9555 = vld [vmem:[#allocation9 + $0x154] sm:$0xf]
        %v9556 = vld [vmem:[#allocation9 + $0x158] sm:$0xf]
        %v9557 = vld [vmem:[#allocation9 + $0x15c] sm:$0xf]
        %v9558 = vld [vmem:[#allocation9 + $0x160] sm:$0xf]
        %v9559 = vld [vmem:[#allocation9 + $0x164] sm:$0xf]
        %v9560 = vld [vmem:[#allocation9 + $0x168] sm:$0xf]
        %v9561 = vld [vmem:[#allocation9 + $0x16c] sm:$0xf]
        %v9562 = vld [vmem:[#allocation9 + $0x170] sm:$0xf]
        %v9563 = vld [vmem:[#allocation9 + $0x174] sm:$0xf]
        %v9564 = vld [vmem:[#allocation9 + $0x178] sm:$0xf]
        %v9565 = vld [vmem:[#allocation9 + $0x17c] sm:$0xf]
        %v9566 = vld [vmem:[#allocation9 + $0x180] sm:$0xf]
        %v9567 = vld [vmem:[#allocation9 + $0x184] sm:$0xf]
        %v9568 = vld [vmem:[#allocation9 + $0x188] sm:$0xf]
        %v9569 = vld [vmem:[#allocation9 + $0x18c] sm:$0xf]
        %v9570 = vld [vmem:[#allocation9 + $0x190] sm:$0xf]
        %v9571 = vld [vmem:[#allocation9 + $0x194] sm:$0xf]
        %v9572 = vld [vmem:[#allocation9 + $0x198] sm:$0xf]
        %v9573 = vld [vmem:[#allocation9 + $0x19c] sm:$0xf]
        %v9574 = vld [vmem:[#allocation9 + $0x1a0] sm:$0xf]
        %v9575 = vld [vmem:[#allocation9 + $0x1a4] sm:$0xf]
        %v9576 = vld [vmem:[#allocation9 + $0x1a8] sm:$0xf]
        %v9577 = vld [vmem:[#allocation9 + $0x1ac] sm:$0xf]
        %v9578 = vld [vmem:[#allocation9 + $0x1b0] sm:$0xf]
        %v9579 = vld [vmem:[#allocation9 + $0x1b4] sm:$0xf]
        %v9580 = vld [vmem:[#allocation9 + $0x1b8] sm:$0xf]
        %v9581 = vld [vmem:[#allocation9 + $0x1bc] sm:$0xf]
        %v9582 = vld [vmem:[#allocation9 + $0x1c0] sm:$0xf]
        %v9583 = vld [vmem:[#allocation9 + $0x1c4] sm:$0xf]
        %v9584 = vld [vmem:[#allocation9 + $0x1c8] sm:$0xf]
        %v9585 = vld [vmem:[#allocation9 + $0x1cc] sm:$0xf]
        %v9586 = vld [vmem:[#allocation9 + $0x1d0] sm:$0xf]
        %v9587 = vld [vmem:[#allocation9 + $0x1d4] sm:$0xf]
        %v9588 = vld [vmem:[#allocation9 + $0x1d8] sm:$0xf]
        %v9589 = vld [vmem:[#allocation9 + $0x1dc] sm:$0xf]
        %v9590 = vld [vmem:[#allocation9 + $0x1e0] sm:$0xf]
        %v9591 = vld [vmem:[#allocation9 + $0x1e4] sm:$0xf]
        %v9592 = vld [vmem:[#allocation9 + $0x1e8] sm:$0xf]
        %v9593 = vld [vmem:[#allocation9 + $0x1ec] sm:$0xf]
        %v9594 = vld [vmem:[#allocation9 + $0x1f0] sm:$0xf]
        %v9595 = vld [vmem:[#allocation9 + $0x1f4] sm:$0xf]
        %v9596 = vld [vmem:[#allocation9 + $0x1f8] sm:$0xf]
        %v9597 = vld [vmem:[#allocation9 + $0x1fc] sm:$0xf]
        %v9598 = vld [vmem:[#allocation9 + $0x200] sm:$0xf]
        %v9599 = vld [vmem:[#allocation9 + $0x204] sm:$0xf]
        %v9600 = vld [vmem:[#allocation9 + $0x208] sm:$0xf]
        %v9601 = vld [vmem:[#allocation9 + $0x20c] sm:$0xf]
        %v9602 = vld [vmem:[#allocation9 + $0x210] sm:$0xf]
        %v9603 = vld [vmem:[#allocation9 + $0x214] sm:$0xf]
        %v9604 = vld [vmem:[#allocation9 + $0x218] sm:$0xf]
        %v9605 = vld [vmem:[#allocation9 + $0x21c] sm:$0xf]
        %v9606 = vld [vmem:[#allocation9 + $0x220] sm:$0xf]
        %v9607 = vld [vmem:[#allocation9 + $0x224] sm:$0xf]
        %v9608 = vld [vmem:[#allocation9 + $0x228] sm:$0xf]
        %v9609 = vld [vmem:[#allocation9 + $0x22c] sm:$0xf]
        %v9610 = vld [vmem:[#allocation9 + $0x230] sm:$0xf]
        %v9611 = vld [vmem:[#allocation9 + $0x234] sm:$0xf]
        %v9612 = vld [vmem:[#allocation9 + $0x238] sm:$0xf]
        %v9613 = vld [vmem:[#allocation9 + $0x23c] sm:$0xf]
        %v9758 = vunpack.c.l.b16 %v9470
        %v9759 = vunpack.c.l.b16 %v9471
        %v9760 = vunpack.c.l.b16 %v9472
        %v9761 = vunpack.c.l.b16 %v9473
        %v9762 = vunpack.c.l.b16 %v9474
        %v9763 = vunpack.c.l.b16 %v9475
        %v9764 = vunpack.c.l.b16 %v9476
        %v9765 = vunpack.c.l.b16 %v9477
        %v9766 = vunpack.c.l.b16 %v9478
        %v9767 = vunpack.c.l.b16 %v9479
        %v9768 = vunpack.c.l.b16 %v9480
        %v9769 = vunpack.c.l.b16 %v9481
        %v9770 = vunpack.c.l.b16 %v9482
        %v9771 = vunpack.c.l.b16 %v9483
        %v9772 = vunpack.c.l.b16 %v9484
        %v9773 = vunpack.c.l.b16 %v9485
        %v9774 = vunpack.c.l.b16 %v9486
        %v9775 = vunpack.c.l.b16 %v9487
        %v9776 = vunpack.c.l.b16 %v9488
        %v9777 = vunpack.c.l.b16 %v9489
        %v9778 = vunpack.c.l.b16 %v9490
        %v9779 = vunpack.c.l.b16 %v9491
        %v9780 = vunpack.c.l.b16 %v9492
        %v9781 = vunpack.c.l.b16 %v9493
        %v9782 = vunpack.c.l.b16 %v9494
        %v9783 = vunpack.c.l.b16 %v9495
        %v9784 = vunpack.c.l.b16 %v9496
        %v9785 = vunpack.c.l.b16 %v9497
        %v9786 = vunpack.c.l.b16 %v9498
        %v9787 = vunpack.c.l.b16 %v9499
        %v9788 = vunpack.c.l.b16 %v9500
        %v9789 = vunpack.c.l.b16 %v9501
        %v9790 = vunpack.c.l.b16 %v9502
        %v9791 = vunpack.c.l.b16 %v9503
        %v9792 = vunpack.c.l.b16 %v9504
        %v9793 = vunpack.c.l.b16 %v9505
        %v9794 = vunpack.c.l.b16 %v9506
        %v9795 = vunpack.c.l.b16 %v9507
        %v9796 = vunpack.c.l.b16 %v9508
        %v9797 = vunpack.c.l.b16 %v9509
        %v9798 = vunpack.c.l.b16 %v9510
        %v9799 = vunpack.c.l.b16 %v9511
        %v9800 = vunpack.c.l.b16 %v9512
        %v9801 = vunpack.c.l.b16 %v9513
        %v9802 = vunpack.c.l.b16 %v9514
        %v9803 = vunpack.c.l.b16 %v9515
        %v9804 = vunpack.c.l.b16 %v9516
        %v9805 = vunpack.c.l.b16 %v9517
        %v9806 = vunpack.c.l.b16 %v9518
        %v9807 = vunpack.c.l.b16 %v9519
        %v9808 = vunpack.c.l.b16 %v9520
        %v9809 = vunpack.c.l.b16 %v9521
        %v9810 = vunpack.c.l.b16 %v9522
        %v9811 = vunpack.c.l.b16 %v9523
        %v9812 = vunpack.c.l.b16 %v9524
        %v9813 = vunpack.c.l.b16 %v9525
        %v9814 = vunpack.c.l.b16 %v9526
        %v9815 = vunpack.c.l.b16 %v9527
        %v9816 = vunpack.c.l.b16 %v9528
        %v9817 = vunpack.c.l.b16 %v9529
        %v9818 = vunpack.c.l.b16 %v9530
        %v9819 = vunpack.c.l.b16 %v9531
        %v9820 = vunpack.c.l.b16 %v9532
        %v9821 = vunpack.c.l.b16 %v9533
        %v9822 = vunpack.c.l.b16 %v9534
        %v9823 = vunpack.c.l.b16 %v9535
        %v9824 = vunpack.c.l.b16 %v9536
        %v9825 = vunpack.c.l.b16 %v9537
        %v9826 = vunpack.c.l.b16 %v9538
        %v9827 = vunpack.c.l.b16 %v9539
        %v9828 = vunpack.c.l.b16 %v9540
        %v9829 = vunpack.c.l.b16 %v9541
        %v9830 = vunpack.c.l.b16 %v9542
        %v9831 = vunpack.c.l.b16 %v9543
        %v9832 = vunpack.c.l.b16 %v9544
        %v9833 = vunpack.c.l.b16 %v9545
        %v9834 = vunpack.c.l.b16 %v9546
        %v9835 = vunpack.c.l.b16 %v9547
        %v9836 = vunpack.c.l.b16 %v9548
        %v9837 = vunpack.c.l.b16 %v9549
        %v9838 = vunpack.c.l.b16 %v9550
        %v9839 = vunpack.c.l.b16 %v9551
        %v9840 = vunpack.c.l.b16 %v9552
        %v9841 = vunpack.c.l.b16 %v9553
        %v9842 = vunpack.c.l.b16 %v9554
        %v9843 = vunpack.c.l.b16 %v9555
        %v9844 = vunpack.c.l.b16 %v9556
        %v9845 = vunpack.c.l.b16 %v9557
        %v9846 = vunpack.c.l.b16 %v9558
        %v9847 = vunpack.c.l.b16 %v9559
        %v9848 = vunpack.c.l.b16 %v9560
        %v9849 = vunpack.c.l.b16 %v9561
        %v9850 = vunpack.c.l.b16 %v9562
        %v9851 = vunpack.c.l.b16 %v9563
        %v9852 = vunpack.c.l.b16 %v9564
        %v9853 = vunpack.c.l.b16 %v9565
        %v9854 = vunpack.c.l.b16 %v9566
        %v9855 = vunpack.c.l.b16 %v9567
        %v9856 = vunpack.c.l.b16 %v9568
        %v9857 = vunpack.c.l.b16 %v9569
        %v9858 = vunpack.c.l.b16 %v9570
        %v9859 = vunpack.c.l.b16 %v9571
        %v9860 = vunpack.c.l.b16 %v9572
        %v9861 = vunpack.c.l.b16 %v9573
        %v9862 = vunpack.c.l.b16 %v9574
        %v9863 = vunpack.c.l.b16 %v9575
        %v9864 = vunpack.c.l.b16 %v9576
        %v9865 = vunpack.c.l.b16 %v9577
        %v9866 = vunpack.c.l.b16 %v9578
        %v9867 = vunpack.c.l.b16 %v9579
        %v9868 = vunpack.c.l.b16 %v9580
        %v9869 = vunpack.c.l.b16 %v9581
        %v9870 = vunpack.c.l.b16 %v9582
        %v9871 = vunpack.c.l.b16 %v9583
        %v9872 = vunpack.c.l.b16 %v9584
        %v9873 = vunpack.c.l.b16 %v9585
        %v9874 = vunpack.c.l.b16 %v9586
        %v9875 = vunpack.c.l.b16 %v9587
        %v9876 = vunpack.c.l.b16 %v9588
        %v9877 = vunpack.c.l.b16 %v9589
        %v9878 = vunpack.c.l.b16 %v9590
        %v9879 = vunpack.c.l.b16 %v9591
        %v9880 = vunpack.c.l.b16 %v9592
        %v9881 = vunpack.c.l.b16 %v9593
        %v9882 = vunpack.c.l.b16 %v9594
        %v9883 = vunpack.c.l.b16 %v9595
        %v9884 = vunpack.c.l.b16 %v9596
        %v9885 = vunpack.c.l.b16 %v9597
        %v9886 = vunpack.c.l.b16 %v9598
        %v9887 = vunpack.c.l.b16 %v9599
        %v9888 = vunpack.c.l.b16 %v9600
        %v9889 = vunpack.c.l.b16 %v9601
        %v9890 = vunpack.c.l.b16 %v9602
        %v9891 = vunpack.c.l.b16 %v9603
        %v9892 = vunpack.c.l.b16 %v9604
        %v9893 = vunpack.c.l.b16 %v9605
        %v9894 = vunpack.c.l.b16 %v9606
        %v9895 = vunpack.c.l.b16 %v9607
        %v9896 = vunpack.c.l.b16 %v9608
        %v9897 = vunpack.c.l.b16 %v9609
        %v9898 = vunpack.c.l.b16 %v9610
        %v9899 = vunpack.c.l.b16 %v9611
        %v9900 = vunpack.c.l.b16 %v9612
        %v9901 = vunpack.c.l.b16 %v9613
        %v9902 = vpack.c.b16 %v9759, %v9758
        %v9903 = vpack.c.b16 %v9761, %v9760
        %v9904 = vpack.c.b16 %v9763, %v9762
        %v9905 = vpack.c.b16 %v9765, %v9764
        %v9906 = vpack.c.b16 %v9767, %v9766
        %v9907 = vpack.c.b16 %v9769, %v9768
        %v9908 = vpack.c.b16 %v9771, %v9770
        %v9909 = vpack.c.b16 %v9773, %v9772
        %v9910 = vpack.c.b16 %v9775, %v9774
        %v9911 = vpack.c.b16 %v9777, %v9776
        %v9912 = vpack.c.b16 %v9779, %v9778
        %v9913 = vpack.c.b16 %v9781, %v9780
        %v9914 = vpack.c.b16 %v9783, %v9782
        %v9915 = vpack.c.b16 %v9785, %v9784
        %v9916 = vpack.c.b16 %v9787, %v9786
        %v9917 = vpack.c.b16 %v9789, %v9788
        %v9918 = vpack.c.b16 %v9791, %v9790
        %v9919 = vpack.c.b16 %v9793, %v9792
        %v9920 = vpack.c.b16 %v9795, %v9794
        %v9921 = vpack.c.b16 %v9797, %v9796
        %v9922 = vpack.c.b16 %v9799, %v9798
        %v9923 = vpack.c.b16 %v9801, %v9800
        %v9924 = vpack.c.b16 %v9803, %v9802
        %v9925 = vpack.c.b16 %v9805, %v9804
        %v9926 = vpack.c.b16 %v9807, %v9806
        %v9927 = vpack.c.b16 %v9809, %v9808
        %v9928 = vpack.c.b16 %v9811, %v9810
        %v9929 = vpack.c.b16 %v9813, %v9812
        %v9930 = vpack.c.b16 %v9815, %v9814
        %v9931 = vpack.c.b16 %v9817, %v9816
        %v9932 = vpack.c.b16 %v9819, %v9818
        %v9933 = vpack.c.b16 %v9821, %v9820
        %v9934 = vpack.c.b16 %v9823, %v9822
        %v9935 = vpack.c.b16 %v9825, %v9824
        %v9936 = vpack.c.b16 %v9827, %v9826
        %v9937 = vpack.c.b16 %v9829, %v9828
        %v9938 = vpack.c.b16 %v9831, %v9830
        %v9939 = vpack.c.b16 %v9833, %v9832
        %v9940 = vpack.c.b16 %v9835, %v9834
        %v9941 = vpack.c.b16 %v9837, %v9836
        %v9942 = vpack.c.b16 %v9839, %v9838
        %v9943 = vpack.c.b16 %v9841, %v9840
        %v9944 = vpack.c.b16 %v9843, %v9842
        %v9945 = vpack.c.b16 %v9845, %v9844
        %v9946 = vpack.c.b16 %v9847, %v9846
        %v9947 = vpack.c.b16 %v9849, %v9848
        %v9948 = vpack.c.b16 %v9851, %v9850
        %v9949 = vpack.c.b16 %v9853, %v9852
        %v9950 = vpack.c.b16 %v9855, %v9854
        %v9951 = vpack.c.b16 %v9857, %v9856
        %v9952 = vpack.c.b16 %v9859, %v9858
        %v9953 = vpack.c.b16 %v9861, %v9860
        %v9954 = vpack.c.b16 %v9863, %v9862
        %v9955 = vpack.c.b16 %v9865, %v9864
        %v9956 = vpack.c.b16 %v9867, %v9866
        %v9957 = vpack.c.b16 %v9869, %v9868
        %v9958 = vpack.c.b16 %v9871, %v9870
        %v9959 = vpack.c.b16 %v9873, %v9872
        %v9960 = vpack.c.b16 %v9875, %v9874
        %v9961 = vpack.c.b16 %v9877, %v9876
        %v9962 = vpack.c.b16 %v9879, %v9878
        %v9963 = vpack.c.b16 %v9881, %v9880
        %v9964 = vpack.c.b16 %v9883, %v9882
        %v9965 = vpack.c.b16 %v9885, %v9884
        %v9966 = vpack.c.b16 %v9887, %v9886
        %v9967 = vpack.c.b16 %v9889, %v9888
        %v9968 = vpack.c.b16 %v9891, %v9890
        %v9969 = vpack.c.b16 %v9893, %v9892
        %v9970 = vpack.c.b16 %v9895, %v9894
        %v9971 = vpack.c.b16 %v9897, %v9896
        %v9972 = vpack.c.b16 %v9899, %v9898
        %v9973 = vpack.c.b16 %v9901, %v9900
        %10046 = vmatprep.subr.bf16.mxu0 0
        %10047 = vmatpush1.bf16.msra.mxu0 %v9902
        %10048 = vmatprep.subr.bf16.mxu0 0
        %10049 = vmatpush1.bf16.msra.mxu0 %v9903
        %10050 = vmatprep.subr.bf16.mxu0 0
        %10051 = vmatpush1.bf16.msra.mxu0 %v9904
        %10052 = vmatprep.subr.bf16.mxu0 0
        %10053 = vmatpush1.bf16.msra.mxu0 %v9905
        %10054 = vmatprep.subr.bf16.mxu0 0
        %10055 = vmatpush1.bf16.msra.mxu0 %v9906
        %10056 = vmatprep.subr.bf16.mxu0 0
        %10057 = vmatpush1.bf16.msra.mxu0 %v9907
        %10058 = vmatprep.subr.bf16.mxu0 0
        %10059 = vmatpush1.bf16.msra.mxu0 %v9908
        %10060 = vmatprep.subr.bf16.mxu0 0
        %10061 = vmatpush1.bf16.msra.mxu0 %v9909
        %10062 = vmatprep.subr.bf16.mxu0 0
        %10063 = vmatpush1.bf16.msra.mxu0 %v9910
        %10064 = vmatprep.subr.bf16.mxu0 0
        %10065 = vmatpush1.bf16.msra.mxu0 %v9911
        %10066 = vmatprep.subr.bf16.mxu0 0
        %10067 = vmatpush1.bf16.msra.mxu0 %v9912
        %10068 = vmatprep.subr.bf16.mxu0 0
        %10069 = vmatpush1.bf16.msra.mxu0 %v9913
        %10070 = vmatprep.subr.bf16.mxu0 0
        %10071 = vmatpush1.bf16.msra.mxu0 %v9914
        %10072 = vmatprep.subr.bf16.mxu0 0
        %10073 = vmatpush1.bf16.msra.mxu0 %v9915
        %10074 = vmatprep.subr.bf16.mxu0 0
        %10075 = vmatpush1.bf16.msra.mxu0 %v9916
        %10076 = vmatprep.subr.bf16.mxu0 0
        %10077 = vmatpush1.bf16.msra.mxu0 %v9917
        %10078 = vmatprep.mubr.bf16.mxu0 %v9327
        %10079 = vmatmul.mubr.bf16.gmra.mrb[0].mxu0 %v9326
        %v10080 = vpop.f32.mrb[0].mxu0
        %v10081 = vadd.f32 0.0, %v10080
        %v10082 = vpop.f32.mrb[0].mxu0
        %v10083 = vpop.f32.mrb[0].mxu0
        %v10084 = vadd.f32 0.0, %v10083
        %v10085 = vpop.f32.mrb[0].mxu0
        %10086 = vmatprep.mubr.bf16.mxu0 %v9336
        %10087 = vmatmul.mubr.bf16.gmra.mrb[0].mxu0 %v9335
        %v10088 = vpop.f32.mrb[0].mxu0
        %v10089 = vadd.f32 0.0, %v10088
        %v10090 = vpop.f32.mrb[0].mxu0
        %v10091 = vpop.f32.mrb[0].mxu0
        %v10092 = vadd.f32 0.0, %v10091
        %v10093 = vpop.f32.mrb[0].mxu0
        %10094 = vmatprep.mubr.bf16.mxu0 %v9345
        %10095 = vmatmul.mubr.bf16.gmra.mrb[0].mxu0 %v9344
        %v10096 = vpop.f32.mrb[0].mxu0
        %v10097 = vadd.f32 0.0, %v10096
        %v10098 = vpop.f32.mrb[0].mxu0
        %v10099 = vpop.f32.mrb[0].mxu0
        %v10100 = vadd.f32 0.0, %v10099
        %v10101 = vpop.f32.mrb[0].mxu0
        %10102 = vmatprep.mubr.bf16.mxu0 %v9354
        %10103 = vmatmul.mubr.bf16.gmra.mrb[0].mxu0 %v9353
        %v10104 = vpop.f32.mrb[0].mxu0
        %v10105 = vadd.f32 0.0, %v10104
        %v10106 = vpop.f32.mrb[0].mxu0
        %v10107 = vpop.f32.mrb[0].mxu0
        %v10108 = vadd.f32 0.0, %v10107
        %v10109 = vpop.f32.mrb[0].mxu0
        %10110 = vmatprep.mubr.bf16.mxu0 %v9363
        %10111 = vmatmul.mubr.bf16.gmra.mrb[0].mxu0 %v9362
        %v10112 = vpop.f32.mrb[0].mxu0
        %v10113 = vadd.f32 0.0, %v10112
        %v10114 = vpop.f32.mrb[0].mxu0
        %v10115 = vpop.f32.mrb[0].mxu0
        %v10116 = vadd.f32 0.0, %v10115
        %v10117 = vpop.f32.mrb[0].mxu0
        %10118 = vmatprep.mubr.bf16.mxu0 %v9372
        %10119 = vmatmul.mubr.bf16.gmra.mrb[0].mxu0 %v9371
        %v10120 = vpop.f32.mrb[0].mxu0
        %v10121 = vadd.f32 0.0, %v10120
        %v10122 = vpop.f32.mrb[0].mxu0
        %v10123 = vpop.f32.mrb[0].mxu0
        %v10124 = vadd.f32 0.0, %v10123
        %v10125 = vpop.f32.mrb[0].mxu0
        %10126 = vmatprep.mubr.bf16.mxu0 %v9381
        %10127 = vmatmul.mubr.bf16.gmra.mrb[0].mxu0 %v9380
        %v10128 = vpop.f32.mrb[0].mxu0
        %v10129 = vadd.f32 0.0, %v10128
        %v10130 = vpop.f32.mrb[0].mxu0
        %v10131 = vpop.f32.mrb[0].mxu0
        %v10132 = vadd.f32 0.0, %v10131
        %v10133 = vpop.f32.mrb[0].mxu0
        %10134 = vmatprep.mubr.bf16.mxu0 %v9390
        %10135 = vmatmul.mubr.bf16.gmra.mrb[0].mxu0 %v9389
        %v10136 = vpop.f32.mrb[0].mxu0
        %v10137 = vadd.f32 0.0, %v10136
        %v10138 = vpop.f32.mrb[0].mxu0
        %v10139 = vpop.f32.mrb[0].mxu0
        %v10140 = vadd.f32 0.0, %v10139
        %v10141 = vpop.f32.mrb[0].mxu0
        %10142 = vmatprep.mubr.bf16.mxu0 %v9399
        %10143 = vmatmul.mubr.bf16.gmra.mrb[0].mxu0 %v9398
        %v10144 = vpop.f32.mrb[0].mxu0
        %v10145 = vadd.f32 0.0, %v10144
        %v10146 = vpop.f32.mrb[0].mxu0
        %v10147 = vpop.f32.mrb[0].mxu0
        %v10148 = vadd.f32 0.0, %v10147
        %v10149 = vpop.f32.mrb[0].mxu0
        %10150 = vmatprep.mubr.bf16.mxu0 %v9408
        %10151 = vmatmul.mubr.bf16.gmra.mrb[0].mxu0 %v9407
        %v10152 = vpop.f32.mrb[0].mxu0
        %v10153 = vadd.f32 0.0, %v10152
        %v10154 = vpop.f32.mrb[0].mxu0
        %v10155 = vpop.f32.mrb[0].mxu0
        %v10156 = vadd.f32 0.0, %v10155
        %v10157 = vpop.f32.mrb[0].mxu0
        %10158 = vmatprep.mubr.bf16.mxu0 %v9417
        %10159 = vmatmul.mubr.bf16.gmra.mrb[0].mxu0 %v9416
        %v10160 = vpop.f32.mrb[0].mxu0
        %v10161 = vadd.f32 0.0, %v10160
        %v10162 = vpop.f32.mrb[0].mxu0
        %v10163 = vpop.f32.mrb[0].mxu0
        %v10164 = vadd.f32 0.0, %v10163
        %v10165 = vpop.f32.mrb[0].mxu0
        %10166 = vmatprep.mubr.bf16.mxu0 %v9426
        %10167 = vmatmul.mubr.bf16.gmra.mrb[0].mxu0 %v9425
        %v10168 = vpop.f32.mrb[0].mxu0
        %v10169 = vadd.f32 0.0, %v10168
        %v10170 = vpop.f32.mrb[0].mxu0
        %v10171 = vpop.f32.mrb[0].mxu0
        %v10172 = vadd.f32 0.0, %v10171
        %v10173 = vpop.f32.mrb[0].mxu0
        %10174 = vmatprep.mubr.bf16.mxu0 %v9435
        %10175 = vmatmul.mubr.bf16.gmra.mrb[0].mxu0 %v9434
        %v10176 = vpop.f32.mrb[0].mxu0
        %v10177 = vadd.f32 0.0, %v10176
        %v10178 = vpop.f32.mrb[0].mxu0
        %v10179 = vpop.f32.mrb[0].mxu0
        %v10180 = vadd.f32 0.0, %v10179
        %v10181 = vpop.f32.mrb[0].mxu0
        %10182 = vmatprep.mubr.bf16.mxu0 %v9444
        %10183 = vmatmul.mubr.bf16.gmra.mrb[0].mxu0 %v9443
        %v10184 = vpop.f32.mrb[0].mxu0
        %v10185 = vadd.f32 0.0, %v10184
        %v10186 = vpop.f32.mrb[0].mxu0
        %v10187 = vpop.f32.mrb[0].mxu0
        %v10188 = vadd.f32 0.0, %v10187
        %v10189 = vpop.f32.mrb[0].mxu0
        %10190 = vmatprep.mubr.bf16.mxu0 %v9453
        %10191 = vmatmul.mubr.bf16.gmra.mrb[0].mxu0 %v9452
        %v10192 = vpop.f32.mrb[0].mxu0
        %v10193 = vadd.f32 0.0, %v10192
        %v10194 = vpop.f32.mrb[0].mxu0
        %v10195 = vpop.f32.mrb[0].mxu0
        %v10196 = vadd.f32 0.0, %v10195
        %v10197 = vpop.f32.mrb[0].mxu0
        %10198 = vmatprep.mubr.bf16.mxu0 %v9462
        %10199 = vmatmul.mubr.bf16.gmra.mrb[0].mxu0 %v9461
        %v10200 = vpop.f32.mrb[0].mxu0
        %v10201 = vadd.f32 0.0, %v10200
        %v10202 = vpop.f32.mrb[0].mxu0
        %v10203 = vpop.f32.mrb[0].mxu0
        %v10204 = vadd.f32 0.0, %v10203
        %v10205 = vpop.f32.mrb[0].mxu0
        %10206 = vdwg.mxu0
        %10207 = vmatprep.subr.bf16.mxu0 0
        %10208 = vmatpush1.bf16.msra.mxu0 %v9918
        %10209 = vmatprep.subr.bf16.mxu0 0
        %10210 = vmatpush1.bf16.msra.mxu0 %v9919
        %10211 = vmatprep.subr.bf16.mxu0 0
        %10212 = vmatpush1.bf16.msra.mxu0 %v9920
        %10213 = vmatprep.subr.bf16.mxu0 0
        %10214 = vmatpush1.bf16.msra.mxu0 %v9921
        %10215 = vmatprep.subr.bf16.mxu0 0
        %10216 = vmatpush1.bf16.msra.mxu0 %v9922
        %10217 = vmatprep.subr.bf16.mxu0 0
        %10218 = vmatpush1.bf16.msra.mxu0 %v9923
        %10219 = vmatprep.subr.bf16.mxu0 0
        %10220 = vmatpush1.bf16.msra.mxu0 %v9924
        %10221 = vmatprep.subr.bf16.mxu0 0
        %10222 = vmatpush1.bf16.msra.mxu0 %v9925
        %10223 = vmatprep.subr.bf16.mxu0 0
        %10224 = vmatpush1.bf16.msra.mxu0 %v9926
        %10225 = vmatprep.subr.bf16.mxu0 0
        %10226 = vmatpush1.bf16.msra.mxu0 %v9927
        %10227 = vmatprep.subr.bf16.mxu0 0
        %10228 = vmatpush1.bf16.msra.mxu0 %v9928
        %10229 = vmatprep.subr.bf16.mxu0 0
        %10230 = vmatpush1.bf16.msra.mxu0 %v9929
        %10231 = vmatprep.subr.bf16.mxu0 0
        %10232 = vmatpush1.bf16.msra.mxu0 %v9930
        %10233 = vmatprep.subr.bf16.mxu0 0
        %10234 = vmatpush1.bf16.msra.mxu0 %v9931
        %10235 = vmatprep.subr.bf16.mxu0 0
        %10236 = vmatpush1.bf16.msra.mxu0 %v9932
        %10237 = vmatprep.subr.bf16.mxu0 0
        %10238 = vmatpush1.bf16.msra.mxu0 %v9933
        %10239 = vmatprep.mubr.bf16.mxu0 %v9329
        %10240 = vmatmul.mubr.bf16.gmra.mrb[0].mxu0 %v9328
        %v10241 = vpop.f32.mrb[0].mxu0
        %v10242 = vadd.f32 %v10081, %v10241
        %v10243 = vpop.f32.mrb[0].mxu0
        %v10244 = vpop.f32.mrb[0].mxu0
        %v10245 = vadd.f32 %v10084, %v10244
        %v10246 = vpop.f32.mrb[0].mxu0
        %10247 = vmatprep.mubr.bf16.mxu0 %v9338
        %10248 = vmatmul.mubr.bf16.gmra.mrb[0].mxu0 %v9337
        %v10249 = vpop.f32.mrb[0].mxu0
        %v10250 = vadd.f32 %v10089, %v10249
        %v10251 = vpop.f32.mrb[0].mxu0
        %v10252 = vpop.f32.mrb[0].mxu0
        %v10253 = vadd.f32 %v10092, %v10252
        %v10254 = vpop.f32.mrb[0].mxu0
        %10255 = vmatprep.mubr.bf16.mxu0 %v9347
        %10256 = vmatmul.mubr.bf16.gmra.mrb[0].mxu0 %v9346
        %v10257 = vpop.f32.mrb[0].mxu0
        %v10258 = vadd.f32 %v10097, %v10257
        %v10259 = vpop.f32.mrb[0].mxu0
        %v10260 = vpop.f32.mrb[0].mxu0
        %v10261 = vadd.f32 %v10100, %v10260
        %v10262 = vpop.f32.mrb[0].mxu0
        %10263 = vmatprep.mubr.bf16.mxu0 %v9356
        %10264 = vmatmul.mubr.bf16.gmra.mrb[0].mxu0 %v9355
        %v10265 = vpop.f32.mrb[0].mxu0
        %v10266 = vadd.f32 %v10105, %v10265
        %v10267 = vpop.f32.mrb[0].mxu0
        %v10268 = vpop.f32.mrb[0].mxu0
        %v10269 = vadd.f32 %v10108, %v10268
        %v10270 = vpop.f32.mrb[0].mxu0
        %10271 = vmatprep.mubr.bf16.mxu0 %v9365
        %10272 = vmatmul.mubr.bf16.gmra.mrb[0].mxu0 %v9364
        %v10273 = vpop.f32.mrb[0].mxu0
        %v10274 = vadd.f32 %v10113, %v10273
        %v10275 = vpop.f32.mrb[0].mxu0
        %v10276 = vpop.f32.mrb[0].mxu0
        %v10277 = vadd.f32 %v10116, %v10276
        %v10278 = vpop.f32.mrb[0].mxu0
        %10279 = vmatprep.mubr.bf16.mxu0 %v9374
        %10280 = vmatmul.mubr.bf16.gmra.mrb[0].mxu0 %v9373
        %v10281 = vpop.f32.mrb[0].mxu0
        %v10282 = vadd.f32 %v10121, %v10281
        %v10283 = vpop.f32.mrb[0].mxu0
        %v10284 = vpop.f32.mrb[0].mxu0
        %v10285 = vadd.f32 %v10124, %v10284
        %v10286 = vpop.f32.mrb[0].mxu0
        %10287 = vmatprep.mubr.bf16.mxu0 %v9383
        %10288 = vmatmul.mubr.bf16.gmra.mrb[0].mxu0 %v9382
        %v10289 = vpop.f32.mrb[0].mxu0
        %v10290 = vadd.f32 %v10129, %v10289
        %v10291 = vpop.f32.mrb[0].mxu0
        %v10292 = vpop.f32.mrb[0].mxu0
        %v10293 = vadd.f32 %v10132, %v10292
        %v10294 = vpop.f32.mrb[0].mxu0
        %10295 = vmatprep.mubr.bf16.mxu0 %v9392
        %10296 = vmatmul.mubr.bf16.gmra.mrb[0].mxu0 %v9391
        %v10297 = vpop.f32.mrb[0].mxu0
        %v10298 = vadd.f32 %v10137, %v10297
        %v10299 = vpop.f32.mrb[0].mxu0
        %v10300 = vpop.f32.mrb[0].mxu0
        %v10301 = vadd.f32 %v10140, %v10300
        %v10302 = vpop.f32.mrb[0].mxu0
        %10303 = vmatprep.mubr.bf16.mxu0 %v9401
        %10304 = vmatmul.mubr.bf16.gmra.mrb[0].mxu0 %v9400
        %v10305 = vpop.f32.mrb[0].mxu0
        %v10306 = vadd.f32 %v10145, %v10305
        %v10307 = vpop.f32.mrb[0].mxu0
        %v10308 = vpop.f32.mrb[0].mxu0
        %v10309 = vadd.f32 %v10148, %v10308
        %v10310 = vpop.f32.mrb[0].mxu0
        %10311 = vmatprep.mubr.bf16.mxu0 %v9410
        %10312 = vmatmul.mubr.bf16.gmra.mrb[0].mxu0 %v9409
        %v10313 = vpop.f32.mrb[0].mxu0
        %v10314 = vadd.f32 %v10153, %v10313
        %v10315 = vpop.f32.mrb[0].mxu0
        %v10316 = vpop.f32.mrb[0].mxu0
        %v10317 = vadd.f32 %v10156, %v10316
        %v10318 = vpop.f32.mrb[0].mxu0
        %10319 = vmatprep.mubr.bf16.mxu0 %v9419
        %10320 = vmatmul.mubr.bf16.gmra.mrb[0].mxu0 %v9418
        %v10321 = vpop.f32.mrb[0].mxu0
        %v10322 = vadd.f32 %v10161, %v10321
        %v10323 = vpop.f32.mrb[0].mxu0
        %v10324 = vpop.f32.mrb[0].mxu0
        %v10325 = vadd.f32 %v10164, %v10324
        %v10326 = vpop.f32.mrb[0].mxu0
        %10327 = vmatprep.mubr.bf16.mxu0 %v9428
        %10328 = vmatmul.mubr.bf16.gmra.mrb[0].mxu0 %v9427
        %v10329 = vpop.f32.mrb[0].mxu0
        %v10330 = vadd.f32 %v10169, %v10329
        %v10331 = vpop.f32.mrb[0].mxu0
        %v10332 = vpop.f32.mrb[0].mxu0
        %v10333 = vadd.f32 %v10172, %v10332
        %v10334 = vpop.f32.mrb[0].mxu0
        %10335 = vmatprep.mubr.bf16.mxu0 %v9437
        %10336 = vmatmul.mubr.bf16.gmra.mrb[0].mxu0 %v9436
        %v10337 = vpop.f32.mrb[0].mxu0
        %v10338 = vadd.f32 %v10177, %v10337
        %v10339 = vpop.f32.mrb[0].mxu0
        %v10340 = vpop.f32.mrb[0].mxu0
        %v10341 = vadd.f32 %v10180, %v10340
        %v10342 = vpop.f32.mrb[0].mxu0
        %10343 = vmatprep.mubr.bf16.mxu0 %v9446
        %10344 = vmatmul.mubr.bf16.gmra.mrb[0].mxu0 %v9445
        %v10345 = vpop.f32.mrb[0].mxu0
        %v10346 = vadd.f32 %v10185, %v10345
        %v10347 = vpop.f32.mrb[0].mxu0
        %v10348 = vpop.f32.mrb[0].mxu0
        %v10349 = vadd.f32 %v10188, %v10348
        %v10350 = vpop.f32.mrb[0].mxu0
        %10351 = vmatprep.mubr.bf16.mxu0 %v9455
        %10352 = vmatmul.mubr.bf16.gmra.mrb[0].mxu0 %v9454
        %v10353 = vpop.f32.mrb[0].mxu0
        %v10354 = vadd.f32 %v10193, %v10353
        %v10355 = vpop.f32.mrb[0].mxu0
        %v10356 = vpop.f32.mrb[0].mxu0
        %v10357 = vadd.f32 %v10196, %v10356
        %v10358 = vpop.f32.mrb[0].mxu0
        %10359 = vmatprep.mubr.bf16.mxu0 %v9464
        %10360 = vmatmul.mubr.bf16.gmra.mrb[0].mxu0 %v9463
        %v10361 = vpop.f32.mrb[0].mxu0
        %v10362 = vadd.f32 %v10201, %v10361
        %v10363 = vpop.f32.mrb[0].mxu0
        %v10364 = vpop.f32.mrb[0].mxu0
        %v10365 = vadd.f32 %v10204, %v10364
        %v10366 = vpop.f32.mrb[0].mxu0
        %10367 = vdwg.mxu0
        %10368 = vmatprep.subr.bf16.mxu0 0
        %10369 = vmatpush1.bf16.msra.mxu0 %v9934
        %10370 = vmatprep.subr.bf16.mxu0 0
        %10371 = vmatpush1.bf16.msra.mxu0 %v9935
        %10372 = vmatprep.subr.bf16.mxu0 0
        %10373 = vmatpush1.bf16.msra.mxu0 %v9936
        %10374 = vmatprep.subr.bf16.mxu0 0
        %10375 = vmatpush1.bf16.msra.mxu0 %v9937
        %10376 = vmatprep.subr.bf16.mxu0 0
        %10377 = vmatpush1.bf16.msra.mxu0 %v9938
        %10378 = vmatprep.subr.bf16.mxu0 0
        %10379 = vmatpush1.bf16.msra.mxu0 %v9939
        %10380 = vmatprep.subr.bf16.mxu0 0
        %10381 = vmatpush1.bf16.msra.mxu0 %v9940
        %10382 = vmatprep.subr.bf16.mxu0 0
        %10383 = vmatpush1.bf16.msra.mxu0 %v9941
        %10384 = vmatprep.subr.bf16.mxu0 0
        %10385 = vmatpush1.bf16.msra.mxu0 %v9942
        %10386 = vmatprep.subr.bf16.mxu0 0
        %10387 = vmatpush1.bf16.msra.mxu0 %v9943
        %10388 = vmatprep.subr.bf16.mxu0 0
        %10389 = vmatpush1.bf16.msra.mxu0 %v9944
        %10390 = vmatprep.subr.bf16.mxu0 0
        %10391 = vmatpush1.bf16.msra.mxu0 %v9945
        %10392 = vmatprep.subr.bf16.mxu0 0
        %10393 = vmatpush1.bf16.msra.mxu0 %v9946
        %10394 = vmatprep.subr.bf16.mxu0 0
        %10395 = vmatpush1.bf16.msra.mxu0 %v9947
        %10396 = vmatprep.subr.bf16.mxu0 0
        %10397 = vmatpush1.bf16.msra.mxu0 %v9948
        %10398 = vmatprep.subr.bf16.mxu0 0
        %10399 = vmatpush1.bf16.msra.mxu0 %v9949
        %10400 = vmatprep.mubr.bf16.mxu0 %v9331
        %10401 = vmatmul.mubr.bf16.gmra.mrb[0].mxu0 %v9330
        %v10402 = vpop.f32.mrb[0].mxu0
        %v10403 = vadd.f32 %v10242, %v10402
        %v10404 = vpop.f32.mrb[0].mxu0
        %v10405 = vpop.f32.mrb[0].mxu0
        %v10406 = vadd.f32 %v10245, %v10405
        %v10407 = vpop.f32.mrb[0].mxu0
        %10408 = vmatprep.mubr.bf16.mxu0 %v9340
        %10409 = vmatmul.mubr.bf16.gmra.mrb[0].mxu0 %v9339
        %v10410 = vpop.f32.mrb[0].mxu0
        %v10411 = vadd.f32 %v10250, %v10410
        %v10412 = vpop.f32.mrb[0].mxu0
        %v10413 = vpop.f32.mrb[0].mxu0
        %v10414 = vadd.f32 %v10253, %v10413
        %v10415 = vpop.f32.mrb[0].mxu0
        %10416 = vmatprep.mubr.bf16.mxu0 %v9349
        %10417 = vmatmul.mubr.bf16.gmra.mrb[0].mxu0 %v9348
        %v10418 = vpop.f32.mrb[0].mxu0
        %v10419 = vadd.f32 %v10258, %v10418
        %v10420 = vpop.f32.mrb[0].mxu0
        %v10421 = vpop.f32.mrb[0].mxu0
        %v10422 = vadd.f32 %v10261, %v10421
        %v10423 = vpop.f32.mrb[0].mxu0
        %10424 = vmatprep.mubr.bf16.mxu0 %v9358
        %10425 = vmatmul.mubr.bf16.gmra.mrb[0].mxu0 %v9357
        %v10426 = vpop.f32.mrb[0].mxu0
        %v10427 = vadd.f32 %v10266, %v10426
        %v10428 = vpop.f32.mrb[0].mxu0
        %v10429 = vpop.f32.mrb[0].mxu0
        %v10430 = vadd.f32 %v10269, %v10429
        %v10431 = vpop.f32.mrb[0].mxu0
        %10432 = vmatprep.mubr.bf16.mxu0 %v9367
        %10433 = vmatmul.mubr.bf16.gmra.mrb[0].mxu0 %v9366
        %v10434 = vpop.f32.mrb[0].mxu0
        %v10435 = vadd.f32 %v10274, %v10434
        %v10436 = vpop.f32.mrb[0].mxu0
        %v10437 = vpop.f32.mrb[0].mxu0
        %v10438 = vadd.f32 %v10277, %v10437
        %v10439 = vpop.f32.mrb[0].mxu0
        %10440 = vmatprep.mubr.bf16.mxu0 %v9376
        %10441 = vmatmul.mubr.bf16.gmra.mrb[0].mxu0 %v9375
        %v10442 = vpop.f32.mrb[0].mxu0
        %v10443 = vadd.f32 %v10282, %v10442
        %v10444 = vpop.f32.mrb[0].mxu0
        %v10445 = vpop.f32.mrb[0].mxu0
        %v10446 = vadd.f32 %v10285, %v10445
        %v10447 = vpop.f32.mrb[0].mxu0
        %10448 = vmatprep.mubr.bf16.mxu0 %v9385
        %10449 = vmatmul.mubr.bf16.gmra.mrb[0].mxu0 %v9384
        %v10450 = vpop.f32.mrb[0].mxu0
        %v10451 = vadd.f32 %v10290, %v10450
        %v10452 = vpop.f32.mrb[0].mxu0
        %v10453 = vpop.f32.mrb[0].mxu0
        %v10454 = vadd.f32 %v10293, %v10453
        %v10455 = vpop.f32.mrb[0].mxu0
        %10456 = vmatprep.mubr.bf16.mxu0 %v9394
        %10457 = vmatmul.mubr.bf16.gmra.mrb[0].mxu0 %v9393
        %v10458 = vpop.f32.mrb[0].mxu0
        %v10459 = vadd.f32 %v10298, %v10458
        %v10460 = vpop.f32.mrb[0].mxu0
        %v10461 = vpop.f32.mrb[0].mxu0
        %v10462 = vadd.f32 %v10301, %v10461
        %v10463 = vpop.f32.mrb[0].mxu0
        %10464 = vmatprep.mubr.bf16.mxu0 %v9403
        %10465 = vmatmul.mubr.bf16.gmra.mrb[0].mxu0 %v9402
        %v10466 = vpop.f32.mrb[0].mxu0
        %v10467 = vadd.f32 %v10306, %v10466
        %v10468 = vpop.f32.mrb[0].mxu0
        %v10469 = vpop.f32.mrb[0].mxu0
        %v10470 = vadd.f32 %v10309, %v10469
        %v10471 = vpop.f32.mrb[0].mxu0
        %10472 = vmatprep.mubr.bf16.mxu0 %v9412
        %10473 = vmatmul.mubr.bf16.gmra.mrb[0].mxu0 %v9411
        %v10474 = vpop.f32.mrb[0].mxu0
        %v10475 = vadd.f32 %v10314, %v10474
        %v10476 = vpop.f32.mrb[0].mxu0
        %v10477 = vpop.f32.mrb[0].mxu0
        %v10478 = vadd.f32 %v10317, %v10477
        %v10479 = vpop.f32.mrb[0].mxu0
        %10480 = vmatprep.mubr.bf16.mxu0 %v9421
        %10481 = vmatmul.mubr.bf16.gmra.mrb[0].mxu0 %v9420
        %v10482 = vpop.f32.mrb[0].mxu0
        %v10483 = vadd.f32 %v10322, %v10482
        %v10484 = vpop.f32.mrb[0].mxu0
        %v10485 = vpop.f32.mrb[0].mxu0
        %v10486 = vadd.f32 %v10325, %v10485
        %v10487 = vpop.f32.mrb[0].mxu0
        %10488 = vmatprep.mubr.bf16.mxu0 %v9430
        %10489 = vmatmul.mubr.bf16.gmra.mrb[0].mxu0 %v9429
        %v10490 = vpop.f32.mrb[0].mxu0
        %v10491 = vadd.f32 %v10330, %v10490
        %v10492 = vpop.f32.mrb[0].mxu0
        %v10493 = vpop.f32.mrb[0].mxu0
        %v10494 = vadd.f32 %v10333, %v10493
        %v10495 = vpop.f32.mrb[0].mxu0
        %10496 = vmatprep.mubr.bf16.mxu0 %v9439
        %10497 = vmatmul.mubr.bf16.gmra.mrb[0].mxu0 %v9438
        %v10498 = vpop.f32.mrb[0].mxu0
        %v10499 = vadd.f32 %v10338, %v10498
        %v10500 = vpop.f32.mrb[0].mxu0
        %v10501 = vpop.f32.mrb[0].mxu0
        %v10502 = vadd.f32 %v10341, %v10501
        %v10503 = vpop.f32.mrb[0].mxu0
        %10504 = vmatprep.mubr.bf16.mxu0 %v9448
        %10505 = vmatmul.mubr.bf16.gmra.mrb[0].mxu0 %v9447
        %v10506 = vpop.f32.mrb[0].mxu0
        %v10507 = vadd.f32 %v10346, %v10506
        %v10508 = vpop.f32.mrb[0].mxu0
        %v10509 = vpop.f32.mrb[0].mxu0
        %v10510 = vadd.f32 %v10349, %v10509
        %v10511 = vpop.f32.mrb[0].mxu0
        %10512 = vmatprep.mubr.bf16.mxu0 %v9457
        %10513 = vmatmul.mubr.bf16.gmra.mrb[0].mxu0 %v9456
        %v10514 = vpop.f32.mrb[0].mxu0
        %v10515 = vadd.f32 %v10354, %v10514
        %v10516 = vpop.f32.mrb[0].mxu0
        %v10517 = vpop.f32.mrb[0].mxu0
        %v10518 = vadd.f32 %v10357, %v10517
        %v10519 = vpop.f32.mrb[0].mxu0
        %10520 = vmatprep.mubr.bf16.mxu0 %v9466
        %10521 = vmatmul.mubr.bf16.gmra.mrb[0].mxu0 %v9465
        %v10522 = vpop.f32.mrb[0].mxu0
        %v10523 = vadd.f32 %v10362, %v10522
        %v10524 = vpop.f32.mrb[0].mxu0
        %v10525 = vpop.f32.mrb[0].mxu0
        %v10526 = vadd.f32 %v10365, %v10525
        %v10527 = vpop.f32.mrb[0].mxu0
        %10528 = vdwg.mxu0
        %10529 = vmatprep.subr.bf16.mxu0 0
        %10530 = vmatpush1.bf16.msra.mxu0 %v9950
        %10531 = vmatprep.subr.bf16.mxu0 0
        %10532 = vmatpush1.bf16.msra.mxu0 %v9951
        %10533 = vmatprep.subr.bf16.mxu0 0
        %10534 = vmatpush1.bf16.msra.mxu0 %v9952
        %10535 = vmatprep.subr.bf16.mxu0 0
        %10536 = vmatpush1.bf16.msra.mxu0 %v9953
        %10537 = vmatprep.subr.bf16.mxu0 0
        %10538 = vmatpush1.bf16.msra.mxu0 %v9954
        %10539 = vmatprep.subr.bf16.mxu0 0
        %10540 = vmatpush1.bf16.msra.mxu0 %v9955
        %10541 = vmatprep.subr.bf16.mxu0 0
        %10542 = vmatpush1.bf16.msra.mxu0 %v9956
        %10543 = vmatprep.subr.bf16.mxu0 0
        %10544 = vmatpush1.bf16.msra.mxu0 %v9957
        %10545 = vmatprep.subr.bf16.mxu0 0
        %10546 = vmatpush1.bf16.msra.mxu0 %v9958
        %10547 = vmatprep.subr.bf16.mxu0 0
        %10548 = vmatpush1.bf16.msra.mxu0 %v9959
        %10549 = vmatprep.subr.bf16.mxu0 0
        %10550 = vmatpush1.bf16.msra.mxu0 %v9960
        %10551 = vmatprep.subr.bf16.mxu0 0
        %10552 = vmatpush1.bf16.msra.mxu0 %v9961
        %10553 = vmatprep.subr.bf16.mxu0 0
        %10554 = vmatpush1.bf16.msra.mxu0 %v9962
        %10555 = vmatprep.subr.bf16.mxu0 0
        %10556 = vmatpush1.bf16.msra.mxu0 %v9963
        %10557 = vmatprep.subr.bf16.mxu0 0
        %10558 = vmatpush1.bf16.msra.mxu0 %v9964
        %10559 = vmatprep.subr.bf16.mxu0 0
        %10560 = vmatpush1.bf16.msra.mxu0 %v9965
        %10561 = vmatprep.mubr.bf16.mxu0 %v9333
        %10562 = vmatmul.mubr.bf16.gmra.mrb[0].mxu0 %v9332
        %v10563 = vpop.f32.mrb[0].mxu0
        %v10564 = vadd.f32 %v10403, %v10563
        %v10565 = vpop.f32.mrb[0].mxu0
        %v10566 = vpop.f32.mrb[0].mxu0
        %v10567 = vadd.f32 %v10406, %v10566
        %v10568 = vpop.f32.mrb[0].mxu0
        %10569 = vmatprep.mubr.bf16.mxu0 %v9342
        %10570 = vmatmul.mubr.bf16.gmra.mrb[0].mxu0 %v9341
        %v10571 = vpop.f32.mrb[0].mxu0
        %v10572 = vadd.f32 %v10411, %v10571
        %v10573 = vpop.f32.mrb[0].mxu0
        %v10574 = vpop.f32.mrb[0].mxu0
        %v10575 = vadd.f32 %v10414, %v10574
        %v10576 = vpop.f32.mrb[0].mxu0
        %10577 = vmatprep.mubr.bf16.mxu0 %v9351
        %10578 = vmatmul.mubr.bf16.gmra.mrb[0].mxu0 %v9350
        %v10579 = vpop.f32.mrb[0].mxu0
        %v10580 = vadd.f32 %v10419, %v10579
        %v10581 = vpop.f32.mrb[0].mxu0
        %v10582 = vpop.f32.mrb[0].mxu0
        %v10583 = vadd.f32 %v10422, %v10582
        %v10584 = vpop.f32.mrb[0].mxu0
        %10585 = vmatprep.mubr.bf16.mxu0 %v9360
        %10586 = vmatmul.mubr.bf16.gmra.mrb[0].mxu0 %v9359
        %v10587 = vpop.f32.mrb[0].mxu0
        %v10588 = vadd.f32 %v10427, %v10587
        %v10589 = vpop.f32.mrb[0].mxu0
        %v10590 = vpop.f32.mrb[0].mxu0
        %v10591 = vadd.f32 %v10430, %v10590
        %v10592 = vpop.f32.mrb[0].mxu0
        %10593 = vmatprep.mubr.bf16.mxu0 %v9369
        %10594 = vmatmul.mubr.bf16.gmra.mrb[0].mxu0 %v9368
        %v10595 = vpop.f32.mrb[0].mxu0
        %v10596 = vadd.f32 %v10435, %v10595
        %v10597 = vpop.f32.mrb[0].mxu0
        %v10598 = vpop.f32.mrb[0].mxu0
        %v10599 = vadd.f32 %v10438, %v10598
        %v10600 = vpop.f32.mrb[0].mxu0
        %10601 = vmatprep.mubr.bf16.mxu0 %v9378
        %10602 = vmatmul.mubr.bf16.gmra.mrb[0].mxu0 %v9377
        %v10603 = vpop.f32.mrb[0].mxu0
        %v10604 = vadd.f32 %v10443, %v10603
        %v10605 = vpop.f32.mrb[0].mxu0
        %v10606 = vpop.f32.mrb[0].mxu0
        %v10607 = vadd.f32 %v10446, %v10606
        %v10608 = vpop.f32.mrb[0].mxu0
        %10609 = vmatprep.mubr.bf16.mxu0 %v9387
        %10610 = vmatmul.mubr.bf16.gmra.mrb[0].mxu0 %v9386
        %v10611 = vpop.f32.mrb[0].mxu0
        %v10612 = vadd.f32 %v10451, %v10611
        %v10613 = vpop.f32.mrb[0].mxu0
        %v10614 = vpop.f32.mrb[0].mxu0
        %v10615 = vadd.f32 %v10454, %v10614
        %v10616 = vpop.f32.mrb[0].mxu0
        %10617 = vmatprep.mubr.bf16.mxu0 %v9396
        %10618 = vmatmul.mubr.bf16.gmra.mrb[0].mxu0 %v9395
        %v10619 = vpop.f32.mrb[0].mxu0
        %v10620 = vadd.f32 %v10459, %v10619
        %v10621 = vpop.f32.mrb[0].mxu0
        %v10622 = vpop.f32.mrb[0].mxu0
        %v10623 = vadd.f32 %v10462, %v10622
        %v10624 = vpop.f32.mrb[0].mxu0
        %10625 = vmatprep.mubr.bf16.mxu0 %v9405
        %10626 = vmatmul.mubr.bf16.gmra.mrb[0].mxu0 %v9404
        %v10627 = vpop.f32.mrb[0].mxu0
        %v10628 = vadd.f32 %v10467, %v10627
        %v10629 = vpop.f32.mrb[0].mxu0
        %v10630 = vpop.f32.mrb[0].mxu0
        %v10631 = vadd.f32 %v10470, %v10630
        %v10632 = vpop.f32.mrb[0].mxu0
        %10633 = vmatprep.mubr.bf16.mxu0 %v9414
        %10634 = vmatmul.mubr.bf16.gmra.mrb[0].mxu0 %v9413
        %v10635 = vpop.f32.mrb[0].mxu0
        %v10636 = vadd.f32 %v10475, %v10635
        %v10637 = vpop.f32.mrb[0].mxu0
        %v10638 = vpop.f32.mrb[0].mxu0
        %v10639 = vadd.f32 %v10478, %v10638
        %v10640 = vpop.f32.mrb[0].mxu0
        %10641 = vmatprep.mubr.bf16.mxu0 %v9423
        %10642 = vmatmul.mubr.bf16.gmra.mrb[0].mxu0 %v9422
        %v10643 = vpop.f32.mrb[0].mxu0
        %v10644 = vadd.f32 %v10483, %v10643
        %v10645 = vpop.f32.mrb[0].mxu0
        %v10646 = vpop.f32.mrb[0].mxu0
        %v10647 = vadd.f32 %v10486, %v10646
        %v10648 = vpop.f32.mrb[0].mxu0
        %10649 = vmatprep.mubr.bf16.mxu0 %v9432
        %10650 = vmatmul.mubr.bf16.gmra.mrb[0].mxu0 %v9431
        %v10651 = vpop.f32.mrb[0].mxu0
        %v10652 = vadd.f32 %v10491, %v10651
        %v10653 = vpop.f32.mrb[0].mxu0
        %v10654 = vpop.f32.mrb[0].mxu0
        %v10655 = vadd.f32 %v10494, %v10654
        %v10656 = vpop.f32.mrb[0].mxu0
        %10657 = vmatprep.mubr.bf16.mxu0 %v9441
        %10658 = vmatmul.mubr.bf16.gmra.mrb[0].mxu0 %v9440
        %v10659 = vpop.f32.mrb[0].mxu0
        %v10660 = vadd.f32 %v10499, %v10659
        %v10661 = vpop.f32.mrb[0].mxu0
        %v10662 = vpop.f32.mrb[0].mxu0
        %v10663 = vadd.f32 %v10502, %v10662
        %v10664 = vpop.f32.mrb[0].mxu0
        %10665 = vmatprep.mubr.bf16.mxu0 %v9450
        %10666 = vmatmul.mubr.bf16.gmra.mrb[0].mxu0 %v9449
        %v10667 = vpop.f32.mrb[0].mxu0
        %v10668 = vadd.f32 %v10507, %v10667
        %v10669 = vpop.f32.mrb[0].mxu0
        %v10670 = vpop.f32.mrb[0].mxu0
        %v10671 = vadd.f32 %v10510, %v10670
        %v10672 = vpop.f32.mrb[0].mxu0
        %10673 = vmatprep.mubr.bf16.mxu0 %v9459
        %10674 = vmatmul.mubr.bf16.gmra.mrb[0].mxu0 %v9458
        %v10675 = vpop.f32.mrb[0].mxu0
        %v10676 = vadd.f32 %v10515, %v10675
        %v10677 = vpop.f32.mrb[0].mxu0
        %v10678 = vpop.f32.mrb[0].mxu0
        %v10679 = vadd.f32 %v10518, %v10678
        %v10680 = vpop.f32.mrb[0].mxu0
        %10681 = vmatprep.mubr.bf16.mxu0 %v9468
        %10682 = vmatmul.mubr.bf16.gmra.mrb[0].mxu0 %v9467
        %v10683 = vpop.f32.mrb[0].mxu0
        %v10684 = vadd.f32 %v10523, %v10683
        %v10685 = vpop.f32.mrb[0].mxu0
        %v10686 = vpop.f32.mrb[0].mxu0
        %v10687 = vadd.f32 %v10526, %v10686
        %v10688 = vpop.f32.mrb[0].mxu0
        %10689 = vdwg.mxu0
        %10690 = vmatprep.subr.bf16.mxu0 0
        %10691 = vmatpush1.bf16.msra.mxu0 %v9966
        %10692 = vmatprep.subr.bf16.mxu0 0
        %10693 = vmatpush1.bf16.msra.mxu0 %v9967
        %10694 = vmatprep.subr.bf16.mxu0 0
        %10695 = vmatpush1.bf16.msra.mxu0 %v9968
        %10696 = vmatprep.subr.bf16.mxu0 0
        %10697 = vmatpush1.bf16.msra.mxu0 %v9969
        %10698 = vmatprep.subr.bf16.mxu0 0
        %10699 = vmatpush1.bf16.msra.mxu0 %v9970
        %10700 = vmatprep.subr.bf16.mxu0 0
        %10701 = vmatpush1.bf16.msra.mxu0 %v9971
        %10702 = vmatprep.subr.bf16.mxu0 0
        %10703 = vmatpush1.bf16.msra.mxu0 %v9972
        %10704 = vmatprep.subr.bf16.mxu0 0
        %10705 = vmatpush1.bf16.msra.mxu0 %v9973
        %10706 = vmatprep.subr.bf16.mxu0 0
        %10707 = vmatpush1.bf16.msra.mxu0 0
        %10708 = vmatprep.subr.bf16.mxu0 0
        %10709 = vmatpush1.bf16.msra.mxu0 0
        %10710 = vmatprep.subr.bf16.mxu0 0
        %10711 = vmatpush1.bf16.msra.mxu0 0
        %10712 = vmatprep.subr.bf16.mxu0 0
        %10713 = vmatpush1.bf16.msra.mxu0 0
        %10714 = vmatprep.subr.bf16.mxu0 0
        %10715 = vmatpush1.bf16.msra.mxu0 0
        %10716 = vmatprep.subr.bf16.mxu0 0
        %10717 = vmatpush1.bf16.msra.mxu0 0
        %10718 = vmatprep.subr.bf16.mxu0 0
        %10719 = vmatpush1.bf16.msra.mxu0 0
        %10720 = vmatprep.subr.bf16.mxu0 0
        %10721 = vmatpush1.bf16.msra.mxu0 0
        %10722 = vmatprep.mubr.bf16.mxu0 0
        %10723 = vmatmul.mubr.bf16.gmra.mrb[0].mxu0 %v9334
        %v10724 = vpop.f32.mrb[0].mxu0
        %v10725 = vadd.f32 %v10564, %v10724
        %v10726 = vpop.f32.mrb[0].mxu0
        %v10727 = vpop.f32.mrb[0].mxu0
        %v10728 = vadd.f32 %v10567, %v10727
        %v10729 = vpop.f32.mrb[0].mxu0
        %10730 = vmatprep.mubr.bf16.mxu0 0
        %10731 = vmatmul.mubr.bf16.gmra.mrb[0].mxu0 %v9343
        %v10732 = vpop.f32.mrb[0].mxu0
        %v10733 = vadd.f32 %v10572, %v10732
        %v10734 = vpop.f32.mrb[0].mxu0
        %v10735 = vpop.f32.mrb[0].mxu0
        %v10736 = vadd.f32 %v10575, %v10735
        %v10737 = vpop.f32.mrb[0].mxu0
        %10738 = vmatprep.mubr.bf16.mxu0 0
        %10739 = vmatmul.mubr.bf16.gmra.mrb[0].mxu0 %v9352
        %v10740 = vpop.f32.mrb[0].mxu0
        %v10741 = vadd.f32 %v10580, %v10740
        %v10742 = vpop.f32.mrb[0].mxu0
        %v10743 = vpop.f32.mrb[0].mxu0
        %v10744 = vadd.f32 %v10583, %v10743
        %v10745 = vpop.f32.mrb[0].mxu0
        %10746 = vmatprep.mubr.bf16.mxu0 0
        %10747 = vmatmul.mubr.bf16.gmra.mrb[0].mxu0 %v9361
        %v10748 = vpop.f32.mrb[0].mxu0
        %v10749 = vadd.f32 %v10588, %v10748
        %v10750 = vpop.f32.mrb[0].mxu0
        %v10751 = vpop.f32.mrb[0].mxu0
        %v10752 = vadd.f32 %v10591, %v10751
        %v10753 = vpop.f32.mrb[0].mxu0
        %10754 = vmatprep.mubr.bf16.mxu0 0
        %10755 = vmatmul.mubr.bf16.gmra.mrb[0].mxu0 %v9370
        %v10756 = vpop.f32.mrb[0].mxu0
        %v10757 = vadd.f32 %v10596, %v10756
        %v10758 = vpop.f32.mrb[0].mxu0
        %v10759 = vpop.f32.mrb[0].mxu0
        %v10760 = vadd.f32 %v10599, %v10759
        %v10761 = vpop.f32.mrb[0].mxu0
        %10762 = vmatprep.mubr.bf16.mxu0 0
        %10763 = vmatmul.mubr.bf16.gmra.mrb[0].mxu0 %v9379
        %v10764 = vpop.f32.mrb[0].mxu0
        %v10765 = vadd.f32 %v10604, %v10764
        %v10766 = vpop.f32.mrb[0].mxu0
        %v10767 = vpop.f32.mrb[0].mxu0
        %v10768 = vadd.f32 %v10607, %v10767
        %v10769 = vpop.f32.mrb[0].mxu0
        %10770 = vmatprep.mubr.bf16.mxu0 0
        %10771 = vmatmul.mubr.bf16.gmra.mrb[0].mxu0 %v9388
        %v10772 = vpop.f32.mrb[0].mxu0
        %v10773 = vadd.f32 %v10612, %v10772
        %v10774 = vpop.f32.mrb[0].mxu0
        %v10775 = vpop.f32.mrb[0].mxu0
        %v10776 = vadd.f32 %v10615, %v10775
        %v10777 = vpop.f32.mrb[0].mxu0
        %10778 = vmatprep.mubr.bf16.mxu0 0
        %10779 = vmatmul.mubr.bf16.gmra.mrb[0].mxu0 %v9397
        %v10780 = vpop.f32.mrb[0].mxu0
        %v10781 = vadd.f32 %v10620, %v10780
        %v10782 = vpop.f32.mrb[0].mxu0
        %v10783 = vpop.f32.mrb[0].mxu0
        %v10784 = vadd.f32 %v10623, %v10783
        %v10785 = vpop.f32.mrb[0].mxu0
        %10786 = vmatprep.mubr.bf16.mxu0 0
        %10787 = vmatmul.mubr.bf16.gmra.mrb[0].mxu0 %v9406
        %v10788 = vpop.f32.mrb[0].mxu0
        %v10789 = vadd.f32 %v10628, %v10788
        %v10790 = vpop.f32.mrb[0].mxu0
        %v10791 = vpop.f32.mrb[0].mxu0
        %v10792 = vadd.f32 %v10631, %v10791
        %v10793 = vpop.f32.mrb[0].mxu0
        %10794 = vmatprep.mubr.bf16.mxu0 0
        %10795 = vmatmul.mubr.bf16.gmra.mrb[0].mxu0 %v9415
        %v10796 = vpop.f32.mrb[0].mxu0
        %v10797 = vadd.f32 %v10636, %v10796
        %v10798 = vpop.f32.mrb[0].mxu0
        %v10799 = vpop.f32.mrb[0].mxu0
        %v10800 = vadd.f32 %v10639, %v10799
        %v10801 = vpop.f32.mrb[0].mxu0
        %10802 = vmatprep.mubr.bf16.mxu0 0
        %10803 = vmatmul.mubr.bf16.gmra.mrb[0].mxu0 %v9424
        %v10804 = vpop.f32.mrb[0].mxu0
        %v10805 = vadd.f32 %v10644, %v10804
        %v10806 = vpop.f32.mrb[0].mxu0
        %v10807 = vpop.f32.mrb[0].mxu0
        %v10808 = vadd.f32 %v10647, %v10807
        %v10809 = vpop.f32.mrb[0].mxu0
        %10810 = vmatprep.mubr.bf16.mxu0 0
        %10811 = vmatmul.mubr.bf16.gmra.mrb[0].mxu0 %v9433
        %v10812 = vpop.f32.mrb[0].mxu0
        %v10813 = vadd.f32 %v10652, %v10812
        %v10814 = vpop.f32.mrb[0].mxu0
        %v10815 = vpop.f32.mrb[0].mxu0
        %v10816 = vadd.f32 %v10655, %v10815
        %v10817 = vpop.f32.mrb[0].mxu0
        %10818 = vmatprep.mubr.bf16.mxu0 0
        %10819 = vmatmul.mubr.bf16.gmra.mrb[0].mxu0 %v9442
        %v10820 = vpop.f32.mrb[0].mxu0
        %v10821 = vadd.f32 %v10660, %v10820
        %v10822 = vpop.f32.mrb[0].mxu0
        %v10823 = vpop.f32.mrb[0].mxu0
        %v10824 = vadd.f32 %v10663, %v10823
        %v10825 = vpop.f32.mrb[0].mxu0
        %10826 = vmatprep.mubr.bf16.mxu0 0
        %10827 = vmatmul.mubr.bf16.gmra.mrb[0].mxu0 %v9451
        %v10828 = vpop.f32.mrb[0].mxu0
        %v10829 = vadd.f32 %v10668, %v10828
        %v10830 = vpop.f32.mrb[0].mxu0
        %v10831 = vpop.f32.mrb[0].mxu0
        %v10832 = vadd.f32 %v10671, %v10831
        %v10833 = vpop.f32.mrb[0].mxu0
        %10834 = vmatprep.mubr.bf16.mxu0 0
        %10835 = vmatmul.mubr.bf16.gmra.mrb[0].mxu0 %v9460
        %v10836 = vpop.f32.mrb[0].mxu0
        %v10837 = vadd.f32 %v10676, %v10836
        %v10838 = vpop.f32.mrb[0].mxu0
        %v10839 = vpop.f32.mrb[0].mxu0
        %v10840 = vadd.f32 %v10679, %v10839
        %v10841 = vpop.f32.mrb[0].mxu0
        %10842 = vmatprep.mubr.bf16.mxu0 0
        %10843 = vmatmul.mubr.bf16.gmra.mrb[0].mxu0 %v9469
        %v10844 = vpop.f32.mrb[0].mxu0
        %v10845 = vadd.f32 %v10684, %v10844
        %v10846 = vpop.f32.mrb[0].mxu0
        %v10847 = vpop.f32.mrb[0].mxu0
        %v10848 = vadd.f32 %v10687, %v10847
        %v10849 = vpop.f32.mrb[0].mxu0
        %10850 = vdwg.mxu0
        %v10851 = vadd.f32 %v10725, %v10728
        %v10852 = vadd.f32 %v10851, %v10733
        %v10853 = vadd.f32 %v10852, %v10736
        %v10854 = vadd.f32 %v10853, %v10741
        %v10855 = vadd.f32 %v10854, %v10744
        %v10856 = vadd.f32 %v10855, %v10749
        %v10857 = vadd.f32 %v10856, %v10752
        %v10858 = vadd.f32 %v10857, %v10757
        %v10859 = vadd.f32 %v10858, %v10760
        %v10860 = vadd.f32 %v10859, %v10765
        %v10861 = vadd.f32 %v10860, %v10768
        %v10862 = vadd.f32 %v10861, %v10773
        %v10863 = vadd.f32 %v10862, %v10776
        %v10864 = vadd.f32 %v10863, %v10781
        %v10865 = vadd.f32 %v10864, %v10784
        %v10866 = vadd.f32 %v10865, %v10789
        %v10867 = vadd.f32 %v10866, %v10792
        %v10868 = vadd.f32 %v10867, %v10797
        %v10869 = vadd.f32 %v10868, %v10800
        %v10870 = vadd.f32 %v10869, %v10805
        %v10871 = vadd.f32 %v10870, %v10808
        %v10872 = vadd.f32 %v10871, %v10813
        %v10873 = vadd.f32 %v10872, %v10816
        %v10874 = vadd.f32 %v10873, %v10821
        %v10875 = vadd.f32 %v10874, %v10824
        %v10876 = vadd.f32 %v10875, %v10829
        %v10877 = vadd.f32 %v10876, %v10832
        %v10878 = vadd.f32 %v10877, %v10837
        %v10879 = vadd.f32 %v10878, %v10840
        %v10880 = vadd.f32 %v10879, %v10845
        %v10881 = vadd.f32 %v10880, %v10848
        %v10882 = vrot.slane %v10881, 4
        %v10883 = vadd.f32 %v10881, %v10882
        %v10884 = vrot.slane %v10883, 2
        %v10885 = vadd.f32 %v10883, %v10884
        %v10886 = vrot.slane %v10885, 1
        %v10887 = vadd.f32 %v10885, %v10886
        %v10888 = vmul.f32 %v10725, %v10725
        %v10889 = vmul.f32 %v10728, %v10728
        %v10890 = vmul.f32 %v10733, %v10733
        %v10891 = vmul.f32 %v10736, %v10736
        %v10892 = vmul.f32 %v10741, %v10741
        %v10893 = vmul.f32 %v10744, %v10744
        %v10894 = vmul.f32 %v10749, %v10749
        %v10895 = vmul.f32 %v10752, %v10752
        %v10896 = vmul.f32 %v10757, %v10757
        %v10897 = vmul.f32 %v10760, %v10760
        %v10898 = vmul.f32 %v10765, %v10765
        %v10899 = vmul.f32 %v10768, %v10768
        %v10900 = vmul.f32 %v10773, %v10773
        %v10901 = vmul.f32 %v10776, %v10776
        %v10902 = vmul.f32 %v10781, %v10781
        %v10903 = vmul.f32 %v10784, %v10784
        %v10904 = vmul.f32 %v10789, %v10789
        %v10905 = vmul.f32 %v10792, %v10792
        %v10906 = vmul.f32 %v10797, %v10797
        %v10907 = vmul.f32 %v10800, %v10800
        %v10908 = vmul.f32 %v10805, %v10805
        %v10909 = vmul.f32 %v10808, %v10808
        %v10910 = vmul.f32 %v10813, %v10813
        %v10911 = vmul.f32 %v10816, %v10816
        %v10912 = vmul.f32 %v10821, %v10821
        %v10913 = vmul.f32 %v10824, %v10824
        %v10914 = vmul.f32 %v10829, %v10829
        %v10915 = vmul.f32 %v10832, %v10832
        %v10916 = vmul.f32 %v10837, %v10837
        %v10917 = vmul.f32 %v10840, %v10840
        %v10918 = vmul.f32 %v10845, %v10845
        %v10919 = vmul.f32 %v10848, %v10848
        %v10920 = vadd.f32 %v10888, %v10889
        %v10921 = vadd.f32 %v10920, %v10890
        %v10922 = vadd.f32 %v10921, %v10891
        %v10923 = vadd.f32 %v10922, %v10892
        %v10924 = vadd.f32 %v10923, %v10893
        %v10925 = vadd.f32 %v10924, %v10894
        %v10926 = vadd.f32 %v10925, %v10895
        %v10927 = vadd.f32 %v10926, %v10896
        %v10928 = vadd.f32 %v10927, %v10897
        %v10929 = vadd.f32 %v10928, %v10898
        %v10930 = vadd.f32 %v10929, %v10899
        %v10931 = vadd.f32 %v10930, %v10900
        %v10932 = vadd.f32 %v10931, %v10901
        %v10933 = vadd.f32 %v10932, %v10902
        %v10934 = vadd.f32 %v10933, %v10903
        %v10935 = vadd.f32 %v10934, %v10904
        %v10936 = vadd.f32 %v10935, %v10905
        %v10937 = vadd.f32 %v10936, %v10906
        %v10938 = vadd.f32 %v10937, %v10907
        %v10939 = vadd.f32 %v10938, %v10908
        %v10940 = vadd.f32 %v10939, %v10909
        %v10941 = vadd.f32 %v10940, %v10910
        %v10942 = vadd.f32 %v10941, %v10911
        %v10943 = vadd.f32 %v10942, %v10912
        %v10944 = vadd.f32 %v10943, %v10913
        %v10945 = vadd.f32 %v10944, %v10914
        %v10946 = vadd.f32 %v10945, %v10915
        %v10947 = vadd.f32 %v10946, %v10916
        %v10948 = vadd.f32 %v10947, %v10917
        %v10949 = vadd.f32 %v10948, %v10918
        %v10950 = vadd.f32 %v10949, %v10919
        %v10951 = vrot.slane %v10950, 4
        %v10952 = vadd.f32 %v10950, %v10951
        %v10953 = vrot.slane %v10952, 2
        %v10954 = vadd.f32 %v10952, %v10953
        %v10955 = vrot.slane %v10954, 1
        %v10956 = vadd.f32 %v10954, %v10955
        %v10957 = vmul.f32 %v10887, 0.00390625
        %v10958 = vmul.f32 %v10956, 0.00390625
        %v10959 = vmul.f32 %v10957, %v10957
        %v10960 = vsub.f32 %v10958, %v10959
        %v10961 = vsub.f32 %v10725, %v10957
        %v10962 = vsub.f32 %v10728, %v10957
        %v10963 = vsub.f32 %v10733, %v10957
        %v10964 = vsub.f32 %v10736, %v10957
        %v10965 = vsub.f32 %v10741, %v10957
        %v10966 = vsub.f32 %v10744, %v10957
        %v10967 = vsub.f32 %v10749, %v10957
        %v10968 = vsub.f32 %v10752, %v10957
        %v10969 = vsub.f32 %v10757, %v10957
        %v10970 = vsub.f32 %v10760, %v10957
        %v10971 = vsub.f32 %v10765, %v10957
        %v10972 = vsub.f32 %v10768, %v10957
        %v10973 = vsub.f32 %v10773, %v10957
        %v10974 = vsub.f32 %v10776, %v10957
        %v10975 = vsub.f32 %v10781, %v10957
        %v10976 = vsub.f32 %v10784, %v10957
        %v10977 = vsub.f32 %v10789, %v10957
        %v10978 = vsub.f32 %v10792, %v10957
        %v10979 = vsub.f32 %v10797, %v10957
        %v10980 = vsub.f32 %v10800, %v10957
        %v10981 = vsub.f32 %v10805, %v10957
        %v10982 = vsub.f32 %v10808, %v10957
        %v10983 = vsub.f32 %v10813, %v10957
        %v10984 = vsub.f32 %v10816, %v10957
        %v10985 = vsub.f32 %v10821, %v10957
        %v10986 = vsub.f32 %v10824, %v10957
        %v10987 = vsub.f32 %v10829, %v10957
        %v10988 = vsub.f32 %v10832, %v10957
        %v10989 = vsub.f32 %v10837, %v10957
        %v10990 = vsub.f32 %v10840, %v10957
        %v10991 = vsub.f32 %v10845, %v10957
        %v10992 = vsub.f32 %v10848, %v10957
        %v10993 = vadd.f32 %v10960, 1e-05
        %v10994 = vrsqrt.pop %v10993
        %v10995 = vmul.f32 %v10961, %v10994
        %v10996 = vmul.f32 %v10962, %v10994
        %v10997 = vmul.f32 %v10963, %v10994
        %v10998 = vmul.f32 %v10964, %v10994
        %v10999 = vmul.f32 %v10965, %v10994
        %v11000 = vmul.f32 %v10966, %v10994
        %v11001 = vmul.f32 %v10967, %v10994
        %v11002 = vmul.f32 %v10968, %v10994
        %v11003 = vmul.f32 %v10969, %v10994
        %v11004 = vmul.f32 %v10970, %v10994
        %v11005 = vmul.f32 %v10971, %v10994
        %v11006 = vmul.f32 %v10972, %v10994
        %v11007 = vmul.f32 %v10973, %v10994
        %v11008 = vmul.f32 %v10974, %v10994
        %v11009 = vmul.f32 %v10975, %v10994
        %v11010 = vmul.f32 %v10976, %v10994
        %v11011 = vmul.f32 %v10977, %v10994
        %v11012 = vmul.f32 %v10978, %v10994
        %v11013 = vmul.f32 %v10979, %v10994
        %v11014 = vmul.f32 %v10980, %v10994
        %v11015 = vmul.f32 %v10981, %v10994
        %v11016 = vmul.f32 %v10982, %v10994
        %v11017 = vmul.f32 %v10983, %v10994
        %v11018 = vmul.f32 %v10984, %v10994
        %v11019 = vmul.f32 %v10985, %v10994
        %v11020 = vmul.f32 %v10986, %v10994
        %v11021 = vmul.f32 %v10987, %v10994
        %v11022 = vmul.f32 %v10988, %v10994
        %v11023 = vmul.f32 %v10989, %v10994
        %v11024 = vmul.f32 %v10990, %v10994
        %v11025 = vmul.f32 %v10991, %v10994
        %v11026 = vmul.f32 %v10992, %v10994
        %v11027 = vadd.f32 %v219, %v10995
        %v11028 = vadd.f32 %v220, %v10996
        %v11029 = vadd.f32 %v221, %v10997
        %v11030 = vadd.f32 %v222, %v10998
        %v11031 = vadd.f32 %v223, %v10999
        %v11032 = vadd.f32 %v224, %v11000
        %v11033 = vadd.f32 %v225, %v11001
        %v11034 = vadd.f32 %v226, %v11002
        %v11035 = vadd.f32 %v227, %v11003
        %v11036 = vadd.f32 %v228, %v11004
        %v11037 = vadd.f32 %v229, %v11005
        %v11038 = vadd.f32 %v230, %v11006
        %v11039 = vadd.f32 %v231, %v11007
        %v11040 = vadd.f32 %v232, %v11008
        %v11041 = vadd.f32 %v233, %v11009
        %v11042 = vadd.f32 %v234, %v11010
        %v11043 = vadd.f32 %v235, %v11011
        %v11044 = vadd.f32 %v236, %v11012
        %v11045 = vadd.f32 %v237, %v11013
        %v11046 = vadd.f32 %v238, %v11014
        %v11047 = vadd.f32 %v239, %v11015
        %v11048 = vadd.f32 %v240, %v11016
        %v11049 = vadd.f32 %v241, %v11017
        %v11050 = vadd.f32 %v242, %v11018
        %v11051 = vadd.f32 %v243, %v11019
        %v11052 = vadd.f32 %v244, %v11020
        %v11053 = vadd.f32 %v245, %v11021
        %v11054 = vadd.f32 %v246, %v11022
        %v11055 = vadd.f32 %v247, %v11023
        %v11056 = vadd.f32 %v248, %v11024
        %v11057 = vadd.f32 %v249, %v11025
        %v11058 = vadd.f32 %v250, %v11026
        %11059 = vst [vmem:[%s217] sm:$0xff] %v11027
        %11060 = vst [vmem:[%s217 + $0x8] sm:$0xff] %v11028
        %11061 = vst [vmem:[%s217 + $0x10] sm:$0xff] %v11029
        %11062 = vst [vmem:[%s217 + $0x18] sm:$0xff] %v11030
        %11063 = vst [vmem:[%s217 + $0x20] sm:$0xff] %v11031
        %11064 = vst [vmem:[%s217 + $0x28] sm:$0xff] %v11032
        %11065 = vst [vmem:[%s217 + $0x30] sm:$0xff] %v11033
        %11066 = vst [vmem:[%s217 + $0x38] sm:$0xff] %v11034
        %11067 = vst [vmem:[%s217 + $0x40] sm:$0xff] %v11035
        %11068 = vst [vmem:[%s217 + $0x48] sm:$0xff] %v11036
        %11069 = vst [vmem:[%s217 + $0x50] sm:$0xff] %v11037
        %11070 = vst [vmem:[%s217 + $0x58] sm:$0xff] %v11038
        %11071 = vst [vmem:[%s217 + $0x60] sm:$0xff] %v11039
        %11072 = vst [vmem:[%s217 + $0x68] sm:$0xff] %v11040
        %11073 = vst [vmem:[%s217 + $0x70] sm:$0xff] %v11041
        %11074 = vst [vmem:[%s217 + $0x78] sm:$0xff] %v11042
        %11075 = vst [vmem:[%s217 + $0x80] sm:$0xff] %v11043
        %11076 = vst [vmem:[%s217 + $0x88] sm:$0xff] %v11044
        %11077 = vst [vmem:[%s217 + $0x90] sm:$0xff] %v11045
        %11078 = vst [vmem:[%s217 + $0x98] sm:$0xff] %v11046
        %11079 = vst [vmem:[%s217 + $0xa0] sm:$0xff] %v11047
        %11080 = vst [vmem:[%s217 + $0xa8] sm:$0xff] %v11048
        %11081 = vst [vmem:[%s217 + $0xb0] sm:$0xff] %v11049
        %11082 = vst [vmem:[%s217 + $0xb8] sm:$0xff] %v11050
        %11083 = vst [vmem:[%s217 + $0xc0] sm:$0xff] %v11051
        %11084 = vst [vmem:[%s217 + $0xc8] sm:$0xff] %v11052
        %11085 = vst [vmem:[%s217 + $0xd0] sm:$0xff] %v11053
        %11086 = vst [vmem:[%s217 + $0xd8] sm:$0xff] %v11054
        %11087 = vst [vmem:[%s217 + $0xe0] sm:$0xff] %v11055
        %11088 = vst [vmem:[%s217 + $0xe8] sm:$0xff] %v11056
        %11089 = vst [vmem:[%s217 + $0xf0] sm:$0xff] %v11057
        %11090 = vst [vmem:[%s217 + $0xf8] sm:$0xff] %v11058
        %s11091 = sand.u32 %s97, 1
        %s11092 = scalar_lea.sflag [#allocation6], %s11091
        %s11093 = sand.u32 %s97, 1
        %s11094 = smul.addr %s11093, 256
        %s11095 = scalar_lea.vmem [#allocation10], %s11094
        // Predicated region
        $region45: #{tpu_custom_call.1} parent=31 // pred_check
          %p11096 = pneg %p107
        $region46: #{tpu_custom_call.1} parent=31 // pred_check_branch
          %11098 = sbr.rel (%p11096) target = $region48
        $region47: #{tpu_custom_call.1} parent=31 // pred_region
          %s11100 = ssub.s32 4096, 4096
          %11101 = vsyncadd %s11092, %s11100
          %s11102 = smul.addr %s21, 32
          %s11103 = smul.addr %s11102, 128
          %s11104 = scalar_lea.hbm %s3, %s11103
          %s11105 = sshll.u32 %s11095, 4
          %s11106 = int_to_ptr.vmem [resolvable:$true] %s11105
          %11111 = dma.vmem_to_hbm [thread:$0]  %s11106, 4096, %s11104, %s11092, 128, 128, 8
        $region48: #{tpu_custom_call.1} parent=31 // pred_fallthru
          _
      $region32: #{tpu_custom_call.1} parent=5 // pred_fallthru
        _
      %p11112 = scmp.le.s32.totalorder 2, %s16
      // Predicated region
      $region49: #{tpu_custom_call.1} parent=5 // pred_check
        %p11113 = pneg %p11112
      $region50: #{tpu_custom_call.1} parent=5 // pred_check_branch
        %11115 = sbr.rel (%p11113) target = $region52
      $region51: #{tpu_custom_call.1} parent=5 // pred_region
        %s11116 = ssub.s32 %s16, 2
        // Predicated region
        $region53: #{tpu_custom_call.1} parent=51 // pred_check
          %p11117 = pneg %p113
        $region54: #{tpu_custom_call.1} parent=51 // pred_check_branch
          %11119 = sbr.rel (%p11117) target = $region56
        $region55: #{tpu_custom_call.1} parent=51 // pred_region
          %s11120 = sand.u32 %s98, 1
          %s11121 = scalar_lea.sflag [#allocation6], %s11120
          %s11122 = sand.u32 %s98, 1
          %s11123 = smul.addr %s11122, 256
          %s11124 = scalar_lea.vmem [#allocation10], %s11123
          %11125 = dma.done %s11121, 4096
        $region56: #{tpu_custom_call.1} parent=51 // pred_fallthru
          _
      $region52: #{tpu_custom_call.1} parent=5 // pred_fallthru
        _
    $region6: #{tpu_custom_call.1} parent=1 // loop_footer
      %s20 = sadd.s32 1, %s16
    $region7: #{tpu_custom_call.1} parent=1 // loop_footer_branch
      %15 = sbr.rel target = $region3
    $region8: #{tpu_custom_call.1} parent=1 // loop_exit
      _
    %11126 = vsyncpa [#allocation5], 1
    %s11127 = scalar_lea.sflag [#allocation5], 1
    %11128 = vsyncpa %s11127, 1
    %11129 = vsyncpa [#allocation8], 1
    %11130 = vsyncpa [#allocation6], 1
    %s11131 = scalar_lea.sflag [#allocation6], 1
    %11132 = vsyncpa %s11131, 1

</llo_original>
